<compile_context>
chip_gen: v6e
topology: v6e:2x2x1
jax: 0.10.0
libtpu: 0.0.40
codegen_flags: <defaults>
</compile_context>

<pallas_src>
import functools

import numpy as np
import jax
import jax.numpy as jnp
from jax.experimental import pallas as pl
from jax.experimental.pallas import tpu as pltpu


def _round_up(x, m):
    return ((x + m - 1) // m) * m


def _largest_divisor_leq(n, cap):
    cap = max(1, min(n, cap))
    for d in range(cap, 0, -1):
        if n % d == 0:
            return d
    return 1


def _pick_vmem_limit():
    """64 MiB scoped VMEM on 128-MiB parts (v5e/v6e), 32 MiB otherwise (v7x)."""
    cap = 0
    try:
        info = pltpu.get_tpu_info()
        cap = int(getattr(info, "vmem_capacity_bytes", 0))
    except Exception:
        cap = 0
    if cap >= 128 * 1024 * 1024:
        return 64 * 1024 * 1024
    return 32 * 1024 * 1024


_VMEM_LIMIT = _pick_vmem_limit()


# ----------------------------------------------------------------------------
# Pallas kernel 1: 2-D tiled weight-stationary matmul + bias
#   out = W (Mp, K) @ X (K, N) + bias      (bf16 operands, f32 accumulate)
# ----------------------------------------------------------------------------
def _wsmm_bias_kernel(w_ref, b_ref, x_ref, o_ref, acc_ref):
    k = pl.program_id(1)

    @pl.when(k == 0)
    def _():
        # Bias folded into the accumulator init (saves one VPU pass at the end).
        acc_ref[...] = jnp.broadcast_to(b_ref[...], acc_ref.shape)

    acc_ref[...] += jnp.dot(w_ref[...], x_ref[...],
                            preferred_element_type=jnp.float32)

    @pl.when(k == pl.num_programs(1) - 1)
    def _():
        o_ref[...] = acc_ref[...].astype(o_ref.dtype)


def matmul_ws(w, bias, x, *, out_dtype=jnp.bfloat16, tn_max=512, tk_max=1024):
    """w: (M, K) f32, bias: (M,), x: (K, N) -> PADDED (Mp, Np) in out_dtype.

    Callers slice out the rows/columns they need (one slice, no double crop).
    """
    M, K = w.shape
    K2, N = x.shape
    assert K == K2
    Mp = _round_up(M, 16)                      # bf16 sublane packing
    if K <= tk_max:
        tk = _round_up(K, 16)
        Kp = tk
    else:
        tk = tk_max
        Kp = _round_up(K, tk)
    # N padded only to a multiple of 128; tn divides Np exactly (no ~2x waste).
    Np = _round_up(N, 128)
    q = Np // 128
    tn = 128 * _largest_divisor_leq(q, max(1, tn_max // 128))

    wp = jnp.pad(w.astype(jnp.float32), ((0, Mp - M), (0, Kp - K))).astype(jnp.bfloat16)
    bp = jnp.pad(bias.astype(jnp.float32), (0, Mp - M)).reshape(Mp, 1)
    xp = jnp.pad(x.astype(jnp.bfloat16), ((0, Kp - K), (0, Np - N)))

    out = pl.pallas_call(
        _wsmm_bias_kernel,
        out_shape=jax.ShapeDtypeStruct((Mp, Np), out_dtype),
        grid=(Np // tn, Kp // tk),
        in_specs=[
            pl.BlockSpec((Mp, tk), lambda n, k: (0, k)),   # weight (stationary)
            pl.BlockSpec((Mp, 1), lambda n, k: (0, 0)),    # bias
            pl.BlockSpec((tk, tn), lambda n, k: (k, n)),   # activations
        ],
        out_specs=pl.BlockSpec((Mp, tn), lambda n, k: (0, n)),
        scratch_shapes=[pltpu.VMEM((Mp, tn), jnp.float32)],
        compiler_params=pltpu.CompilerParams(
            dimension_semantics=("parallel", "arbitrary"),
            vmem_limit_bytes=_VMEM_LIMIT),
    )(wp, bp, xp)
    return out


# ----------------------------------------------------------------------------
# Pallas kernel 2: fused softmax(25) + sigmoid gate + CARAFE + gated blend,
# phase-wise at LOW resolution (consumes k1/k2 before the pixel-shuffle).
# ----------------------------------------------------------------------------
def _fade_fuse_kernel(de_ref, k1_ref, k2_ref, gl_ref, en_ref, out_ref, *, c_chunk):
    # de_ref : (1, tc, H+4, W+4)  bf16   low-res de, zero-padded by 2
    # k1_ref : (25, 4, 1, H, W)   bf16   stride-2 conv logits (per phase)
    # k2_ref : (25, 1, H, W)      bf16   stride-1 conv logits
    # gl_ref : (1, 1, H, W)       bf16   gate logits (pre-sigmoid, low-res)
    # en_ref : (1, 4, tc, H, W)   bf16   encoder features, phase layout
    # out_ref: (1, 4, tc, H, W)   bf16   blended output, phase layout
    tc = out_ref.shape[2]
    H, W = out_ref.shape[3], out_ref.shape[4]

    g = jax.nn.sigmoid(gl_ref[0, 0].astype(jnp.float32))          # (H, W)
    gi = 1.0 - g
    k2 = k2_ref[:, 0, :, :].astype(jnp.float32)                   # (25, H, W)

    for s in range(4):                                            # 4 upsample phases
        klog = k1_ref[:, s, 0, :, :].astype(jnp.float32) + k2     # (25, H, W)
        m = jnp.max(klog, axis=0, keepdims=True)
        e = jnp.exp(klog - m)
        kern = e * pl.reciprocal(jnp.sum(e, axis=0, keepdims=True), approx=True)

        # Register accumulation: channels processed in vreg-sized sub-chunks,
        # one store per chunk (no VMEM accumulator round-trip).
        for c0 in range(0, tc, c_chunk):
            acc = jnp.zeros((c_chunk, H, W), jnp.float32)
            for kh in range(5):
                for kw in range(5):
                    win = de_ref[0, c0:c0 + c_chunk,
                                 kh:kh + H, kw:kw + W].astype(jnp.float32)
                    acc = acc + win * kern[kh * 5 + kw]
            en_s = en_ref[0, s, c0:c0 + c_chunk].astype(jnp.float32)
            out_ref[0, s, c0:c0 + c_chunk] = (g * en_s + gi * acc).astype(out_ref.dtype)


def fade_fused(de_pad, k1, k2, gate_logit, en_ph):
    """de_pad (B,C,H+4,W+4), k1 (25,4,B,H,W), k2 (25,B,H,W),
    gate_logit (B,1,H,W), en_ph (B,4,C,H,W)  -> out_ph (B,4,C,H,W) bf16."""
    B, C, Hp, Wp = de_pad.shape
    H, W = Hp - 4, Wp - 4

    # Channel tile sized against the scoped-VMEM budget, counting the untiled
    # 25-channel logit blocks and double buffering of the channel-tiled blocks.
    per_c = 2 * (Hp * Wp * 2 + 4 * H * W * 2 + 4 * H * W * 2)       # de + en + out
    fixed = 2 * ((25 * 4 + 25 + 1) * H * W * 2)                     # k1 + k2 + gate
    budget = (_VMEM_LIMIT * 3) // 5
    cap_vmem = max(1, (budget - fixed) // per_c)
    vregs_per_chan = ((H + 7) // 8) * ((W + 127) // 128)
    c_chunk_target = max(1, 16 // vregs_per_chan)
    tc = _largest_divisor_leq(C, max(1, min(C, cap_vmem, 4 * c_chunk_target)))
    c_chunk = _largest_divisor_leq(tc, c_chunk_target)

    kernel = functools.partial(_fade_fuse_kernel, c_chunk=c_chunk)
    return pl.pallas_call(
        kernel,
        out_shape=jax.ShapeDtypeStruct((B, 4, C, H, W), jnp.bfloat16),
        grid=(B, C // tc),
        in_specs=[
            pl.BlockSpec((1, tc, Hp, Wp), lambda b, c: (b, c, 0, 0)),
            pl.BlockSpec((25, 4, 1, H, W), lambda b, c: (0, 0, b, 0, 0)),
            pl.BlockSpec((25, 1, H, W), lambda b, c: (0, b, 0, 0)),
            pl.BlockSpec((1, 1, H, W), lambda b, c: (b, 0, 0, 0)),
            pl.BlockSpec((1, 4, tc, H, W), lambda b, c: (b, 0, c, 0, 0)),
        ],
        out_specs=pl.BlockSpec((1, 4, tc, H, W), lambda b, c: (b, 0, c, 0, 0)),
        compiler_params=pltpu.CompilerParams(
            dimension_semantics=("parallel", "parallel"),
            vmem_limit_bytes=_VMEM_LIMIT),
    )(de_pad, k1, k2, gate_logit, en_ph)


# ----------------------------------------------------------------------------
# Plain-JAX glue (layout / im2col only) driving the Pallas kernels
# ----------------------------------------------------------------------------
def fade_forward(en, de, p):
    B, Cen, H2, W2 = en.shape
    _, Cde, H, W = de.shape
    E = p["w1_en"].shape[0]
    bf = jnp.bfloat16

    # ---- 1x1 compressions: channel-major, batch folded into the lane axis ----
    en_cm = jnp.transpose(en.astype(bf), (1, 0, 2, 3)).reshape(Cen, B * H2 * W2)
    de_cm = jnp.transpose(de.astype(bf), (1, 0, 2, 3)).reshape(Cde, B * H * W)

    ce_p = matmul_ws(p["w1_en"], p["b1_en"], en_cm)                     # (Ep, Np)
    ce = ce_p[:E, :B * H2 * W2].reshape(E, B, H2, W2)                   # bf16

    # conv1_de (no bias) + the 1x1 gate conv share `de`: one matmul, Cout=E+1.
    w_de = jnp.concatenate([p["w1_de"], p["wg"]], axis=0)
    b_de = jnp.concatenate([jnp.zeros((E,), jnp.float32), p["bg"]], axis=0)
    cdg_p = matmul_ws(w_de, b_de, de_cm)
    cd = cdg_p[:E, :B * H * W].reshape(E, B, H, W)
    gate_logit = cdg_p[E:E + 1, :B * H * W].reshape(B, 1, H, W)         # free reshape

    # ---- merged 3x3 kernel-generator convs (same (25, E*9) weight) ----------
    # F.pad(pad=[l,r,t,b]) -> ((top,bottom),(left,right)) on (H, W)
    pads = [((1, 0), (1, 0)), ((1, 0), (0, 1)), ((0, 1), (1, 0)), ((0, 1), (0, 1))]
    pad_v = jnp.stack([jnp.pad(ce, ((0, 0), (0, 0), ph, pw)) for ph, pw in pads],
                      axis=0)                                           # (4,E,B,Hp,Wp)
    Hp, Wp = H2 + 1, W2 + 1
    # reference einops '(c scale_2)' channel split: flat (v*E+e) reread as (c*4+s)
    pe_cs = pad_v.reshape(E, 4, B, Hp, Wp)

    taps1 = [pe_cs[:, :, :, dh:dh + 2 * H - 1:2, dw:dw + 2 * W - 1:2]   # stride-2
             for dh in range(3) for dw in range(3)]
    xk1 = jnp.stack(taps1, axis=1).reshape(E * 9, 4 * B * H * W)

    cd_pad = jnp.pad(cd, ((0, 0), (0, 0), (1, 1), (1, 1)))
    taps2 = [cd_pad[:, :, dh:dh + H, dw:dw + W]                         # stride-1
             for dh in range(3) for dw in range(3)]
    xk2 = jnp.stack(taps2, axis=1).reshape(E * 9, B * H * W)

    xk = jnp.concatenate([xk1, xk2], axis=1)                            # (E*9, 5BHW)
    kk_p = matmul_ws(p["w2"].reshape(25, E * 9), p["b2"], xk)
    n1 = 4 * B * H * W
    k1 = kk_p[:25, :n1].reshape(25, 4, B, H, W)                         # bf16
    k2 = kk_p[:25, n1:n1 + B * H * W].reshape(25, B, H, W)              # bf16

    # ---- fused softmax + gate + CARAFE + blend, phase-wise at low res -------
    de_pad_lo = jnp.pad(de.astype(bf), ((0, 0), (0, 0), (2, 2), (2, 2)))
    en_ph = (en.astype(bf).reshape(B, Cde, H, 2, W, 2)
             .transpose(0, 3, 5, 1, 2, 4).reshape(B, 4, Cde, H, W))
    out_ph = fade_fused(de_pad_lo, k1, k2, gate_logit, en_ph)           # (B,4,C,H,W)

    # pure layout: phase layout -> (B, C, 2H, 2W)
    out = (out_ph.reshape(B, 2, 2, Cde, H, W)
           .transpose(0, 3, 4, 1, 5, 2)
           .reshape(B, Cde, 2 * H, 2 * W)).astype(jnp.float32)
    return out


# ----------------------------------------------------------------------------
# Pure-JAX reference (mirrors the bf16 rounding points of the kernel path)
# ----------------------------------------------------------------------------
def fade_forward_ref(en, de, p):
    HI = jax.lax.Precision.HIGHEST
    bf = lambda t: t.astype(jnp.bfloat16).astype(jnp.float32)
    r16 = bf                                                    # round-to-bf16
    B, C, H, W = de.shape
    E = p["w1_en"].shape[0]

    ce = r16(jnp.einsum("oc,bchw->bohw", bf(p["w1_en"]), bf(en), precision=HI)
             + p["b1_en"][None, :, None, None])
    cd = r16(jnp.einsum("oc,bchw->bohw", bf(p["w1_de"]), bf(de), precision=HI))
    gate_logit = r16(jnp.einsum("oc,bchw->bohw", bf(p["wg"]), bf(de), precision=HI)
                     + p["bg"][None, :, None, None])
    gate = jax.nn.sigmoid(jnp.repeat(jnp.repeat(gate_logit, 2, axis=2), 2, axis=3))

    pads = [((1, 0), (1, 0)), ((1, 0), (0, 1)), ((0, 1), (1, 0)), ((0, 1), (0, 1))]
    pad_en = jnp.concatenate(
        [jnp.pad(ce, ((0, 0), (0, 0), ph, pw)) for ph, pw in pads], axis=1)
    Hp, Wp = 2 * H + 1, 2 * W + 1
    pe = pad_en.reshape(B, E, 4, Hp, Wp).transpose(0, 2, 1, 3, 4).reshape(B * 4, E, Hp, Wp)

    dn = ("NCHW", "OIHW", "NCHW")
    k1 = r16(jax.lax.conv_general_dilated(bf(pe), bf(p["w2"]), (2, 2), "VALID",
                                          dimension_numbers=dn, precision=HI)
             + p["b2"][None, :, None, None])
    k2 = r16(jax.lax.conv_general_dilated(bf(cd), bf(p["w2"]), (1, 1), ((1, 1), (1, 1)),
                                          dimension_numbers=dn, precision=HI)
             + p["b2"][None, :, None, None])
    k = k1.reshape(B, 4, 25, H, W) + k2[:, None]
    klog = (k.reshape(B, 2, 2, 25, H, W)
            .transpose(0, 3, 4, 1, 5, 2)
            .reshape(B, 25, 2 * H, 2 * W))
    kern = jax.nn.softmax(klog, axis=1)

    xp = jnp.pad(bf(de), ((0, 0), (0, 0), (2, 2), (2, 2)))
    acc = jnp.zeros((B, C, 2 * H, 2 * W), jnp.float32)
    for kh in range(5):
        for kw in range(5):
            win = xp[:, :, kh:kh + H, kw:kw + W]
            win_up = jnp.repeat(jnp.repeat(win, 2, axis=2), 2, axis=3)
            acc = acc + win_up * kern[:, kh * 5 + kw][:, None]
    return r16(gate * bf(en) + (1.0 - gate) * acc)


# ----------------------------------------------------------------------------
# Deterministic parameter init (shapes from FADE.__init__; synthetic weights)
# ----------------------------------------------------------------------------
def init_fade_params(key, c_en, c_de, embedding_dim=64, up_k=5):
    E, K2 = embedding_dim, up_k * up_k
    ks = jax.random.split(key, 6)

    def xavier_u(k, shape, fi, fo):
        lim = (6.0 / (fi + fo)) ** 0.5
        return jax.random.uniform(k, shape, jnp.float32, -lim, lim)

    def xavier_n(k, shape, fi, fo):
        return jax.random.normal(k, shape, jnp.float32) * (2.0 / (fi + fo)) ** 0.5

    return dict(
        wg=xavier_u(ks[0], (1, c_de), c_de, 1),            # gate 1x1 (Cout, Cin)
        bg=jnp.zeros((1,), jnp.float32),
        w1_en=xavier_u(ks[1], (E, c_en), c_en, E),         # conv1_en 1x1
        b1_en=xavier_u(ks[2], (E,), E, E) * 0.1,
        w1_de=xavier_u(ks[3], (E, c_de), c_de, E),         # conv1_de 1x1 (no bias)
        w2=xavier_n(ks[4], (K2, E, 3, 3), E * 9, K2 * 9),  # conv2_kernels
        b2=jnp.zeros((K2,), jnp.float32),
    )


# ----------------------------------------------------------------------------
if __name__ == "__main__":
    key = jax.random.PRNGKey(0)
    B, C, H, W = 2, 4, 8, 8                    # de: (B, C, H, W); en: (B, C, 2H, 2W)
    k_en, k_de, k_p = jax.random.split(key, 3)
    en = jax.random.normal(k_en, (B, C, 2 * H, 2 * W), jnp.float32)
    de = jax.random.normal(k_de, (B, C, H, W), jnp.float32)
    params = init_fade_params(k_p, c_en=C, c_de=C, embedding_dim=64, up_k=5)

    out = jax.block_until_ready(jax.jit(fade_forward)(en, de, params))
    assert out.shape == (B, C, 2 * H, 2 * W) and out.dtype == jnp.float32

    ref = np.asarray(fade_forward_ref(en, de, params))
    # Tolerance covers bf16 MXU operands / bf16 intermediate I/O (f32 math) and
    # the approx reciprocal in the softmax; layout/indexing bugs would be O(0.1+).
    np.testing.assert_allclose(np.asarray(out), ref, atol=2e-2, rtol=2e-2)

    print("KERNEL_OK")
</pallas_src>

<mosaic_0001>
module attributes {stable_mosaic.version = 11 : i64} {
  func.func @_wsmm_bias_kernel(%arg0: i32, %arg1: i32, %arg2: memref<64x16xbf16, #tpu.memory_space<vmem>>, %arg3: memref<64x1xf32, #tpu.memory_space<vmem>>, %arg4: memref<16x512xbf16, #tpu.memory_space<vmem>>, %arg5: memref<64x512xbf16, #tpu.memory_space<vmem>>, %arg6: memref<64x512xf32, #tpu.memory_space<vmem>>) attributes {dimension_semantics = [#tpu.dimension_semantics<parallel>, #tpu.dimension_semantics<arbitrary>], iteration_bounds = array<i64: 1, 1>, scalar_prefetch = 0 : i64, scratch_operands = 1 : i64, tpu.core_type = #tpu.core_type<tc>, window_params = [{transform_indices = @transform_0, window_bounds = array<i64: 64, 16>}, {pipeline_mode = #tpu.pipeline_mode<synchronous>, transform_indices = @transform_1, window_bounds = array<i64: 64, 1>}, {transform_indices = @transform_2, window_bounds = array<i64: 16, 512>}, {transform_indices = @transform_3, window_bounds = array<i64: 64, 512>}]} {
    %c0_i32 = arith.constant 0 : i32
    %0 = arith.cmpi eq, %arg1, %c0_i32 : i32
    %1 = arith.extui %0 : i1 to i32
    %c0_i32_0 = arith.constant 0 : i32
    %2 = arith.cmpi ne, %1, %c0_i32_0 : i32
    scf.if %2 {
      %c0_10 = arith.constant 0 : index
      %c0_11 = arith.constant 0 : index
      %12 = vector.load %arg3[%c0_10, %c0_11] : memref<64x1xf32, #tpu.memory_space<vmem>>, vector<64x1xf32>
      %13 = vector.shape_cast %12 : vector<64x1xf32> to vector<64x1xf32>
      %14 = vector.broadcast %13 : vector<64x1xf32> to vector<64x512xf32>
      %c0_12 = arith.constant 0 : index
      %c0_13 = arith.constant 0 : index
      %15 = vector.load %arg6[%c0_12, %c0_13] : memref<64x512xf32, #tpu.memory_space<vmem>>, vector<64x512xf32>
      tpu.vector_store %arg6[%c0_12, %c0_13], %14 {strides = array<i32>} : memref<64x512xf32, #tpu.memory_space<vmem>>, vector<64x512xf32>,
    } else {
    }
    %c0 = arith.constant 0 : index
    %c0_1 = arith.constant 0 : index
    %3 = vector.load %arg6[%c0, %c0_1] : memref<64x512xf32, #tpu.memory_space<vmem>>, vector<64x512xf32>
    %c0_2 = arith.constant 0 : index
    %c0_3 = arith.constant 0 : index
    %4 = vector.load %arg2[%c0_2, %c0_3] : memref<64x16xbf16, #tpu.memory_space<vmem>>, vector<64x16xbf16>
    %c0_4 = arith.constant 0 : index
    %c0_5 = arith.constant 0 : index
    %5 = vector.load %arg4[%c0_4, %c0_5] : memref<16x512xbf16, #tpu.memory_space<vmem>>, vector<16x512xbf16>
    %cst = arith.constant dense<0.000000e+00> : vector<64x512xf32>
    %6 = tpu.matmul %4, %5, %cst {dimension_numbers = #tpu.dot_dimension_numbers<[1], [0], [0], [1], [0, 0, 1, 1], [], []>} : vector<64x16xbf16>, vector<16x512xbf16>, vector<64x512xf32> -> vector<64x512xf32>
    %7 = arith.addf %3, %6 : vector<64x512xf32>
    %c0_6 = arith.constant 0 : index
    %c0_7 = arith.constant 0 : index
    %8 = vector.load %arg6[%c0_6, %c0_7] : memref<64x512xf32, #tpu.memory_space<vmem>>, vector<64x512xf32>
    tpu.vector_store %arg6[%c0_6, %c0_7], %7 {strides = array<i32>} : memref<64x512xf32, #tpu.memory_space<vmem>>, vector<64x512xf32>,
    %c0_i32_8 = arith.constant 0 : i32
    %9 = arith.cmpi eq, %arg1, %c0_i32_8 : i32
    %10 = arith.extui %9 : i1 to i32
    %c0_i32_9 = arith.constant 0 : i32
    %11 = arith.cmpi ne, %10, %c0_i32_9 : i32
    scf.if %11 {
      %c0_10 = arith.constant 0 : index
      %c0_11 = arith.constant 0 : index
      %12 = vector.load %arg6[%c0_10, %c0_11] : memref<64x512xf32, #tpu.memory_space<vmem>>, vector<64x512xf32>
      %13 = arith.truncf %12 : vector<64x512xf32> to vector<64x512xbf16>
      %c0_12 = arith.constant 0 : index
      %c0_13 = arith.constant 0 : index
      %14 = vector.load %arg5[%c0_12, %c0_13] : memref<64x512xbf16, #tpu.memory_space<vmem>>, vector<64x512xbf16>
      tpu.vector_store %arg5[%c0_12, %c0_13], %13 {strides = array<i32>} : memref<64x512xbf16, #tpu.memory_space<vmem>>, vector<64x512xbf16>,
    } else {
    }
    return
  }
  func.func @transform_0(%arg0: i32, %arg1: i32) -> (i32, i32) {
    %c0_i32 = arith.constant 0 : i32
    %c0_i32_0 = arith.constant 0 : i32
    return %c0_i32, %arg1 : i32, i32
  }
  func.func @transform_1(%arg0: i32, %arg1: i32) -> (i32, i32) {
    %c0_i32 = arith.constant 0 : i32
    %c0_i32_0 = arith.constant 0 : i32
    %c0_i32_1 = arith.constant 0 : i32
    return %c0_i32, %c0_i32_0 : i32, i32
  }
  func.func @transform_2(%arg0: i32, %arg1: i32) -> (i32, i32) {
    %c0_i32 = arith.constant 0 : i32
    return %arg1, %arg0 : i32, i32
  }
  func.func @transform_3(%arg0: i32, %arg1: i32) -> (i32, i32) {
    %c0_i32 = arith.constant 0 : i32
    %c0_i32_0 = arith.constant 0 : i32
    return %c0_i32, %arg0 : i32, i32
  }
}

module attributes {stable_mosaic.version = 11 : i64} {
  func.func @_wsmm_bias_kernel(%arg0: i32, %arg1: i32, %arg2: memref<80x16xbf16, #tpu.memory_space<vmem>>, %arg3: memref<80x1xf32, #tpu.memory_space<vmem>>, %arg4: memref<16x128xbf16, #tpu.memory_space<vmem>>, %arg5: memref<80x128xbf16, #tpu.memory_space<vmem>>, %arg6: memref<80x128xf32, #tpu.memory_space<vmem>>) attributes {dimension_semantics = [#tpu.dimension_semantics<parallel>, #tpu.dimension_semantics<arbitrary>], iteration_bounds = array<i64: 1, 1>, scalar_prefetch = 0 : i64, scratch_operands = 1 : i64, tpu.core_type = #tpu.core_type<tc>, window_params = [{transform_indices = @transform_0, window_bounds = array<i64: 80, 16>}, {pipeline_mode = #tpu.pipeline_mode<synchronous>, transform_indices = @transform_1, window_bounds = array<i64: 80, 1>}, {transform_indices = @transform_2, window_bounds = array<i64: 16, 128>}, {transform_indices = @transform_3, window_bounds = array<i64: 80, 128>}]} {
    %c0_i32 = arith.constant 0 : i32
    %0 = arith.cmpi eq, %arg1, %c0_i32 : i32
    %1 = arith.extui %0 : i1 to i32
    %c0_i32_0 = arith.constant 0 : i32
    %2 = arith.cmpi ne, %1, %c0_i32_0 : i32
    scf.if %2 {
      %c0_10 = arith.constant 0 : index
      %c0_11 = arith.constant 0 : index
      %12 = vector.load %arg3[%c0_10, %c0_11] : memref<80x1xf32, #tpu.memory_space<vmem>>, vector<80x1xf32>
      %13 = vector.shape_cast %12 : vector<80x1xf32> to vector<80x1xf32>
      %14 = vector.broadcast %13 : vector<80x1xf32> to vector<80x128xf32>
      %c0_12 = arith.constant 0 : index
      %c0_13 = arith.constant 0 : index
      %15 = vector.load %arg6[%c0_12, %c0_13] : memref<80x128xf32, #tpu.memory_space<vmem>>, vector<80x128xf32>
      tpu.vector_store %arg6[%c0_12, %c0_13], %14 {strides = array<i32>} : memref<80x128xf32, #tpu.memory_space<vmem>>, vector<80x128xf32>,
    } else {
    }
    %c0 = arith.constant 0 : index
    %c0_1 = arith.constant 0 : index
    %3 = vector.load %arg6[%c0, %c0_1] : memref<80x128xf32, #tpu.memory_space<vmem>>, vector<80x128xf32>
    %c0_2 = arith.constant 0 : index
    %c0_3 = arith.constant 0 : index
    %4 = vector.load %arg2[%c0_2, %c0_3] : memref<80x16xbf16, #tpu.memory_space<vmem>>, vector<80x16xbf16>
    %c0_4 = arith.constant 0 : index
    %c0_5 = arith.constant 0 : index
    %5 = vector.load %arg4[%c0_4, %c0_5] : memref<16x128xbf16, #tpu.memory_space<vmem>>, vector<16x128xbf16>
    %cst = arith.constant dense<0.000000e+00> : vector<80x128xf32>
    %6 = tpu.matmul %4, %5, %cst {dimension_numbers = #tpu.dot_dimension_numbers<[1], [0], [0], [1], [0, 0, 1, 1], [], []>} : vector<80x16xbf16>, vector<16x128xbf16>, vector<80x128xf32> -> vector<80x128xf32>
    %7 = arith.addf %3, %6 : vector<80x128xf32>
    %c0_6 = arith.constant 0 : index
    %c0_7 = arith.constant 0 : index
    %8 = vector.load %arg6[%c0_6, %c0_7] : memref<80x128xf32, #tpu.memory_space<vmem>>, vector<80x128xf32>
    tpu.vector_store %arg6[%c0_6, %c0_7], %7 {strides = array<i32>} : memref<80x128xf32, #tpu.memory_space<vmem>>, vector<80x128xf32>,
    %c0_i32_8 = arith.constant 0 : i32
    %9 = arith.cmpi eq, %arg1, %c0_i32_8 : i32
    %10 = arith.extui %9 : i1 to i32
    %c0_i32_9 = arith.constant 0 : i32
    %11 = arith.cmpi ne, %10, %c0_i32_9 : i32
    scf.if %11 {
      %c0_10 = arith.constant 0 : index
      %c0_11 = arith.constant 0 : index
      %12 = vector.load %arg6[%c0_10, %c0_11] : memref<80x128xf32, #tpu.memory_space<vmem>>, vector<80x128xf32>
      %13 = arith.truncf %12 : vector<80x128xf32> to vector<80x128xbf16>
      %c0_12 = arith.constant 0 : index
      %c0_13 = arith.constant 0 : index
      %14 = vector.load %arg5[%c0_12, %c0_13] : memref<80x128xbf16, #tpu.memory_space<vmem>>, vector<80x128xbf16>
      tpu.vector_store %arg5[%c0_12, %c0_13], %13 {strides = array<i32>} : memref<80x128xbf16, #tpu.memory_space<vmem>>, vector<80x128xbf16>,
    } else {
    }
    return
  }
  func.func @transform_0(%arg0: i32, %arg1: i32) -> (i32, i32) {
    %c0_i32 = arith.constant 0 : i32
    %c0_i32_0 = arith.constant 0 : i32
    return %c0_i32, %arg1 : i32, i32
  }
  func.func @transform_1(%arg0: i32, %arg1: i32) -> (i32, i32) {
    %c0_i32 = arith.constant 0 : i32
    %c0_i32_0 = arith.constant 0 : i32
    %c0_i32_1 = arith.constant 0 : i32
    return %c0_i32, %c0_i32_0 : i32, i32
  }
  func.func @transform_2(%arg0: i32, %arg1: i32) -> (i32, i32) {
    %c0_i32 = arith.constant 0 : i32
    return %arg1, %arg0 : i32, i32
  }
  func.func @transform_3(%arg0: i32, %arg1: i32) -> (i32, i32) {
    %c0_i32 = arith.constant 0 : i32
    %c0_i32_0 = arith.constant 0 : i32
    return %c0_i32, %arg0 : i32, i32
  }
}

module attributes {stable_mosaic.version = 11 : i64} {
  func.func @_wsmm_bias_kernel(%arg0: i32, %arg1: i32, %arg2: memref<32x576xbf16, #tpu.memory_space<vmem>>, %arg3: memref<32x1xf32, #tpu.memory_space<vmem>>, %arg4: memref<576x128xbf16, #tpu.memory_space<vmem>>, %arg5: memref<32x128xbf16, #tpu.memory_space<vmem>>, %arg6: memref<32x128xf32, #tpu.memory_space<vmem>>) attributes {dimension_semantics = [#tpu.dimension_semantics<parallel>, #tpu.dimension_semantics<arbitrary>], iteration_bounds = array<i64: 5, 1>, scalar_prefetch = 0 : i64, scratch_operands = 1 : i64, tpu.core_type = #tpu.core_type<tc>, window_params = [{transform_indices = @transform_0, window_bounds = array<i64: 32, 576>}, {pipeline_mode = #tpu.pipeline_mode<synchronous>, transform_indices = @transform_1, window_bounds = array<i64: 32, 1>}, {transform_indices = @transform_2, window_bounds = array<i64: 576, 128>}, {transform_indices = @transform_3, window_bounds = array<i64: 32, 128>}]} {
    %c0_i32 = arith.constant 0 : i32
    %0 = arith.cmpi eq, %arg1, %c0_i32 : i32
    %1 = arith.extui %0 : i1 to i32
    %c0_i32_0 = arith.constant 0 : i32
    %2 = arith.cmpi ne, %1, %c0_i32_0 : i32
    scf.if %2 {
      %c0_10 = arith.constant 0 : index
      %c0_11 = arith.constant 0 : index
      %12 = vector.load %arg3[%c0_10, %c0_11] : memref<32x1xf32, #tpu.memory_space<vmem>>, vector<32x1xf32>
      %13 = vector.shape_cast %12 : vector<32x1xf32> to vector<32x1xf32>
      %14 = vector.broadcast %13 : vector<32x1xf32> to vector<32x128xf32>
      %c0_12 = arith.constant 0 : index
      %c0_13 = arith.constant 0 : index
      %15 = vector.load %arg6[%c0_12, %c0_13] : memref<32x128xf32, #tpu.memory_space<vmem>>, vector<32x128xf32>
      tpu.vector_store %arg6[%c0_12, %c0_13], %14 {strides = array<i32>} : memref<32x128xf32, #tpu.memory_space<vmem>>, vector<32x128xf32>,
    } else {
    }
    %c0 = arith.constant 0 : index
    %c0_1 = arith.constant 0 : index
    %3 = vector.load %arg6[%c0, %c0_1] : memref<32x128xf32, #tpu.memory_space<vmem>>, vector<32x128xf32>
    %c0_2 = arith.constant 0 : index
    %c0_3 = arith.constant 0 : index
    %4 = vector.load %arg2[%c0_2, %c0_3] : memref<32x576xbf16, #tpu.memory_space<vmem>>, vector<32x576xbf16>
    %c0_4 = arith.constant 0 : index
    %c0_5 = arith.constant 0 : index
    %5 = vector.load %arg4[%c0_4, %c0_5] : memref<576x128xbf16, #tpu.memory_space<vmem>>, vector<576x128xbf16>
    %cst = arith.constant dense<0.000000e+00> : vector<32x128xf32>
    %6 = tpu.matmul %4, %5, %cst {dimension_numbers = #tpu.dot_dimension_numbers<[1], [0], [0], [1], [0, 0, 1, 1], [], []>} : vector<32x576xbf16>, vector<576x128xbf16>, vector<32x128xf32> -> vector<32x128xf32>
    %7 = arith.addf %3, %6 : vector<32x128xf32>
    %c0_6 = arith.constant 0 : index
    %c0_7 = arith.constant 0 : index
    %8 = vector.load %arg6[%c0_6, %c0_7] : memref<32x128xf32, #tpu.memory_space<vmem>>, vector<32x128xf32>
    tpu.vector_store %arg6[%c0_6, %c0_7], %7 {strides = array<i32>} : memref<32x128xf32, #tpu.memory_space<vmem>>, vector<32x128xf32>,
    %c0_i32_8 = arith.constant 0 : i32
    %9 = arith.cmpi eq, %arg1, %c0_i32_8 : i32
    %10 = arith.extui %9 : i1 to i32
    %c0_i32_9 = arith.constant 0 : i32
    %11 = arith.cmpi ne, %10, %c0_i32_9 : i32
    scf.if %11 {
      %c0_10 = arith.constant 0 : index
      %c0_11 = arith.constant 0 : index
      %12 = vector.load %arg6[%c0_10, %c0_11] : memref<32x128xf32, #tpu.memory_space<vmem>>, vector<32x128xf32>
      %13 = arith.truncf %12 : vector<32x128xf32> to vector<32x128xbf16>
      %c0_12 = arith.constant 0 : index
      %c0_13 = arith.constant 0 : index
      %14 = vector.load %arg5[%c0_12, %c0_13] : memref<32x128xbf16, #tpu.memory_space<vmem>>, vector<32x128xbf16>
      tpu.vector_store %arg5[%c0_12, %c0_13], %13 {strides = array<i32>} : memref<32x128xbf16, #tpu.memory_space<vmem>>, vector<32x128xbf16>,
    } else {
    }
    return
  }
  func.func @transform_0(%arg0: i32, %arg1: i32) -> (i32, i32) {
    %c0_i32 = arith.constant 0 : i32
    %c0_i32_0 = arith.constant 0 : i32
    return %c0_i32, %arg1 : i32, i32
  }
  func.func @transform_1(%arg0: i32, %arg1: i32) -> (i32, i32) {
    %c0_i32 = arith.constant 0 : i32
    %c0_i32_0 = arith.constant 0 : i32
    %c0_i32_1 = arith.constant 0 : i32
    return %c0_i32, %c0_i32_0 : i32, i32
  }
  func.func @transform_2(%arg0: i32, %arg1: i32) -> (i32, i32) {
    %c0_i32 = arith.constant 0 : i32
    return %arg1, %arg0 : i32, i32
  }
  func.func @transform_3(%arg0: i32, %arg1: i32) -> (i32, i32) {
    %c0_i32 = arith.constant 0 : i32
    %c0_i32_0 = arith.constant 0 : i32
    return %c0_i32, %arg0 : i32, i32
  }
}

module attributes {stable_mosaic.version = 11 : i64} {
  func.func @_fade_fuse_kernel(%arg0: i32, %arg1: i32, %arg2: memref<1x4x12x12xbf16, #tpu.memory_space<vmem>>, %arg3: memref<25x4x1x8x8xbf16, #tpu.memory_space<vmem>>, %arg4: memref<25x1x8x8xbf16, #tpu.memory_space<vmem>>, %arg5: memref<1x1x8x8xbf16, #tpu.memory_space<vmem>>, %arg6: memref<1x4x4x8x8xbf16, #tpu.memory_space<vmem>>, %arg7: memref<1x4x4x8x8xbf16, #tpu.memory_space<vmem>>) attributes {dimension_semantics = [#tpu.dimension_semantics<parallel>, #tpu.dimension_semantics<parallel>], iteration_bounds = array<i64: 2, 1>, scalar_prefetch = 0 : i64, scratch_operands = 0 : i64, tpu.core_type = #tpu.core_type<tc>, window_params = [{transform_indices = @transform_0, window_bounds = array<i64: 1, 4, 12, 12>}, {transform_indices = @transform_1, window_bounds = array<i64: 25, 4, 1, 8, 8>}, {transform_indices = @transform_2, window_bounds = array<i64: 25, 1, 8, 8>}, {transform_indices = @transform_3, window_bounds = array<i64: 1, 1, 8, 8>}, {transform_indices = @transform_4, window_bounds = array<i64: 1, 4, 4, 8, 8>}, {transform_indices = @transform_5, window_bounds = array<i64: 1, 4, 4, 8, 8>}]} {
    %c0 = arith.constant 0 : index
    %c0_0 = arith.constant 0 : index
    %c0_1 = arith.constant 0 : index
    %c0_2 = arith.constant 0 : index
    %0 = vector.load %arg5[%c0, %c0_0, %c0_1, %c0_2] : memref<1x1x8x8xbf16, #tpu.memory_space<vmem>>, vector<1x1x8x8xbf16>
    %1 = vector.shape_cast %0 : vector<1x1x8x8xbf16> to vector<8x8xbf16>
    %2 = arith.extf %1 : vector<8x8xbf16> to vector<8x8xf32>
    %3 = arith.negf %2 : vector<8x8xf32>
    %4 = math.exp %3 : vector<8x8xf32>
    %cst = arith.constant 1.000000e+00 : f32
    %5 = vector.broadcast %cst : f32 to vector<8x8xf32>
    %6 = arith.addf %5, %4 : vector<8x8xf32>
    %7 = arith.divf %5, %6 : vector<8x8xf32>
    %cst_3 = arith.constant 1.000000e+00 : f32
    %8 = vector.broadcast %cst_3 : f32 to vector<8x8xf32>
    %9 = arith.subf %8, %7 : vector<8x8xf32>
    %c0_4 = arith.constant 0 : index
    %c0_5 = arith.constant 0 : index
    %c0_6 = arith.constant 0 : index
    %c0_7 = arith.constant 0 : index
    %10 = vector.load %arg4[%c0_4, %c0_5, %c0_6, %c0_7] : memref<25x1x8x8xbf16, #tpu.memory_space<vmem>>, vector<25x1x8x8xbf16>
    %11 = vector.shape_cast %10 : vector<25x1x8x8xbf16> to vector<25x8x8xbf16>
    %12 = arith.extf %11 : vector<25x8x8xbf16> to vector<25x8x8xf32>
    %c0_8 = arith.constant 0 : index
    %c0_9 = arith.constant 0 : index
    %c0_10 = arith.constant 0 : index
    %c0_11 = arith.constant 0 : index
    %c0_12 = arith.constant 0 : index
    %13 = vector.load %arg3[%c0_8, %c0_9, %c0_10, %c0_11, %c0_12] : memref<25x4x1x8x8xbf16, #tpu.memory_space<vmem>>, vector<25x1x1x8x8xbf16>
    %14 = vector.shape_cast %13 : vector<25x1x1x8x8xbf16> to vector<25x8x8xbf16>
    %15 = arith.extf %14 : vector<25x8x8xbf16> to vector<25x8x8xf32>
    %16 = arith.addf %15, %12 : vector<25x8x8xf32>
    %cst_13 = arith.constant dense<0xFF800000> : vector<8x8xf32>
    %17 = vector.multi_reduction <maximumf>, %16, %cst_13 [0] : vector<25x8x8xf32> to vector<8x8xf32>
    %18 = vector.shape_cast %17 : vector<8x8xf32> to vector<1x8x8xf32>
    %19 = vector.broadcast %18 : vector<1x8x8xf32> to vector<25x8x8xf32>
    %20 = arith.subf %16, %19 : vector<25x8x8xf32>
    %21 = math.exp %20 : vector<25x8x8xf32>
    %cst_14 = arith.constant dense<0.000000e+00> : vector<8x8xf32>
    %22 = vector.multi_reduction <add>, %21, %cst_14 [0] : vector<25x8x8xf32> to vector<8x8xf32>
    %23 = vector.shape_cast %22 : vector<8x8xf32> to vector<1x8x8xf32>
    %24 = tpu.reciprocal %23 {approx = true} : vector<1x8x8xf32> -> vector<1x8x8xf32>
    %25 = vector.broadcast %24 : vector<1x8x8xf32> to vector<25x8x8xf32>
    %26 = arith.mulf %21, %25 : vector<25x8x8xf32>
    %cst_15 = arith.constant 0.000000e+00 : f32
    %27 = vector.broadcast %cst_15 : f32 to vector<4x8x8xf32>
    %c0_16 = arith.constant 0 : index
    %c0_17 = arith.constant 0 : index
    %c0_18 = arith.constant 0 : index
    %c0_19 = arith.constant 0 : index
    %28 = vector.load %arg2[%c0_16, %c0_17, %c0_18, %c0_19] : memref<1x4x12x12xbf16, #tpu.memory_space<vmem>>, vector<1x4x8x8xbf16>
    %29 = vector.shape_cast %28 : vector<1x4x8x8xbf16> to vector<4x8x8xbf16>
    %30 = arith.extf %29 : vector<4x8x8xbf16> to vector<4x8x8xf32>
    %31 = vector.extract_strided_slice %26 {offsets = [0, 0, 0], sizes = [1, 8, 8], strides = [1, 1, 1]} : vector<25x8x8xf32> to vector<1x8x8xf32>
    %32 = vector.shape_cast %31 : vector<1x8x8xf32> to vector<8x8xf32>
    %33 = vector.shape_cast %32 : vector<8x8xf32> to vector<1x8x8xf32>
    %34 = vector.broadcast %33 : vector<1x8x8xf32> to vector<4x8x8xf32>
    %35 = arith.mulf %30, %34 : vector<4x8x8xf32>
    %36 = arith.addf %27, %35 : vector<4x8x8xf32>
    %c0_20 = arith.constant 0 : index
    %c0_21 = arith.constant 0 : index
    %c0_22 = arith.constant 0 : index
    %c1 = arith.constant 1 : index
    %37 = vector.load %arg2[%c0_20, %c0_21, %c0_22, %c1] : memref<1x4x12x12xbf16, #tpu.memory_space<vmem>>, vector<1x4x8x8xbf16>
    %38 = vector.shape_cast %37 : vector<1x4x8x8xbf16> to vector<4x8x8xbf16>
    %39 = arith.extf %38 : vector<4x8x8xbf16> to vector<4x8x8xf32>
    %40 = vector.extract_strided_slice %26 {offsets = [1, 0, 0], sizes = [1, 8, 8], strides = [1, 1, 1]} : vector<25x8x8xf32> to vector<1x8x8xf32>
    %41 = vector.shape_cast %40 : vector<1x8x8xf32> to vector<8x8xf32>
    %42 = vector.shape_cast %41 : vector<8x8xf32> to vector<1x8x8xf32>
    %43 = vector.broadcast %42 : vector<1x8x8xf32> to vector<4x8x8xf32>
    %44 = arith.mulf %39, %43 : vector<4x8x8xf32>
    %45 = arith.addf %36, %44 : vector<4x8x8xf32>
    %c0_23 = arith.constant 0 : index
    %c0_24 = arith.constant 0 : index
    %c0_25 = arith.constant 0 : index
    %c2 = arith.constant 2 : index
    %46 = vector.load %arg2[%c0_23, %c0_24, %c0_25, %c2] : memref<1x4x12x12xbf16, #tpu.memory_space<vmem>>, vector<1x4x8x8xbf16>
    %47 = vector.shape_cast %46 : vector<1x4x8x8xbf16> to vector<4x8x8xbf16>
    %48 = arith.extf %47 : vector<4x8x8xbf16> to vector<4x8x8xf32>
    %49 = vector.extract_strided_slice %26 {offsets = [2, 0, 0], sizes = [1, 8, 8], strides = [1, 1, 1]} : vector<25x8x8xf32> to vector<1x8x8xf32>
    %50 = vector.shape_cast %49 : vector<1x8x8xf32> to vector<8x8xf32>
    %51 = vector.shape_cast %50 : vector<8x8xf32> to vector<1x8x8xf32>
    %52 = vector.broadcast %51 : vector<1x8x8xf32> to vector<4x8x8xf32>
    %53 = arith.mulf %48, %52 : vector<4x8x8xf32>
    %54 = arith.addf %45, %53 : vector<4x8x8xf32>
    %c0_26 = arith.constant 0 : index
    %c0_27 = arith.constant 0 : index
    %c0_28 = arith.constant 0 : index
    %c3 = arith.constant 3 : index
    %55 = vector.load %arg2[%c0_26, %c0_27, %c0_28, %c3] : memref<1x4x12x12xbf16, #tpu.memory_space<vmem>>, vector<1x4x8x8xbf16>
    %56 = vector.shape_cast %55 : vector<1x4x8x8xbf16> to vector<4x8x8xbf16>
    %57 = arith.extf %56 : vector<4x8x8xbf16> to vector<4x8x8xf32>
    %58 = vector.extract_strided_slice %26 {offsets = [3, 0, 0], sizes = [1, 8, 8], strides = [1, 1, 1]} : vector<25x8x8xf32> to vector<1x8x8xf32>
    %59 = vector.shape_cast %58 : vector<1x8x8xf32> to vector<8x8xf32>
    %60 = vector.shape_cast %59 : vector<8x8xf32> to vector<1x8x8xf32>
    %61 = vector.broadcast %60 : vector<1x8x8xf32> to vector<4x8x8xf32>
    %62 = arith.mulf %57, %61 : vector<4x8x8xf32>
    %63 = arith.addf %54, %62 : vector<4x8x8xf32>
    %c0_29 = arith.constant 0 : index
    %c0_30 = arith.constant 0 : index
    %c0_31 = arith.constant 0 : index
    %c4 = arith.constant 4 : index
    %64 = vector.load %arg2[%c0_29, %c0_30, %c0_31, %c4] : memref<1x4x12x12xbf16, #tpu.memory_space<vmem>>, vector<1x4x8x8xbf16>
    %65 = vector.shape_cast %64 : vector<1x4x8x8xbf16> to vector<4x8x8xbf16>
    %66 = arith.extf %65 : vector<4x8x8xbf16> to vector<4x8x8xf32>
    %67 = vector.extract_strided_slice %26 {offsets = [4, 0, 0], sizes = [1, 8, 8], strides = [1, 1, 1]} : vector<25x8x8xf32> to vector<1x8x8xf32>
    %68 = vector.shape_cast %67 : vector<1x8x8xf32> to vector<8x8xf32>
    %69 = vector.shape_cast %68 : vector<8x8xf32> to vector<1x8x8xf32>
    %70 = vector.broadcast %69 : vector<1x8x8xf32> to vector<4x8x8xf32>
    %71 = arith.mulf %66, %70 : vector<4x8x8xf32>
    %72 = arith.addf %63, %71 : vector<4x8x8xf32>
    %c0_32 = arith.constant 0 : index
    %c0_33 = arith.constant 0 : index
    %c1_34 = arith.constant 1 : index
    %c0_35 = arith.constant 0 : index
    %73 = vector.load %arg2[%c0_32, %c0_33, %c1_34, %c0_35] : memref<1x4x12x12xbf16, #tpu.memory_space<vmem>>, vector<1x4x8x8xbf16>
    %74 = vector.shape_cast %73 : vector<1x4x8x8xbf16> to vector<4x8x8xbf16>
    %75 = arith.extf %74 : vector<4x8x8xbf16> to vector<4x8x8xf32>
    %76 = vector.extract_strided_slice %26 {offsets = [5, 0, 0], sizes = [1, 8, 8], strides = [1, 1, 1]} : vector<25x8x8xf32> to vector<1x8x8xf32>
    %77 = vector.shape_cast %76 : vector<1x8x8xf32> to vector<8x8xf32>
    %78 = vector.shape_cast %77 : vector<8x8xf32> to vector<1x8x8xf32>
    %79 = vector.broadcast %78 : vector<1x8x8xf32> to vector<4x8x8xf32>
    %80 = arith.mulf %75, %79 : vector<4x8x8xf32>
    %81 = arith.addf %72, %80 : vector<4x8x8xf32>
    %c0_36 = arith.constant 0 : index
    %c0_37 = arith.constant 0 : index
    %c1_38 = arith.constant 1 : index
    %c1_39 = arith.constant 1 : index
    %82 = vector.load %arg2[%c0_36, %c0_37, %c1_38, %c1_39] : memref<1x4x12x12xbf16, #tpu.memory_space<vmem>>, vector<1x4x8x8xbf16>
    %83 = vector.shape_cast %82 : vector<1x4x8x8xbf16> to vector<4x8x8xbf16>
    %84 = arith.extf %83 : vector<4x8x8xbf16> to vector<4x8x8xf32>
    %85 = vector.extract_strided_slice %26 {offsets = [6, 0, 0], sizes = [1, 8, 8], strides = [1, 1, 1]} : vector<25x8x8xf32> to vector<1x8x8xf32>
    %86 = vector.shape_cast %85 : vector<1x8x8xf32> to vector<8x8xf32>
    %87 = vector.shape_cast %86 : vector<8x8xf32> to vector<1x8x8xf32>
    %88 = vector.broadcast %87 : vector<1x8x8xf32> to vector<4x8x8xf32>
    %89 = arith.mulf %84, %88 : vector<4x8x8xf32>
    %90 = arith.addf %81, %89 : vector<4x8x8xf32>
    %c0_40 = arith.constant 0 : index
    %c0_41 = arith.constant 0 : index
    %c1_42 = arith.constant 1 : index
    %c2_43 = arith.constant 2 : index
    %91 = vector.load %arg2[%c0_40, %c0_41, %c1_42, %c2_43] : memref<1x4x12x12xbf16, #tpu.memory_space<vmem>>, vector<1x4x8x8xbf16>
    %92 = vector.shape_cast %91 : vector<1x4x8x8xbf16> to vector<4x8x8xbf16>
    %93 = arith.extf %92 : vector<4x8x8xbf16> to vector<4x8x8xf32>
    %94 = vector.extract_strided_slice %26 {offsets = [7, 0, 0], sizes = [1, 8, 8], strides = [1, 1, 1]} : vector<25x8x8xf32> to vector<1x8x8xf32>
    %95 = vector.shape_cast %94 : vector<1x8x8xf32> to vector<8x8xf32>
    %96 = vector.shape_cast %95 : vector<8x8xf32> to vector<1x8x8xf32>
    %97 = vector.broadcast %96 : vector<1x8x8xf32> to vector<4x8x8xf32>
    %98 = arith.mulf %93, %97 : vector<4x8x8xf32>
    %99 = arith.addf %90, %98 : vector<4x8x8xf32>
    %c0_44 = arith.constant 0 : index
    %c0_45 = arith.constant 0 : index
    %c1_46 = arith.constant 1 : index
    %c3_47 = arith.constant 3 : index
    %100 = vector.load %arg2[%c0_44, %c0_45, %c1_46, %c3_47] : memref<1x4x12x12xbf16, #tpu.memory_space<vmem>>, vector<1x4x8x8xbf16>
    %101 = vector.shape_cast %100 : vector<1x4x8x8xbf16> to vector<4x8x8xbf16>
    %102 = arith.extf %101 : vector<4x8x8xbf16> to vector<4x8x8xf32>
    %103 = vector.extract_strided_slice %26 {offsets = [8, 0, 0], sizes = [1, 8, 8], strides = [1, 1, 1]} : vector<25x8x8xf32> to vector<1x8x8xf32>
    %104 = vector.shape_cast %103 : vector<1x8x8xf32> to vector<8x8xf32>
    %105 = vector.shape_cast %104 : vector<8x8xf32> to vector<1x8x8xf32>
    %106 = vector.broadcast %105 : vector<1x8x8xf32> to vector<4x8x8xf32>
    %107 = arith.mulf %102, %106 : vector<4x8x8xf32>
    %108 = arith.addf %99, %107 : vector<4x8x8xf32>
    %c0_48 = arith.constant 0 : index
    %c0_49 = arith.constant 0 : index
    %c1_50 = arith.constant 1 : index
    %c4_51 = arith.constant 4 : index
    %109 = vector.load %arg2[%c0_48, %c0_49, %c1_50, %c4_51] : memref<1x4x12x12xbf16, #tpu.memory_space<vmem>>, vector<1x4x8x8xbf16>
    %110 = vector.shape_cast %109 : vector<1x4x8x8xbf16> to vector<4x8x8xbf16>
    %111 = arith.extf %110 : vector<4x8x8xbf16> to vector<4x8x8xf32>
    %112 = vector.extract_strided_slice %26 {offsets = [9, 0, 0], sizes = [1, 8, 8], strides = [1, 1, 1]} : vector<25x8x8xf32> to vector<1x8x8xf32>
    %113 = vector.shape_cast %112 : vector<1x8x8xf32> to vector<8x8xf32>
    %114 = vector.shape_cast %113 : vector<8x8xf32> to vector<1x8x8xf32>
    %115 = vector.broadcast %114 : vector<1x8x8xf32> to vector<4x8x8xf32>
    %116 = arith.mulf %111, %115 : vector<4x8x8xf32>
    %117 = arith.addf %108, %116 : vector<4x8x8xf32>
    %c0_52 = arith.constant 0 : index
    %c0_53 = arith.constant 0 : index
    %c2_54 = arith.constant 2 : index
    %c0_55 = arith.constant 0 : index
    %118 = vector.load %arg2[%c0_52, %c0_53, %c2_54, %c0_55] : memref<1x4x12x12xbf16, #tpu.memory_space<vmem>>, vector<1x4x8x8xbf16>
    %119 = vector.shape_cast %118 : vector<1x4x8x8xbf16> to vector<4x8x8xbf16>
    %120 = arith.extf %119 : vector<4x8x8xbf16> to vector<4x8x8xf32>
    %121 = vector.extract_strided_slice %26 {offsets = [10, 0, 0], sizes = [1, 8, 8], strides = [1, 1, 1]} : vector<25x8x8xf32> to vector<1x8x8xf32>
    %122 = vector.shape_cast %121 : vector<1x8x8xf32> to vector<8x8xf32>
    %123 = vector.shape_cast %122 : vector<8x8xf32> to vector<1x8x8xf32>
    %124 = vector.broadcast %123 : vector<1x8x8xf32> to vector<4x8x8xf32>
    %125 = arith.mulf %120, %124 : vector<4x8x8xf32>
    %126 = arith.addf %117, %125 : vector<4x8x8xf32>
    %c0_56 = arith.constant 0 : index
    %c0_57 = arith.constant 0 : index
    %c2_58 = arith.constant 2 : index
    %c1_59 = arith.constant 1 : index
    %127 = vector.load %arg2[%c0_56, %c0_57, %c2_58, %c1_59] : memref<1x4x12x12xbf16, #tpu.memory_space<vmem>>, vector<1x4x8x8xbf16>
    %128 = vector.shape_cast %127 : vector<1x4x8x8xbf16> to vector<4x8x8xbf16>
    %129 = arith.extf %128 : vector<4x8x8xbf16> to vector<4x8x8xf32>
    %130 = vector.extract_strided_slice %26 {offsets = [11, 0, 0], sizes = [1, 8, 8], strides = [1, 1, 1]} : vector<25x8x8xf32> to vector<1x8x8xf32>
    %131 = vector.shape_cast %130 : vector<1x8x8xf32> to vector<8x8xf32>
    %132 = vector.shape_cast %131 : vector<8x8xf32> to vector<1x8x8xf32>
    %133 = vector.broadcast %132 : vector<1x8x8xf32> to vector<4x8x8xf32>
    %134 = arith.mulf %129, %133 : vector<4x8x8xf32>
    %135 = arith.addf %126, %134 : vector<4x8x8xf32>
    %c0_60 = arith.constant 0 : index
    %c0_61 = arith.constant 0 : index
    %c2_62 = arith.constant 2 : index
    %c2_63 = arith.constant 2 : index
    %136 = vector.load %arg2[%c0_60, %c0_61, %c2_62, %c2_63] : memref<1x4x12x12xbf16, #tpu.memory_space<vmem>>, vector<1x4x8x8xbf16>
    %137 = vector.shape_cast %136 : vector<1x4x8x8xbf16> to vector<4x8x8xbf16>
    %138 = arith.extf %137 : vector<4x8x8xbf16> to vector<4x8x8xf32>
    %139 = vector.extract_strided_slice %26 {offsets = [12, 0, 0], sizes = [1, 8, 8], strides = [1, 1, 1]} : vector<25x8x8xf32> to vector<1x8x8xf32>
    %140 = vector.shape_cast %139 : vector<1x8x8xf32> to vector<8x8xf32>
    %141 = vector.shape_cast %140 : vector<8x8xf32> to vector<1x8x8xf32>
    %142 = vector.broadcast %141 : vector<1x8x8xf32> to vector<4x8x8xf32>
    %143 = arith.mulf %138, %142 : vector<4x8x8xf32>
    %144 = arith.addf %135, %143 : vector<4x8x8xf32>
    %c0_64 = arith.constant 0 : index
    %c0_65 = arith.constant 0 : index
    %c2_66 = arith.constant 2 : index
    %c3_67 = arith.constant 3 : index
    %145 = vector.load %arg2[%c0_64, %c0_65, %c2_66, %c3_67] : memref<1x4x12x12xbf16, #tpu.memory_space<vmem>>, vector<1x4x8x8xbf16>
    %146 = vector.shape_cast %145 : vector<1x4x8x8xbf16> to vector<4x8x8xbf16>
    %147 = arith.extf %146 : vector<4x8x8xbf16> to vector<4x8x8xf32>
    %148 = vector.extract_strided_slice %26 {offsets = [13, 0, 0], sizes = [1, 8, 8], strides = [1, 1, 1]} : vector<25x8x8xf32> to vector<1x8x8xf32>
    %149 = vector.shape_cast %148 : vector<1x8x8xf32> to vector<8x8xf32>
    %150 = vector.shape_cast %149 : vector<8x8xf32> to vector<1x8x8xf32>
    %151 = vector.broadcast %150 : vector<1x8x8xf32> to vector<4x8x8xf32>
    %152 = arith.mulf %147, %151 : vector<4x8x8xf32>
    %153 = arith.addf %144, %152 : vector<4x8x8xf32>
    %c0_68 = arith.constant 0 : index
    %c0_69 = arith.constant 0 : index
    %c2_70 = arith.constant 2 : index
    %c4_71 = arith.constant 4 : index
    %154 = vector.load %arg2[%c0_68, %c0_69, %c2_70, %c4_71] : memref<1x4x12x12xbf16, #tpu.memory_space<vmem>>, vector<1x4x8x8xbf16>
    %155 = vector.shape_cast %154 : vector<1x4x8x8xbf16> to vector<4x8x8xbf16>
    %156 = arith.extf %155 : vector<4x8x8xbf16> to vector<4x8x8xf32>
    %157 = vector.extract_strided_slice %26 {offsets = [14, 0, 0], sizes = [1, 8, 8], strides = [1, 1, 1]} : vector<25x8x8xf32> to vector<1x8x8xf32>
    %158 = vector.shape_cast %157 : vector<1x8x8xf32> to vector<8x8xf32>
    %159 = vector.shape_cast %158 : vector<8x8xf32> to vector<1x8x8xf32>
    %160 = vector.broadcast %159 : vector<1x8x8xf32> to vector<4x8x8xf32>
    %161 = arith.mulf %156, %160 : vector<4x8x8xf32>
    %162 = arith.addf %153, %161 : vector<4x8x8xf32>
    %c0_72 = arith.constant 0 : index
    %c0_73 = arith.constant 0 : index
    %c3_74 = arith.constant 3 : index
    %c0_75 = arith.constant 0 : index
    %163 = vector.load %arg2[%c0_72, %c0_73, %c3_74, %c0_75] : memref<1x4x12x12xbf16, #tpu.memory_space<vmem>>, vector<1x4x8x8xbf16>
    %164 = vector.shape_cast %163 : vector<1x4x8x8xbf16> to vector<4x8x8xbf16>
    %165 = arith.extf %164 : vector<4x8x8xbf16> to vector<4x8x8xf32>
    %166 = vector.extract_strided_slice %26 {offsets = [15, 0, 0], sizes = [1, 8, 8], strides = [1, 1, 1]} : vector<25x8x8xf32> to vector<1x8x8xf32>
    %167 = vector.shape_cast %166 : vector<1x8x8xf32> to vector<8x8xf32>
    %168 = vector.shape_cast %167 : vector<8x8xf32> to vector<1x8x8xf32>
    %169 = vector.broadcast %168 : vector<1x8x8xf32> to vector<4x8x8xf32>
    %170 = arith.mulf %165, %169 : vector<4x8x8xf32>
    %171 = arith.addf %162, %170 : vector<4x8x8xf32>
    %c0_76 = arith.constant 0 : index
    %c0_77 = arith.constant 0 : index
    %c3_78 = arith.constant 3 : index
    %c1_79 = arith.constant 1 : index
    %172 = vector.load %arg2[%c0_76, %c0_77, %c3_78, %c1_79] : memref<1x4x12x12xbf16, #tpu.memory_space<vmem>>, vector<1x4x8x8xbf16>
    %173 = vector.shape_cast %172 : vector<1x4x8x8xbf16> to vector<4x8x8xbf16>
    %174 = arith.extf %173 : vector<4x8x8xbf16> to vector<4x8x8xf32>
    %175 = vector.extract_strided_slice %26 {offsets = [16, 0, 0], sizes = [1, 8, 8], strides = [1, 1, 1]} : vector<25x8x8xf32> to vector<1x8x8xf32>
    %176 = vector.shape_cast %175 : vector<1x8x8xf32> to vector<8x8xf32>
    %177 = vector.shape_cast %176 : vector<8x8xf32> to vector<1x8x8xf32>
    %178 = vector.broadcast %177 : vector<1x8x8xf32> to vector<4x8x8xf32>
    %179 = arith.mulf %174, %178 : vector<4x8x8xf32>
    %180 = arith.addf %171, %179 : vector<4x8x8xf32>
    %c0_80 = arith.constant 0 : index
    %c0_81 = arith.constant 0 : index
    %c3_82 = arith.constant 3 : index
    %c2_83 = arith.constant 2 : index
    %181 = vector.load %arg2[%c0_80, %c0_81, %c3_82, %c2_83] : memref<1x4x12x12xbf16, #tpu.memory_space<vmem>>, vector<1x4x8x8xbf16>
    %182 = vector.shape_cast %181 : vector<1x4x8x8xbf16> to vector<4x8x8xbf16>
    %183 = arith.extf %182 : vector<4x8x8xbf16> to vector<4x8x8xf32>
    %184 = vector.extract_strided_slice %26 {offsets = [17, 0, 0], sizes = [1, 8, 8], strides = [1, 1, 1]} : vector<25x8x8xf32> to vector<1x8x8xf32>
    %185 = vector.shape_cast %184 : vector<1x8x8xf32> to vector<8x8xf32>
    %186 = vector.shape_cast %185 : vector<8x8xf32> to vector<1x8x8xf32>
    %187 = vector.broadcast %186 : vector<1x8x8xf32> to vector<4x8x8xf32>
    %188 = arith.mulf %183, %187 : vector<4x8x8xf32>
    %189 = arith.addf %180, %188 : vector<4x8x8xf32>
    %c0_84 = arith.constant 0 : index
    %c0_85 = arith.constant 0 : index
    %c3_86 = arith.constant 3 : index
    %c3_87 = arith.constant 3 : index
    %190 = vector.load %arg2[%c0_84, %c0_85, %c3_86, %c3_87] : memref<1x4x12x12xbf16, #tpu.memory_space<vmem>>, vector<1x4x8x8xbf16>
    %191 = vector.shape_cast %190 : vector<1x4x8x8xbf16> to vector<4x8x8xbf16>
    %192 = arith.extf %191 : vector<4x8x8xbf16> to vector<4x8x8xf32>
    %193 = vector.extract_strided_slice %26 {offsets = [18, 0, 0], sizes = [1, 8, 8], strides = [1, 1, 1]} : vector<25x8x8xf32> to vector<1x8x8xf32>
    %194 = vector.shape_cast %193 : vector<1x8x8xf32> to vector<8x8xf32>
    %195 = vector.shape_cast %194 : vector<8x8xf32> to vector<1x8x8xf32>
    %196 = vector.broadcast %195 : vector<1x8x8xf32> to vector<4x8x8xf32>
    %197 = arith.mulf %192, %196 : vector<4x8x8xf32>
    %198 = arith.addf %189, %197 : vector<4x8x8xf32>
    %c0_88 = arith.constant 0 : index
    %c0_89 = arith.constant 0 : index
    %c3_90 = arith.constant 3 : index
    %c4_91 = arith.constant 4 : index
    %199 = vector.load %arg2[%c0_88, %c0_89, %c3_90, %c4_91] : memref<1x4x12x12xbf16, #tpu.memory_space<vmem>>, vector<1x4x8x8xbf16>
    %200 = vector.shape_cast %199 : vector<1x4x8x8xbf16> to vector<4x8x8xbf16>
    %201 = arith.extf %200 : vector<4x8x8xbf16> to vector<4x8x8xf32>
    %202 = vector.extract_strided_slice %26 {offsets = [19, 0, 0], sizes = [1, 8, 8], strides = [1, 1, 1]} : vector<25x8x8xf32> to vector<1x8x8xf32>
    %203 = vector.shape_cast %202 : vector<1x8x8xf32> to vector<8x8xf32>
    %204 = vector.shape_cast %203 : vector<8x8xf32> to vector<1x8x8xf32>
    %205 = vector.broadcast %204 : vector<1x8x8xf32> to vector<4x8x8xf32>
    %206 = arith.mulf %201, %205 : vector<4x8x8xf32>
    %207 = arith.addf %198, %206 : vector<4x8x8xf32>
    %c0_92 = arith.constant 0 : index
    %c0_93 = arith.constant 0 : index
    %c4_94 = arith.constant 4 : index
    %c0_95 = arith.constant 0 : index
    %208 = vector.load %arg2[%c0_92, %c0_93, %c4_94, %c0_95] : memref<1x4x12x12xbf16, #tpu.memory_space<vmem>>, vector<1x4x8x8xbf16>
    %209 = vector.shape_cast %208 : vector<1x4x8x8xbf16> to vector<4x8x8xbf16>
    %210 = arith.extf %209 : vector<4x8x8xbf16> to vector<4x8x8xf32>
    %211 = vector.extract_strided_slice %26 {offsets = [20, 0, 0], sizes = [1, 8, 8], strides = [1, 1, 1]} : vector<25x8x8xf32> to vector<1x8x8xf32>
    %212 = vector.shape_cast %211 : vector<1x8x8xf32> to vector<8x8xf32>
    %213 = vector.shape_cast %212 : vector<8x8xf32> to vector<1x8x8xf32>
    %214 = vector.broadcast %213 : vector<1x8x8xf32> to vector<4x8x8xf32>
    %215 = arith.mulf %210, %214 : vector<4x8x8xf32>
    %216 = arith.addf %207, %215 : vector<4x8x8xf32>
    %c0_96 = arith.constant 0 : index
    %c0_97 = arith.constant 0 : index
    %c4_98 = arith.constant 4 : index
    %c1_99 = arith.constant 1 : index
    %217 = vector.load %arg2[%c0_96, %c0_97, %c4_98, %c1_99] : memref<1x4x12x12xbf16, #tpu.memory_space<vmem>>, vector<1x4x8x8xbf16>
    %218 = vector.shape_cast %217 : vector<1x4x8x8xbf16> to vector<4x8x8xbf16>
    %219 = arith.extf %218 : vector<4x8x8xbf16> to vector<4x8x8xf32>
    %220 = vector.extract_strided_slice %26 {offsets = [21, 0, 0], sizes = [1, 8, 8], strides = [1, 1, 1]} : vector<25x8x8xf32> to vector<1x8x8xf32>
    %221 = vector.shape_cast %220 : vector<1x8x8xf32> to vector<8x8xf32>
    %222 = vector.shape_cast %221 : vector<8x8xf32> to vector<1x8x8xf32>
    %223 = vector.broadcast %222 : vector<1x8x8xf32> to vector<4x8x8xf32>
    %224 = arith.mulf %219, %223 : vector<4x8x8xf32>
    %225 = arith.addf %216, %224 : vector<4x8x8xf32>
    %c0_100 = arith.constant 0 : index
    %c0_101 = arith.constant 0 : index
    %c4_102 = arith.constant 4 : index
    %c2_103 = arith.constant 2 : index
    %226 = vector.load %arg2[%c0_100, %c0_101, %c4_102, %c2_103] : memref<1x4x12x12xbf16, #tpu.memory_space<vmem>>, vector<1x4x8x8xbf16>
    %227 = vector.shape_cast %226 : vector<1x4x8x8xbf16> to vector<4x8x8xbf16>
    %228 = arith.extf %227 : vector<4x8x8xbf16> to vector<4x8x8xf32>
    %229 = vector.extract_strided_slice %26 {offsets = [22, 0, 0], sizes = [1, 8, 8], strides = [1, 1, 1]} : vector<25x8x8xf32> to vector<1x8x8xf32>
    %230 = vector.shape_cast %229 : vector<1x8x8xf32> to vector<8x8xf32>
    %231 = vector.shape_cast %230 : vector<8x8xf32> to vector<1x8x8xf32>
    %232 = vector.broadcast %231 : vector<1x8x8xf32> to vector<4x8x8xf32>
    %233 = arith.mulf %228, %232 : vector<4x8x8xf32>
    %234 = arith.addf %225, %233 : vector<4x8x8xf32>
    %c0_104 = arith.constant 0 : index
    %c0_105 = arith.constant 0 : index
    %c4_106 = arith.constant 4 : index
    %c3_107 = arith.constant 3 : index
    %235 = vector.load %arg2[%c0_104, %c0_105, %c4_106, %c3_107] : memref<1x4x12x12xbf16, #tpu.memory_space<vmem>>, vector<1x4x8x8xbf16>
    %236 = vector.shape_cast %235 : vector<1x4x8x8xbf16> to vector<4x8x8xbf16>
    %237 = arith.extf %236 : vector<4x8x8xbf16> to vector<4x8x8xf32>
    %238 = vector.extract_strided_slice %26 {offsets = [23, 0, 0], sizes = [1, 8, 8], strides = [1, 1, 1]} : vector<25x8x8xf32> to vector<1x8x8xf32>
    %239 = vector.shape_cast %238 : vector<1x8x8xf32> to vector<8x8xf32>
    %240 = vector.shape_cast %239 : vector<8x8xf32> to vector<1x8x8xf32>
    %241 = vector.broadcast %240 : vector<1x8x8xf32> to vector<4x8x8xf32>
    %242 = arith.mulf %237, %241 : vector<4x8x8xf32>
    %243 = arith.addf %234, %242 : vector<4x8x8xf32>
    %c0_108 = arith.constant 0 : index
    %c0_109 = arith.constant 0 : index
    %c4_110 = arith.constant 4 : index
    %c4_111 = arith.constant 4 : index
    %244 = vector.load %arg2[%c0_108, %c0_109, %c4_110, %c4_111] : memref<1x4x12x12xbf16, #tpu.memory_space<vmem>>, vector<1x4x8x8xbf16>
    %245 = vector.shape_cast %244 : vector<1x4x8x8xbf16> to vector<4x8x8xbf16>
    %246 = arith.extf %245 : vector<4x8x8xbf16> to vector<4x8x8xf32>
    %247 = vector.extract_strided_slice %26 {offsets = [24, 0, 0], sizes = [1, 8, 8], strides = [1, 1, 1]} : vector<25x8x8xf32> to vector<1x8x8xf32>
    %248 = vector.shape_cast %247 : vector<1x8x8xf32> to vector<8x8xf32>
    %249 = vector.shape_cast %248 : vector<8x8xf32> to vector<1x8x8xf32>
    %250 = vector.broadcast %249 : vector<1x8x8xf32> to vector<4x8x8xf32>
    %251 = arith.mulf %246, %250 : vector<4x8x8xf32>
    %252 = arith.addf %243, %251 : vector<4x8x8xf32>
    %c0_112 = arith.constant 0 : index
    %c0_113 = arith.constant 0 : index
    %c0_114 = arith.constant 0 : index
    %c0_115 = arith.constant 0 : index
    %c0_116 = arith.constant 0 : index
    %253 = vector.load %arg6[%c0_112, %c0_113, %c0_114, %c0_115, %c0_116] : memref<1x4x4x8x8xbf16, #tpu.memory_space<vmem>>, vector<1x1x4x8x8xbf16>
    %254 = vector.shape_cast %253 : vector<1x1x4x8x8xbf16> to vector<4x8x8xbf16>
    %255 = arith.extf %254 : vector<4x8x8xbf16> to vector<4x8x8xf32>
    %256 = vector.shape_cast %7 : vector<8x8xf32> to vector<1x8x8xf32>
    %257 = vector.broadcast %256 : vector<1x8x8xf32> to vector<4x8x8xf32>
    %258 = arith.mulf %257, %255 : vector<4x8x8xf32>
    %259 = vector.shape_cast %9 : vector<8x8xf32> to vector<1x8x8xf32>
    %260 = vector.broadcast %259 : vector<1x8x8xf32> to vector<4x8x8xf32>
    %261 = arith.mulf %260, %252 : vector<4x8x8xf32>
    %262 = arith.addf %258, %261 : vector<4x8x8xf32>
    %263 = arith.truncf %262 : vector<4x8x8xf32> to vector<4x8x8xbf16>
    %c0_117 = arith.constant 0 : index
    %c0_118 = arith.constant 0 : index
    %c0_119 = arith.constant 0 : index
    %c0_120 = arith.constant 0 : index
    %c0_121 = arith.constant 0 : index
    %264 = vector.load %arg7[%c0_117, %c0_118, %c0_119, %c0_120, %c0_121] : memref<1x4x4x8x8xbf16, #tpu.memory_space<vmem>>, vector<1x1x4x8x8xbf16>
    %265 = vector.shape_cast %264 : vector<1x1x4x8x8xbf16> to vector<4x8x8xbf16>
    %266 = vector.shape_cast %263 : vector<4x8x8xbf16> to vector<1x1x4x8x8xbf16>
    tpu.vector_store %arg7[%c0_117, %c0_118, %c0_119, %c0_120, %c0_121], %266 {strides = array<i32>} : memref<1x4x4x8x8xbf16, #tpu.memory_space<vmem>>, vector<1x1x4x8x8xbf16>,
    %c0_122 = arith.constant 0 : index
    %c1_123 = arith.constant 1 : index
    %c0_124 = arith.constant 0 : index
    %c0_125 = arith.constant 0 : index
    %c0_126 = arith.constant 0 : index
    %267 = vector.load %arg3[%c0_122, %c1_123, %c0_124, %c0_125, %c0_126] : memref<25x4x1x8x8xbf16, #tpu.memory_space<vmem>>, vector<25x1x1x8x8xbf16>
    %268 = vector.shape_cast %267 : vector<25x1x1x8x8xbf16> to vector<25x8x8xbf16>
    %269 = arith.extf %268 : vector<25x8x8xbf16> to vector<25x8x8xf32>
    %270 = arith.addf %269, %12 : vector<25x8x8xf32>
    %cst_127 = arith.constant dense<0xFF800000> : vector<8x8xf32>
    %271 = vector.multi_reduction <maximumf>, %270, %cst_127 [0] : vector<25x8x8xf32> to vector<8x8xf32>
    %272 = vector.shape_cast %271 : vector<8x8xf32> to vector<1x8x8xf32>
    %273 = vector.broadcast %272 : vector<1x8x8xf32> to vector<25x8x8xf32>
    %274 = arith.subf %270, %273 : vector<25x8x8xf32>
    %275 = math.exp %274 : vector<25x8x8xf32>
    %cst_128 = arith.constant dense<0.000000e+00> : vector<8x8xf32>
    %276 = vector.multi_reduction <add>, %275, %cst_128 [0] : vector<25x8x8xf32> to vector<8x8xf32>
    %277 = vector.shape_cast %276 : vector<8x8xf32> to vector<1x8x8xf32>
    %278 = tpu.reciprocal %277 {approx = true} : vector<1x8x8xf32> -> vector<1x8x8xf32>
    %279 = vector.broadcast %278 : vector<1x8x8xf32> to vector<25x8x8xf32>
    %280 = arith.mulf %275, %279 : vector<25x8x8xf32>
    %cst_129 = arith.constant 0.000000e+00 : f32
    %281 = vector.broadcast %cst_129 : f32 to vector<4x8x8xf32>
    %c0_130 = arith.constant 0 : index
    %c0_131 = arith.constant 0 : index
    %c0_132 = arith.constant 0 : index
    %c0_133 = arith.constant 0 : index
    %282 = vector.load %arg2[%c0_130, %c0_131, %c0_132, %c0_133] : memref<1x4x12x12xbf16, #tpu.memory_space<vmem>>, vector<1x4x8x8xbf16>
    %283 = vector.shape_cast %282 : vector<1x4x8x8xbf16> to vector<4x8x8xbf16>
    %284 = arith.extf %283 : vector<4x8x8xbf16> to vector<4x8x8xf32>
    %285 = vector.extract_strided_slice %280 {offsets = [0, 0, 0], sizes = [1, 8, 8], strides = [1, 1, 1]} : vector<25x8x8xf32> to vector<1x8x8xf32>
    %286 = vector.shape_cast %285 : vector<1x8x8xf32> to vector<8x8xf32>
    %287 = vector.shape_cast %286 : vector<8x8xf32> to vector<1x8x8xf32>
    %288 = vector.broadcast %287 : vector<1x8x8xf32> to vector<4x8x8xf32>
    %289 = arith.mulf %284, %288 : vector<4x8x8xf32>
    %290 = arith.addf %281, %289 : vector<4x8x8xf32>
    %c0_134 = arith.constant 0 : index
    %c0_135 = arith.constant 0 : index
    %c0_136 = arith.constant 0 : index
    %c1_137 = arith.constant 1 : index
    %291 = vector.load %arg2[%c0_134, %c0_135, %c0_136, %c1_137] : memref<1x4x12x12xbf16, #tpu.memory_space<vmem>>, vector<1x4x8x8xbf16>
    %292 = vector.shape_cast %291 : vector<1x4x8x8xbf16> to vector<4x8x8xbf16>
    %293 = arith.extf %292 : vector<4x8x8xbf16> to vector<4x8x8xf32>
    %294 = vector.extract_strided_slice %280 {offsets = [1, 0, 0], sizes = [1, 8, 8], strides = [1, 1, 1]} : vector<25x8x8xf32> to vector<1x8x8xf32>
    %295 = vector.shape_cast %294 : vector<1x8x8xf32> to vector<8x8xf32>
    %296 = vector.shape_cast %295 : vector<8x8xf32> to vector<1x8x8xf32>
    %297 = vector.broadcast %296 : vector<1x8x8xf32> to vector<4x8x8xf32>
    %298 = arith.mulf %293, %297 : vector<4x8x8xf32>
    %299 = arith.addf %290, %298 : vector<4x8x8xf32>
    %c0_138 = arith.constant 0 : index
    %c0_139 = arith.constant 0 : index
    %c0_140 = arith.constant 0 : index
    %c2_141 = arith.constant 2 : index
    %300 = vector.load %arg2[%c0_138, %c0_139, %c0_140, %c2_141] : memref<1x4x12x12xbf16, #tpu.memory_space<vmem>>, vector<1x4x8x8xbf16>
    %301 = vector.shape_cast %300 : vector<1x4x8x8xbf16> to vector<4x8x8xbf16>
    %302 = arith.extf %301 : vector<4x8x8xbf16> to vector<4x8x8xf32>
    %303 = vector.extract_strided_slice %280 {offsets = [2, 0, 0], sizes = [1, 8, 8], strides = [1, 1, 1]} : vector<25x8x8xf32> to vector<1x8x8xf32>
    %304 = vector.shape_cast %303 : vector<1x8x8xf32> to vector<8x8xf32>
    %305 = vector.shape_cast %304 : vector<8x8xf32> to vector<1x8x8xf32>
    %306 = vector.broadcast %305 : vector<1x8x8xf32> to vector<4x8x8xf32>
    %307 = arith.mulf %302, %306 : vector<4x8x8xf32>
    %308 = arith.addf %299, %307 : vector<4x8x8xf32>
    %c0_142 = arith.constant 0 : index
    %c0_143 = arith.constant 0 : index
    %c0_144 = arith.constant 0 : index
    %c3_145 = arith.constant 3 : index
    %309 = vector.load %arg2[%c0_142, %c0_143, %c0_144, %c3_145] : memref<1x4x12x12xbf16, #tpu.memory_space<vmem>>, vector<1x4x8x8xbf16>
    %310 = vector.shape_cast %309 : vector<1x4x8x8xbf16> to vector<4x8x8xbf16>
    %311 = arith.extf %310 : vector<4x8x8xbf16> to vector<4x8x8xf32>
    %312 = vector.extract_strided_slice %280 {offsets = [3, 0, 0], sizes = [1, 8, 8], strides = [1, 1, 1]} : vector<25x8x8xf32> to vector<1x8x8xf32>
    %313 = vector.shape_cast %312 : vector<1x8x8xf32> to vector<8x8xf32>
    %314 = vector.shape_cast %313 : vector<8x8xf32> to vector<1x8x8xf32>
    %315 = vector.broadcast %314 : vector<1x8x8xf32> to vector<4x8x8xf32>
    %316 = arith.mulf %311, %315 : vector<4x8x8xf32>
    %317 = arith.addf %308, %316 : vector<4x8x8xf32>
    %c0_146 = arith.constant 0 : index
    %c0_147 = arith.constant 0 : index
    %c0_148 = arith.constant 0 : index
    %c4_149 = arith.constant 4 : index
    %318 = vector.load %arg2[%c0_146, %c0_147, %c0_148, %c4_149] : memref<1x4x12x12xbf16, #tpu.memory_space<vmem>>, vector<1x4x8x8xbf16>
    %319 = vector.shape_cast %318 : vector<1x4x8x8xbf16> to vector<4x8x8xbf16>
    %320 = arith.extf %319 : vector<4x8x8xbf16> to vector<4x8x8xf32>
    %321 = vector.extract_strided_slice %280 {offsets = [4, 0, 0], sizes = [1, 8, 8], strides = [1, 1, 1]} : vector<25x8x8xf32> to vector<1x8x8xf32>
    %322 = vector.shape_cast %321 : vector<1x8x8xf32> to vector<8x8xf32>
    %323 = vector.shape_cast %322 : vector<8x8xf32> to vector<1x8x8xf32>
    %324 = vector.broadcast %323 : vector<1x8x8xf32> to vector<4x8x8xf32>
    %325 = arith.mulf %320, %324 : vector<4x8x8xf32>
    %326 = arith.addf %317, %325 : vector<4x8x8xf32>
    %c0_150 = arith.constant 0 : index
    %c0_151 = arith.constant 0 : index
    %c1_152 = arith.constant 1 : index
    %c0_153 = arith.constant 0 : index
    %327 = vector.load %arg2[%c0_150, %c0_151, %c1_152, %c0_153] : memref<1x4x12x12xbf16, #tpu.memory_space<vmem>>, vector<1x4x8x8xbf16>
    %328 = vector.shape_cast %327 : vector<1x4x8x8xbf16> to vector<4x8x8xbf16>
    %329 = arith.extf %328 : vector<4x8x8xbf16> to vector<4x8x8xf32>
    %330 = vector.extract_strided_slice %280 {offsets = [5, 0, 0], sizes = [1, 8, 8], strides = [1, 1, 1]} : vector<25x8x8xf32> to vector<1x8x8xf32>
    %331 = vector.shape_cast %330 : vector<1x8x8xf32> to vector<8x8xf32>
    %332 = vector.shape_cast %331 : vector<8x8xf32> to vector<1x8x8xf32>
    %333 = vector.broadcast %332 : vector<1x8x8xf32> to vector<4x8x8xf32>
    %334 = arith.mulf %329, %333 : vector<4x8x8xf32>
    %335 = arith.addf %326, %334 : vector<4x8x8xf32>
    %c0_154 = arith.constant 0 : index
    %c0_155 = arith.constant 0 : index
    %c1_156 = arith.constant 1 : index
    %c1_157 = arith.constant 1 : index
    %336 = vector.load %arg2[%c0_154, %c0_155, %c1_156, %c1_157] : memref<1x4x12x12xbf16, #tpu.memory_space<vmem>>, vector<1x4x8x8xbf16>
    %337 = vector.shape_cast %336 : vector<1x4x8x8xbf16> to vector<4x8x8xbf16>
    %338 = arith.extf %337 : vector<4x8x8xbf16> to vector<4x8x8xf32>
    %339 = vector.extract_strided_slice %280 {offsets = [6, 0, 0], sizes = [1, 8, 8], strides = [1, 1, 1]} : vector<25x8x8xf32> to vector<1x8x8xf32>
    %340 = vector.shape_cast %339 : vector<1x8x8xf32> to vector<8x8xf32>
    %341 = vector.shape_cast %340 : vector<8x8xf32> to vector<1x8x8xf32>
    %342 = vector.broadcast %341 : vector<1x8x8xf32> to vector<4x8x8xf32>
    %343 = arith.mulf %338, %342 : vector<4x8x8xf32>
    %344 = arith.addf %335, %343 : vector<4x8x8xf32>
    %c0_158 = arith.constant 0 : index
    %c0_159 = arith.constant 0 : index
    %c1_160 = arith.constant 1 : index
    %c2_161 = arith.constant 2 : index
    %345 = vector.load %arg2[%c0_158, %c0_159, %c1_160, %c2_161] : memref<1x4x12x12xbf16, #tpu.memory_space<vmem>>, vector<1x4x8x8xbf16>
    %346 = vector.shape_cast %345 : vector<1x4x8x8xbf16> to vector<4x8x8xbf16>
    %347 = arith.extf %346 : vector<4x8x8xbf16> to vector<4x8x8xf32>
    %348 = vector.extract_strided_slice %280 {offsets = [7, 0, 0], sizes = [1, 8, 8], strides = [1, 1, 1]} : vector<25x8x8xf32> to vector<1x8x8xf32>
    %349 = vector.shape_cast %348 : vector<1x8x8xf32> to vector<8x8xf32>
    %350 = vector.shape_cast %349 : vector<8x8xf32> to vector<1x8x8xf32>
    %351 = vector.broadcast %350 : vector<1x8x8xf32> to vector<4x8x8xf32>
    %352 = arith.mulf %347, %351 : vector<4x8x8xf32>
    %353 = arith.addf %344, %352 : vector<4x8x8xf32>
    %c0_162 = arith.constant 0 : index
    %c0_163 = arith.constant 0 : index
    %c1_164 = arith.constant 1 : index
    %c3_165 = arith.constant 3 : index
    %354 = vector.load %arg2[%c0_162, %c0_163, %c1_164, %c3_165] : memref<1x4x12x12xbf16, #tpu.memory_space<vmem>>, vector<1x4x8x8xbf16>
    %355 = vector.shape_cast %354 : vector<1x4x8x8xbf16> to vector<4x8x8xbf16>
    %356 = arith.extf %355 : vector<4x8x8xbf16> to vector<4x8x8xf32>
    %357 = vector.extract_strided_slice %280 {offsets = [8, 0, 0], sizes = [1, 8, 8], strides = [1, 1, 1]} : vector<25x8x8xf32> to vector<1x8x8xf32>
    %358 = vector.shape_cast %357 : vector<1x8x8xf32> to vector<8x8xf32>
    %359 = vector.shape_cast %358 : vector<8x8xf32> to vector<1x8x8xf32>
    %360 = vector.broadcast %359 : vector<1x8x8xf32> to vector<4x8x8xf32>
    %361 = arith.mulf %356, %360 : vector<4x8x8xf32>
    %362 = arith.addf %353, %361 : vector<4x8x8xf32>
    %c0_166 = arith.constant 0 : index
    %c0_167 = arith.constant 0 : index
    %c1_168 = arith.constant 1 : index
    %c4_169 = arith.constant 4 : index
    %363 = vector.load %arg2[%c0_166, %c0_167, %c1_168, %c4_169] : memref<1x4x12x12xbf16, #tpu.memory_space<vmem>>, vector<1x4x8x8xbf16>
    %364 = vector.shape_cast %363 : vector<1x4x8x8xbf16> to vector<4x8x8xbf16>
    %365 = arith.extf %364 : vector<4x8x8xbf16> to vector<4x8x8xf32>
    %366 = vector.extract_strided_slice %280 {offsets = [9, 0, 0], sizes = [1, 8, 8], strides = [1, 1, 1]} : vector<25x8x8xf32> to vector<1x8x8xf32>
    %367 = vector.shape_cast %366 : vector<1x8x8xf32> to vector<8x8xf32>
    %368 = vector.shape_cast %367 : vector<8x8xf32> to vector<1x8x8xf32>
    %369 = vector.broadcast %368 : vector<1x8x8xf32> to vector<4x8x8xf32>
    %370 = arith.mulf %365, %369 : vector<4x8x8xf32>
    %371 = arith.addf %362, %370 : vector<4x8x8xf32>
    %c0_170 = arith.constant 0 : index
    %c0_171 = arith.constant 0 : index
    %c2_172 = arith.constant 2 : index
    %c0_173 = arith.constant 0 : index
    %372 = vector.load %arg2[%c0_170, %c0_171, %c2_172, %c0_173] : memref<1x4x12x12xbf16, #tpu.memory_space<vmem>>, vector<1x4x8x8xbf16>
    %373 = vector.shape_cast %372 : vector<1x4x8x8xbf16> to vector<4x8x8xbf16>
    %374 = arith.extf %373 : vector<4x8x8xbf16> to vector<4x8x8xf32>
    %375 = vector.extract_strided_slice %280 {offsets = [10, 0, 0], sizes = [1, 8, 8], strides = [1, 1, 1]} : vector<25x8x8xf32> to vector<1x8x8xf32>
    %376 = vector.shape_cast %375 : vector<1x8x8xf32> to vector<8x8xf32>
    %377 = vector.shape_cast %376 : vector<8x8xf32> to vector<1x8x8xf32>
    %378 = vector.broadcast %377 : vector<1x8x8xf32> to vector<4x8x8xf32>
    %379 = arith.mulf %374, %378 : vector<4x8x8xf32>
    %380 = arith.addf %371, %379 : vector<4x8x8xf32>
    %c0_174 = arith.constant 0 : index
    %c0_175 = arith.constant 0 : index
    %c2_176 = arith.constant 2 : index
    %c1_177 = arith.constant 1 : index
    %381 = vector.load %arg2[%c0_174, %c0_175, %c2_176, %c1_177] : memref<1x4x12x12xbf16, #tpu.memory_space<vmem>>, vector<1x4x8x8xbf16>
    %382 = vector.shape_cast %381 : vector<1x4x8x8xbf16> to vector<4x8x8xbf16>
    %383 = arith.extf %382 : vector<4x8x8xbf16> to vector<4x8x8xf32>
    %384 = vector.extract_strided_slice %280 {offsets = [11, 0, 0], sizes = [1, 8, 8], strides = [1, 1, 1]} : vector<25x8x8xf32> to vector<1x8x8xf32>
    %385 = vector.shape_cast %384 : vector<1x8x8xf32> to vector<8x8xf32>
    %386 = vector.shape_cast %385 : vector<8x8xf32> to vector<1x8x8xf32>
    %387 = vector.broadcast %386 : vector<1x8x8xf32> to vector<4x8x8xf32>
    %388 = arith.mulf %383, %387 : vector<4x8x8xf32>
    %389 = arith.addf %380, %388 : vector<4x8x8xf32>
    %c0_178 = arith.constant 0 : index
    %c0_179 = arith.constant 0 : index
    %c2_180 = arith.constant 2 : index
    %c2_181 = arith.constant 2 : index
    %390 = vector.load %arg2[%c0_178, %c0_179, %c2_180, %c2_181] : memref<1x4x12x12xbf16, #tpu.memory_space<vmem>>, vector<1x4x8x8xbf16>
    %391 = vector.shape_cast %390 : vector<1x4x8x8xbf16> to vector<4x8x8xbf16>
    %392 = arith.extf %391 : vector<4x8x8xbf16> to vector<4x8x8xf32>
    %393 = vector.extract_strided_slice %280 {offsets = [12, 0, 0], sizes = [1, 8, 8], strides = [1, 1, 1]} : vector<25x8x8xf32> to vector<1x8x8xf32>
    %394 = vector.shape_cast %393 : vector<1x8x8xf32> to vector<8x8xf32>
    %395 = vector.shape_cast %394 : vector<8x8xf32> to vector<1x8x8xf32>
    %396 = vector.broadcast %395 : vector<1x8x8xf32> to vector<4x8x8xf32>
    %397 = arith.mulf %392, %396 : vector<4x8x8xf32>
    %398 = arith.addf %389, %397 : vector<4x8x8xf32>
    %c0_182 = arith.constant 0 : index
    %c0_183 = arith.constant 0 : index
    %c2_184 = arith.constant 2 : index
    %c3_185 = arith.constant 3 : index
    %399 = vector.load %arg2[%c0_182, %c0_183, %c2_184, %c3_185] : memref<1x4x12x12xbf16, #tpu.memory_space<vmem>>, vector<1x4x8x8xbf16>
    %400 = vector.shape_cast %399 : vector<1x4x8x8xbf16> to vector<4x8x8xbf16>
    %401 = arith.extf %400 : vector<4x8x8xbf16> to vector<4x8x8xf32>
    %402 = vector.extract_strided_slice %280 {offsets = [13, 0, 0], sizes = [1, 8, 8], strides = [1, 1, 1]} : vector<25x8x8xf32> to vector<1x8x8xf32>
    %403 = vector.shape_cast %402 : vector<1x8x8xf32> to vector<8x8xf32>
    %404 = vector.shape_cast %403 : vector<8x8xf32> to vector<1x8x8xf32>
    %405 = vector.broadcast %404 : vector<1x8x8xf32> to vector<4x8x8xf32>
    %406 = arith.mulf %401, %405 : vector<4x8x8xf32>
    %407 = arith.addf %398, %406 : vector<4x8x8xf32>
    %c0_186 = arith.constant 0 : index
    %c0_187 = arith.constant 0 : index
    %c2_188 = arith.constant 2 : index
    %c4_189 = arith.constant 4 : index
    %408 = vector.load %arg2[%c0_186, %c0_187, %c2_188, %c4_189] : memref<1x4x12x12xbf16, #tpu.memory_space<vmem>>, vector<1x4x8x8xbf16>
    %409 = vector.shape_cast %408 : vector<1x4x8x8xbf16> to vector<4x8x8xbf16>
    %410 = arith.extf %409 : vector<4x8x8xbf16> to vector<4x8x8xf32>
    %411 = vector.extract_strided_slice %280 {offsets = [14, 0, 0], sizes = [1, 8, 8], strides = [1, 1, 1]} : vector<25x8x8xf32> to vector<1x8x8xf32>
    %412 = vector.shape_cast %411 : vector<1x8x8xf32> to vector<8x8xf32>
    %413 = vector.shape_cast %412 : vector<8x8xf32> to vector<1x8x8xf32>
    %414 = vector.broadcast %413 : vector<1x8x8xf32> to vector<4x8x8xf32>
    %415 = arith.mulf %410, %414 : vector<4x8x8xf32>
    %416 = arith.addf %407, %415 : vector<4x8x8xf32>
    %c0_190 = arith.constant 0 : index
    %c0_191 = arith.constant 0 : index
    %c3_192 = arith.constant 3 : index
    %c0_193 = arith.constant 0 : index
    %417 = vector.load %arg2[%c0_190, %c0_191, %c3_192, %c0_193] : memref<1x4x12x12xbf16, #tpu.memory_space<vmem>>, vector<1x4x8x8xbf16>
    %418 = vector.shape_cast %417 : vector<1x4x8x8xbf16> to vector<4x8x8xbf16>
    %419 = arith.extf %418 : vector<4x8x8xbf16> to vector<4x8x8xf32>
    %420 = vector.extract_strided_slice %280 {offsets = [15, 0, 0], sizes = [1, 8, 8], strides = [1, 1, 1]} : vector<25x8x8xf32> to vector<1x8x8xf32>
    %421 = vector.shape_cast %420 : vector<1x8x8xf32> to vector<8x8xf32>
    %422 = vector.shape_cast %421 : vector<8x8xf32> to vector<1x8x8xf32>
    %423 = vector.broadcast %422 : vector<1x8x8xf32> to vector<4x8x8xf32>
    %424 = arith.mulf %419, %423 : vector<4x8x8xf32>
    %425 = arith.addf %416, %424 : vector<4x8x8xf32>
    %c0_194 = arith.constant 0 : index
    %c0_195 = arith.constant 0 : index
    %c3_196 = arith.constant 3 : index
    %c1_197 = arith.constant 1 : index
    %426 = vector.load %arg2[%c0_194, %c0_195, %c3_196, %c1_197] : memref<1x4x12x12xbf16, #tpu.memory_space<vmem>>, vector<1x4x8x8xbf16>
    %427 = vector.shape_cast %426 : vector<1x4x8x8xbf16> to vector<4x8x8xbf16>
    %428 = arith.extf %427 : vector<4x8x8xbf16> to vector<4x8x8xf32>
    %429 = vector.extract_strided_slice %280 {offsets = [16, 0, 0], sizes = [1, 8, 8], strides = [1, 1, 1]} : vector<25x8x8xf32> to vector<1x8x8xf32>
    %430 = vector.shape_cast %429 : vector<1x8x8xf32> to vector<8x8xf32>
    %431 = vector.shape_cast %430 : vector<8x8xf32> to vector<1x8x8xf32>
    %432 = vector.broadcast %431 : vector<1x8x8xf32> to vector<4x8x8xf32>
    %433 = arith.mulf %428, %432 : vector<4x8x8xf32>
    %434 = arith.addf %425, %433 : vector<4x8x8xf32>
    %c0_198 = arith.constant 0 : index
    %c0_199 = arith.constant 0 : index
    %c3_200 = arith.constant 3 : index
    %c2_201 = arith.constant 2 : index
    %435 = vector.load %arg2[%c0_198, %c0_199, %c3_200, %c2_201] : memref<1x4x12x12xbf16, #tpu.memory_space<vmem>>, vector<1x4x8x8xbf16>
    %436 = vector.shape_cast %435 : vector<1x4x8x8xbf16> to vector<4x8x8xbf16>
    %437 = arith.extf %436 : vector<4x8x8xbf16> to vector<4x8x8xf32>
    %438 = vector.extract_strided_slice %280 {offsets = [17, 0, 0], sizes = [1, 8, 8], strides = [1, 1, 1]} : vector<25x8x8xf32> to vector<1x8x8xf32>
    %439 = vector.shape_cast %438 : vector<1x8x8xf32> to vector<8x8xf32>
    %440 = vector.shape_cast %439 : vector<8x8xf32> to vector<1x8x8xf32>
    %441 = vector.broadcast %440 : vector<1x8x8xf32> to vector<4x8x8xf32>
    %442 = arith.mulf %437, %441 : vector<4x8x8xf32>
    %443 = arith.addf %434, %442 : vector<4x8x8xf32>
    %c0_202 = arith.constant 0 : index
    %c0_203 = arith.constant 0 : index
    %c3_204 = arith.constant 3 : index
    %c3_205 = arith.constant 3 : index
    %444 = vector.load %arg2[%c0_202, %c0_203, %c3_204, %c3_205] : memref<1x4x12x12xbf16, #tpu.memory_space<vmem>>, vector<1x4x8x8xbf16>
    %445 = vector.shape_cast %444 : vector<1x4x8x8xbf16> to vector<4x8x8xbf16>
    %446 = arith.extf %445 : vector<4x8x8xbf16> to vector<4x8x8xf32>
    %447 = vector.extract_strided_slice %280 {offsets = [18, 0, 0], sizes = [1, 8, 8], strides = [1, 1, 1]} : vector<25x8x8xf32> to vector<1x8x8xf32>
    %448 = vector.shape_cast %447 : vector<1x8x8xf32> to vector<8x8xf32>
    %449 = vector.shape_cast %448 : vector<8x8xf32> to vector<1x8x8xf32>
    %450 = vector.broadcast %449 : vector<1x8x8xf32> to vector<4x8x8xf32>
    %451 = arith.mulf %446, %450 : vector<4x8x8xf32>
    %452 = arith.addf %443, %451 : vector<4x8x8xf32>
    %c0_206 = arith.constant 0 : index
    %c0_207 = arith.constant 0 : index
    %c3_208 = arith.constant 3 : index
    %c4_209 = arith.constant 4 : index
    %453 = vector.load %arg2[%c0_206, %c0_207, %c3_208, %c4_209] : memref<1x4x12x12xbf16, #tpu.memory_space<vmem>>, vector<1x4x8x8xbf16>
    %454 = vector.shape_cast %453 : vector<1x4x8x8xbf16> to vector<4x8x8xbf16>
    %455 = arith.extf %454 : vector<4x8x8xbf16> to vector<4x8x8xf32>
    %456 = vector.extract_strided_slice %280 {offsets = [19, 0, 0], sizes = [1, 8, 8], strides = [1, 1, 1]} : vector<25x8x8xf32> to vector<1x8x8xf32>
    %457 = vector.shape_cast %456 : vector<1x8x8xf32> to vector<8x8xf32>
    %458 = vector.shape_cast %457 : vector<8x8xf32> to vector<1x8x8xf32>
    %459 = vector.broadcast %458 : vector<1x8x8xf32> to vector<4x8x8xf32>
    %460 = arith.mulf %455, %459 : vector<4x8x8xf32>
    %461 = arith.addf %452, %460 : vector<4x8x8xf32>
    %c0_210 = arith.constant 0 : index
    %c0_211 = arith.constant 0 : index
    %c4_212 = arith.constant 4 : index
    %c0_213 = arith.constant 0 : index
    %462 = vector.load %arg2[%c0_210, %c0_211, %c4_212, %c0_213] : memref<1x4x12x12xbf16, #tpu.memory_space<vmem>>, vector<1x4x8x8xbf16>
    %463 = vector.shape_cast %462 : vector<1x4x8x8xbf16> to vector<4x8x8xbf16>
    %464 = arith.extf %463 : vector<4x8x8xbf16> to vector<4x8x8xf32>
    %465 = vector.extract_strided_slice %280 {offsets = [20, 0, 0], sizes = [1, 8, 8], strides = [1, 1, 1]} : vector<25x8x8xf32> to vector<1x8x8xf32>
    %466 = vector.shape_cast %465 : vector<1x8x8xf32> to vector<8x8xf32>
    %467 = vector.shape_cast %466 : vector<8x8xf32> to vector<1x8x8xf32>
    %468 = vector.broadcast %467 : vector<1x8x8xf32> to vector<4x8x8xf32>
    %469 = arith.mulf %464, %468 : vector<4x8x8xf32>
    %470 = arith.addf %461, %469 : vector<4x8x8xf32>
    %c0_214 = arith.constant 0 : index
    %c0_215 = arith.constant 0 : index
    %c4_216 = arith.constant 4 : index
    %c1_217 = arith.constant 1 : index
    %471 = vector.load %arg2[%c0_214, %c0_215, %c4_216, %c1_217] : memref<1x4x12x12xbf16, #tpu.memory_space<vmem>>, vector<1x4x8x8xbf16>
    %472 = vector.shape_cast %471 : vector<1x4x8x8xbf16> to vector<4x8x8xbf16>
    %473 = arith.extf %472 : vector<4x8x8xbf16> to vector<4x8x8xf32>
    %474 = vector.extract_strided_slice %280 {offsets = [21, 0, 0], sizes = [1, 8, 8], strides = [1, 1, 1]} : vector<25x8x8xf32> to vector<1x8x8xf32>
    %475 = vector.shape_cast %474 : vector<1x8x8xf32> to vector<8x8xf32>
    %476 = vector.shape_cast %475 : vector<8x8xf32> to vector<1x8x8xf32>
    %477 = vector.broadcast %476 : vector<1x8x8xf32> to vector<4x8x8xf32>
    %478 = arith.mulf %473, %477 : vector<4x8x8xf32>
    %479 = arith.addf %470, %478 : vector<4x8x8xf32>
    %c0_218 = arith.constant 0 : index
    %c0_219 = arith.constant 0 : index
    %c4_220 = arith.constant 4 : index
    %c2_221 = arith.constant 2 : index
    %480 = vector.load %arg2[%c0_218, %c0_219, %c4_220, %c2_221] : memref<1x4x12x12xbf16, #tpu.memory_space<vmem>>, vector<1x4x8x8xbf16>
    %481 = vector.shape_cast %480 : vector<1x4x8x8xbf16> to vector<4x8x8xbf16>
    %482 = arith.extf %481 : vector<4x8x8xbf16> to vector<4x8x8xf32>
    %483 = vector.extract_strided_slice %280 {offsets = [22, 0, 0], sizes = [1, 8, 8], strides = [1, 1, 1]} : vector<25x8x8xf32> to vector<1x8x8xf32>
    %484 = vector.shape_cast %483 : vector<1x8x8xf32> to vector<8x8xf32>
    %485 = vector.shape_cast %484 : vector<8x8xf32> to vector<1x8x8xf32>
    %486 = vector.broadcast %485 : vector<1x8x8xf32> to vector<4x8x8xf32>
    %487 = arith.mulf %482, %486 : vector<4x8x8xf32>
    %488 = arith.addf %479, %487 : vector<4x8x8xf32>
    %c0_222 = arith.constant 0 : index
    %c0_223 = arith.constant 0 : index
    %c4_224 = arith.constant 4 : index
    %c3_225 = arith.constant 3 : index
    %489 = vector.load %arg2[%c0_222, %c0_223, %c4_224, %c3_225] : memref<1x4x12x12xbf16, #tpu.memory_space<vmem>>, vector<1x4x8x8xbf16>
    %490 = vector.shape_cast %489 : vector<1x4x8x8xbf16> to vector<4x8x8xbf16>
    %491 = arith.extf %490 : vector<4x8x8xbf16> to vector<4x8x8xf32>
    %492 = vector.extract_strided_slice %280 {offsets = [23, 0, 0], sizes = [1, 8, 8], strides = [1, 1, 1]} : vector<25x8x8xf32> to vector<1x8x8xf32>
    %493 = vector.shape_cast %492 : vector<1x8x8xf32> to vector<8x8xf32>
    %494 = vector.shape_cast %493 : vector<8x8xf32> to vector<1x8x8xf32>
    %495 = vector.broadcast %494 : vector<1x8x8xf32> to vector<4x8x8xf32>
    %496 = arith.mulf %491, %495 : vector<4x8x8xf32>
    %497 = arith.addf %488, %496 : vector<4x8x8xf32>
    %c0_226 = arith.constant 0 : index
    %c0_227 = arith.constant 0 : index
    %c4_228 = arith.constant 4 : index
    %c4_229 = arith.constant 4 : index
    %498 = vector.load %arg2[%c0_226, %c0_227, %c4_228, %c4_229] : memref<1x4x12x12xbf16, #tpu.memory_space<vmem>>, vector<1x4x8x8xbf16>
    %499 = vector.shape_cast %498 : vector<1x4x8x8xbf16> to vector<4x8x8xbf16>
    %500 = arith.extf %499 : vector<4x8x8xbf16> to vector<4x8x8xf32>
    %501 = vector.extract_strided_slice %280 {offsets = [24, 0, 0], sizes = [1, 8, 8], strides = [1, 1, 1]} : vector<25x8x8xf32> to vector<1x8x8xf32>
    %502 = vector.shape_cast %501 : vector<1x8x8xf32> to vector<8x8xf32>
    %503 = vector.shape_cast %502 : vector<8x8xf32> to vector<1x8x8xf32>
    %504 = vector.broadcast %503 : vector<1x8x8xf32> to vector<4x8x8xf32>
    %505 = arith.mulf %500, %504 : vector<4x8x8xf32>
    %506 = arith.addf %497, %505 : vector<4x8x8xf32>
    %c0_230 = arith.constant 0 : index
    %c1_231 = arith.constant 1 : index
    %c0_232 = arith.constant 0 : index
    %c0_233 = arith.constant 0 : index
    %c0_234 = arith.constant 0 : index
    %507 = vector.load %arg6[%c0_230, %c1_231, %c0_232, %c0_233, %c0_234] : memref<1x4x4x8x8xbf16, #tpu.memory_space<vmem>>, vector<1x1x4x8x8xbf16>
    %508 = vector.shape_cast %507 : vector<1x1x4x8x8xbf16> to vector<4x8x8xbf16>
    %509 = arith.extf %508 : vector<4x8x8xbf16> to vector<4x8x8xf32>
    %510 = vector.shape_cast %7 : vector<8x8xf32> to vector<1x8x8xf32>
    %511 = vector.broadcast %510 : vector<1x8x8xf32> to vector<4x8x8xf32>
    %512 = arith.mulf %511, %509 : vector<4x8x8xf32>
    %513 = vector.shape_cast %9 : vector<8x8xf32> to vector<1x8x8xf32>
    %514 = vector.broadcast %513 : vector<1x8x8xf32> to vector<4x8x8xf32>
    %515 = arith.mulf %514, %506 : vector<4x8x8xf32>
    %516 = arith.addf %512, %515 : vector<4x8x8xf32>
    %517 = arith.truncf %516 : vector<4x8x8xf32> to vector<4x8x8xbf16>
    %c0_235 = arith.constant 0 : index
    %c1_236 = arith.constant 1 : index
    %c0_237 = arith.constant 0 : index
    %c0_238 = arith.constant 0 : index
    %c0_239 = arith.constant 0 : index
    %518 = vector.load %arg7[%c0_235, %c1_236, %c0_237, %c0_238, %c0_239] : memref<1x4x4x8x8xbf16, #tpu.memory_space<vmem>>, vector<1x1x4x8x8xbf16>
    %519 = vector.shape_cast %518 : vector<1x1x4x8x8xbf16> to vector<4x8x8xbf16>
    %520 = vector.shape_cast %517 : vector<4x8x8xbf16> to vector<1x1x4x8x8xbf16>
    tpu.vector_store %arg7[%c0_235, %c1_236, %c0_237, %c0_238, %c0_239], %520 {strides = array<i32>} : memref<1x4x4x8x8xbf16, #tpu.memory_space<vmem>>, vector<1x1x4x8x8xbf16>,
    %c0_240 = arith.constant 0 : index
    %c2_241 = arith.constant 2 : index
    %c0_242 = arith.constant 0 : index
    %c0_243 = arith.constant 0 : index
    %c0_244 = arith.constant 0 : index
    %521 = vector.load %arg3[%c0_240, %c2_241, %c0_242, %c0_243, %c0_244] : memref<25x4x1x8x8xbf16, #tpu.memory_space<vmem>>, vector<25x1x1x8x8xbf16>
    %522 = vector.shape_cast %521 : vector<25x1x1x8x8xbf16> to vector<25x8x8xbf16>
    %523 = arith.extf %522 : vector<25x8x8xbf16> to vector<25x8x8xf32>
    %524 = arith.addf %523, %12 : vector<25x8x8xf32>
    %cst_245 = arith.constant dense<0xFF800000> : vector<8x8xf32>
    %525 = vector.multi_reduction <maximumf>, %524, %cst_245 [0] : vector<25x8x8xf32> to vector<8x8xf32>
    %526 = vector.shape_cast %525 : vector<8x8xf32> to vector<1x8x8xf32>
    %527 = vector.broadcast %526 : vector<1x8x8xf32> to vector<25x8x8xf32>
    %528 = arith.subf %524, %527 : vector<25x8x8xf32>
    %529 = math.exp %528 : vector<25x8x8xf32>
    %cst_246 = arith.constant dense<0.000000e+00> : vector<8x8xf32>
    %530 = vector.multi_reduction <add>, %529, %cst_246 [0] : vector<25x8x8xf32> to vector<8x8xf32>
    %531 = vector.shape_cast %530 : vector<8x8xf32> to vector<1x8x8xf32>
    %532 = tpu.reciprocal %531 {approx = true} : vector<1x8x8xf32> -> vector<1x8x8xf32>
    %533 = vector.broadcast %532 : vector<1x8x8xf32> to vector<25x8x8xf32>
    %534 = arith.mulf %529, %533 : vector<25x8x8xf32>
    %cst_247 = arith.constant 0.000000e+00 : f32
    %535 = vector.broadcast %cst_247 : f32 to vector<4x8x8xf32>
    %c0_248 = arith.constant 0 : index
    %c0_249 = arith.constant 0 : index
    %c0_250 = arith.constant 0 : index
    %c0_251 = arith.constant 0 : index
    %536 = vector.load %arg2[%c0_248, %c0_249, %c0_250, %c0_251] : memref<1x4x12x12xbf16, #tpu.memory_space<vmem>>, vector<1x4x8x8xbf16>
    %537 = vector.shape_cast %536 : vector<1x4x8x8xbf16> to vector<4x8x8xbf16>
    %538 = arith.extf %537 : vector<4x8x8xbf16> to vector<4x8x8xf32>
    %539 = vector.extract_strided_slice %534 {offsets = [0, 0, 0], sizes = [1, 8, 8], strides = [1, 1, 1]} : vector<25x8x8xf32> to vector<1x8x8xf32>
    %540 = vector.shape_cast %539 : vector<1x8x8xf32> to vector<8x8xf32>
    %541 = vector.shape_cast %540 : vector<8x8xf32> to vector<1x8x8xf32>
    %542 = vector.broadcast %541 : vector<1x8x8xf32> to vector<4x8x8xf32>
    %543 = arith.mulf %538, %542 : vector<4x8x8xf32>
    %544 = arith.addf %535, %543 : vector<4x8x8xf32>
    %c0_252 = arith.constant 0 : index
    %c0_253 = arith.constant 0 : index
    %c0_254 = arith.constant 0 : index
    %c1_255 = arith.constant 1 : index
    %545 = vector.load %arg2[%c0_252, %c0_253, %c0_254, %c1_255] : memref<1x4x12x12xbf16, #tpu.memory_space<vmem>>, vector<1x4x8x8xbf16>
    %546 = vector.shape_cast %545 : vector<1x4x8x8xbf16> to vector<4x8x8xbf16>
    %547 = arith.extf %546 : vector<4x8x8xbf16> to vector<4x8x8xf32>
    %548 = vector.extract_strided_slice %534 {offsets = [1, 0, 0], sizes = [1, 8, 8], strides = [1, 1, 1]} : vector<25x8x8xf32> to vector<1x8x8xf32>
    %549 = vector.shape_cast %548 : vector<1x8x8xf32> to vector<8x8xf32>
    %550 = vector.shape_cast %549 : vector<8x8xf32> to vector<1x8x8xf32>
    %551 = vector.broadcast %550 : vector<1x8x8xf32> to vector<4x8x8xf32>
    %552 = arith.mulf %547, %551 : vector<4x8x8xf32>
    %553 = arith.addf %544, %552 : vector<4x8x8xf32>
    %c0_256 = arith.constant 0 : index
    %c0_257 = arith.constant 0 : index
    %c0_258 = arith.constant 0 : index
    %c2_259 = arith.constant 2 : index
    %554 = vector.load %arg2[%c0_256, %c0_257, %c0_258, %c2_259] : memref<1x4x12x12xbf16, #tpu.memory_space<vmem>>, vector<1x4x8x8xbf16>
    %555 = vector.shape_cast %554 : vector<1x4x8x8xbf16> to vector<4x8x8xbf16>
    %556 = arith.extf %555 : vector<4x8x8xbf16> to vector<4x8x8xf32>
    %557 = vector.extract_strided_slice %534 {offsets = [2, 0, 0], sizes = [1, 8, 8], strides = [1, 1, 1]} : vector<25x8x8xf32> to vector<1x8x8xf32>
    %558 = vector.shape_cast %557 : vector<1x8x8xf32> to vector<8x8xf32>
    %559 = vector.shape_cast %558 : vector<8x8xf32> to vector<1x8x8xf32>
    %560 = vector.broadcast %559 : vector<1x8x8xf32> to vector<4x8x8xf32>
    %561 = arith.mulf %556, %560 : vector<4x8x8xf32>
    %562 = arith.addf %553, %561 : vector<4x8x8xf32>
    %c0_260 = arith.constant 0 : index
    %c0_261 = arith.constant 0 : index
    %c0_262 = arith.constant 0 : index
    %c3_263 = arith.constant 3 : index
    %563 = vector.load %arg2[%c0_260, %c0_261, %c0_262, %c3_263] : memref<1x4x12x12xbf16, #tpu.memory_space<vmem>>, vector<1x4x8x8xbf16>
    %564 = vector.shape_cast %563 : vector<1x4x8x8xbf16> to vector<4x8x8xbf16>
    %565 = arith.extf %564 : vector<4x8x8xbf16> to vector<4x8x8xf32>
    %566 = vector.extract_strided_slice %534 {offsets = [3, 0, 0], sizes = [1, 8, 8], strides = [1, 1, 1]} : vector<25x8x8xf32> to vector<1x8x8xf32>
    %567 = vector.shape_cast %566 : vector<1x8x8xf32> to vector<8x8xf32>
    %568 = vector.shape_cast %567 : vector<8x8xf32> to vector<1x8x8xf32>
    %569 = vector.broadcast %568 : vector<1x8x8xf32> to vector<4x8x8xf32>
    %570 = arith.mulf %565, %569 : vector<4x8x8xf32>
    %571 = arith.addf %562, %570 : vector<4x8x8xf32>
    %c0_264 = arith.constant 0 : index
    %c0_265 = arith.constant 0 : index
    %c0_266 = arith.constant 0 : index
    %c4_267 = arith.constant 4 : index
    %572 = vector.load %arg2[%c0_264, %c0_265, %c0_266, %c4_267] : memref<1x4x12x12xbf16, #tpu.memory_space<vmem>>, vector<1x4x8x8xbf16>
    %573 = vector.shape_cast %572 : vector<1x4x8x8xbf16> to vector<4x8x8xbf16>
    %574 = arith.extf %573 : vector<4x8x8xbf16> to vector<4x8x8xf32>
    %575 = vector.extract_strided_slice %534 {offsets = [4, 0, 0], sizes = [1, 8, 8], strides = [1, 1, 1]} : vector<25x8x8xf32> to vector<1x8x8xf32>
    %576 = vector.shape_cast %575 : vector<1x8x8xf32> to vector<8x8xf32>
    %577 = vector.shape_cast %576 : vector<8x8xf32> to vector<1x8x8xf32>
    %578 = vector.broadcast %577 : vector<1x8x8xf32> to vector<4x8x8xf32>
    %579 = arith.mulf %574, %578 : vector<4x8x8xf32>
    %580 = arith.addf %571, %579 : vector<4x8x8xf32>
    %c0_268 = arith.constant 0 : index
    %c0_269 = arith.constant 0 : index
    %c1_270 = arith.constant 1 : index
    %c0_271 = arith.constant 0 : index
    %581 = vector.load %arg2[%c0_268, %c0_269, %c1_270, %c0_271] : memref<1x4x12x12xbf16, #tpu.memory_space<vmem>>, vector<1x4x8x8xbf16>
    %582 = vector.shape_cast %581 : vector<1x4x8x8xbf16> to vector<4x8x8xbf16>
    %583 = arith.extf %582 : vector<4x8x8xbf16> to vector<4x8x8xf32>
    %584 = vector.extract_strided_slice %534 {offsets = [5, 0, 0], sizes = [1, 8, 8], strides = [1, 1, 1]} : vector<25x8x8xf32> to vector<1x8x8xf32>
    %585 = vector.shape_cast %584 : vector<1x8x8xf32> to vector<8x8xf32>
    %586 = vector.shape_cast %585 : vector<8x8xf32> to vector<1x8x8xf32>
    %587 = vector.broadcast %586 : vector<1x8x8xf32> to vector<4x8x8xf32>
    %588 = arith.mulf %583, %587 : vector<4x8x8xf32>
    %589 = arith.addf %580, %588 : vector<4x8x8xf32>
    %c0_272 = arith.constant 0 : index
    %c0_273 = arith.constant 0 : index
    %c1_274 = arith.constant 1 : index
    %c1_275 = arith.constant 1 : index
    %590 = vector.load %arg2[%c0_272, %c0_273, %c1_274, %c1_275] : memref<1x4x12x12xbf16, #tpu.memory_space<vmem>>, vector<1x4x8x8xbf16>
    %591 = vector.shape_cast %590 : vector<1x4x8x8xbf16> to vector<4x8x8xbf16>
    %592 = arith.extf %591 : vector<4x8x8xbf16> to vector<4x8x8xf32>
    %593 = vector.extract_strided_slice %534 {offsets = [6, 0, 0], sizes = [1, 8, 8], strides = [1, 1, 1]} : vector<25x8x8xf32> to vector<1x8x8xf32>
    %594 = vector.shape_cast %593 : vector<1x8x8xf32> to vector<8x8xf32>
    %595 = vector.shape_cast %594 : vector<8x8xf32> to vector<1x8x8xf32>
    %596 = vector.broadcast %595 : vector<1x8x8xf32> to vector<4x8x8xf32>
    %597 = arith.mulf %592, %596 : vector<4x8x8xf32>
    %598 = arith.addf %589, %597 : vector<4x8x8xf32>
    %c0_276 = arith.constant 0 : index
    %c0_277 = arith.constant 0 : index
    %c1_278 = arith.constant 1 : index
    %c2_279 = arith.constant 2 : index
    %599 = vector.load %arg2[%c0_276, %c0_277, %c1_278, %c2_279] : memref<1x4x12x12xbf16, #tpu.memory_space<vmem>>, vector<1x4x8x8xbf16>
    %600 = vector.shape_cast %599 : vector<1x4x8x8xbf16> to vector<4x8x8xbf16>
    %601 = arith.extf %600 : vector<4x8x8xbf16> to vector<4x8x8xf32>
    %602 = vector.extract_strided_slice %534 {offsets = [7, 0, 0], sizes = [1, 8, 8], strides = [1, 1, 1]} : vector<25x8x8xf32> to vector<1x8x8xf32>
    %603 = vector.shape_cast %602 : vector<1x8x8xf32> to vector<8x8xf32>
    %604 = vector.shape_cast %603 : vector<8x8xf32> to vector<1x8x8xf32>
    %605 = vector.broadcast %604 : vector<1x8x8xf32> to vector<4x8x8xf32>
    %606 = arith.mulf %601, %605 : vector<4x8x8xf32>
    %607 = arith.addf %598, %606 : vector<4x8x8xf32>
    %c0_280 = arith.constant 0 : index
    %c0_281 = arith.constant 0 : index
    %c1_282 = arith.constant 1 : index
    %c3_283 = arith.constant 3 : index
    %608 = vector.load %arg2[%c0_280, %c0_281, %c1_282, %c3_283] : memref<1x4x12x12xbf16, #tpu.memory_space<vmem>>, vector<1x4x8x8xbf16>
    %609 = vector.shape_cast %608 : vector<1x4x8x8xbf16> to vector<4x8x8xbf16>
    %610 = arith.extf %609 : vector<4x8x8xbf16> to vector<4x8x8xf32>
    %611 = vector.extract_strided_slice %534 {offsets = [8, 0, 0], sizes = [1, 8, 8], strides = [1, 1, 1]} : vector<25x8x8xf32> to vector<1x8x8xf32>
    %612 = vector.shape_cast %611 : vector<1x8x8xf32> to vector<8x8xf32>
    %613 = vector.shape_cast %612 : vector<8x8xf32> to vector<1x8x8xf32>
    %614 = vector.broadcast %613 : vector<1x8x8xf32> to vector<4x8x8xf32>
    %615 = arith.mulf %610, %614 : vector<4x8x8xf32>
    %616 = arith.addf %607, %615 : vector<4x8x8xf32>
    %c0_284 = arith.constant 0 : index
    %c0_285 = arith.constant 0 : index
    %c1_286 = arith.constant 1 : index
    %c4_287 = arith.constant 4 : index
    %617 = vector.load %arg2[%c0_284, %c0_285, %c1_286, %c4_287] : memref<1x4x12x12xbf16, #tpu.memory_space<vmem>>, vector<1x4x8x8xbf16>
    %618 = vector.shape_cast %617 : vector<1x4x8x8xbf16> to vector<4x8x8xbf16>
    %619 = arith.extf %618 : vector<4x8x8xbf16> to vector<4x8x8xf32>
    %620 = vector.extract_strided_slice %534 {offsets = [9, 0, 0], sizes = [1, 8, 8], strides = [1, 1, 1]} : vector<25x8x8xf32> to vector<1x8x8xf32>
    %621 = vector.shape_cast %620 : vector<1x8x8xf32> to vector<8x8xf32>
    %622 = vector.shape_cast %621 : vector<8x8xf32> to vector<1x8x8xf32>
    %623 = vector.broadcast %622 : vector<1x8x8xf32> to vector<4x8x8xf32>
    %624 = arith.mulf %619, %623 : vector<4x8x8xf32>
    %625 = arith.addf %616, %624 : vector<4x8x8xf32>
    %c0_288 = arith.constant 0 : index
    %c0_289 = arith.constant 0 : index
    %c2_290 = arith.constant 2 : index
    %c0_291 = arith.constant 0 : index
    %626 = vector.load %arg2[%c0_288, %c0_289, %c2_290, %c0_291] : memref<1x4x12x12xbf16, #tpu.memory_space<vmem>>, vector<1x4x8x8xbf16>
    %627 = vector.shape_cast %626 : vector<1x4x8x8xbf16> to vector<4x8x8xbf16>
    %628 = arith.extf %627 : vector<4x8x8xbf16> to vector<4x8x8xf32>
    %629 = vector.extract_strided_slice %534 {offsets = [10, 0, 0], sizes = [1, 8, 8], strides = [1, 1, 1]} : vector<25x8x8xf32> to vector<1x8x8xf32>
    %630 = vector.shape_cast %629 : vector<1x8x8xf32> to vector<8x8xf32>
    %631 = vector.shape_cast %630 : vector<8x8xf32> to vector<1x8x8xf32>
    %632 = vector.broadcast %631 : vector<1x8x8xf32> to vector<4x8x8xf32>
    %633 = arith.mulf %628, %632 : vector<4x8x8xf32>
    %634 = arith.addf %625, %633 : vector<4x8x8xf32>
    %c0_292 = arith.constant 0 : index
    %c0_293 = arith.constant 0 : index
    %c2_294 = arith.constant 2 : index
    %c1_295 = arith.constant 1 : index
    %635 = vector.load %arg2[%c0_292, %c0_293, %c2_294, %c1_295] : memref<1x4x12x12xbf16, #tpu.memory_space<vmem>>, vector<1x4x8x8xbf16>
    %636 = vector.shape_cast %635 : vector<1x4x8x8xbf16> to vector<4x8x8xbf16>
    %637 = arith.extf %636 : vector<4x8x8xbf16> to vector<4x8x8xf32>
    %638 = vector.extract_strided_slice %534 {offsets = [11, 0, 0], sizes = [1, 8, 8], strides = [1, 1, 1]} : vector<25x8x8xf32> to vector<1x8x8xf32>
    %639 = vector.shape_cast %638 : vector<1x8x8xf32> to vector<8x8xf32>
    %640 = vector.shape_cast %639 : vector<8x8xf32> to vector<1x8x8xf32>
    %641 = vector.broadcast %640 : vector<1x8x8xf32> to vector<4x8x8xf32>
    %642 = arith.mulf %637, %641 : vector<4x8x8xf32>
    %643 = arith.addf %634, %642 : vector<4x8x8xf32>
    %c0_296 = arith.constant 0 : index
    %c0_297 = arith.constant 0 : index
    %c2_298 = arith.constant 2 : index
    %c2_299 = arith.constant 2 : index
    %644 = vector.load %arg2[%c0_296, %c0_297, %c2_298, %c2_299] : memref<1x4x12x12xbf16, #tpu.memory_space<vmem>>, vector<1x4x8x8xbf16>
    %645 = vector.shape_cast %644 : vector<1x4x8x8xbf16> to vector<4x8x8xbf16>
    %646 = arith.extf %645 : vector<4x8x8xbf16> to vector<4x8x8xf32>
    %647 = vector.extract_strided_slice %534 {offsets = [12, 0, 0], sizes = [1, 8, 8], strides = [1, 1, 1]} : vector<25x8x8xf32> to vector<1x8x8xf32>
    %648 = vector.shape_cast %647 : vector<1x8x8xf32> to vector<8x8xf32>
    %649 = vector.shape_cast %648 : vector<8x8xf32> to vector<1x8x8xf32>
    %650 = vector.broadcast %649 : vector<1x8x8xf32> to vector<4x8x8xf32>
    %651 = arith.mulf %646, %650 : vector<4x8x8xf32>
    %652 = arith.addf %643, %651 : vector<4x8x8xf32>
    %c0_300 = arith.constant 0 : index
    %c0_301 = arith.constant 0 : index
    %c2_302 = arith.constant 2 : index
    %c3_303 = arith.constant 3 : index
    %653 = vector.load %arg2[%c0_300, %c0_301, %c2_302, %c3_303] : memref<1x4x12x12xbf16, #tpu.memory_space<vmem>>, vector<1x4x8x8xbf16>
    %654 = vector.shape_cast %653 : vector<1x4x8x8xbf16> to vector<4x8x8xbf16>
    %655 = arith.extf %654 : vector<4x8x8xbf16> to vector<4x8x8xf32>
    %656 = vector.extract_strided_slice %534 {offsets = [13, 0, 0], sizes = [1, 8, 8], strides = [1, 1, 1]} : vector<25x8x8xf32> to vector<1x8x8xf32>
    %657 = vector.shape_cast %656 : vector<1x8x8xf32> to vector<8x8xf32>
    %658 = vector.shape_cast %657 : vector<8x8xf32> to vector<1x8x8xf32>
    %659 = vector.broadcast %658 : vector<1x8x8xf32> to vector<4x8x8xf32>
    %660 = arith.mulf %655, %659 : vector<4x8x8xf32>
    %661 = arith.addf %652, %660 : vector<4x8x8xf32>
    %c0_304 = arith.constant 0 : index
    %c0_305 = arith.constant 0 : index
    %c2_306 = arith.constant 2 : index
    %c4_307 = arith.constant 4 : index
    %662 = vector.load %arg2[%c0_304, %c0_305, %c2_306, %c4_307] : memref<1x4x12x12xbf16, #tpu.memory_space<vmem>>, vector<1x4x8x8xbf16>
    %663 = vector.shape_cast %662 : vector<1x4x8x8xbf16> to vector<4x8x8xbf16>
    %664 = arith.extf %663 : vector<4x8x8xbf16> to vector<4x8x8xf32>
    %665 = vector.extract_strided_slice %534 {offsets = [14, 0, 0], sizes = [1, 8, 8], strides = [1, 1, 1]} : vector<25x8x8xf32> to vector<1x8x8xf32>
    %666 = vector.shape_cast %665 : vector<1x8x8xf32> to vector<8x8xf32>
    %667 = vector.shape_cast %666 : vector<8x8xf32> to vector<1x8x8xf32>
    %668 = vector.broadcast %667 : vector<1x8x8xf32> to vector<4x8x8xf32>
    %669 = arith.mulf %664, %668 : vector<4x8x8xf32>
    %670 = arith.addf %661, %669 : vector<4x8x8xf32>
    %c0_308 = arith.constant 0 : index
    %c0_309 = arith.constant 0 : index
    %c3_310 = arith.constant 3 : index
    %c0_311 = arith.constant 0 : index
    %671 = vector.load %arg2[%c0_308, %c0_309, %c3_310, %c0_311] : memref<1x4x12x12xbf16, #tpu.memory_space<vmem>>, vector<1x4x8x8xbf16>
    %672 = vector.shape_cast %671 : vector<1x4x8x8xbf16> to vector<4x8x8xbf16>
    %673 = arith.extf %672 : vector<4x8x8xbf16> to vector<4x8x8xf32>
    %674 = vector.extract_strided_slice %534 {offsets = [15, 0, 0], sizes = [1, 8, 8], strides = [1, 1, 1]} : vector<25x8x8xf32> to vector<1x8x8xf32>
    %675 = vector.shape_cast %674 : vector<1x8x8xf32> to vector<8x8xf32>
    %676 = vector.shape_cast %675 : vector<8x8xf32> to vector<1x8x8xf32>
    %677 = vector.broadcast %676 : vector<1x8x8xf32> to vector<4x8x8xf32>
    %678 = arith.mulf %673, %677 : vector<4x8x8xf32>
    %679 = arith.addf %670, %678 : vector<4x8x8xf32>
    %c0_312 = arith.constant 0 : index
    %c0_313 = arith.constant 0 : index
    %c3_314 = arith.constant 3 : index
    %c1_315 = arith.constant 1 : index
    %680 = vector.load %arg2[%c0_312, %c0_313, %c3_314, %c1_315] : memref<1x4x12x12xbf16, #tpu.memory_space<vmem>>, vector<1x4x8x8xbf16>
    %681 = vector.shape_cast %680 : vector<1x4x8x8xbf16> to vector<4x8x8xbf16>
    %682 = arith.extf %681 : vector<4x8x8xbf16> to vector<4x8x8xf32>
    %683 = vector.extract_strided_slice %534 {offsets = [16, 0, 0], sizes = [1, 8, 8], strides = [1, 1, 1]} : vector<25x8x8xf32> to vector<1x8x8xf32>
    %684 = vector.shape_cast %683 : vector<1x8x8xf32> to vector<8x8xf32>
    %685 = vector.shape_cast %684 : vector<8x8xf32> to vector<1x8x8xf32>
    %686 = vector.broadcast %685 : vector<1x8x8xf32> to vector<4x8x8xf32>
    %687 = arith.mulf %682, %686 : vector<4x8x8xf32>
    %688 = arith.addf %679, %687 : vector<4x8x8xf32>
    %c0_316 = arith.constant 0 : index
    %c0_317 = arith.constant 0 : index
    %c3_318 = arith.constant 3 : index
    %c2_319 = arith.constant 2 : index
    %689 = vector.load %arg2[%c0_316, %c0_317, %c3_318, %c2_319] : memref<1x4x12x12xbf16, #tpu.memory_space<vmem>>, vector<1x4x8x8xbf16>
    %690 = vector.shape_cast %689 : vector<1x4x8x8xbf16> to vector<4x8x8xbf16>
    %691 = arith.extf %690 : vector<4x8x8xbf16> to vector<4x8x8xf32>
    %692 = vector.extract_strided_slice %534 {offsets = [17, 0, 0], sizes = [1, 8, 8], strides = [1, 1, 1]} : vector<25x8x8xf32> to vector<1x8x8xf32>
    %693 = vector.shape_cast %692 : vector<1x8x8xf32> to vector<8x8xf32>
    %694 = vector.shape_cast %693 : vector<8x8xf32> to vector<1x8x8xf32>
    %695 = vector.broadcast %694 : vector<1x8x8xf32> to vector<4x8x8xf32>
    %696 = arith.mulf %691, %695 : vector<4x8x8xf32>
    %697 = arith.addf %688, %696 : vector<4x8x8xf32>
    %c0_320 = arith.constant 0 : index
    %c0_321 = arith.constant 0 : index
    %c3_322 = arith.constant 3 : index
    %c3_323 = arith.constant 3 : index
    %698 = vector.load %arg2[%c0_320, %c0_321, %c3_322, %c3_323] : memref<1x4x12x12xbf16, #tpu.memory_space<vmem>>, vector<1x4x8x8xbf16>
    %699 = vector.shape_cast %698 : vector<1x4x8x8xbf16> to vector<4x8x8xbf16>
    %700 = arith.extf %699 : vector<4x8x8xbf16> to vector<4x8x8xf32>
    %701 = vector.extract_strided_slice %534 {offsets = [18, 0, 0], sizes = [1, 8, 8], strides = [1, 1, 1]} : vector<25x8x8xf32> to vector<1x8x8xf32>
    %702 = vector.shape_cast %701 : vector<1x8x8xf32> to vector<8x8xf32>
    %703 = vector.shape_cast %702 : vector<8x8xf32> to vector<1x8x8xf32>
    %704 = vector.broadcast %703 : vector<1x8x8xf32> to vector<4x8x8xf32>
    %705 = arith.mulf %700, %704 : vector<4x8x8xf32>
    %706 = arith.addf %697, %705 : vector<4x8x8xf32>
    %c0_324 = arith.constant 0 : index
    %c0_325 = arith.constant 0 : index
    %c3_326 = arith.constant 3 : index
    %c4_327 = arith.constant 4 : index
    %707 = vector.load %arg2[%c0_324, %c0_325, %c3_326, %c4_327] : memref<1x4x12x12xbf16, #tpu.memory_space<vmem>>, vector<1x4x8x8xbf16>
    %708 = vector.shape_cast %707 : vector<1x4x8x8xbf16> to vector<4x8x8xbf16>
    %709 = arith.extf %708 : vector<4x8x8xbf16> to vector<4x8x8xf32>
    %710 = vector.extract_strided_slice %534 {offsets = [19, 0, 0], sizes = [1, 8, 8], strides = [1, 1, 1]} : vector<25x8x8xf32> to vector<1x8x8xf32>
    %711 = vector.shape_cast %710 : vector<1x8x8xf32> to vector<8x8xf32>
    %712 = vector.shape_cast %711 : vector<8x8xf32> to vector<1x8x8xf32>
    %713 = vector.broadcast %712 : vector<1x8x8xf32> to vector<4x8x8xf32>
    %714 = arith.mulf %709, %713 : vector<4x8x8xf32>
    %715 = arith.addf %706, %714 : vector<4x8x8xf32>
    %c0_328 = arith.constant 0 : index
    %c0_329 = arith.constant 0 : index
    %c4_330 = arith.constant 4 : index
    %c0_331 = arith.constant 0 : index
    %716 = vector.load %arg2[%c0_328, %c0_329, %c4_330, %c0_331] : memref<1x4x12x12xbf16, #tpu.memory_space<vmem>>, vector<1x4x8x8xbf16>
    %717 = vector.shape_cast %716 : vector<1x4x8x8xbf16> to vector<4x8x8xbf16>
    %718 = arith.extf %717 : vector<4x8x8xbf16> to vector<4x8x8xf32>
    %719 = vector.extract_strided_slice %534 {offsets = [20, 0, 0], sizes = [1, 8, 8], strides = [1, 1, 1]} : vector<25x8x8xf32> to vector<1x8x8xf32>
    %720 = vector.shape_cast %719 : vector<1x8x8xf32> to vector<8x8xf32>
    %721 = vector.shape_cast %720 : vector<8x8xf32> to vector<1x8x8xf32>
    %722 = vector.broadcast %721 : vector<1x8x8xf32> to vector<4x8x8xf32>
    %723 = arith.mulf %718, %722 : vector<4x8x8xf32>
    %724 = arith.addf %715, %723 : vector<4x8x8xf32>
    %c0_332 = arith.constant 0 : index
    %c0_333 = arith.constant 0 : index
    %c4_334 = arith.constant 4 : index
    %c1_335 = arith.constant 1 : index
    %725 = vector.load %arg2[%c0_332, %c0_333, %c4_334, %c1_335] : memref<1x4x12x12xbf16, #tpu.memory_space<vmem>>, vector<1x4x8x8xbf16>
    %726 = vector.shape_cast %725 : vector<1x4x8x8xbf16> to vector<4x8x8xbf16>
    %727 = arith.extf %726 : vector<4x8x8xbf16> to vector<4x8x8xf32>
    %728 = vector.extract_strided_slice %534 {offsets = [21, 0, 0], sizes = [1, 8, 8], strides = [1, 1, 1]} : vector<25x8x8xf32> to vector<1x8x8xf32>
    %729 = vector.shape_cast %728 : vector<1x8x8xf32> to vector<8x8xf32>
    %730 = vector.shape_cast %729 : vector<8x8xf32> to vector<1x8x8xf32>
    %731 = vector.broadcast %730 : vector<1x8x8xf32> to vector<4x8x8xf32>
    %732 = arith.mulf %727, %731 : vector<4x8x8xf32>
    %733 = arith.addf %724, %732 : vector<4x8x8xf32>
    %c0_336 = arith.constant 0 : index
    %c0_337 = arith.constant 0 : index
    %c4_338 = arith.constant 4 : index
    %c2_339 = arith.constant 2 : index
    %734 = vector.load %arg2[%c0_336, %c0_337, %c4_338, %c2_339] : memref<1x4x12x12xbf16, #tpu.memory_space<vmem>>, vector<1x4x8x8xbf16>
    %735 = vector.shape_cast %734 : vector<1x4x8x8xbf16> to vector<4x8x8xbf16>
    %736 = arith.extf %735 : vector<4x8x8xbf16> to vector<4x8x8xf32>
    %737 = vector.extract_strided_slice %534 {offsets = [22, 0, 0], sizes = [1, 8, 8], strides = [1, 1, 1]} : vector<25x8x8xf32> to vector<1x8x8xf32>
    %738 = vector.shape_cast %737 : vector<1x8x8xf32> to vector<8x8xf32>
    %739 = vector.shape_cast %738 : vector<8x8xf32> to vector<1x8x8xf32>
    %740 = vector.broadcast %739 : vector<1x8x8xf32> to vector<4x8x8xf32>
    %741 = arith.mulf %736, %740 : vector<4x8x8xf32>
    %742 = arith.addf %733, %741 : vector<4x8x8xf32>
    %c0_340 = arith.constant 0 : index
    %c0_341 = arith.constant 0 : index
    %c4_342 = arith.constant 4 : index
    %c3_343 = arith.constant 3 : index
    %743 = vector.load %arg2[%c0_340, %c0_341, %c4_342, %c3_343] : memref<1x4x12x12xbf16, #tpu.memory_space<vmem>>, vector<1x4x8x8xbf16>
    %744 = vector.shape_cast %743 : vector<1x4x8x8xbf16> to vector<4x8x8xbf16>
    %745 = arith.extf %744 : vector<4x8x8xbf16> to vector<4x8x8xf32>
    %746 = vector.extract_strided_slice %534 {offsets = [23, 0, 0], sizes = [1, 8, 8], strides = [1, 1, 1]} : vector<25x8x8xf32> to vector<1x8x8xf32>
    %747 = vector.shape_cast %746 : vector<1x8x8xf32> to vector<8x8xf32>
    %748 = vector.shape_cast %747 : vector<8x8xf32> to vector<1x8x8xf32>
    %749 = vector.broadcast %748 : vector<1x8x8xf32> to vector<4x8x8xf32>
    %750 = arith.mulf %745, %749 : vector<4x8x8xf32>
    %751 = arith.addf %742, %750 : vector<4x8x8xf32>
    %c0_344 = arith.constant 0 : index
    %c0_345 = arith.constant 0 : index
    %c4_346 = arith.constant 4 : index
    %c4_347 = arith.constant 4 : index
    %752 = vector.load %arg2[%c0_344, %c0_345, %c4_346, %c4_347] : memref<1x4x12x12xbf16, #tpu.memory_space<vmem>>, vector<1x4x8x8xbf16>
    %753 = vector.shape_cast %752 : vector<1x4x8x8xbf16> to vector<4x8x8xbf16>
    %754 = arith.extf %753 : vector<4x8x8xbf16> to vector<4x8x8xf32>
    %755 = vector.extract_strided_slice %534 {offsets = [24, 0, 0], sizes = [1, 8, 8], strides = [1, 1, 1]} : vector<25x8x8xf32> to vector<1x8x8xf32>
    %756 = vector.shape_cast %755 : vector<1x8x8xf32> to vector<8x8xf32>
    %757 = vector.shape_cast %756 : vector<8x8xf32> to vector<1x8x8xf32>
    %758 = vector.broadcast %757 : vector<1x8x8xf32> to vector<4x8x8xf32>
    %759 = arith.mulf %754, %758 : vector<4x8x8xf32>
    %760 = arith.addf %751, %759 : vector<4x8x8xf32>
    %c0_348 = arith.constant 0 : index
    %c2_349 = arith.constant 2 : index
    %c0_350 = arith.constant 0 : index
    %c0_351 = arith.constant 0 : index
    %c0_352 = arith.constant 0 : index
    %761 = vector.load %arg6[%c0_348, %c2_349, %c0_350, %c0_351, %c0_352] : memref<1x4x4x8x8xbf16, #tpu.memory_space<vmem>>, vector<1x1x4x8x8xbf16>
    %762 = vector.shape_cast %761 : vector<1x1x4x8x8xbf16> to vector<4x8x8xbf16>
    %763 = arith.extf %762 : vector<4x8x8xbf16> to vector<4x8x8xf32>
    %764 = vector.shape_cast %7 : vector<8x8xf32> to vector<1x8x8xf32>
    %765 = vector.broadcast %764 : vector<1x8x8xf32> to vector<4x8x8xf32>
    %766 = arith.mulf %765, %763 : vector<4x8x8xf32>
    %767 = vector.shape_cast %9 : vector<8x8xf32> to vector<1x8x8xf32>
    %768 = vector.broadcast %767 : vector<1x8x8xf32> to vector<4x8x8xf32>
    %769 = arith.mulf %768, %760 : vector<4x8x8xf32>
    %770 = arith.addf %766, %769 : vector<4x8x8xf32>
    %771 = arith.truncf %770 : vector<4x8x8xf32> to vector<4x8x8xbf16>
    %c0_353 = arith.constant 0 : index
    %c2_354 = arith.constant 2 : index
    %c0_355 = arith.constant 0 : index
    %c0_356 = arith.constant 0 : index
    %c0_357 = arith.constant 0 : index
    %772 = vector.load %arg7[%c0_353, %c2_354, %c0_355, %c0_356, %c0_357] : memref<1x4x4x8x8xbf16, #tpu.memory_space<vmem>>, vector<1x1x4x8x8xbf16>
    %773 = vector.shape_cast %772 : vector<1x1x4x8x8xbf16> to vector<4x8x8xbf16>
    %774 = vector.shape_cast %771 : vector<4x8x8xbf16> to vector<1x1x4x8x8xbf16>
    tpu.vector_store %arg7[%c0_353, %c2_354, %c0_355, %c0_356, %c0_357], %774 {strides = array<i32>} : memref<1x4x4x8x8xbf16, #tpu.memory_space<vmem>>, vector<1x1x4x8x8xbf16>,
    %c0_358 = arith.constant 0 : index
    %c3_359 = arith.constant 3 : index
    %c0_360 = arith.constant 0 : index
    %c0_361 = arith.constant 0 : index
    %c0_362 = arith.constant 0 : index
    %775 = vector.load %arg3[%c0_358, %c3_359, %c0_360, %c0_361, %c0_362] : memref<25x4x1x8x8xbf16, #tpu.memory_space<vmem>>, vector<25x1x1x8x8xbf16>
    %776 = vector.shape_cast %775 : vector<25x1x1x8x8xbf16> to vector<25x8x8xbf16>
    %777 = arith.extf %776 : vector<25x8x8xbf16> to vector<25x8x8xf32>
    %778 = arith.addf %777, %12 : vector<25x8x8xf32>
    %cst_363 = arith.constant dense<0xFF800000> : vector<8x8xf32>
    %779 = vector.multi_reduction <maximumf>, %778, %cst_363 [0] : vector<25x8x8xf32> to vector<8x8xf32>
    %780 = vector.shape_cast %779 : vector<8x8xf32> to vector<1x8x8xf32>
    %781 = vector.broadcast %780 : vector<1x8x8xf32> to vector<25x8x8xf32>
    %782 = arith.subf %778, %781 : vector<25x8x8xf32>
    %783 = math.exp %782 : vector<25x8x8xf32>
    %cst_364 = arith.constant dense<0.000000e+00> : vector<8x8xf32>
    %784 = vector.multi_reduction <add>, %783, %cst_364 [0] : vector<25x8x8xf32> to vector<8x8xf32>
    %785 = vector.shape_cast %784 : vector<8x8xf32> to vector<1x8x8xf32>
    %786 = tpu.reciprocal %785 {approx = true} : vector<1x8x8xf32> -> vector<1x8x8xf32>
    %787 = vector.broadcast %786 : vector<1x8x8xf32> to vector<25x8x8xf32>
    %788 = arith.mulf %783, %787 : vector<25x8x8xf32>
    %cst_365 = arith.constant 0.000000e+00 : f32
    %789 = vector.broadcast %cst_365 : f32 to vector<4x8x8xf32>
    %c0_366 = arith.constant 0 : index
    %c0_367 = arith.constant 0 : index
    %c0_368 = arith.constant 0 : index
    %c0_369 = arith.constant 0 : index
    %790 = vector.load %arg2[%c0_366, %c0_367, %c0_368, %c0_369] : memref<1x4x12x12xbf16, #tpu.memory_space<vmem>>, vector<1x4x8x8xbf16>
    %791 = vector.shape_cast %790 : vector<1x4x8x8xbf16> to vector<4x8x8xbf16>
    %792 = arith.extf %791 : vector<4x8x8xbf16> to vector<4x8x8xf32>
    %793 = vector.extract_strided_slice %788 {offsets = [0, 0, 0], sizes = [1, 8, 8], strides = [1, 1, 1]} : vector<25x8x8xf32> to vector<1x8x8xf32>
    %794 = vector.shape_cast %793 : vector<1x8x8xf32> to vector<8x8xf32>
    %795 = vector.shape_cast %794 : vector<8x8xf32> to vector<1x8x8xf32>
    %796 = vector.broadcast %795 : vector<1x8x8xf32> to vector<4x8x8xf32>
    %797 = arith.mulf %792, %796 : vector<4x8x8xf32>
    %798 = arith.addf %789, %797 : vector<4x8x8xf32>
    %c0_370 = arith.constant 0 : index
    %c0_371 = arith.constant 0 : index
    %c0_372 = arith.constant 0 : index
    %c1_373 = arith.constant 1 : index
    %799 = vector.load %arg2[%c0_370, %c0_371, %c0_372, %c1_373] : memref<1x4x12x12xbf16, #tpu.memory_space<vmem>>, vector<1x4x8x8xbf16>
    %800 = vector.shape_cast %799 : vector<1x4x8x8xbf16> to vector<4x8x8xbf16>
    %801 = arith.extf %800 : vector<4x8x8xbf16> to vector<4x8x8xf32>
    %802 = vector.extract_strided_slice %788 {offsets = [1, 0, 0], sizes = [1, 8, 8], strides = [1, 1, 1]} : vector<25x8x8xf32> to vector<1x8x8xf32>
    %803 = vector.shape_cast %802 : vector<1x8x8xf32> to vector<8x8xf32>
    %804 = vector.shape_cast %803 : vector<8x8xf32> to vector<1x8x8xf32>
    %805 = vector.broadcast %804 : vector<1x8x8xf32> to vector<4x8x8xf32>
    %806 = arith.mulf %801, %805 : vector<4x8x8xf32>
    %807 = arith.addf %798, %806 : vector<4x8x8xf32>
    %c0_374 = arith.constant 0 : index
    %c0_375 = arith.constant 0 : index
    %c0_376 = arith.constant 0 : index
    %c2_377 = arith.constant 2 : index
    %808 = vector.load %arg2[%c0_374, %c0_375, %c0_376, %c2_377] : memref<1x4x12x12xbf16, #tpu.memory_space<vmem>>, vector<1x4x8x8xbf16>
    %809 = vector.shape_cast %808 : vector<1x4x8x8xbf16> to vector<4x8x8xbf16>
    %810 = arith.extf %809 : vector<4x8x8xbf16> to vector<4x8x8xf32>
    %811 = vector.extract_strided_slice %788 {offsets = [2, 0, 0], sizes = [1, 8, 8], strides = [1, 1, 1]} : vector<25x8x8xf32> to vector<1x8x8xf32>
    %812 = vector.shape_cast %811 : vector<1x8x8xf32> to vector<8x8xf32>
    %813 = vector.shape_cast %812 : vector<8x8xf32> to vector<1x8x8xf32>
    %814 = vector.broadcast %813 : vector<1x8x8xf32> to vector<4x8x8xf32>
    %815 = arith.mulf %810, %814 : vector<4x8x8xf32>
    %816 = arith.addf %807, %815 : vector<4x8x8xf32>
    %c0_378 = arith.constant 0 : index
    %c0_379 = arith.constant 0 : index
    %c0_380 = arith.constant 0 : index
    %c3_381 = arith.constant 3 : index
    %817 = vector.load %arg2[%c0_378, %c0_379, %c0_380, %c3_381] : memref<1x4x12x12xbf16, #tpu.memory_space<vmem>>, vector<1x4x8x8xbf16>
    %818 = vector.shape_cast %817 : vector<1x4x8x8xbf16> to vector<4x8x8xbf16>
    %819 = arith.extf %818 : vector<4x8x8xbf16> to vector<4x8x8xf32>
    %820 = vector.extract_strided_slice %788 {offsets = [3, 0, 0], sizes = [1, 8, 8], strides = [1, 1, 1]} : vector<25x8x8xf32> to vector<1x8x8xf32>
    %821 = vector.shape_cast %820 : vector<1x8x8xf32> to vector<8x8xf32>
    %822 = vector.shape_cast %821 : vector<8x8xf32> to vector<1x8x8xf32>
    %823 = vector.broadcast %822 : vector<1x8x8xf32> to vector<4x8x8xf32>
    %824 = arith.mulf %819, %823 : vector<4x8x8xf32>
    %825 = arith.addf %816, %824 : vector<4x8x8xf32>
    %c0_382 = arith.constant 0 : index
    %c0_383 = arith.constant 0 : index
    %c0_384 = arith.constant 0 : index
    %c4_385 = arith.constant 4 : index
    %826 = vector.load %arg2[%c0_382, %c0_383, %c0_384, %c4_385] : memref<1x4x12x12xbf16, #tpu.memory_space<vmem>>, vector<1x4x8x8xbf16>
    %827 = vector.shape_cast %826 : vector<1x4x8x8xbf16> to vector<4x8x8xbf16>
    %828 = arith.extf %827 : vector<4x8x8xbf16> to vector<4x8x8xf32>
    %829 = vector.extract_strided_slice %788 {offsets = [4, 0, 0], sizes = [1, 8, 8], strides = [1, 1, 1]} : vector<25x8x8xf32> to vector<1x8x8xf32>
    %830 = vector.shape_cast %829 : vector<1x8x8xf32> to vector<8x8xf32>
    %831 = vector.shape_cast %830 : vector<8x8xf32> to vector<1x8x8xf32>
    %832 = vector.broadcast %831 : vector<1x8x8xf32> to vector<4x8x8xf32>
    %833 = arith.mulf %828, %832 : vector<4x8x8xf32>
    %834 = arith.addf %825, %833 : vector<4x8x8xf32>
    %c0_386 = arith.constant 0 : index
    %c0_387 = arith.constant 0 : index
    %c1_388 = arith.constant 1 : index
    %c0_389 = arith.constant 0 : index
    %835 = vector.load %arg2[%c0_386, %c0_387, %c1_388, %c0_389] : memref<1x4x12x12xbf16, #tpu.memory_space<vmem>>, vector<1x4x8x8xbf16>
    %836 = vector.shape_cast %835 : vector<1x4x8x8xbf16> to vector<4x8x8xbf16>
    %837 = arith.extf %836 : vector<4x8x8xbf16> to vector<4x8x8xf32>
    %838 = vector.extract_strided_slice %788 {offsets = [5, 0, 0], sizes = [1, 8, 8], strides = [1, 1, 1]} : vector<25x8x8xf32> to vector<1x8x8xf32>
    %839 = vector.shape_cast %838 : vector<1x8x8xf32> to vector<8x8xf32>
    %840 = vector.shape_cast %839 : vector<8x8xf32> to vector<1x8x8xf32>
    %841 = vector.broadcast %840 : vector<1x8x8xf32> to vector<4x8x8xf32>
    %842 = arith.mulf %837, %841 : vector<4x8x8xf32>
    %843 = arith.addf %834, %842 : vector<4x8x8xf32>
    %c0_390 = arith.constant 0 : index
    %c0_391 = arith.constant 0 : index
    %c1_392 = arith.constant 1 : index
    %c1_393 = arith.constant 1 : index
    %844 = vector.load %arg2[%c0_390, %c0_391, %c1_392, %c1_393] : memref<1x4x12x12xbf16, #tpu.memory_space<vmem>>, vector<1x4x8x8xbf16>
    %845 = vector.shape_cast %844 : vector<1x4x8x8xbf16> to vector<4x8x8xbf16>
    %846 = arith.extf %845 : vector<4x8x8xbf16> to vector<4x8x8xf32>
    %847 = vector.extract_strided_slice %788 {offsets = [6, 0, 0], sizes = [1, 8, 8], strides = [1, 1, 1]} : vector<25x8x8xf32> to vector<1x8x8xf32>
    %848 = vector.shape_cast %847 : vector<1x8x8xf32> to vector<8x8xf32>
    %849 = vector.shape_cast %848 : vector<8x8xf32> to vector<1x8x8xf32>
    %850 = vector.broadcast %849 : vector<1x8x8xf32> to vector<4x8x8xf32>
    %851 = arith.mulf %846, %850 : vector<4x8x8xf32>
    %852 = arith.addf %843, %851 : vector<4x8x8xf32>
    %c0_394 = arith.constant 0 : index
    %c0_395 = arith.constant 0 : index
    %c1_396 = arith.constant 1 : index
    %c2_397 = arith.constant 2 : index
    %853 = vector.load %arg2[%c0_394, %c0_395, %c1_396, %c2_397] : memref<1x4x12x12xbf16, #tpu.memory_space<vmem>>, vector<1x4x8x8xbf16>
    %854 = vector.shape_cast %853 : vector<1x4x8x8xbf16> to vector<4x8x8xbf16>
    %855 = arith.extf %854 : vector<4x8x8xbf16> to vector<4x8x8xf32>
    %856 = vector.extract_strided_slice %788 {offsets = [7, 0, 0], sizes = [1, 8, 8], strides = [1, 1, 1]} : vector<25x8x8xf32> to vector<1x8x8xf32>
    %857 = vector.shape_cast %856 : vector<1x8x8xf32> to vector<8x8xf32>
    %858 = vector.shape_cast %857 : vector<8x8xf32> to vector<1x8x8xf32>
    %859 = vector.broadcast %858 : vector<1x8x8xf32> to vector<4x8x8xf32>
    %860 = arith.mulf %855, %859 : vector<4x8x8xf32>
    %861 = arith.addf %852, %860 : vector<4x8x8xf32>
    %c0_398 = arith.constant 0 : index
    %c0_399 = arith.constant 0 : index
    %c1_400 = arith.constant 1 : index
    %c3_401 = arith.constant 3 : index
    %862 = vector.load %arg2[%c0_398, %c0_399, %c1_400, %c3_401] : memref<1x4x12x12xbf16, #tpu.memory_space<vmem>>, vector<1x4x8x8xbf16>
    %863 = vector.shape_cast %862 : vector<1x4x8x8xbf16> to vector<4x8x8xbf16>
    %864 = arith.extf %863 : vector<4x8x8xbf16> to vector<4x8x8xf32>
    %865 = vector.extract_strided_slice %788 {offsets = [8, 0, 0], sizes = [1, 8, 8], strides = [1, 1, 1]} : vector<25x8x8xf32> to vector<1x8x8xf32>
    %866 = vector.shape_cast %865 : vector<1x8x8xf32> to vector<8x8xf32>
    %867 = vector.shape_cast %866 : vector<8x8xf32> to vector<1x8x8xf32>
    %868 = vector.broadcast %867 : vector<1x8x8xf32> to vector<4x8x8xf32>
    %869 = arith.mulf %864, %868 : vector<4x8x8xf32>
    %870 = arith.addf %861, %869 : vector<4x8x8xf32>
    %c0_402 = arith.constant 0 : index
    %c0_403 = arith.constant 0 : index
    %c1_404 = arith.constant 1 : index
    %c4_405 = arith.constant 4 : index
    %871 = vector.load %arg2[%c0_402, %c0_403, %c1_404, %c4_405] : memref<1x4x12x12xbf16, #tpu.memory_space<vmem>>, vector<1x4x8x8xbf16>
    %872 = vector.shape_cast %871 : vector<1x4x8x8xbf16> to vector<4x8x8xbf16>
    %873 = arith.extf %872 : vector<4x8x8xbf16> to vector<4x8x8xf32>
    %874 = vector.extract_strided_slice %788 {offsets = [9, 0, 0], sizes = [1, 8, 8], strides = [1, 1, 1]} : vector<25x8x8xf32> to vector<1x8x8xf32>
    %875 = vector.shape_cast %874 : vector<1x8x8xf32> to vector<8x8xf32>
    %876 = vector.shape_cast %875 : vector<8x8xf32> to vector<1x8x8xf32>
    %877 = vector.broadcast %876 : vector<1x8x8xf32> to vector<4x8x8xf32>
    %878 = arith.mulf %873, %877 : vector<4x8x8xf32>
    %879 = arith.addf %870, %878 : vector<4x8x8xf32>
    %c0_406 = arith.constant 0 : index
    %c0_407 = arith.constant 0 : index
    %c2_408 = arith.constant 2 : index
    %c0_409 = arith.constant 0 : index
    %880 = vector.load %arg2[%c0_406, %c0_407, %c2_408, %c0_409] : memref<1x4x12x12xbf16, #tpu.memory_space<vmem>>, vector<1x4x8x8xbf16>
    %881 = vector.shape_cast %880 : vector<1x4x8x8xbf16> to vector<4x8x8xbf16>
    %882 = arith.extf %881 : vector<4x8x8xbf16> to vector<4x8x8xf32>
    %883 = vector.extract_strided_slice %788 {offsets = [10, 0, 0], sizes = [1, 8, 8], strides = [1, 1, 1]} : vector<25x8x8xf32> to vector<1x8x8xf32>
    %884 = vector.shape_cast %883 : vector<1x8x8xf32> to vector<8x8xf32>
    %885 = vector.shape_cast %884 : vector<8x8xf32> to vector<1x8x8xf32>
    %886 = vector.broadcast %885 : vector<1x8x8xf32> to vector<4x8x8xf32>
    %887 = arith.mulf %882, %886 : vector<4x8x8xf32>
    %888 = arith.addf %879, %887 : vector<4x8x8xf32>
    %c0_410 = arith.constant 0 : index
    %c0_411 = arith.constant 0 : index
    %c2_412 = arith.constant 2 : index
    %c1_413 = arith.constant 1 : index
    %889 = vector.load %arg2[%c0_410, %c0_411, %c2_412, %c1_413] : memref<1x4x12x12xbf16, #tpu.memory_space<vmem>>, vector<1x4x8x8xbf16>
    %890 = vector.shape_cast %889 : vector<1x4x8x8xbf16> to vector<4x8x8xbf16>
    %891 = arith.extf %890 : vector<4x8x8xbf16> to vector<4x8x8xf32>
    %892 = vector.extract_strided_slice %788 {offsets = [11, 0, 0], sizes = [1, 8, 8], strides = [1, 1, 1]} : vector<25x8x8xf32> to vector<1x8x8xf32>
    %893 = vector.shape_cast %892 : vector<1x8x8xf32> to vector<8x8xf32>
    %894 = vector.shape_cast %893 : vector<8x8xf32> to vector<1x8x8xf32>
    %895 = vector.broadcast %894 : vector<1x8x8xf32> to vector<4x8x8xf32>
    %896 = arith.mulf %891, %895 : vector<4x8x8xf32>
    %897 = arith.addf %888, %896 : vector<4x8x8xf32>
    %c0_414 = arith.constant 0 : index
    %c0_415 = arith.constant 0 : index
    %c2_416 = arith.constant 2 : index
    %c2_417 = arith.constant 2 : index
    %898 = vector.load %arg2[%c0_414, %c0_415, %c2_416, %c2_417] : memref<1x4x12x12xbf16, #tpu.memory_space<vmem>>, vector<1x4x8x8xbf16>
    %899 = vector.shape_cast %898 : vector<1x4x8x8xbf16> to vector<4x8x8xbf16>
    %900 = arith.extf %899 : vector<4x8x8xbf16> to vector<4x8x8xf32>
    %901 = vector.extract_strided_slice %788 {offsets = [12, 0, 0], sizes = [1, 8, 8], strides = [1, 1, 1]} : vector<25x8x8xf32> to vector<1x8x8xf32>
    %902 = vector.shape_cast %901 : vector<1x8x8xf32> to vector<8x8xf32>
    %903 = vector.shape_cast %902 : vector<8x8xf32> to vector<1x8x8xf32>
    %904 = vector.broadcast %903 : vector<1x8x8xf32> to vector<4x8x8xf32>
    %905 = arith.mulf %900, %904 : vector<4x8x8xf32>
    %906 = arith.addf %897, %905 : vector<4x8x8xf32>
    %c0_418 = arith.constant 0 : index
    %c0_419 = arith.constant 0 : index
    %c2_420 = arith.constant 2 : index
    %c3_421 = arith.constant 3 : index
    %907 = vector.load %arg2[%c0_418, %c0_419, %c2_420, %c3_421] : memref<1x4x12x12xbf16, #tpu.memory_space<vmem>>, vector<1x4x8x8xbf16>
    %908 = vector.shape_cast %907 : vector<1x4x8x8xbf16> to vector<4x8x8xbf16>
    %909 = arith.extf %908 : vector<4x8x8xbf16> to vector<4x8x8xf32>
    %910 = vector.extract_strided_slice %788 {offsets = [13, 0, 0], sizes = [1, 8, 8], strides = [1, 1, 1]} : vector<25x8x8xf32> to vector<1x8x8xf32>
    %911 = vector.shape_cast %910 : vector<1x8x8xf32> to vector<8x8xf32>
    %912 = vector.shape_cast %911 : vector<8x8xf32> to vector<1x8x8xf32>
    %913 = vector.broadcast %912 : vector<1x8x8xf32> to vector<4x8x8xf32>
    %914 = arith.mulf %909, %913 : vector<4x8x8xf32>
    %915 = arith.addf %906, %914 : vector<4x8x8xf32>
    %c0_422 = arith.constant 0 : index
    %c0_423 = arith.constant 0 : index
    %c2_424 = arith.constant 2 : index
    %c4_425 = arith.constant 4 : index
    %916 = vector.load %arg2[%c0_422, %c0_423, %c2_424, %c4_425] : memref<1x4x12x12xbf16, #tpu.memory_space<vmem>>, vector<1x4x8x8xbf16>
    %917 = vector.shape_cast %916 : vector<1x4x8x8xbf16> to vector<4x8x8xbf16>
    %918 = arith.extf %917 : vector<4x8x8xbf16> to vector<4x8x8xf32>
    %919 = vector.extract_strided_slice %788 {offsets = [14, 0, 0], sizes = [1, 8, 8], strides = [1, 1, 1]} : vector<25x8x8xf32> to vector<1x8x8xf32>
    %920 = vector.shape_cast %919 : vector<1x8x8xf32> to vector<8x8xf32>
    %921 = vector.shape_cast %920 : vector<8x8xf32> to vector<1x8x8xf32>
    %922 = vector.broadcast %921 : vector<1x8x8xf32> to vector<4x8x8xf32>
    %923 = arith.mulf %918, %922 : vector<4x8x8xf32>
    %924 = arith.addf %915, %923 : vector<4x8x8xf32>
    %c0_426 = arith.constant 0 : index
    %c0_427 = arith.constant 0 : index
    %c3_428 = arith.constant 3 : index
    %c0_429 = arith.constant 0 : index
    %925 = vector.load %arg2[%c0_426, %c0_427, %c3_428, %c0_429] : memref<1x4x12x12xbf16, #tpu.memory_space<vmem>>, vector<1x4x8x8xbf16>
    %926 = vector.shape_cast %925 : vector<1x4x8x8xbf16> to vector<4x8x8xbf16>
    %927 = arith.extf %926 : vector<4x8x8xbf16> to vector<4x8x8xf32>
    %928 = vector.extract_strided_slice %788 {offsets = [15, 0, 0], sizes = [1, 8, 8], strides = [1, 1, 1]} : vector<25x8x8xf32> to vector<1x8x8xf32>
    %929 = vector.shape_cast %928 : vector<1x8x8xf32> to vector<8x8xf32>
    %930 = vector.shape_cast %929 : vector<8x8xf32> to vector<1x8x8xf32>
    %931 = vector.broadcast %930 : vector<1x8x8xf32> to vector<4x8x8xf32>
    %932 = arith.mulf %927, %931 : vector<4x8x8xf32>
    %933 = arith.addf %924, %932 : vector<4x8x8xf32>
    %c0_430 = arith.constant 0 : index
    %c0_431 = arith.constant 0 : index
    %c3_432 = arith.constant 3 : index
    %c1_433 = arith.constant 1 : index
    %934 = vector.load %arg2[%c0_430, %c0_431, %c3_432, %c1_433] : memref<1x4x12x12xbf16, #tpu.memory_space<vmem>>, vector<1x4x8x8xbf16>
    %935 = vector.shape_cast %934 : vector<1x4x8x8xbf16> to vector<4x8x8xbf16>
    %936 = arith.extf %935 : vector<4x8x8xbf16> to vector<4x8x8xf32>
    %937 = vector.extract_strided_slice %788 {offsets = [16, 0, 0], sizes = [1, 8, 8], strides = [1, 1, 1]} : vector<25x8x8xf32> to vector<1x8x8xf32>
    %938 = vector.shape_cast %937 : vector<1x8x8xf32> to vector<8x8xf32>
    %939 = vector.shape_cast %938 : vector<8x8xf32> to vector<1x8x8xf32>
    %940 = vector.broadcast %939 : vector<1x8x8xf32> to vector<4x8x8xf32>
    %941 = arith.mulf %936, %940 : vector<4x8x8xf32>
    %942 = arith.addf %933, %941 : vector<4x8x8xf32>
    %c0_434 = arith.constant 0 : index
    %c0_435 = arith.constant 0 : index
    %c3_436 = arith.constant 3 : index
    %c2_437 = arith.constant 2 : index
    %943 = vector.load %arg2[%c0_434, %c0_435, %c3_436, %c2_437] : memref<1x4x12x12xbf16, #tpu.memory_space<vmem>>, vector<1x4x8x8xbf16>
    %944 = vector.shape_cast %943 : vector<1x4x8x8xbf16> to vector<4x8x8xbf16>
    %945 = arith.extf %944 : vector<4x8x8xbf16> to vector<4x8x8xf32>
    %946 = vector.extract_strided_slice %788 {offsets = [17, 0, 0], sizes = [1, 8, 8], strides = [1, 1, 1]} : vector<25x8x8xf32> to vector<1x8x8xf32>
    %947 = vector.shape_cast %946 : vector<1x8x8xf32> to vector<8x8xf32>
    %948 = vector.shape_cast %947 : vector<8x8xf32> to vector<1x8x8xf32>
    %949 = vector.broadcast %948 : vector<1x8x8xf32> to vector<4x8x8xf32>
    %950 = arith.mulf %945, %949 : vector<4x8x8xf32>
    %951 = arith.addf %942, %950 : vector<4x8x8xf32>
    %c0_438 = arith.constant 0 : index
    %c0_439 = arith.constant 0 : index
    %c3_440 = arith.constant 3 : index
    %c3_441 = arith.constant 3 : index
    %952 = vector.load %arg2[%c0_438, %c0_439, %c3_440, %c3_441] : memref<1x4x12x12xbf16, #tpu.memory_space<vmem>>, vector<1x4x8x8xbf16>
    %953 = vector.shape_cast %952 : vector<1x4x8x8xbf16> to vector<4x8x8xbf16>
    %954 = arith.extf %953 : vector<4x8x8xbf16> to vector<4x8x8xf32>
    %955 = vector.extract_strided_slice %788 {offsets = [18, 0, 0], sizes = [1, 8, 8], strides = [1, 1, 1]} : vector<25x8x8xf32> to vector<1x8x8xf32>
    %956 = vector.shape_cast %955 : vector<1x8x8xf32> to vector<8x8xf32>
    %957 = vector.shape_cast %956 : vector<8x8xf32> to vector<1x8x8xf32>
    %958 = vector.broadcast %957 : vector<1x8x8xf32> to vector<4x8x8xf32>
    %959 = arith.mulf %954, %958 : vector<4x8x8xf32>
    %960 = arith.addf %951, %959 : vector<4x8x8xf32>
    %c0_442 = arith.constant 0 : index
    %c0_443 = arith.constant 0 : index
    %c3_444 = arith.constant 3 : index
    %c4_445 = arith.constant 4 : index
    %961 = vector.load %arg2[%c0_442, %c0_443, %c3_444, %c4_445] : memref<1x4x12x12xbf16, #tpu.memory_space<vmem>>, vector<1x4x8x8xbf16>
    %962 = vector.shape_cast %961 : vector<1x4x8x8xbf16> to vector<4x8x8xbf16>
    %963 = arith.extf %962 : vector<4x8x8xbf16> to vector<4x8x8xf32>
    %964 = vector.extract_strided_slice %788 {offsets = [19, 0, 0], sizes = [1, 8, 8], strides = [1, 1, 1]} : vector<25x8x8xf32> to vector<1x8x8xf32>
    %965 = vector.shape_cast %964 : vector<1x8x8xf32> to vector<8x8xf32>
    %966 = vector.shape_cast %965 : vector<8x8xf32> to vector<1x8x8xf32>
    %967 = vector.broadcast %966 : vector<1x8x8xf32> to vector<4x8x8xf32>
    %968 = arith.mulf %963, %967 : vector<4x8x8xf32>
    %969 = arith.addf %960, %968 : vector<4x8x8xf32>
    %c0_446 = arith.constant 0 : index
    %c0_447 = arith.constant 0 : index
    %c4_448 = arith.constant 4 : index
    %c0_449 = arith.constant 0 : index
    %970 = vector.load %arg2[%c0_446, %c0_447, %c4_448, %c0_449] : memref<1x4x12x12xbf16, #tpu.memory_space<vmem>>, vector<1x4x8x8xbf16>
    %971 = vector.shape_cast %970 : vector<1x4x8x8xbf16> to vector<4x8x8xbf16>
    %972 = arith.extf %971 : vector<4x8x8xbf16> to vector<4x8x8xf32>
    %973 = vector.extract_strided_slice %788 {offsets = [20, 0, 0], sizes = [1, 8, 8], strides = [1, 1, 1]} : vector<25x8x8xf32> to vector<1x8x8xf32>
    %974 = vector.shape_cast %973 : vector<1x8x8xf32> to vector<8x8xf32>
    %975 = vector.shape_cast %974 : vector<8x8xf32> to vector<1x8x8xf32>
    %976 = vector.broadcast %975 : vector<1x8x8xf32> to vector<4x8x8xf32>
    %977 = arith.mulf %972, %976 : vector<4x8x8xf32>
    %978 = arith.addf %969, %977 : vector<4x8x8xf32>
    %c0_450 = arith.constant 0 : index
    %c0_451 = arith.constant 0 : index
    %c4_452 = arith.constant 4 : index
    %c1_453 = arith.constant 1 : index
    %979 = vector.load %arg2[%c0_450, %c0_451, %c4_452, %c1_453] : memref<1x4x12x12xbf16, #tpu.memory_space<vmem>>, vector<1x4x8x8xbf16>
    %980 = vector.shape_cast %979 : vector<1x4x8x8xbf16> to vector<4x8x8xbf16>
    %981 = arith.extf %980 : vector<4x8x8xbf16> to vector<4x8x8xf32>
    %982 = vector.extract_strided_slice %788 {offsets = [21, 0, 0], sizes = [1, 8, 8], strides = [1, 1, 1]} : vector<25x8x8xf32> to vector<1x8x8xf32>
    %983 = vector.shape_cast %982 : vector<1x8x8xf32> to vector<8x8xf32>
    %984 = vector.shape_cast %983 : vector<8x8xf32> to vector<1x8x8xf32>
    %985 = vector.broadcast %984 : vector<1x8x8xf32> to vector<4x8x8xf32>
    %986 = arith.mulf %981, %985 : vector<4x8x8xf32>
    %987 = arith.addf %978, %986 : vector<4x8x8xf32>
    %c0_454 = arith.constant 0 : index
    %c0_455 = arith.constant 0 : index
    %c4_456 = arith.constant 4 : index
    %c2_457 = arith.constant 2 : index
    %988 = vector.load %arg2[%c0_454, %c0_455, %c4_456, %c2_457] : memref<1x4x12x12xbf16, #tpu.memory_space<vmem>>, vector<1x4x8x8xbf16>
    %989 = vector.shape_cast %988 : vector<1x4x8x8xbf16> to vector<4x8x8xbf16>
    %990 = arith.extf %989 : vector<4x8x8xbf16> to vector<4x8x8xf32>
    %991 = vector.extract_strided_slice %788 {offsets = [22, 0, 0], sizes = [1, 8, 8], strides = [1, 1, 1]} : vector<25x8x8xf32> to vector<1x8x8xf32>
    %992 = vector.shape_cast %991 : vector<1x8x8xf32> to vector<8x8xf32>
    %993 = vector.shape_cast %992 : vector<8x8xf32> to vector<1x8x8xf32>
    %994 = vector.broadcast %993 : vector<1x8x8xf32> to vector<4x8x8xf32>
    %995 = arith.mulf %990, %994 : vector<4x8x8xf32>
    %996 = arith.addf %987, %995 : vector<4x8x8xf32>
    %c0_458 = arith.constant 0 : index
    %c0_459 = arith.constant 0 : index
    %c4_460 = arith.constant 4 : index
    %c3_461 = arith.constant 3 : index
    %997 = vector.load %arg2[%c0_458, %c0_459, %c4_460, %c3_461] : memref<1x4x12x12xbf16, #tpu.memory_space<vmem>>, vector<1x4x8x8xbf16>
    %998 = vector.shape_cast %997 : vector<1x4x8x8xbf16> to vector<4x8x8xbf16>
    %999 = arith.extf %998 : vector<4x8x8xbf16> to vector<4x8x8xf32>
    %1000 = vector.extract_strided_slice %788 {offsets = [23, 0, 0], sizes = [1, 8, 8], strides = [1, 1, 1]} : vector<25x8x8xf32> to vector<1x8x8xf32>
    %1001 = vector.shape_cast %1000 : vector<1x8x8xf32> to vector<8x8xf32>
    %1002 = vector.shape_cast %1001 : vector<8x8xf32> to vector<1x8x8xf32>
    %1003 = vector.broadcast %1002 : vector<1x8x8xf32> to vector<4x8x8xf32>
    %1004 = arith.mulf %999, %1003 : vector<4x8x8xf32>
    %1005 = arith.addf %996, %1004 : vector<4x8x8xf32>
    %c0_462 = arith.constant 0 : index
    %c0_463 = arith.constant 0 : index
    %c4_464 = arith.constant 4 : index
    %c4_465 = arith.constant 4 : index
    %1006 = vector.load %arg2[%c0_462, %c0_463, %c4_464, %c4_465] : memref<1x4x12x12xbf16, #tpu.memory_space<vmem>>, vector<1x4x8x8xbf16>
    %1007 = vector.shape_cast %1006 : vector<1x4x8x8xbf16> to vector<4x8x8xbf16>
    %1008 = arith.extf %1007 : vector<4x8x8xbf16> to vector<4x8x8xf32>
    %1009 = vector.extract_strided_slice %788 {offsets = [24, 0, 0], sizes = [1, 8, 8], strides = [1, 1, 1]} : vector<25x8x8xf32> to vector<1x8x8xf32>
    %1010 = vector.shape_cast %1009 : vector<1x8x8xf32> to vector<8x8xf32>
    %1011 = vector.shape_cast %1010 : vector<8x8xf32> to vector<1x8x8xf32>
    %1012 = vector.broadcast %1011 : vector<1x8x8xf32> to vector<4x8x8xf32>
    %1013 = arith.mulf %1008, %1012 : vector<4x8x8xf32>
    %1014 = arith.addf %1005, %1013 : vector<4x8x8xf32>
    %c0_466 = arith.constant 0 : index
    %c3_467 = arith.constant 3 : index
    %c0_468 = arith.constant 0 : index
    %c0_469 = arith.constant 0 : index
    %c0_470 = arith.constant 0 : index
    %1015 = vector.load %arg6[%c0_466, %c3_467, %c0_468, %c0_469, %c0_470] : memref<1x4x4x8x8xbf16, #tpu.memory_space<vmem>>, vector<1x1x4x8x8xbf16>
    %1016 = vector.shape_cast %1015 : vector<1x1x4x8x8xbf16> to vector<4x8x8xbf16>
    %1017 = arith.extf %1016 : vector<4x8x8xbf16> to vector<4x8x8xf32>
    %1018 = vector.shape_cast %7 : vector<8x8xf32> to vector<1x8x8xf32>
    %1019 = vector.broadcast %1018 : vector<1x8x8xf32> to vector<4x8x8xf32>
    %1020 = arith.mulf %1019, %1017 : vector<4x8x8xf32>
    %1021 = vector.shape_cast %9 : vector<8x8xf32> to vector<1x8x8xf32>
    %1022 = vector.broadcast %1021 : vector<1x8x8xf32> to vector<4x8x8xf32>
    %1023 = arith.mulf %1022, %1014 : vector<4x8x8xf32>
    %1024 = arith.addf %1020, %1023 : vector<4x8x8xf32>
    %1025 = arith.truncf %1024 : vector<4x8x8xf32> to vector<4x8x8xbf16>
    %c0_471 = arith.constant 0 : index
    %c3_472 = arith.constant 3 : index
    %c0_473 = arith.constant 0 : index
    %c0_474 = arith.constant 0 : index
    %c0_475 = arith.constant 0 : index
    %1026 = vector.load %arg7[%c0_471, %c3_472, %c0_473, %c0_474, %c0_475] : memref<1x4x4x8x8xbf16, #tpu.memory_space<vmem>>, vector<1x1x4x8x8xbf16>
    %1027 = vector.shape_cast %1026 : vector<1x1x4x8x8xbf16> to vector<4x8x8xbf16>
    %1028 = vector.shape_cast %1025 : vector<4x8x8xbf16> to vector<1x1x4x8x8xbf16>
    tpu.vector_store %arg7[%c0_471, %c3_472, %c0_473, %c0_474, %c0_475], %1028 {strides = array<i32>} : memref<1x4x4x8x8xbf16, #tpu.memory_space<vmem>>, vector<1x1x4x8x8xbf16>,
    return
  }
  func.func @transform_0(%arg0: i32, %arg1: i32) -> (i32, i32, i32, i32) {
    %c0_i32 = arith.constant 0 : i32
    %c0_i32_0 = arith.constant 0 : i32
    %c0_i32_1 = arith.constant 0 : i32
    return %arg0, %arg1, %c0_i32, %c0_i32_0 : i32, i32, i32, i32
  }
  func.func @transform_1(%arg0: i32, %arg1: i32) -> (i32, i32, i32, i32, i32) {
    %c0_i32 = arith.constant 0 : i32
    %c0_i32_0 = arith.constant 0 : i32
    %c0_i32_1 = arith.constant 0 : i32
    %c0_i32_2 = arith.constant 0 : i32
    %c0_i32_3 = arith.constant 0 : i32
    return %c0_i32, %c0_i32_0, %arg0, %c0_i32_1, %c0_i32_2 : i32, i32, i32, i32, i32
  }
  func.func @transform_2(%arg0: i32, %arg1: i32) -> (i32, i32, i32, i32) {
    %c0_i32 = arith.constant 0 : i32
    %c0_i32_0 = arith.constant 0 : i32
    %c0_i32_1 = arith.constant 0 : i32
    %c0_i32_2 = arith.constant 0 : i32
    return %c0_i32, %arg0, %c0_i32_0, %c0_i32_1 : i32, i32, i32, i32
  }
  func.func @transform_3(%arg0: i32, %arg1: i32) -> (i32, i32, i32, i32) {
    %c0_i32 = arith.constant 0 : i32
    %c0_i32_0 = arith.constant 0 : i32
    %c0_i32_1 = arith.constant 0 : i32
    %c0_i32_2 = arith.constant 0 : i32
    return %arg0, %c0_i32, %c0_i32_0, %c0_i32_1 : i32, i32, i32, i32
  }
  func.func @transform_4(%arg0: i32, %arg1: i32) -> (i32, i32, i32, i32, i32) {
    %c0_i32 = arith.constant 0 : i32
    %c0_i32_0 = arith.constant 0 : i32
    %c0_i32_1 = arith.constant 0 : i32
    %c0_i32_2 = arith.constant 0 : i32
    return %arg0, %c0_i32, %arg1, %c0_i32_0, %c0_i32_1 : i32, i32, i32, i32, i32
  }
  func.func @transform_5(%arg0: i32, %arg1: i32) -> (i32, i32, i32, i32, i32) {
    %c0_i32 = arith.constant 0 : i32
    %c0_i32_0 = arith.constant 0 : i32
    %c0_i32_1 = arith.constant 0 : i32
    %c0_i32_2 = arith.constant 0 : i32
    return %arg0, %c0_i32, %arg1, %c0_i32_0, %c0_i32_1 : i32, i32, i32, i32, i32
  }
}

</mosaic_0001>

<llo_original>
// kernel: fade_forward.4
$region0: #{fade_forward.4}
  #allocation0 [shape = 'u32[]', space=smem, size = 0x4, offset = 0x4, fixed_abs, tag = 'smem constant byte address 0x4 - core index']
  #allocation1 [shape = 'u32[144,128]{1,0:T(1,128)}', space=vmem, size = 0x12000, scoped, tag = 'internal scratch']
  #allocation2 [shape = 'f32[64,512]{1,0:T(8,128)}', space=vmem, size = 0x20000, scoped, tag = 'scratch operand']
  %s0 = inlined_call_operand.vmem [shape: bf16[64,16], index: 0, kind: input, shape index: {}]
  %s1 = inlined_call_operand.vmem [shape: f32[64,1], index: 1, kind: input, shape index: {}]
  %s2 = inlined_call_operand.vmem [shape: bf16[16,512], index: 2, kind: input, shape index: {}]
  %s3 = inlined_call_operand.vmem [shape: bf16[64,512], index: 3, kind: output, shape index: {}]
  %s4 = sld [smem:[#allocation0]]
  $region30: #{fade_forward.4} parent=0
    _
  %s6 = ssub.s32 1, %s4
  %s7 = scalar_select 0, %s6, %s4
  // Predicated region
  $region2: #{fade_forward.4} parent=0 // pred_check
    _
  $region3: #{fade_forward.4} parent=0 // pred_check_branch
    %9 = sbr.rel (0) target = $region5
  $region4: #{fade_forward.4} parent=0 // pred_region
    _
  $region5: #{fade_forward.4} parent=0 // pred_fallthru
    _
  // Predicated region
  $region6: #{fade_forward.4} parent=0 // pred_check
    _
  $region7: #{fade_forward.4} parent=0 // pred_check_branch
    %11 = sbr.rel (0) target = $region9
  $region8: #{fade_forward.4} parent=0 // pred_region
    _
  $region9: #{fade_forward.4} parent=0 // pred_fallthru
    _
  // Predicated region
  $region10: #{fade_forward.4} parent=0 // pred_check
    _
  $region11: #{fade_forward.4} parent=0 // pred_check_branch
    %13 = sbr.rel (0) target = $region13
  $region12: #{fade_forward.4} parent=0 // pred_region
    _
  $region13: #{fade_forward.4} parent=0 // pred_fallthru
    _
  %p15 = scmp.eq.s32.totalorder 0, 0
  // Predicated region
  $region14: #{fade_forward.4} parent=0 // pred_check
    %p16 = pneg %p15
  $region15: #{fade_forward.4} parent=0 // pred_check_branch
    %18 = sbr.rel (%p16) target = $region17
  $region16: #{fade_forward.4} parent=0 // pred_region
    %v19 = vld [vmem:[%s1] sm:$0xff]
    %v20 = vld [vmem:[%s1 + $0x8] sm:$0xff]
    %v21 = vld [vmem:[%s1 + $0x10] sm:$0xff]
    %v22 = vld [vmem:[%s1 + $0x18] sm:$0xff]
    %v23 = vld [vmem:[%s1 + $0x20] sm:$0xff]
    %v24 = vld [vmem:[%s1 + $0x28] sm:$0xff]
    %v25 = vld [vmem:[%s1 + $0x30] sm:$0xff]
    %v26 = vld [vmem:[%s1 + $0x38] sm:$0xff]
    %28 = vset.pattern.permute.xlu0 0
    %29 = vperm.xlu0 %28, %v19
    %v30 = vpop.permute.xlu0 %29
    %33 = vset.pattern.permute.xlu0 0
    %34 = vperm.xlu0 %33, %v20
    %v35 = vpop.permute.xlu0 %34
    %38 = vset.pattern.permute.xlu0 0
    %39 = vperm.xlu0 %38, %v21
    %v40 = vpop.permute.xlu0 %39
    %43 = vset.pattern.permute.xlu0 0
    %44 = vperm.xlu0 %43, %v22
    %v45 = vpop.permute.xlu0 %44
    %48 = vset.pattern.permute.xlu0 0
    %49 = vperm.xlu0 %48, %v23
    %v50 = vpop.permute.xlu0 %49
    %53 = vset.pattern.permute.xlu0 0
    %54 = vperm.xlu0 %53, %v24
    %v55 = vpop.permute.xlu0 %54
    %58 = vset.pattern.permute.xlu0 0
    %59 = vperm.xlu0 %58, %v25
    %v60 = vpop.permute.xlu0 %59
    %63 = vset.pattern.permute.xlu0 0
    %64 = vperm.xlu0 %63, %v26
    %v65 = vpop.permute.xlu0 %64
    %67 = vst [vmem:[#allocation2] sm:$0xff] %v30
    %68 = vst [vmem:[#allocation2 + $0x8] sm:$0xff] %v30
    %69 = vst [vmem:[#allocation2 + $0x10] sm:$0xff] %v30
    %70 = vst [vmem:[#allocation2 + $0x18] sm:$0xff] %v30
    %71 = vst [vmem:[#allocation2 + $0x20] sm:$0xff] %v35
    %72 = vst [vmem:[#allocation2 + $0x28] sm:$0xff] %v35
    %73 = vst [vmem:[#allocation2 + $0x30] sm:$0xff] %v35
    %74 = vst [vmem:[#allocation2 + $0x38] sm:$0xff] %v35
    %75 = vst [vmem:[#allocation2 + $0x40] sm:$0xff] %v40
    %76 = vst [vmem:[#allocation2 + $0x48] sm:$0xff] %v40
    %77 = vst [vmem:[#allocation2 + $0x50] sm:$0xff] %v40
    %78 = vst [vmem:[#allocation2 + $0x58] sm:$0xff] %v40
    %79 = vst [vmem:[#allocation2 + $0x60] sm:$0xff] %v45
    %80 = vst [vmem:[#allocation2 + $0x68] sm:$0xff] %v45
    %81 = vst [vmem:[#allocation2 + $0x70] sm:$0xff] %v45
    %82 = vst [vmem:[#allocation2 + $0x78] sm:$0xff] %v45
    %83 = vst [vmem:[#allocation2 + $0x80] sm:$0xff] %v50
    %84 = vst [vmem:[#allocation2 + $0x88] sm:$0xff] %v50
    %85 = vst [vmem:[#allocation2 + $0x90] sm:$0xff] %v50
    %86 = vst [vmem:[#allocation2 + $0x98] sm:$0xff] %v50
    %87 = vst [vmem:[#allocation2 + $0xa0] sm:$0xff] %v55
    %88 = vst [vmem:[#allocation2 + $0xa8] sm:$0xff] %v55
    %89 = vst [vmem:[#allocation2 + $0xb0] sm:$0xff] %v55
    %90 = vst [vmem:[#allocation2 + $0xb8] sm:$0xff] %v55
    %91 = vst [vmem:[#allocation2 + $0xc0] sm:$0xff] %v60
    %92 = vst [vmem:[#allocation2 + $0xc8] sm:$0xff] %v60
    %93 = vst [vmem:[#allocation2 + $0xd0] sm:$0xff] %v60
    %94 = vst [vmem:[#allocation2 + $0xd8] sm:$0xff] %v60
    %95 = vst [vmem:[#allocation2 + $0xe0] sm:$0xff] %v65
    %96 = vst [vmem:[#allocation2 + $0xe8] sm:$0xff] %v65
    %97 = vst [vmem:[#allocation2 + $0xf0] sm:$0xff] %v65
    %98 = vst [vmem:[#allocation2 + $0xf8] sm:$0xff] %v65
  $region17: #{fade_forward.4} parent=0 // pred_fallthru
    _
  %v99 = vld [vmem:[#allocation2] sm:$0xff]
  %v100 = vld [vmem:[#allocation2 + $0x8] sm:$0xff]
  %v101 = vld [vmem:[#allocation2 + $0x10] sm:$0xff]
  %v102 = vld [vmem:[#allocation2 + $0x18] sm:$0xff]
  %v103 = vld [vmem:[#allocation2 + $0x20] sm:$0xff]
  %v104 = vld [vmem:[#allocation2 + $0x28] sm:$0xff]
  %v105 = vld [vmem:[#allocation2 + $0x30] sm:$0xff]
  %v106 = vld [vmem:[#allocation2 + $0x38] sm:$0xff]
  %v107 = vld [vmem:[#allocation2 + $0x40] sm:$0xff]
  %v108 = vld [vmem:[#allocation2 + $0x48] sm:$0xff]
  %v109 = vld [vmem:[#allocation2 + $0x50] sm:$0xff]
  %v110 = vld [vmem:[#allocation2 + $0x58] sm:$0xff]
  %v111 = vld [vmem:[#allocation2 + $0x60] sm:$0xff]
  %v112 = vld [vmem:[#allocation2 + $0x68] sm:$0xff]
  %v113 = vld [vmem:[#allocation2 + $0x70] sm:$0xff]
  %v114 = vld [vmem:[#allocation2 + $0x78] sm:$0xff]
  %v115 = vld [vmem:[#allocation2 + $0x80] sm:$0xff]
  %v116 = vld [vmem:[#allocation2 + $0x88] sm:$0xff]
  %v117 = vld [vmem:[#allocation2 + $0x90] sm:$0xff]
  %v118 = vld [vmem:[#allocation2 + $0x98] sm:$0xff]
  %v119 = vld [vmem:[#allocation2 + $0xa0] sm:$0xff]
  %v120 = vld [vmem:[#allocation2 + $0xa8] sm:$0xff]
  %v121 = vld [vmem:[#allocation2 + $0xb0] sm:$0xff]
  %v122 = vld [vmem:[#allocation2 + $0xb8] sm:$0xff]
  %v123 = vld [vmem:[#allocation2 + $0xc0] sm:$0xff]
  %v124 = vld [vmem:[#allocation2 + $0xc8] sm:$0xff]
  %v125 = vld [vmem:[#allocation2 + $0xd0] sm:$0xff]
  %v126 = vld [vmem:[#allocation2 + $0xd8] sm:$0xff]
  %v127 = vld [vmem:[#allocation2 + $0xe0] sm:$0xff]
  %v128 = vld [vmem:[#allocation2 + $0xe8] sm:$0xff]
  %v129 = vld [vmem:[#allocation2 + $0xf0] sm:$0xff]
  %v130 = vld [vmem:[#allocation2 + $0xf8] sm:$0xff]
  %v131 = vld [vmem:[%s0] sm:$0xf]
  %v132 = vld [vmem:[%s0 + $0x4] sm:$0xf]
  %v133 = vld [vmem:[%s0 + $0x8] sm:$0xf]
  %v134 = vld [vmem:[%s0 + $0xc] sm:$0xf]
  %v135 = vld [vmem:[%s0 + $0x10] sm:$0xf]
  %v136 = vld [vmem:[%s0 + $0x14] sm:$0xf]
  %v137 = vld [vmem:[%s0 + $0x18] sm:$0xf]
  %v138 = vld [vmem:[%s0 + $0x1c] sm:$0xf]
  %v139 = vld [vmem:[%s2] sm:$0xff]
  %v140 = vld [vmem:[%s2 + $0x8] sm:$0xff]
  %v141 = vld [vmem:[%s2 + $0x10] sm:$0xff]
  %v142 = vld [vmem:[%s2 + $0x18] sm:$0xff]
  %v151 = vunpack.c.l.b16 %v131
  %v152 = vunpack.c.l.b16 %v132
  %v153 = vunpack.c.l.b16 %v133
  %v154 = vunpack.c.l.b16 %v134
  %v155 = vunpack.c.l.b16 %v135
  %v156 = vunpack.c.l.b16 %v136
  %v157 = vunpack.c.l.b16 %v137
  %v158 = vunpack.c.l.b16 %v138
  %v159 = vpack.c.b16 %v152, %v151
  %v160 = vpack.c.b16 %v154, %v153
  %v161 = vpack.c.b16 %v156, %v155
  %v162 = vpack.c.b16 %v158, %v157
  %v167 = vunpack.c.l.b16 %v139
  %v168 = vunpack.c.h.b16 %v139
  %v169 = vunpack.c.l.b16 %v140
  %v170 = vunpack.c.h.b16 %v140
  %v171 = vunpack.c.l.b16 %v141
  %v172 = vunpack.c.h.b16 %v141
  %v173 = vunpack.c.l.b16 %v142
  %v174 = vunpack.c.h.b16 %v142
  %v175 = vpack.c.b16 %v171, %v167
  %v176 = vpack.c.b16 %v172, %v168
  %v177 = vpack.c.b16 %v173, %v169
  %v178 = vpack.c.b16 %v174, %v170
  %vm183 = vcmask 130048
  %v185 = vsel %vm183, %v159, 0
  %v188 = vsel %vm183, %v160, 0
  %v191 = vsel %vm183, %v161, 0
  %v194 = vsel %vm183, %v162, 0
  %196 = vmatprep.subr.bf16.mxu0 0
  %197 = vmatpush1.bf16.msra.mxu0 0
  %198 = vmatprep.subr.bf16.mxu0 0
  %199 = vmatpush1.bf16.msra.mxu0 0
  %200 = vmatprep.subr.bf16.mxu0 0
  %201 = vmatpush1.bf16.msra.mxu0 0
  %202 = vmatprep.subr.bf16.mxu0 0
  %203 = vmatpush1.bf16.msra.mxu0 0
  %204 = vmatprep.subr.bf16.mxu0 0
  %205 = vmatpush1.bf16.msra.mxu0 0
  %206 = vmatprep.subr.bf16.mxu0 0
  %207 = vmatpush1.bf16.msra.mxu0 0
  %208 = vmatprep.subr.bf16.mxu0 0
  %209 = vmatpush1.bf16.msra.mxu0 0
  %210 = vmatprep.subr.bf16.mxu0 %v176
  %211 = vmatpush1.bf16.msra.mxu0 %v175
  %212 = vmatprep.subr.bf16.mxu0 0
  %213 = vmatpush2.bf16.msra.mxu0 0
  %214 = vmatprep.subr.bf16.mxu0 0
  %215 = vmatpush2.bf16.msra.mxu0 0
  %216 = vmatprep.subr.bf16.mxu0 0
  %217 = vmatpush2.bf16.msra.mxu0 0
  %218 = vmatprep.subr.bf16.mxu0 0
  %219 = vmatpush2.bf16.msra.mxu0 0
  %220 = vmatprep.subr.bf16.mxu0 0
  %221 = vmatpush2.bf16.msra.mxu0 0
  %222 = vmatprep.subr.bf16.mxu0 0
  %223 = vmatpush2.bf16.msra.mxu0 0
  %224 = vmatprep.subr.bf16.mxu0 0
  %225 = vmatpush2.bf16.msra.mxu0 0
  %226 = vmatprep.subr.bf16.mxu0 0
  %227 = vmatpush2.bf16.msra.mxu0 0
  %228 = vmatprep.mubr.bf16.mxu0 0
  %229 = vmatmul.mubr.bf16.gmra.mxu0 %v185
  %v230 = vpop.f32.mrf.mxu0
  %v231 = vadd.f32 0.0, %v230
  %v232 = vpop.f32.mrf.mxu0
  %v233 = vadd.f32 0.0, %v232
  %v234 = vpop.f32.mrf.mxu0
  %v235 = vadd.f32 0.0, %v234
  %v236 = vpop.f32.mrf.mxu0
  %v237 = vadd.f32 0.0, %v236
  %238 = vmatprep.mubr.bf16.mxu0 0
  %239 = vmatmul.mubr.bf16.gmra.mxu0 %v188
  %v240 = vpop.f32.mrf.mxu0
  %v241 = vadd.f32 0.0, %v240
  %v242 = vpop.f32.mrf.mxu0
  %v243 = vadd.f32 0.0, %v242
  %v244 = vpop.f32.mrf.mxu0
  %v245 = vadd.f32 0.0, %v244
  %v246 = vpop.f32.mrf.mxu0
  %v247 = vadd.f32 0.0, %v246
  %248 = vmatprep.mubr.bf16.mxu0 0
  %249 = vmatmul.mubr.bf16.gmra.mxu0 %v191
  %v250 = vpop.f32.mrf.mxu0
  %v251 = vadd.f32 0.0, %v250
  %v252 = vpop.f32.mrf.mxu0
  %v253 = vadd.f32 0.0, %v252
  %v254 = vpop.f32.mrf.mxu0
  %v255 = vadd.f32 0.0, %v254
  %v256 = vpop.f32.mrf.mxu0
  %v257 = vadd.f32 0.0, %v256
  %258 = vmatprep.mubr.bf16.mxu0 0
  %259 = vmatmul.mubr.bf16.gmra.mxu0 %v194
  %v260 = vpop.f32.mrf.mxu0
  %v261 = vadd.f32 0.0, %v260
  %v262 = vpop.f32.mrf.mxu0
  %v263 = vadd.f32 0.0, %v262
  %v264 = vpop.f32.mrf.mxu0
  %v265 = vadd.f32 0.0, %v264
  %v266 = vpop.f32.mrf.mxu0
  %v267 = vadd.f32 0.0, %v266
  %268 = vdwg.mxu0
  %269 = vmatprep.subr.bf16.mxu0 0
  %270 = vmatpush1.bf16.msra.mxu0 0
  %271 = vmatprep.subr.bf16.mxu0 0
  %272 = vmatpush1.bf16.msra.mxu0 0
  %273 = vmatprep.subr.bf16.mxu0 0
  %274 = vmatpush1.bf16.msra.mxu0 0
  %275 = vmatprep.subr.bf16.mxu0 0
  %276 = vmatpush1.bf16.msra.mxu0 0
  %277 = vmatprep.subr.bf16.mxu0 0
  %278 = vmatpush1.bf16.msra.mxu0 0
  %279 = vmatprep.subr.bf16.mxu0 0
  %280 = vmatpush1.bf16.msra.mxu0 0
  %281 = vmatprep.subr.bf16.mxu0 0
  %282 = vmatpush1.bf16.msra.mxu0 0
  %283 = vmatprep.subr.bf16.mxu0 %v178
  %284 = vmatpush1.bf16.msra.mxu0 %v177
  %285 = vmatprep.subr.bf16.mxu0 0
  %286 = vmatpush2.bf16.msra.mxu0 0
  %287 = vmatprep.subr.bf16.mxu0 0
  %288 = vmatpush2.bf16.msra.mxu0 0
  %289 = vmatprep.subr.bf16.mxu0 0
  %290 = vmatpush2.bf16.msra.mxu0 0
  %291 = vmatprep.subr.bf16.mxu0 0
  %292 = vmatpush2.bf16.msra.mxu0 0
  %293 = vmatprep.subr.bf16.mxu0 0
  %294 = vmatpush2.bf16.msra.mxu0 0
  %295 = vmatprep.subr.bf16.mxu0 0
  %296 = vmatpush2.bf16.msra.mxu0 0
  %297 = vmatprep.subr.bf16.mxu0 0
  %298 = vmatpush2.bf16.msra.mxu0 0
  %299 = vmatprep.subr.bf16.mxu0 0
  %300 = vmatpush2.bf16.msra.mxu0 0
  %301 = vmatprep.mubr.bf16.mxu0 0
  %302 = vmatmul.mubr.bf16.gmra.mxu0 %v185
  %v303 = vpop.f32.mrf.mxu0
  %v304 = vadd.f32 0.0, %v303
  %v305 = vpop.f32.mrf.mxu0
  %v306 = vadd.f32 0.0, %v305
  %v307 = vpop.f32.mrf.mxu0
  %v308 = vadd.f32 0.0, %v307
  %v309 = vpop.f32.mrf.mxu0
  %v310 = vadd.f32 0.0, %v309
  %311 = vmatprep.mubr.bf16.mxu0 0
  %312 = vmatmul.mubr.bf16.gmra.mxu0 %v188
  %v313 = vpop.f32.mrf.mxu0
  %v314 = vadd.f32 0.0, %v313
  %v315 = vpop.f32.mrf.mxu0
  %v316 = vadd.f32 0.0, %v315
  %v317 = vpop.f32.mrf.mxu0
  %v318 = vadd.f32 0.0, %v317
  %v319 = vpop.f32.mrf.mxu0
  %v320 = vadd.f32 0.0, %v319
  %321 = vmatprep.mubr.bf16.mxu0 0
  %322 = vmatmul.mubr.bf16.gmra.mxu0 %v191
  %v323 = vpop.f32.mrf.mxu0
  %v324 = vadd.f32 0.0, %v323
  %v325 = vpop.f32.mrf.mxu0
  %v326 = vadd.f32 0.0, %v325
  %v327 = vpop.f32.mrf.mxu0
  %v328 = vadd.f32 0.0, %v327
  %v329 = vpop.f32.mrf.mxu0
  %v330 = vadd.f32 0.0, %v329
  %331 = vmatprep.mubr.bf16.mxu0 0
  %332 = vmatmul.mubr.bf16.gmra.mxu0 %v194
  %v333 = vpop.f32.mrf.mxu0
  %v334 = vadd.f32 0.0, %v333
  %v335 = vpop.f32.mrf.mxu0
  %v336 = vadd.f32 0.0, %v335
  %v337 = vpop.f32.mrf.mxu0
  %v338 = vadd.f32 0.0, %v337
  %v339 = vpop.f32.mrf.mxu0
  %v340 = vadd.f32 0.0, %v339
  %341 = vdwg.mxu0
  %v342 = vadd.f32 %v99, %v231
  %v343 = vadd.f32 %v100, %v233
  %v344 = vadd.f32 %v101, %v304
  %v345 = vadd.f32 %v102, %v306
  %v346 = vadd.f32 %v103, %v235
  %v347 = vadd.f32 %v104, %v237
  %v348 = vadd.f32 %v105, %v308
  %v349 = vadd.f32 %v106, %v310
  %v350 = vadd.f32 %v107, %v241
  %v351 = vadd.f32 %v108, %v243
  %v352 = vadd.f32 %v109, %v314
  %v353 = vadd.f32 %v110, %v316
  %v354 = vadd.f32 %v111, %v245
  %v355 = vadd.f32 %v112, %v247
  %v356 = vadd.f32 %v113, %v318
  %v357 = vadd.f32 %v114, %v320
  %v358 = vadd.f32 %v115, %v251
  %v359 = vadd.f32 %v116, %v253
  %v360 = vadd.f32 %v117, %v324
  %v361 = vadd.f32 %v118, %v326
  %v362 = vadd.f32 %v119, %v255
  %v363 = vadd.f32 %v120, %v257
  %v364 = vadd.f32 %v121, %v328
  %v365 = vadd.f32 %v122, %v330
  %v366 = vadd.f32 %v123, %v261
  %v367 = vadd.f32 %v124, %v263
  %v368 = vadd.f32 %v125, %v334
  %v369 = vadd.f32 %v126, %v336
  %v370 = vadd.f32 %v127, %v265
  %v371 = vadd.f32 %v128, %v267
  %v372 = vadd.f32 %v129, %v338
  %v373 = vadd.f32 %v130, %v340
  %374 = vst [vmem:[#allocation2] sm:$0xff] %v342
  %375 = vst [vmem:[#allocation2 + $0x8] sm:$0xff] %v343
  %376 = vst [vmem:[#allocation2 + $0x10] sm:$0xff] %v344
  %377 = vst [vmem:[#allocation2 + $0x18] sm:$0xff] %v345
  %378 = vst [vmem:[#allocation2 + $0x20] sm:$0xff] %v346
  %379 = vst [vmem:[#allocation2 + $0x28] sm:$0xff] %v347
  %380 = vst [vmem:[#allocation2 + $0x30] sm:$0xff] %v348
  %381 = vst [vmem:[#allocation2 + $0x38] sm:$0xff] %v349
  %382 = vst [vmem:[#allocation2 + $0x40] sm:$0xff] %v350
  %383 = vst [vmem:[#allocation2 + $0x48] sm:$0xff] %v351
  %384 = vst [vmem:[#allocation2 + $0x50] sm:$0xff] %v352
  %385 = vst [vmem:[#allocation2 + $0x58] sm:$0xff] %v353
  %386 = vst [vmem:[#allocation2 + $0x60] sm:$0xff] %v354
  %387 = vst [vmem:[#allocation2 + $0x68] sm:$0xff] %v355
  %388 = vst [vmem:[#allocation2 + $0x70] sm:$0xff] %v356
  %389 = vst [vmem:[#allocation2 + $0x78] sm:$0xff] %v357
  %390 = vst [vmem:[#allocation2 + $0x80] sm:$0xff] %v358
  %391 = vst [vmem:[#allocation2 + $0x88] sm:$0xff] %v359
  %392 = vst [vmem:[#allocation2 + $0x90] sm:$0xff] %v360
  %393 = vst [vmem:[#allocation2 + $0x98] sm:$0xff] %v361
  %394 = vst [vmem:[#allocation2 + $0xa0] sm:$0xff] %v362
  %395 = vst [vmem:[#allocation2 + $0xa8] sm:$0xff] %v363
  %396 = vst [vmem:[#allocation2 + $0xb0] sm:$0xff] %v364
  %397 = vst [vmem:[#allocation2 + $0xb8] sm:$0xff] %v365
  %398 = vst [vmem:[#allocation2 + $0xc0] sm:$0xff] %v366
  %399 = vst [vmem:[#allocation2 + $0xc8] sm:$0xff] %v367
  %400 = vst [vmem:[#allocation2 + $0xd0] sm:$0xff] %v368
  %401 = vst [vmem:[#allocation2 + $0xd8] sm:$0xff] %v369
  %402 = vst [vmem:[#allocation2 + $0xe0] sm:$0xff] %v370
  %403 = vst [vmem:[#allocation2 + $0xe8] sm:$0xff] %v371
  %404 = vst [vmem:[#allocation2 + $0xf0] sm:$0xff] %v372
  %405 = vst [vmem:[#allocation2 + $0xf8] sm:$0xff] %v373
  // Predicated region
  $region18: #{fade_forward.4} parent=0 // pred_check
    %p406 = pneg %p15
  $region19: #{fade_forward.4} parent=0 // pred_check_branch
    %408 = sbr.rel (%p406) target = $region21
  $region20: #{fade_forward.4} parent=0 // pred_region
    %v409 = vld [vmem:[#allocation2] sm:$0xff]
    %v410 = vld [vmem:[#allocation2 + $0x8] sm:$0xff]
    %v411 = vld [vmem:[#allocation2 + $0x10] sm:$0xff]
    %v412 = vld [vmem:[#allocation2 + $0x18] sm:$0xff]
    %v413 = vld [vmem:[#allocation2 + $0x20] sm:$0xff]
    %v414 = vld [vmem:[#allocation2 + $0x28] sm:$0xff]
    %v415 = vld [vmem:[#allocation2 + $0x30] sm:$0xff]
    %v416 = vld [vmem:[#allocation2 + $0x38] sm:$0xff]
    %v417 = vld [vmem:[#allocation2 + $0x40] sm:$0xff]
    %v418 = vld [vmem:[#allocation2 + $0x48] sm:$0xff]
    %v419 = vld [vmem:[#allocation2 + $0x50] sm:$0xff]
    %v420 = vld [vmem:[#allocation2 + $0x58] sm:$0xff]
    %v421 = vld [vmem:[#allocation2 + $0x60] sm:$0xff]
    %v422 = vld [vmem:[#allocation2 + $0x68] sm:$0xff]
    %v423 = vld [vmem:[#allocation2 + $0x70] sm:$0xff]
    %v424 = vld [vmem:[#allocation2 + $0x78] sm:$0xff]
    %v425 = vld [vmem:[#allocation2 + $0x80] sm:$0xff]
    %v426 = vld [vmem:[#allocation2 + $0x88] sm:$0xff]
    %v427 = vld [vmem:[#allocation2 + $0x90] sm:$0xff]
    %v428 = vld [vmem:[#allocation2 + $0x98] sm:$0xff]
    %v429 = vld [vmem:[#allocation2 + $0xa0] sm:$0xff]
    %v430 = vld [vmem:[#allocation2 + $0xa8] sm:$0xff]
    %v431 = vld [vmem:[#allocation2 + $0xb0] sm:$0xff]
    %v432 = vld [vmem:[#allocation2 + $0xb8] sm:$0xff]
    %v433 = vld [vmem:[#allocation2 + $0xc0] sm:$0xff]
    %v434 = vld [vmem:[#allocation2 + $0xc8] sm:$0xff]
    %v435 = vld [vmem:[#allocation2 + $0xd0] sm:$0xff]
    %v436 = vld [vmem:[#allocation2 + $0xd8] sm:$0xff]
    %v437 = vld [vmem:[#allocation2 + $0xe0] sm:$0xff]
    %v438 = vld [vmem:[#allocation2 + $0xe8] sm:$0xff]
    %v439 = vld [vmem:[#allocation2 + $0xf0] sm:$0xff]
    %v440 = vld [vmem:[#allocation2 + $0xf8] sm:$0xff]
    %v441 = vpack.c.bf16 %v413, %v409
    %v442 = vpack.c.bf16 %v414, %v410
    %v443 = vpack.c.bf16 %v415, %v411
    %v444 = vpack.c.bf16 %v416, %v412
    %v445 = vpack.c.bf16 %v421, %v417
    %v446 = vpack.c.bf16 %v422, %v418
    %v447 = vpack.c.bf16 %v423, %v419
    %v448 = vpack.c.bf16 %v424, %v420
    %v449 = vpack.c.bf16 %v429, %v425
    %v450 = vpack.c.bf16 %v430, %v426
    %v451 = vpack.c.bf16 %v431, %v427
    %v452 = vpack.c.bf16 %v432, %v428
    %v453 = vpack.c.bf16 %v437, %v433
    %v454 = vpack.c.bf16 %v438, %v434
    %v455 = vpack.c.bf16 %v439, %v435
    %v456 = vpack.c.bf16 %v440, %v436
    %v473 = vunpack.c.l.b16 %v441
    %v474 = vunpack.c.l.b16 %v442
    %v475 = vunpack.c.l.b16 %v443
    %v476 = vunpack.c.l.b16 %v444
    %v477 = vunpack.c.h.b16 %v441
    %v478 = vunpack.c.h.b16 %v442
    %v479 = vunpack.c.h.b16 %v443
    %v480 = vunpack.c.h.b16 %v444
    %v481 = vunpack.c.l.b16 %v445
    %v482 = vunpack.c.l.b16 %v446
    %v483 = vunpack.c.l.b16 %v447
    %v484 = vunpack.c.l.b16 %v448
    %v485 = vunpack.c.h.b16 %v445
    %v486 = vunpack.c.h.b16 %v446
    %v487 = vunpack.c.h.b16 %v447
    %v488 = vunpack.c.h.b16 %v448
    %v489 = vunpack.c.l.b16 %v449
    %v490 = vunpack.c.l.b16 %v450
    %v491 = vunpack.c.l.b16 %v451
    %v492 = vunpack.c.l.b16 %v452
    %v493 = vunpack.c.h.b16 %v449
    %v494 = vunpack.c.h.b16 %v450
    %v495 = vunpack.c.h.b16 %v451
    %v496 = vunpack.c.h.b16 %v452
    %v497 = vunpack.c.l.b16 %v453
    %v498 = vunpack.c.l.b16 %v454
    %v499 = vunpack.c.l.b16 %v455
    %v500 = vunpack.c.l.b16 %v456
    %v501 = vunpack.c.h.b16 %v453
    %v502 = vunpack.c.h.b16 %v454
    %v503 = vunpack.c.h.b16 %v455
    %v504 = vunpack.c.h.b16 %v456
    %v505 = vpack.c.b16 %v474, %v473
    %v506 = vpack.c.b16 %v476, %v475
    %v507 = vpack.c.b16 %v478, %v477
    %v508 = vpack.c.b16 %v480, %v479
    %v509 = vpack.c.b16 %v482, %v481
    %v510 = vpack.c.b16 %v484, %v483
    %v511 = vpack.c.b16 %v486, %v485
    %v512 = vpack.c.b16 %v488, %v487
    %v513 = vpack.c.b16 %v490, %v489
    %v514 = vpack.c.b16 %v492, %v491
    %v515 = vpack.c.b16 %v494, %v493
    %v516 = vpack.c.b16 %v496, %v495
    %v517 = vpack.c.b16 %v498, %v497
    %v518 = vpack.c.b16 %v500, %v499
    %v519 = vpack.c.b16 %v502, %v501
    %v520 = vpack.c.b16 %v504, %v503
    %537 = vst [vmem:[%s3] sm:$0xff] %v505
    %538 = vst [vmem:[%s3 + $0x8] sm:$0xff] %v506
    %539 = vst [vmem:[%s3 + $0x10] sm:$0xff] %v507
    %540 = vst [vmem:[%s3 + $0x18] sm:$0xff] %v508
    %541 = vst [vmem:[%s3 + $0x20] sm:$0xff] %v509
    %542 = vst [vmem:[%s3 + $0x28] sm:$0xff] %v510
    %543 = vst [vmem:[%s3 + $0x30] sm:$0xff] %v511
    %544 = vst [vmem:[%s3 + $0x38] sm:$0xff] %v512
    %545 = vst [vmem:[%s3 + $0x40] sm:$0xff] %v513
    %546 = vst [vmem:[%s3 + $0x48] sm:$0xff] %v514
    %547 = vst [vmem:[%s3 + $0x50] sm:$0xff] %v515
    %548 = vst [vmem:[%s3 + $0x58] sm:$0xff] %v516
    %549 = vst [vmem:[%s3 + $0x60] sm:$0xff] %v517
    %550 = vst [vmem:[%s3 + $0x68] sm:$0xff] %v518
    %551 = vst [vmem:[%s3 + $0x70] sm:$0xff] %v519
    %552 = vst [vmem:[%s3 + $0x78] sm:$0xff] %v520
  $region21: #{fade_forward.4} parent=0 // pred_fallthru
    _
  // Predicated region
  $region22: #{fade_forward.4} parent=0 // pred_check
    _
  $region23: #{fade_forward.4} parent=0 // pred_check_branch
    %554 = sbr.rel (0) target = $region25
  $region24: #{fade_forward.4} parent=0 // pred_region
    _
  $region25: #{fade_forward.4} parent=0 // pred_fallthru
    _
  // Predicated region
  $region26: #{fade_forward.4} parent=0 // pred_check
    _
  $region27: #{fade_forward.4} parent=0 // pred_check_branch
    %556 = sbr.rel (0) target = $region29
  $region28: #{fade_forward.4} parent=0 // pred_region
    _
  $region29: #{fade_forward.4} parent=0 // pred_fallthru
    _

// kernel: fade_forward.5
$region0: #{fade_forward.5}
  #allocation0 [shape = 'u32[]', space=smem, size = 0x4, offset = 0x4, fixed_abs, tag = 'smem constant byte address 0x4 - core index']
  #allocation1 [shape = 'u32[144,128]{1,0:T(1,128)}', space=vmem, size = 0x12000, scoped, tag = 'internal scratch']
  #allocation2 [shape = 'f32[80,128]{1,0:T(8,128)}', space=vmem, size = 0xa000, scoped, tag = 'scratch operand']
  %s0 = inlined_call_operand.vmem [shape: bf16[80,16], index: 0, kind: input, shape index: {}]
  %s1 = inlined_call_operand.vmem [shape: f32[80,1], index: 1, kind: input, shape index: {}]
  %s2 = inlined_call_operand.vmem [shape: bf16[16,128], index: 2, kind: input, shape index: {}]
  %s3 = inlined_call_operand.vmem [shape: bf16[80,128], index: 3, kind: output, shape index: {}]
  %s4 = sld [smem:[#allocation0]]
  $region30: #{fade_forward.5} parent=0
    _
  %s6 = ssub.s32 1, %s4
  %s7 = scalar_select 0, %s6, %s4
  // Predicated region
  $region2: #{fade_forward.5} parent=0 // pred_check
    _
  $region3: #{fade_forward.5} parent=0 // pred_check_branch
    %9 = sbr.rel (0) target = $region5
  $region4: #{fade_forward.5} parent=0 // pred_region
    _
  $region5: #{fade_forward.5} parent=0 // pred_fallthru
    _
  // Predicated region
  $region6: #{fade_forward.5} parent=0 // pred_check
    _
  $region7: #{fade_forward.5} parent=0 // pred_check_branch
    %11 = sbr.rel (0) target = $region9
  $region8: #{fade_forward.5} parent=0 // pred_region
    _
  $region9: #{fade_forward.5} parent=0 // pred_fallthru
    _
  // Predicated region
  $region10: #{fade_forward.5} parent=0 // pred_check
    _
  $region11: #{fade_forward.5} parent=0 // pred_check_branch
    %13 = sbr.rel (0) target = $region13
  $region12: #{fade_forward.5} parent=0 // pred_region
    _
  $region13: #{fade_forward.5} parent=0 // pred_fallthru
    _
  %p15 = scmp.eq.s32.totalorder 0, 0
  // Predicated region
  $region14: #{fade_forward.5} parent=0 // pred_check
    %p16 = pneg %p15
  $region15: #{fade_forward.5} parent=0 // pred_check_branch
    %18 = sbr.rel (%p16) target = $region17
  $region16: #{fade_forward.5} parent=0 // pred_region
    %v19 = vld [vmem:[%s1] sm:$0xff]
    %v20 = vld [vmem:[%s1 + $0x8] sm:$0xff]
    %v21 = vld [vmem:[%s1 + $0x10] sm:$0xff]
    %v22 = vld [vmem:[%s1 + $0x18] sm:$0xff]
    %v23 = vld [vmem:[%s1 + $0x20] sm:$0xff]
    %v24 = vld [vmem:[%s1 + $0x28] sm:$0xff]
    %v25 = vld [vmem:[%s1 + $0x30] sm:$0xff]
    %v26 = vld [vmem:[%s1 + $0x38] sm:$0xff]
    %v27 = vld [vmem:[%s1 + $0x40] sm:$0xff]
    %v28 = vld [vmem:[%s1 + $0x48] sm:$0xff]
    %30 = vset.pattern.permute.xlu0 0
    %31 = vperm.xlu0 %30, %v19
    %v32 = vpop.permute.xlu0 %31
    %35 = vset.pattern.permute.xlu0 0
    %36 = vperm.xlu0 %35, %v20
    %v37 = vpop.permute.xlu0 %36
    %40 = vset.pattern.permute.xlu0 0
    %41 = vperm.xlu0 %40, %v21
    %v42 = vpop.permute.xlu0 %41
    %45 = vset.pattern.permute.xlu0 0
    %46 = vperm.xlu0 %45, %v22
    %v47 = vpop.permute.xlu0 %46
    %50 = vset.pattern.permute.xlu0 0
    %51 = vperm.xlu0 %50, %v23
    %v52 = vpop.permute.xlu0 %51
    %55 = vset.pattern.permute.xlu0 0
    %56 = vperm.xlu0 %55, %v24
    %v57 = vpop.permute.xlu0 %56
    %60 = vset.pattern.permute.xlu0 0
    %61 = vperm.xlu0 %60, %v25
    %v62 = vpop.permute.xlu0 %61
    %65 = vset.pattern.permute.xlu0 0
    %66 = vperm.xlu0 %65, %v26
    %v67 = vpop.permute.xlu0 %66
    %70 = vset.pattern.permute.xlu0 0
    %71 = vperm.xlu0 %70, %v27
    %v72 = vpop.permute.xlu0 %71
    %75 = vset.pattern.permute.xlu0 0
    %76 = vperm.xlu0 %75, %v28
    %v77 = vpop.permute.xlu0 %76
    %79 = vst [vmem:[#allocation2] sm:$0xff] %v32
    %80 = vst [vmem:[#allocation2 + $0x8] sm:$0xff] %v37
    %81 = vst [vmem:[#allocation2 + $0x10] sm:$0xff] %v42
    %82 = vst [vmem:[#allocation2 + $0x18] sm:$0xff] %v47
    %83 = vst [vmem:[#allocation2 + $0x20] sm:$0xff] %v52
    %84 = vst [vmem:[#allocation2 + $0x28] sm:$0xff] %v57
    %85 = vst [vmem:[#allocation2 + $0x30] sm:$0xff] %v62
    %86 = vst [vmem:[#allocation2 + $0x38] sm:$0xff] %v67
    %87 = vst [vmem:[#allocation2 + $0x40] sm:$0xff] %v72
    %88 = vst [vmem:[#allocation2 + $0x48] sm:$0xff] %v77
  $region17: #{fade_forward.5} parent=0 // pred_fallthru
    _
  %v89 = vld [vmem:[#allocation2] sm:$0xff]
  %v90 = vld [vmem:[#allocation2 + $0x8] sm:$0xff]
  %v91 = vld [vmem:[#allocation2 + $0x10] sm:$0xff]
  %v92 = vld [vmem:[#allocation2 + $0x18] sm:$0xff]
  %v93 = vld [vmem:[#allocation2 + $0x20] sm:$0xff]
  %v94 = vld [vmem:[#allocation2 + $0x28] sm:$0xff]
  %v95 = vld [vmem:[#allocation2 + $0x30] sm:$0xff]
  %v96 = vld [vmem:[#allocation2 + $0x38] sm:$0xff]
  %v97 = vld [vmem:[#allocation2 + $0x40] sm:$0xff]
  %v98 = vld [vmem:[#allocation2 + $0x48] sm:$0xff]
  %v99 = vld [vmem:[%s0] sm:$0xf]
  %v100 = vld [vmem:[%s0 + $0x4] sm:$0xf]
  %v101 = vld [vmem:[%s0 + $0x8] sm:$0xf]
  %v102 = vld [vmem:[%s0 + $0xc] sm:$0xf]
  %v103 = vld [vmem:[%s0 + $0x10] sm:$0xf]
  %v104 = vld [vmem:[%s0 + $0x14] sm:$0xf]
  %v105 = vld [vmem:[%s0 + $0x18] sm:$0xf]
  %v106 = vld [vmem:[%s0 + $0x1c] sm:$0xf]
  %v107 = vld [vmem:[%s0 + $0x20] sm:$0xf]
  %v108 = vld [vmem:[%s0 + $0x24] sm:$0xf]
  %v109 = vld [vmem:[%s2] sm:$0xf]
  %v110 = vld [vmem:[%s2 + $0x4] sm:$0xf]
  %v121 = vunpack.c.l.b16 %v99
  %v122 = vunpack.c.l.b16 %v100
  %v123 = vunpack.c.l.b16 %v101
  %v124 = vunpack.c.l.b16 %v102
  %v125 = vunpack.c.l.b16 %v103
  %v126 = vunpack.c.l.b16 %v104
  %v127 = vunpack.c.l.b16 %v105
  %v128 = vunpack.c.l.b16 %v106
  %v129 = vunpack.c.l.b16 %v107
  %v130 = vunpack.c.l.b16 %v108
  %v131 = vpack.c.b16 %v122, %v121
  %v132 = vpack.c.b16 %v124, %v123
  %v133 = vpack.c.b16 %v126, %v125
  %v134 = vpack.c.b16 %v128, %v127
  %v135 = vpack.c.b16 %v130, %v129
  %v138 = vunpack.c.l.b16 %v109
  %v139 = vunpack.c.l.b16 %v110
  %v140 = vpack.c.b16 %v139, %v138
  %vm142 = vcmask 130048
  %v144 = vsel %vm142, %v131, 0
  %v147 = vsel %vm142, %v132, 0
  %v150 = vsel %vm142, %v133, 0
  %v153 = vsel %vm142, %v134, 0
  %v156 = vsel %vm142, %v135, 0
  %158 = vmatprep.subr.bf16.mxu0 0
  %159 = vmatpush1.bf16.msra.mxu0 0
  %160 = vmatprep.subr.bf16.mxu0 0
  %161 = vmatpush1.bf16.msra.mxu0 0
  %162 = vmatprep.subr.bf16.mxu0 0
  %163 = vmatpush1.bf16.msra.mxu0 0
  %164 = vmatprep.subr.bf16.mxu0 0
  %165 = vmatpush1.bf16.msra.mxu0 0
  %166 = vmatprep.subr.bf16.mxu0 0
  %167 = vmatpush1.bf16.msra.mxu0 0
  %168 = vmatprep.subr.bf16.mxu0 0
  %169 = vmatpush1.bf16.msra.mxu0 0
  %170 = vmatprep.subr.bf16.mxu0 0
  %171 = vmatpush1.bf16.msra.mxu0 0
  %172 = vmatprep.subr.bf16.mxu0 0
  %173 = vmatpush1.bf16.msra.mxu0 %v140
  %174 = vmatprep.subr.bf16.mxu0 0
  %175 = vmatpush2.bf16.msra.mxu0 0
  %176 = vmatprep.subr.bf16.mxu0 0
  %177 = vmatpush2.bf16.msra.mxu0 0
  %178 = vmatprep.subr.bf16.mxu0 0
  %179 = vmatpush2.bf16.msra.mxu0 0
  %180 = vmatprep.subr.bf16.mxu0 0
  %181 = vmatpush2.bf16.msra.mxu0 0
  %182 = vmatprep.subr.bf16.mxu0 0
  %183 = vmatpush2.bf16.msra.mxu0 0
  %184 = vmatprep.subr.bf16.mxu0 0
  %185 = vmatpush2.bf16.msra.mxu0 0
  %186 = vmatprep.subr.bf16.mxu0 0
  %187 = vmatpush2.bf16.msra.mxu0 0
  %188 = vmatprep.subr.bf16.mxu0 0
  %189 = vmatpush2.bf16.msra.mxu0 0
  %190 = vmatprep.mubr.bf16.mxu0 0
  %191 = vmatmul.mubr.bf16.gmra.mxu0 %v144
  %v192 = vpop.f32.mrf.mxu0
  %v193 = vadd.f32 0.0, %v192
  %v194 = vpop.f32.mrf.mxu0
  %v195 = vpop.f32.mrf.mxu0
  %v196 = vadd.f32 0.0, %v195
  %v197 = vpop.f32.mrf.mxu0
  %198 = vmatprep.mubr.bf16.mxu0 0
  %199 = vmatmul.mubr.bf16.gmra.mxu0 %v147
  %v200 = vpop.f32.mrf.mxu0
  %v201 = vadd.f32 0.0, %v200
  %v202 = vpop.f32.mrf.mxu0
  %v203 = vpop.f32.mrf.mxu0
  %v204 = vadd.f32 0.0, %v203
  %v205 = vpop.f32.mrf.mxu0
  %206 = vmatprep.mubr.bf16.mxu0 0
  %207 = vmatmul.mubr.bf16.gmra.mxu0 %v150
  %v208 = vpop.f32.mrf.mxu0
  %v209 = vadd.f32 0.0, %v208
  %v210 = vpop.f32.mrf.mxu0
  %v211 = vpop.f32.mrf.mxu0
  %v212 = vadd.f32 0.0, %v211
  %v213 = vpop.f32.mrf.mxu0
  %214 = vmatprep.mubr.bf16.mxu0 0
  %215 = vmatmul.mubr.bf16.gmra.mxu0 %v153
  %v216 = vpop.f32.mrf.mxu0
  %v217 = vadd.f32 0.0, %v216
  %v218 = vpop.f32.mrf.mxu0
  %v219 = vpop.f32.mrf.mxu0
  %v220 = vadd.f32 0.0, %v219
  %v221 = vpop.f32.mrf.mxu0
  %222 = vmatprep.mubr.bf16.mxu0 0
  %223 = vmatmul.mubr.bf16.gmra.mxu0 %v156
  %v224 = vpop.f32.mrf.mxu0
  %v225 = vadd.f32 0.0, %v224
  %v226 = vpop.f32.mrf.mxu0
  %v227 = vpop.f32.mrf.mxu0
  %v228 = vadd.f32 0.0, %v227
  %v229 = vpop.f32.mrf.mxu0
  %230 = vdwg.mxu0
  %v231 = vadd.f32 %v89, %v193
  %v232 = vadd.f32 %v90, %v196
  %v233 = vadd.f32 %v91, %v201
  %v234 = vadd.f32 %v92, %v204
  %v235 = vadd.f32 %v93, %v209
  %v236 = vadd.f32 %v94, %v212
  %v237 = vadd.f32 %v95, %v217
  %v238 = vadd.f32 %v96, %v220
  %v239 = vadd.f32 %v97, %v225
  %v240 = vadd.f32 %v98, %v228
  %241 = vst [vmem:[#allocation2] sm:$0xff] %v231
  %242 = vst [vmem:[#allocation2 + $0x8] sm:$0xff] %v232
  %243 = vst [vmem:[#allocation2 + $0x10] sm:$0xff] %v233
  %244 = vst [vmem:[#allocation2 + $0x18] sm:$0xff] %v234
  %245 = vst [vmem:[#allocation2 + $0x20] sm:$0xff] %v235
  %246 = vst [vmem:[#allocation2 + $0x28] sm:$0xff] %v236
  %247 = vst [vmem:[#allocation2 + $0x30] sm:$0xff] %v237
  %248 = vst [vmem:[#allocation2 + $0x38] sm:$0xff] %v238
  %249 = vst [vmem:[#allocation2 + $0x40] sm:$0xff] %v239
  %250 = vst [vmem:[#allocation2 + $0x48] sm:$0xff] %v240
  // Predicated region
  $region18: #{fade_forward.5} parent=0 // pred_check
    %p251 = pneg %p15
  $region19: #{fade_forward.5} parent=0 // pred_check_branch
    %253 = sbr.rel (%p251) target = $region21
  $region20: #{fade_forward.5} parent=0 // pred_region
    %v254 = vld [vmem:[#allocation2] sm:$0xff]
    %v255 = vld [vmem:[#allocation2 + $0x8] sm:$0xff]
    %v256 = vld [vmem:[#allocation2 + $0x10] sm:$0xff]
    %v257 = vld [vmem:[#allocation2 + $0x18] sm:$0xff]
    %v258 = vld [vmem:[#allocation2 + $0x20] sm:$0xff]
    %v259 = vld [vmem:[#allocation2 + $0x28] sm:$0xff]
    %v260 = vld [vmem:[#allocation2 + $0x30] sm:$0xff]
    %v261 = vld [vmem:[#allocation2 + $0x38] sm:$0xff]
    %v262 = vld [vmem:[#allocation2 + $0x40] sm:$0xff]
    %v263 = vld [vmem:[#allocation2 + $0x48] sm:$0xff]
    %v264 = vpack.c.bf16 %v255, %v254
    %v265 = vpack.c.bf16 %v257, %v256
    %v266 = vpack.c.bf16 %v259, %v258
    %v267 = vpack.c.bf16 %v261, %v260
    %v268 = vpack.c.bf16 %v263, %v262
    %v274 = vunpack.c.l.b16 %v264
    %v275 = vunpack.c.h.b16 %v264
    %v276 = vunpack.c.l.b16 %v265
    %v277 = vunpack.c.h.b16 %v265
    %v278 = vunpack.c.l.b16 %v266
    %v279 = vunpack.c.h.b16 %v266
    %v280 = vunpack.c.l.b16 %v267
    %v281 = vunpack.c.h.b16 %v267
    %v282 = vunpack.c.l.b16 %v268
    %v283 = vunpack.c.h.b16 %v268
    %v284 = vpack.c.b16 %v274, %v274
    %v285 = vpack.c.b16 %v275, %v275
    %v286 = vpack.c.b16 %v276, %v276
    %v287 = vpack.c.b16 %v277, %v277
    %v288 = vpack.c.b16 %v278, %v278
    %v289 = vpack.c.b16 %v279, %v279
    %v290 = vpack.c.b16 %v280, %v280
    %v291 = vpack.c.b16 %v281, %v281
    %v292 = vpack.c.b16 %v282, %v282
    %v293 = vpack.c.b16 %v283, %v283
    %304 = vst [vmem:[%s3] sm:$0xf] %v284
    %305 = vst [vmem:[%s3 + $0x4] sm:$0xf] %v285
    %306 = vst [vmem:[%s3 + $0x8] sm:$0xf] %v286
    %307 = vst [vmem:[%s3 + $0xc] sm:$0xf] %v287
    %308 = vst [vmem:[%s3 + $0x10] sm:$0xf] %v288
    %309 = vst [vmem:[%s3 + $0x14] sm:$0xf] %v289
    %310 = vst [vmem:[%s3 + $0x18] sm:$0xf] %v290
    %311 = vst [vmem:[%s3 + $0x1c] sm:$0xf] %v291
    %312 = vst [vmem:[%s3 + $0x20] sm:$0xf] %v292
    %313 = vst [vmem:[%s3 + $0x24] sm:$0xf] %v293
  $region21: #{fade_forward.5} parent=0 // pred_fallthru
    _
  // Predicated region
  $region22: #{fade_forward.5} parent=0 // pred_check
    _
  $region23: #{fade_forward.5} parent=0 // pred_check_branch
    %315 = sbr.rel (0) target = $region25
  $region24: #{fade_forward.5} parent=0 // pred_region
    _
  $region25: #{fade_forward.5} parent=0 // pred_fallthru
    _
  // Predicated region
  $region26: #{fade_forward.5} parent=0 // pred_check
    _
  $region27: #{fade_forward.5} parent=0 // pred_check_branch
    %317 = sbr.rel (0) target = $region29
  $region28: #{fade_forward.5} parent=0 // pred_region
    _
  $region29: #{fade_forward.5} parent=0 // pred_fallthru
    _

// kernel: fade_forward.6
$region0: #{fade_forward.6}
  #allocation0 [shape = 'u32[]', space=smem, size = 0x4, offset = 0x4, fixed_abs, tag = 'smem constant byte address 0x4 - core index']
  #allocation1 [shape = 'u32[144,128]{1,0:T(1,128)}', space=vmem, size = 0x12000, scoped, tag = 'internal scratch']
  #allocation2 [shape = 'f32[32,128]{1,0:T(8,128)}', space=vmem, size = 0x4000, scoped, tag = 'scratch operand']
  %s0 = inlined_call_operand.vmem [shape: bf16[32,576], index: 0, kind: input, shape index: {}]
  %s1 = inlined_call_operand.vmem [shape: f32[32,1], index: 1, kind: input, shape index: {}]
  %s2 = inlined_call_operand.vmem [shape: bf16[576,640], index: 2, kind: input, shape index: {}]
  %s3 = inlined_call_operand.vmem [shape: bf16[32,640], index: 3, kind: output, shape index: {}]
  %s4 = sld [smem:[#allocation0]]
  $region131: #{fade_forward.6} parent=0
    _
  %s6 = ssub.s32 1, %s4
  %s7 = scalar_select 0, %s6, %s4
  $region1: #{fade_forward.6} parent=0
    #allocation3 [shape = 'u8[294912]{0}', space=vmem, size = 0x48000, scoped, tag = 'input window, operand 2']
    #allocation4 [shape = 'u8[16384]{0}', space=vmem, size = 0x4000, scoped, tag = 'output window, operand 0']
    loop: start=0, step=1, limit=7
    $region2: #{fade_forward.6} parent=1 // loop_pre_header
      _
    $region3: #{fade_forward.6} parent=1 // loop_header
      %s9 = sphi 0, %s13
      %p10 = scmp.ge.s32.totalorder %s9, 7
      %s16 = sphi 0, %s28
      %s17 = sphi 0, %s24
      %s18 = sphi 0, %s16
      %s19 = sphi 0, %s17
      %s20 = sphi 0, %s18
      %s21 = sphi 0, %s19
      %s31 = sphi 0, %s33
      %s34 = sphi 0, %s31
      %s35 = sphi 0, %s34
      %s51 = sphi 0, %s35
      %s55 = sphi 0, %s55
      %s57 = sphi 0, %s55
      %s58 = sphi 0, %s57
      %s72 = sphi 0, %s58
      %s80 = sphi 0, %s82
      %s83 = sphi 0, %s80
      %s84 = sphi 0, %s83
      %s100 = sphi 0, %s84
      %s106 = sphi 0, %s108
      %s109 = sphi 0, %s106
      %s110 = sphi 0, %s109
      %s126 = sphi 0, %s110
    $region4: #{fade_forward.6} parent=1 // loop_header_branch
      %12 = sbr.rel (%p10) target = $region8
    $region5: #{fade_forward.6} parent=1 // loop_body
      %s14 = ssub.s32 %s9, 1
      %s15 = ssub.s32 %s9, 2
      %s22 = sadd.s32 1, %s17
      %p23 = scmp.ge.s32.totalorder %s22, 1
      %s24 = scalar_select %p23, 0, %s22
      %s25 = sadd.s32 1, %s16
      %s26 = scalar_select %p23, %s25, %s16
      %p27 = scmp.ge.s32.totalorder %s26, 5
      %s28 = scalar_select %p27, 0, %s26
      %s29 = ssub.s32 %s17, %s24
      %p30 = scmp.eq.s32.totalorder %s29, 0
      %s32 = sadd.s32 %s31, 1
      %s33 = scalar_select %p30, %s31, %s32
      %p36 = pneg %p30
      %p37 = scmp.eq.s32.totalorder %s9, 4
      %p38 = por %p36, %p37
      %p39 = scmp.ne.s32.totalorder %s31, %s34
      %p40 = scmp.eq.s32.totalorder %s9, 0
      %p41 = por %p39, %p40
      %p42 = scmp.ne.s32.totalorder %s31, %s34
      %p43 = scmp.eq.s32.totalorder %s14, 4
      %p44 = por %p42, %p43
      %p45 = scmp.ne.s32.totalorder %s34, %s35
      %p46 = scmp.eq.s32.totalorder %s14, 0
      %p47 = por %p45, %p46
      %p48 = scmp.ne.s32.totalorder %s34, %s35
      %p49 = scmp.eq.s32.totalorder %s15, 4
      %p50 = por %p48, %p49
      %p52 = scmp.ne.s32.totalorder %s35, %s51
      %p53 = scmp.eq.s32.totalorder %s15, 0
      %p54 = por %p52, %p53
      %s56 = sadd.s32 %s55, 1
      %p59 = scmp.eq.s32.totalorder %s9, 4
      %p60 = scmp.ne.s32.totalorder %s55, %s57
      %p61 = scmp.eq.s32.totalorder %s9, 0
      %p62 = por %p60, %p61
      %p63 = scmp.ne.s32.totalorder %s55, %s57
      %p64 = scmp.eq.s32.totalorder %s14, 4
      %p65 = por %p63, %p64
      %p66 = scmp.ne.s32.totalorder %s57, %s58
      %p67 = scmp.eq.s32.totalorder %s14, 0
      %p68 = por %p66, %p67
      %p69 = scmp.ne.s32.totalorder %s57, %s58
      %p70 = scmp.eq.s32.totalorder %s15, 4
      %p71 = por %p69, %p70
      %p73 = scmp.ne.s32.totalorder %s58, %s72
      %p74 = scmp.eq.s32.totalorder %s15, 0
      %p75 = por %p73, %p74
      %s76 = ssub.s32 %s17, %s24
      %s77 = ssub.s32 %s16, %s28
      %s78 = sor.u32 %s76, %s77
      %p79 = scmp.eq.s32.totalorder %s78, 0
      %s81 = sadd.s32 %s80, 1
      %s82 = scalar_select %p79, %s80, %s81
      %p85 = pneg %p79
      %p86 = scmp.eq.s32.totalorder %s9, 4
      %p87 = por %p85, %p86
      %p88 = scmp.ne.s32.totalorder %s80, %s83
      %p89 = scmp.eq.s32.totalorder %s9, 0
      %p90 = por %p88, %p89
      %p91 = scmp.ne.s32.totalorder %s80, %s83
      %p92 = scmp.eq.s32.totalorder %s14, 4
      %p93 = por %p91, %p92
      %p94 = scmp.ne.s32.totalorder %s83, %s84
      %p95 = scmp.eq.s32.totalorder %s14, 0
      %p96 = por %p94, %p95
      %p97 = scmp.ne.s32.totalorder %s83, %s84
      %p98 = scmp.eq.s32.totalorder %s15, 4
      %p99 = por %p97, %p98
      %p101 = scmp.ne.s32.totalorder %s84, %s100
      %p102 = scmp.eq.s32.totalorder %s15, 0
      %p103 = por %p101, %p102
      %s104 = ssub.s32 %s16, %s28
      %p105 = scmp.eq.s32.totalorder %s104, 0
      %s107 = sadd.s32 %s106, 1
      %s108 = scalar_select %p105, %s106, %s107
      %p111 = pneg %p105
      %p112 = scmp.eq.s32.totalorder %s9, 4
      %p113 = por %p111, %p112
      %p114 = scmp.ne.s32.totalorder %s106, %s109
      %p115 = scmp.eq.s32.totalorder %s9, 0
      %p116 = por %p114, %p115
      %p117 = scmp.ne.s32.totalorder %s106, %s109
      %p118 = scmp.eq.s32.totalorder %s14, 4
      %p119 = por %p117, %p118
      %p120 = scmp.ne.s32.totalorder %s109, %s110
      %p121 = scmp.eq.s32.totalorder %s14, 0
      %p122 = por %p120, %p121
      %p123 = scmp.ne.s32.totalorder %s109, %s110
      %p124 = scmp.eq.s32.totalorder %s15, 4
      %p125 = por %p123, %p124
      %p127 = scmp.ne.s32.totalorder %s110, %s126
      %p128 = scmp.eq.s32.totalorder %s15, 0
      %p129 = por %p127, %p128
      %p130 = scmp.le.s32.totalorder 1, %s9
      %p131 = scmp.lt.s32.totalorder %s9, 6
      %p132 = pnand %p130, %p131
      %p133 = pneg %p132
      // Predicated region
      $region9: #{fade_forward.6} parent=5 // pred_check
        _
      $region10: #{fade_forward.6} parent=5 // pred_check_branch
        %135 = sbr.rel (%p132) target = $region12
      $region11: #{fade_forward.6} parent=5 // pred_region
        %s136 = ssub.s32 %s9, 1
        // Predicated region
        $region13: #{fade_forward.6} parent=11 // pred_check
          %p137 = pneg %p47
        $region14: #{fade_forward.6} parent=11 // pred_check_branch
          %139 = sbr.rel (%p137) target = $region16
        $region15: #{fade_forward.6} parent=11 // pred_region
          %s140 = smul.u32 5, %s19
          %p141 = scmp.lt.s32.totalorder %s140, 4
          %s142 = scalar_select %p141, %s140, 4
          %s143 = smul.addr %s142, 4
          %s144 = scalar_lea.vmem %s0, %s143
          %s145 = smul.u32 5, %s19
        $region16: #{fade_forward.6} parent=11 // pred_fallthru
          _
        // Predicated region
        $region17: #{fade_forward.6} parent=11 // pred_check
          %p146 = pneg %p68
        $region18: #{fade_forward.6} parent=11 // pred_check_branch
          %148 = sbr.rel (%p146) target = $region20
        $region19: #{fade_forward.6} parent=11 // pred_region
          _
        $region20: #{fade_forward.6} parent=11 // pred_fallthru
          _
      $region12: #{fade_forward.6} parent=5 // pred_fallthru
        _
      %p149 = scmp.lt.s32.totalorder %s9, 5
      // Predicated region
      $region21: #{fade_forward.6} parent=5 // pred_check
        %p150 = pneg %p149
      $region22: #{fade_forward.6} parent=5 // pred_check_branch
        %152 = sbr.rel (%p150) target = $region24
      $region23: #{fade_forward.6} parent=5 // pred_region
        // Predicated region
        $region25: #{fade_forward.6} parent=23 // pred_check
          %p153 = pneg %p90
        $region26: #{fade_forward.6} parent=23 // pred_check_branch
          %155 = sbr.rel (%p153) target = $region28
        $region27: #{fade_forward.6} parent=23 // pred_region
          %s156 = sand.u32 %s80, 1
          %s157 = sand.u32 %s80, 1
          %s158 = smul.addr %s157, 288
          %s159 = scalar_lea.vmem [#allocation3], %s158
          %s160 = smul.u32 72, %s17
          %s161 = smul.addr %s160, 5
          %s162 = sadd.s32 %s16, %s161
          %s163 = smul.addr %s162, 4
          %s164 = scalar_lea.vmem %s2, %s163
          // Predicated region
          $region29: #{fade_forward.6} parent=27 // pred_check
            _
          $region30: #{fade_forward.6} parent=27 // pred_check_branch
            %166 = sbr.rel (0) target = $region32
          $region31: #{fade_forward.6} parent=27 // pred_region
            // Predicated region
            $region33: #{fade_forward.6} parent=31 // pred_check
              _
            $region34: #{fade_forward.6} parent=31 // pred_check_branch
              %168 = sbr.rel target = $region36
            $region35: #{fade_forward.6} parent=31 // pred_region
              // Predicated region
              $region48: #{fade_forward.6} parent=35 // pred_check
                _
              $region49: #{fade_forward.6} parent=35 // pred_check_branch
                %326 = sbr.rel (0) target = $region51
              $region50: #{fade_forward.6} parent=35 // pred_region
                loop: start=0, step=1, limit=1
                $region52: #{fade_forward.6} parent=50 // loop_pre_header
                  _
                $region53: #{fade_forward.6} parent=50 // loop_header
                  %s328 = sphi 0, %s332
                  %p329 = scmp.ge.s32.totalorder %s328, 1
                  %s333 = sphi %s164, %s164
                  %s334 = sphi %s159, %s159
                $region54: #{fade_forward.6} parent=50 // loop_header_branch
                  %331 = sbr.rel (%p329) target = $region58
                $region55: #{fade_forward.6} parent=50 // loop_body
                  _
                $region56: #{fade_forward.6} parent=50 // loop_footer
                  %s332 = sadd.s32 1, %s328
                $region57: #{fade_forward.6} parent=50 // loop_footer_branch
                  %327 = sbr.rel target = $region53
                $region58: #{fade_forward.6} parent=50 // loop_exit
                  _
                %s336 = ssub.s32 16, 1
                loop: start=0, step=1, limit=1
                $region59: #{fade_forward.6} parent=50 // loop_pre_header
                  _
                $region60: #{fade_forward.6} parent=50 // loop_header
                  %s338 = sphi 0, %s342
                  %p339 = scmp.ge.s32.totalorder %s338, 1
                  %s343 = sphi %s164, %s164
                  %s344 = sphi %s159, %s159
                $region61: #{fade_forward.6} parent=50 // loop_header_branch
                  %341 = sbr.rel (%p339) target = $region65
                $region62: #{fade_forward.6} parent=50 // loop_body
                  %v345 = vld [vmem:[%s343] sm:%s336]
                  %346 = vst [vmem:[%s344] sm:%s336] %v345
                  %v347 = vld [vmem:[%s343 + $0x14] sm:%s336]
                  %348 = vst [vmem:[%s344 + $0x4] sm:%s336] %v347
                  %v349 = vld [vmem:[%s343 + $0x28] sm:%s336]
                  %350 = vst [vmem:[%s344 + $0x8] sm:%s336] %v349
                  %v351 = vld [vmem:[%s343 + $0x3c] sm:%s336]
                  %352 = vst [vmem:[%s344 + $0xc] sm:%s336] %v351
                  %v353 = vld [vmem:[%s343 + $0x50] sm:%s336]
                  %354 = vst [vmem:[%s344 + $0x10] sm:%s336] %v353
                  %v355 = vld [vmem:[%s343 + $0x64] sm:%s336]
                  %356 = vst [vmem:[%s344 + $0x14] sm:%s336] %v355
                  %v357 = vld [vmem:[%s343 + $0x78] sm:%s336]
                  %358 = vst [vmem:[%s344 + $0x18] sm:%s336] %v357
                  %v359 = vld [vmem:[%s343 + $0x8c] sm:%s336]
                  %360 = vst [vmem:[%s344 + $0x1c] sm:%s336] %v359
                  %v361 = vld [vmem:[%s343 + $0xa0] sm:%s336]
                  %362 = vst [vmem:[%s344 + $0x20] sm:%s336] %v361
                  %v363 = vld [vmem:[%s343 + $0xb4] sm:%s336]
                  %364 = vst [vmem:[%s344 + $0x24] sm:%s336] %v363
                  %v365 = vld [vmem:[%s343 + $0xc8] sm:%s336]
                  %366 = vst [vmem:[%s344 + $0x28] sm:%s336] %v365
                  %v367 = vld [vmem:[%s343 + $0xdc] sm:%s336]
                  %368 = vst [vmem:[%s344 + $0x2c] sm:%s336] %v367
                  %v369 = vld [vmem:[%s343 + $0xf0] sm:%s336]
                  %370 = vst [vmem:[%s344 + $0x30] sm:%s336] %v369
                  %v371 = vld [vmem:[%s343 + $0x104] sm:%s336]
                  %372 = vst [vmem:[%s344 + $0x34] sm:%s336] %v371
                  %v373 = vld [vmem:[%s343 + $0x118] sm:%s336]
                  %374 = vst [vmem:[%s344 + $0x38] sm:%s336] %v373
                  %v375 = vld [vmem:[%s343 + $0x12c] sm:%s336]
                  %376 = vst [vmem:[%s344 + $0x3c] sm:%s336] %v375
                  %v377 = vld [vmem:[%s343 + $0x140] sm:%s336]
                  %378 = vst [vmem:[%s344 + $0x40] sm:%s336] %v377
                  %v379 = vld [vmem:[%s343 + $0x154] sm:%s336]
                  %380 = vst [vmem:[%s344 + $0x44] sm:%s336] %v379
                  %v381 = vld [vmem:[%s343 + $0x168] sm:%s336]
                  %382 = vst [vmem:[%s344 + $0x48] sm:%s336] %v381
                  %v383 = vld [vmem:[%s343 + $0x17c] sm:%s336]
                  %384 = vst [vmem:[%s344 + $0x4c] sm:%s336] %v383
                  %v385 = vld [vmem:[%s343 + $0x190] sm:%s336]
                  %386 = vst [vmem:[%s344 + $0x50] sm:%s336] %v385
                  %v387 = vld [vmem:[%s343 + $0x1a4] sm:%s336]
                  %388 = vst [vmem:[%s344 + $0x54] sm:%s336] %v387
                  %v389 = vld [vmem:[%s343 + $0x1b8] sm:%s336]
                  %390 = vst [vmem:[%s344 + $0x58] sm:%s336] %v389
                  %v391 = vld [vmem:[%s343 + $0x1cc] sm:%s336]
                  %392 = vst [vmem:[%s344 + $0x5c] sm:%s336] %v391
                  %v393 = vld [vmem:[%s343 + $0x1e0] sm:%s336]
                  %394 = vst [vmem:[%s344 + $0x60] sm:%s336] %v393
                  %v395 = vld [vmem:[%s343 + $0x1f4] sm:%s336]
                  %396 = vst [vmem:[%s344 + $0x64] sm:%s336] %v395
                  %v397 = vld [vmem:[%s343 + $0x208] sm:%s336]
                  %398 = vst [vmem:[%s344 + $0x68] sm:%s336] %v397
                  %v399 = vld [vmem:[%s343 + $0x21c] sm:%s336]
                  %400 = vst [vmem:[%s344 + $0x6c] sm:%s336] %v399
                  %v401 = vld [vmem:[%s343 + $0x230] sm:%s336]
                  %402 = vst [vmem:[%s344 + $0x70] sm:%s336] %v401
                  %v403 = vld [vmem:[%s343 + $0x244] sm:%s336]
                  %404 = vst [vmem:[%s344 + $0x74] sm:%s336] %v403
                  %v405 = vld [vmem:[%s343 + $0x258] sm:%s336]
                  %406 = vst [vmem:[%s344 + $0x78] sm:%s336] %v405
                  %v407 = vld [vmem:[%s343 + $0x26c] sm:%s336]
                  %408 = vst [vmem:[%s344 + $0x7c] sm:%s336] %v407
                  %v409 = vld [vmem:[%s343 + $0x280] sm:%s336]
                  %410 = vst [vmem:[%s344 + $0x80] sm:%s336] %v409
                  %v411 = vld [vmem:[%s343 + $0x294] sm:%s336]
                  %412 = vst [vmem:[%s344 + $0x84] sm:%s336] %v411
                  %v413 = vld [vmem:[%s343 + $0x2a8] sm:%s336]
                  %414 = vst [vmem:[%s344 + $0x88] sm:%s336] %v413
                  %v415 = vld [vmem:[%s343 + $0x2bc] sm:%s336]
                  %416 = vst [vmem:[%s344 + $0x8c] sm:%s336] %v415
                  %v417 = vld [vmem:[%s343 + $0x2d0] sm:%s336]
                  %418 = vst [vmem:[%s344 + $0x90] sm:%s336] %v417
                  %v419 = vld [vmem:[%s343 + $0x2e4] sm:%s336]
                  %420 = vst [vmem:[%s344 + $0x94] sm:%s336] %v419
                  %v421 = vld [vmem:[%s343 + $0x2f8] sm:%s336]
                  %422 = vst [vmem:[%s344 + $0x98] sm:%s336] %v421
                  %v423 = vld [vmem:[%s343 + $0x30c] sm:%s336]
                  %424 = vst [vmem:[%s344 + $0x9c] sm:%s336] %v423
                  %v425 = vld [vmem:[%s343 + $0x320] sm:%s336]
                  %426 = vst [vmem:[%s344 + $0xa0] sm:%s336] %v425
                  %v427 = vld [vmem:[%s343 + $0x334] sm:%s336]
                  %428 = vst [vmem:[%s344 + $0xa4] sm:%s336] %v427
                  %v429 = vld [vmem:[%s343 + $0x348] sm:%s336]
                  %430 = vst [vmem:[%s344 + $0xa8] sm:%s336] %v429
                  %v431 = vld [vmem:[%s343 + $0x35c] sm:%s336]
                  %432 = vst [vmem:[%s344 + $0xac] sm:%s336] %v431
                  %v433 = vld [vmem:[%s343 + $0x370] sm:%s336]
                  %434 = vst [vmem:[%s344 + $0xb0] sm:%s336] %v433
                  %v435 = vld [vmem:[%s343 + $0x384] sm:%s336]
                  %436 = vst [vmem:[%s344 + $0xb4] sm:%s336] %v435
                  %v437 = vld [vmem:[%s343 + $0x398] sm:%s336]
                  %438 = vst [vmem:[%s344 + $0xb8] sm:%s336] %v437
                  %v439 = vld [vmem:[%s343 + $0x3ac] sm:%s336]
                  %440 = vst [vmem:[%s344 + $0xbc] sm:%s336] %v439
                  %v441 = vld [vmem:[%s343 + $0x3c0] sm:%s336]
                  %442 = vst [vmem:[%s344 + $0xc0] sm:%s336] %v441
                  %v443 = vld [vmem:[%s343 + $0x3d4] sm:%s336]
                  %444 = vst [vmem:[%s344 + $0xc4] sm:%s336] %v443
                  %v445 = vld [vmem:[%s343 + $0x3e8] sm:%s336]
                  %446 = vst [vmem:[%s344 + $0xc8] sm:%s336] %v445
                  %v447 = vld [vmem:[%s343 + $0x3fc] sm:%s336]
                  %448 = vst [vmem:[%s344 + $0xcc] sm:%s336] %v447
                  %v449 = vld [vmem:[%s343 + $0x410] sm:%s336]
                  %450 = vst [vmem:[%s344 + $0xd0] sm:%s336] %v449
                  %v451 = vld [vmem:[%s343 + $0x424] sm:%s336]
                  %452 = vst [vmem:[%s344 + $0xd4] sm:%s336] %v451
                  %v453 = vld [vmem:[%s343 + $0x438] sm:%s336]
                  %454 = vst [vmem:[%s344 + $0xd8] sm:%s336] %v453
                  %v455 = vld [vmem:[%s343 + $0x44c] sm:%s336]
                  %456 = vst [vmem:[%s344 + $0xdc] sm:%s336] %v455
                  %v457 = vld [vmem:[%s343 + $0x460] sm:%s336]
                  %458 = vst [vmem:[%s344 + $0xe0] sm:%s336] %v457
                  %v459 = vld [vmem:[%s343 + $0x474] sm:%s336]
                  %460 = vst [vmem:[%s344 + $0xe4] sm:%s336] %v459
                  %v461 = vld [vmem:[%s343 + $0x488] sm:%s336]
                  %462 = vst [vmem:[%s344 + $0xe8] sm:%s336] %v461
                  %v463 = vld [vmem:[%s343 + $0x49c] sm:%s336]
                  %464 = vst [vmem:[%s344 + $0xec] sm:%s336] %v463
                  %v465 = vld [vmem:[%s343 + $0x4b0] sm:%s336]
                  %466 = vst [vmem:[%s344 + $0xf0] sm:%s336] %v465
                  %v467 = vld [vmem:[%s343 + $0x4c4] sm:%s336]
                  %468 = vst [vmem:[%s344 + $0xf4] sm:%s336] %v467
                  %v469 = vld [vmem:[%s343 + $0x4d8] sm:%s336]
                  %470 = vst [vmem:[%s344 + $0xf8] sm:%s336] %v469
                  %v471 = vld [vmem:[%s343 + $0x4ec] sm:%s336]
                  %472 = vst [vmem:[%s344 + $0xfc] sm:%s336] %v471
                  %v473 = vld [vmem:[%s343 + $0x500] sm:%s336]
                  %474 = vst [vmem:[%s344 + $0x100] sm:%s336] %v473
                  %v475 = vld [vmem:[%s343 + $0x514] sm:%s336]
                  %476 = vst [vmem:[%s344 + $0x104] sm:%s336] %v475
                  %v477 = vld [vmem:[%s343 + $0x528] sm:%s336]
                  %478 = vst [vmem:[%s344 + $0x108] sm:%s336] %v477
                  %v479 = vld [vmem:[%s343 + $0x53c] sm:%s336]
                  %480 = vst [vmem:[%s344 + $0x10c] sm:%s336] %v479
                  %v481 = vld [vmem:[%s343 + $0x550] sm:%s336]
                  %482 = vst [vmem:[%s344 + $0x110] sm:%s336] %v481
                  %v483 = vld [vmem:[%s343 + $0x564] sm:%s336]
                  %484 = vst [vmem:[%s344 + $0x114] sm:%s336] %v483
                  %v485 = vld [vmem:[%s343 + $0x578] sm:%s336]
                  %486 = vst [vmem:[%s344 + $0x118] sm:%s336] %v485
                  %v487 = vld [vmem:[%s343 + $0x58c] sm:%s336]
                  %488 = vst [vmem:[%s344 + $0x11c] sm:%s336] %v487
                $region63: #{fade_forward.6} parent=50 // loop_footer
                  %s342 = sadd.s32 1, %s338
                $region64: #{fade_forward.6} parent=50 // loop_footer_branch
                  %337 = sbr.rel target = $region60
                $region65: #{fade_forward.6} parent=50 // loop_exit
                  _
              $region51: #{fade_forward.6} parent=35 // pred_fallthru
                _
            $region36: #{fade_forward.6} parent=31 // pred_fallthru
              _
            // Predicated region
            $region37: #{fade_forward.6} parent=31 // pred_check
              _
            $region38: #{fade_forward.6} parent=31 // pred_check_branch
              %170 = sbr.rel (0) target = $region40
            $region39: #{fade_forward.6} parent=31 // pred_region
              %s172 = ssub.s32 16, 1
              loop: start=0, step=1, limit=1
              $region41: #{fade_forward.6} parent=39 // loop_pre_header
                _
              $region42: #{fade_forward.6} parent=39 // loop_header
                %s174 = sphi 0, %s178
                %p175 = scmp.ge.s32.totalorder %s174, 1
                %s179 = sphi %s164, %s164
                %s180 = sphi %s159, %s159
              $region43: #{fade_forward.6} parent=39 // loop_header_branch
                %177 = sbr.rel (%p175) target = $region47
              $region44: #{fade_forward.6} parent=39 // loop_body
                %v181 = vld [vmem:[%s179] sm:%s172]
                %182 = vst [vmem:[%s180] sm:%s172] %v181
                %v183 = vld [vmem:[%s179 + $0x14] sm:%s172]
                %184 = vst [vmem:[%s180 + $0x4] sm:%s172] %v183
                %v185 = vld [vmem:[%s179 + $0x28] sm:%s172]
                %186 = vst [vmem:[%s180 + $0x8] sm:%s172] %v185
                %v187 = vld [vmem:[%s179 + $0x3c] sm:%s172]
                %188 = vst [vmem:[%s180 + $0xc] sm:%s172] %v187
                %v189 = vld [vmem:[%s179 + $0x50] sm:%s172]
                %190 = vst [vmem:[%s180 + $0x10] sm:%s172] %v189
                %v191 = vld [vmem:[%s179 + $0x64] sm:%s172]
                %192 = vst [vmem:[%s180 + $0x14] sm:%s172] %v191
                %v193 = vld [vmem:[%s179 + $0x78] sm:%s172]
                %194 = vst [vmem:[%s180 + $0x18] sm:%s172] %v193
                %v195 = vld [vmem:[%s179 + $0x8c] sm:%s172]
                %196 = vst [vmem:[%s180 + $0x1c] sm:%s172] %v195
                %v197 = vld [vmem:[%s179 + $0xa0] sm:%s172]
                %198 = vst [vmem:[%s180 + $0x20] sm:%s172] %v197
                %v199 = vld [vmem:[%s179 + $0xb4] sm:%s172]
                %200 = vst [vmem:[%s180 + $0x24] sm:%s172] %v199
                %v201 = vld [vmem:[%s179 + $0xc8] sm:%s172]
                %202 = vst [vmem:[%s180 + $0x28] sm:%s172] %v201
                %v203 = vld [vmem:[%s179 + $0xdc] sm:%s172]
                %204 = vst [vmem:[%s180 + $0x2c] sm:%s172] %v203
                %v205 = vld [vmem:[%s179 + $0xf0] sm:%s172]
                %206 = vst [vmem:[%s180 + $0x30] sm:%s172] %v205
                %v207 = vld [vmem:[%s179 + $0x104] sm:%s172]
                %208 = vst [vmem:[%s180 + $0x34] sm:%s172] %v207
                %v209 = vld [vmem:[%s179 + $0x118] sm:%s172]
                %210 = vst [vmem:[%s180 + $0x38] sm:%s172] %v209
                %v211 = vld [vmem:[%s179 + $0x12c] sm:%s172]
                %212 = vst [vmem:[%s180 + $0x3c] sm:%s172] %v211
                %v213 = vld [vmem:[%s179 + $0x140] sm:%s172]
                %214 = vst [vmem:[%s180 + $0x40] sm:%s172] %v213
                %v215 = vld [vmem:[%s179 + $0x154] sm:%s172]
                %216 = vst [vmem:[%s180 + $0x44] sm:%s172] %v215
                %v217 = vld [vmem:[%s179 + $0x168] sm:%s172]
                %218 = vst [vmem:[%s180 + $0x48] sm:%s172] %v217
                %v219 = vld [vmem:[%s179 + $0x17c] sm:%s172]
                %220 = vst [vmem:[%s180 + $0x4c] sm:%s172] %v219
                %v221 = vld [vmem:[%s179 + $0x190] sm:%s172]
                %222 = vst [vmem:[%s180 + $0x50] sm:%s172] %v221
                %v223 = vld [vmem:[%s179 + $0x1a4] sm:%s172]
                %224 = vst [vmem:[%s180 + $0x54] sm:%s172] %v223
                %v225 = vld [vmem:[%s179 + $0x1b8] sm:%s172]
                %226 = vst [vmem:[%s180 + $0x58] sm:%s172] %v225
                %v227 = vld [vmem:[%s179 + $0x1cc] sm:%s172]
                %228 = vst [vmem:[%s180 + $0x5c] sm:%s172] %v227
                %v229 = vld [vmem:[%s179 + $0x1e0] sm:%s172]
                %230 = vst [vmem:[%s180 + $0x60] sm:%s172] %v229
                %v231 = vld [vmem:[%s179 + $0x1f4] sm:%s172]
                %232 = vst [vmem:[%s180 + $0x64] sm:%s172] %v231
                %v233 = vld [vmem:[%s179 + $0x208] sm:%s172]
                %234 = vst [vmem:[%s180 + $0x68] sm:%s172] %v233
                %v235 = vld [vmem:[%s179 + $0x21c] sm:%s172]
                %236 = vst [vmem:[%s180 + $0x6c] sm:%s172] %v235
                %v237 = vld [vmem:[%s179 + $0x230] sm:%s172]
                %238 = vst [vmem:[%s180 + $0x70] sm:%s172] %v237
                %v239 = vld [vmem:[%s179 + $0x244] sm:%s172]
                %240 = vst [vmem:[%s180 + $0x74] sm:%s172] %v239
                %v241 = vld [vmem:[%s179 + $0x258] sm:%s172]
                %242 = vst [vmem:[%s180 + $0x78] sm:%s172] %v241
                %v243 = vld [vmem:[%s179 + $0x26c] sm:%s172]
                %244 = vst [vmem:[%s180 + $0x7c] sm:%s172] %v243
                %v245 = vld [vmem:[%s179 + $0x280] sm:%s172]
                %246 = vst [vmem:[%s180 + $0x80] sm:%s172] %v245
                %v247 = vld [vmem:[%s179 + $0x294] sm:%s172]
                %248 = vst [vmem:[%s180 + $0x84] sm:%s172] %v247
                %v249 = vld [vmem:[%s179 + $0x2a8] sm:%s172]
                %250 = vst [vmem:[%s180 + $0x88] sm:%s172] %v249
                %v251 = vld [vmem:[%s179 + $0x2bc] sm:%s172]
                %252 = vst [vmem:[%s180 + $0x8c] sm:%s172] %v251
                %v253 = vld [vmem:[%s179 + $0x2d0] sm:%s172]
                %254 = vst [vmem:[%s180 + $0x90] sm:%s172] %v253
                %v255 = vld [vmem:[%s179 + $0x2e4] sm:%s172]
                %256 = vst [vmem:[%s180 + $0x94] sm:%s172] %v255
                %v257 = vld [vmem:[%s179 + $0x2f8] sm:%s172]
                %258 = vst [vmem:[%s180 + $0x98] sm:%s172] %v257
                %v259 = vld [vmem:[%s179 + $0x30c] sm:%s172]
                %260 = vst [vmem:[%s180 + $0x9c] sm:%s172] %v259
                %v261 = vld [vmem:[%s179 + $0x320] sm:%s172]
                %262 = vst [vmem:[%s180 + $0xa0] sm:%s172] %v261
                %v263 = vld [vmem:[%s179 + $0x334] sm:%s172]
                %264 = vst [vmem:[%s180 + $0xa4] sm:%s172] %v263
                %v265 = vld [vmem:[%s179 + $0x348] sm:%s172]
                %266 = vst [vmem:[%s180 + $0xa8] sm:%s172] %v265
                %v267 = vld [vmem:[%s179 + $0x35c] sm:%s172]
                %268 = vst [vmem:[%s180 + $0xac] sm:%s172] %v267
                %v269 = vld [vmem:[%s179 + $0x370] sm:%s172]
                %270 = vst [vmem:[%s180 + $0xb0] sm:%s172] %v269
                %v271 = vld [vmem:[%s179 + $0x384] sm:%s172]
                %272 = vst [vmem:[%s180 + $0xb4] sm:%s172] %v271
                %v273 = vld [vmem:[%s179 + $0x398] sm:%s172]
                %274 = vst [vmem:[%s180 + $0xb8] sm:%s172] %v273
                %v275 = vld [vmem:[%s179 + $0x3ac] sm:%s172]
                %276 = vst [vmem:[%s180 + $0xbc] sm:%s172] %v275
                %v277 = vld [vmem:[%s179 + $0x3c0] sm:%s172]
                %278 = vst [vmem:[%s180 + $0xc0] sm:%s172] %v277
                %v279 = vld [vmem:[%s179 + $0x3d4] sm:%s172]
                %280 = vst [vmem:[%s180 + $0xc4] sm:%s172] %v279
                %v281 = vld [vmem:[%s179 + $0x3e8] sm:%s172]
                %282 = vst [vmem:[%s180 + $0xc8] sm:%s172] %v281
                %v283 = vld [vmem:[%s179 + $0x3fc] sm:%s172]
                %284 = vst [vmem:[%s180 + $0xcc] sm:%s172] %v283
                %v285 = vld [vmem:[%s179 + $0x410] sm:%s172]
                %286 = vst [vmem:[%s180 + $0xd0] sm:%s172] %v285
                %v287 = vld [vmem:[%s179 + $0x424] sm:%s172]
                %288 = vst [vmem:[%s180 + $0xd4] sm:%s172] %v287
                %v289 = vld [vmem:[%s179 + $0x438] sm:%s172]
                %290 = vst [vmem:[%s180 + $0xd8] sm:%s172] %v289
                %v291 = vld [vmem:[%s179 + $0x44c] sm:%s172]
                %292 = vst [vmem:[%s180 + $0xdc] sm:%s172] %v291
                %v293 = vld [vmem:[%s179 + $0x460] sm:%s172]
                %294 = vst [vmem:[%s180 + $0xe0] sm:%s172] %v293
                %v295 = vld [vmem:[%s179 + $0x474] sm:%s172]
                %296 = vst [vmem:[%s180 + $0xe4] sm:%s172] %v295
                %v297 = vld [vmem:[%s179 + $0x488] sm:%s172]
                %298 = vst [vmem:[%s180 + $0xe8] sm:%s172] %v297
                %v299 = vld [vmem:[%s179 + $0x49c] sm:%s172]
                %300 = vst [vmem:[%s180 + $0xec] sm:%s172] %v299
                %v301 = vld [vmem:[%s179 + $0x4b0] sm:%s172]
                %302 = vst [vmem:[%s180 + $0xf0] sm:%s172] %v301
                %v303 = vld [vmem:[%s179 + $0x4c4] sm:%s172]
                %304 = vst [vmem:[%s180 + $0xf4] sm:%s172] %v303
                %v305 = vld [vmem:[%s179 + $0x4d8] sm:%s172]
                %306 = vst [vmem:[%s180 + $0xf8] sm:%s172] %v305
                %v307 = vld [vmem:[%s179 + $0x4ec] sm:%s172]
                %308 = vst [vmem:[%s180 + $0xfc] sm:%s172] %v307
                %v309 = vld [vmem:[%s179 + $0x500] sm:%s172]
                %310 = vst [vmem:[%s180 + $0x100] sm:%s172] %v309
                %v311 = vld [vmem:[%s179 + $0x514] sm:%s172]
                %312 = vst [vmem:[%s180 + $0x104] sm:%s172] %v311
                %v313 = vld [vmem:[%s179 + $0x528] sm:%s172]
                %314 = vst [vmem:[%s180 + $0x108] sm:%s172] %v313
                %v315 = vld [vmem:[%s179 + $0x53c] sm:%s172]
                %316 = vst [vmem:[%s180 + $0x10c] sm:%s172] %v315
                %v317 = vld [vmem:[%s179 + $0x550] sm:%s172]
                %318 = vst [vmem:[%s180 + $0x110] sm:%s172] %v317
                %v319 = vld [vmem:[%s179 + $0x564] sm:%s172]
                %320 = vst [vmem:[%s180 + $0x114] sm:%s172] %v319
                %v321 = vld [vmem:[%s179 + $0x578] sm:%s172]
                %322 = vst [vmem:[%s180 + $0x118] sm:%s172] %v321
                %v323 = vld [vmem:[%s179 + $0x58c] sm:%s172]
                %324 = vst [vmem:[%s180 + $0x11c] sm:%s172] %v323
              $region45: #{fade_forward.6} parent=39 // loop_footer
                %s178 = sadd.s32 1, %s174
              $region46: #{fade_forward.6} parent=39 // loop_footer_branch
                %173 = sbr.rel target = $region42
              $region47: #{fade_forward.6} parent=39 // loop_exit
                _
            $region40: #{fade_forward.6} parent=31 // pred_fallthru
              _
          $region32: #{fade_forward.6} parent=27 // pred_fallthru
            _
          %489 = vnop
        $region28: #{fade_forward.6} parent=23 // pred_fallthru
          _
      $region24: #{fade_forward.6} parent=5 // pred_fallthru
        _
      %p490 = scmp.le.s32.totalorder 1, %s9
      %p491 = scmp.lt.s32.totalorder %s9, 6
      %p492 = pnand %p490, %p491
      %p493 = pneg %p492
      // Predicated region
      $region66: #{fade_forward.6} parent=5 // pred_check
        _
      $region67: #{fade_forward.6} parent=5 // pred_check_branch
        %495 = sbr.rel (%p492) target = $region69
      $region68: #{fade_forward.6} parent=5 // pred_region
        %s496 = ssub.s32 %s9, 1
        %s497 = sand.u32 %s83, 1
        %s498 = sand.u32 %s83, 1
        %s499 = smul.addr %s498, 288
        %s500 = scalar_lea.vmem [#allocation3], %s499
        // Predicated region
        $region70: #{fade_forward.6} parent=68 // pred_check
          %p501 = pneg %p96
        $region71: #{fade_forward.6} parent=68 // pred_check_branch
          %503 = sbr.rel (%p501) target = $region73
        $region72: #{fade_forward.6} parent=68 // pred_region
          _
        $region73: #{fade_forward.6} parent=68 // pred_fallthru
          _
        %s504 = smul.u32 5, %s19
        %p505 = scmp.lt.s32.totalorder %s504, 4
        %s506 = scalar_select %p505, %s504, 4
        %s507 = smul.addr %s506, 4
        %s508 = scalar_lea.vmem %s0, %s507
        %p509 = pneg %p47
        %p510 = pneg %p44
        %p511 = pneg %p68
        %p512 = pneg %p65
        %s513 = sand.u32 %s83, 1
        %s514 = sand.u32 %s83, 1
        %s515 = smul.addr %s514, 288
        %s516 = scalar_lea.vmem [#allocation3], %s515
        %p517 = pneg %p96
        %p518 = pneg %p93
        %p519 = pneg %p122
        %p520 = pneg %p119
        %s521 = sand.u32 %s109, 1
        %s522 = sand.u32 %s109, 1
        %s523 = smul.addr %s522, 16
        %s524 = scalar_lea.vmem [#allocation4], %s523
        %s525 = smul.u32 5, %s19
        %p526 = scmp.lt.s32.totalorder %s525, 4
        %s527 = scalar_select %p526, %s525, 4
        %s528 = smul.addr %s527, 4
        %s529 = scalar_lea.vmem %s0, %s528
        %s530 = smul.u32 5, %s19
        %s531 = smul.u32 72, %s19
        %p533 = scmp.eq.s32.totalorder %s19, 0
        // Predicated region
        $region74: #{fade_forward.6} parent=68 // pred_check
          %p534 = pneg %p533
        $region75: #{fade_forward.6} parent=68 // pred_check_branch
          %536 = sbr.rel (%p534) target = $region77
        $region76: #{fade_forward.6} parent=68 // pred_region
          %v537 = vld [vmem:[%s1] sm:$0xff]
          %v538 = vld [vmem:[%s1 + $0x8] sm:$0xff]
          %v539 = vld [vmem:[%s1 + $0x10] sm:$0xff]
          %v540 = vld [vmem:[%s1 + $0x18] sm:$0xff]
          %542 = vset.pattern.permute.xlu0 0
          %543 = vperm.xlu0 %542, %v537
          %v544 = vpop.permute.xlu0 %543
          %547 = vset.pattern.permute.xlu0 0
          %548 = vperm.xlu0 %547, %v538
          %v549 = vpop.permute.xlu0 %548
          %552 = vset.pattern.permute.xlu0 0
          %553 = vperm.xlu0 %552, %v539
          %v554 = vpop.permute.xlu0 %553
          %557 = vset.pattern.permute.xlu0 0
          %558 = vperm.xlu0 %557, %v540
          %v559 = vpop.permute.xlu0 %558
          %561 = vst [vmem:[#allocation2] sm:$0xff] %v544
          %562 = vst [vmem:[#allocation2 + $0x8] sm:$0xff] %v549
          %563 = vst [vmem:[#allocation2 + $0x10] sm:$0xff] %v554
          %564 = vst [vmem:[#allocation2 + $0x18] sm:$0xff] %v559
        $region77: #{fade_forward.6} parent=68 // pred_fallthru
          _
        %v565 = vld [vmem:[#allocation2] sm:$0xff]
        %v566 = vld [vmem:[#allocation2 + $0x8] sm:$0xff]
        %v567 = vld [vmem:[#allocation2 + $0x10] sm:$0xff]
        %v568 = vld [vmem:[#allocation2 + $0x18] sm:$0xff]
        %v569 = vld [vmem:[%s529] sm:$0xff]
        %v570 = vld [vmem:[%s529 + $0x8] sm:$0xff]
        %v571 = vld [vmem:[%s529 + $0x10] sm:$0xf]
        %v572 = vld [vmem:[%s529 + $0x14] sm:$0xff]
        %v573 = vld [vmem:[%s529 + $0x1c] sm:$0xff]
        %v574 = vld [vmem:[%s529 + $0x24] sm:$0xf]
        %v575 = vld [vmem:[%s529 + $0x28] sm:$0xff]
        %v576 = vld [vmem:[%s529 + $0x30] sm:$0xff]
        %v577 = vld [vmem:[%s529 + $0x38] sm:$0xf]
        %v578 = vld [vmem:[%s529 + $0x3c] sm:$0xff]
        %v579 = vld [vmem:[%s529 + $0x44] sm:$0xff]
        %v580 = vld [vmem:[%s529 + $0x4c] sm:$0xf]
        %v581 = vld [vmem:[%s500] sm:$0xf]
        %v582 = vld [vmem:[%s500 + $0x4] sm:$0xf]
        %v583 = vld [vmem:[%s500 + $0x8] sm:$0xf]
        %v584 = vld [vmem:[%s500 + $0xc] sm:$0xf]
        %v585 = vld [vmem:[%s500 + $0x10] sm:$0xf]
        %v586 = vld [vmem:[%s500 + $0x14] sm:$0xf]
        %v587 = vld [vmem:[%s500 + $0x18] sm:$0xf]
        %v588 = vld [vmem:[%s500 + $0x1c] sm:$0xf]
        %v589 = vld [vmem:[%s500 + $0x20] sm:$0xf]
        %v590 = vld [vmem:[%s500 + $0x24] sm:$0xf]
        %v591 = vld [vmem:[%s500 + $0x28] sm:$0xf]
        %v592 = vld [vmem:[%s500 + $0x2c] sm:$0xf]
        %v593 = vld [vmem:[%s500 + $0x30] sm:$0xf]
        %v594 = vld [vmem:[%s500 + $0x34] sm:$0xf]
        %v595 = vld [vmem:[%s500 + $0x38] sm:$0xf]
        %v596 = vld [vmem:[%s500 + $0x3c] sm:$0xf]
        %v597 = vld [vmem:[%s500 + $0x40] sm:$0xf]
        %v598 = vld [vmem:[%s500 + $0x44] sm:$0xf]
        %v599 = vld [vmem:[%s500 + $0x48] sm:$0xf]
        %v600 = vld [vmem:[%s500 + $0x4c] sm:$0xf]
        %v601 = vld [vmem:[%s500 + $0x50] sm:$0xf]
        %v602 = vld [vmem:[%s500 + $0x54] sm:$0xf]
        %v603 = vld [vmem:[%s500 + $0x58] sm:$0xf]
        %v604 = vld [vmem:[%s500 + $0x5c] sm:$0xf]
        %v605 = vld [vmem:[%s500 + $0x60] sm:$0xf]
        %v606 = vld [vmem:[%s500 + $0x64] sm:$0xf]
        %v607 = vld [vmem:[%s500 + $0x68] sm:$0xf]
        %v608 = vld [vmem:[%s500 + $0x6c] sm:$0xf]
        %v609 = vld [vmem:[%s500 + $0x70] sm:$0xf]
        %v610 = vld [vmem:[%s500 + $0x74] sm:$0xf]
        %v611 = vld [vmem:[%s500 + $0x78] sm:$0xf]
        %v612 = vld [vmem:[%s500 + $0x7c] sm:$0xf]
        %v613 = vld [vmem:[%s500 + $0x80] sm:$0xf]
        %v614 = vld [vmem:[%s500 + $0x84] sm:$0xf]
        %v615 = vld [vmem:[%s500 + $0x88] sm:$0xf]
        %v616 = vld [vmem:[%s500 + $0x8c] sm:$0xf]
        %v617 = vld [vmem:[%s500 + $0x90] sm:$0xf]
        %v618 = vld [vmem:[%s500 + $0x94] sm:$0xf]
        %v619 = vld [vmem:[%s500 + $0x98] sm:$0xf]
        %v620 = vld [vmem:[%s500 + $0x9c] sm:$0xf]
        %v621 = vld [vmem:[%s500 + $0xa0] sm:$0xf]
        %v622 = vld [vmem:[%s500 + $0xa4] sm:$0xf]
        %v623 = vld [vmem:[%s500 + $0xa8] sm:$0xf]
        %v624 = vld [vmem:[%s500 + $0xac] sm:$0xf]
        %v625 = vld [vmem:[%s500 + $0xb0] sm:$0xf]
        %v626 = vld [vmem:[%s500 + $0xb4] sm:$0xf]
        %v627 = vld [vmem:[%s500 + $0xb8] sm:$0xf]
        %v628 = vld [vmem:[%s500 + $0xbc] sm:$0xf]
        %v629 = vld [vmem:[%s500 + $0xc0] sm:$0xf]
        %v630 = vld [vmem:[%s500 + $0xc4] sm:$0xf]
        %v631 = vld [vmem:[%s500 + $0xc8] sm:$0xf]
        %v632 = vld [vmem:[%s500 + $0xcc] sm:$0xf]
        %v633 = vld [vmem:[%s500 + $0xd0] sm:$0xf]
        %v634 = vld [vmem:[%s500 + $0xd4] sm:$0xf]
        %v635 = vld [vmem:[%s500 + $0xd8] sm:$0xf]
        %v636 = vld [vmem:[%s500 + $0xdc] sm:$0xf]
        %v637 = vld [vmem:[%s500 + $0xe0] sm:$0xf]
        %v638 = vld [vmem:[%s500 + $0xe4] sm:$0xf]
        %v639 = vld [vmem:[%s500 + $0xe8] sm:$0xf]
        %v640 = vld [vmem:[%s500 + $0xec] sm:$0xf]
        %v641 = vld [vmem:[%s500 + $0xf0] sm:$0xf]
        %v642 = vld [vmem:[%s500 + $0xf4] sm:$0xf]
        %v643 = vld [vmem:[%s500 + $0xf8] sm:$0xf]
        %v644 = vld [vmem:[%s500 + $0xfc] sm:$0xf]
        %v645 = vld [vmem:[%s500 + $0x100] sm:$0xf]
        %v646 = vld [vmem:[%s500 + $0x104] sm:$0xf]
        %v647 = vld [vmem:[%s500 + $0x108] sm:$0xf]
        %v648 = vld [vmem:[%s500 + $0x10c] sm:$0xf]
        %v649 = vld [vmem:[%s500 + $0x110] sm:$0xf]
        %v650 = vld [vmem:[%s500 + $0x114] sm:$0xf]
        %v651 = vld [vmem:[%s500 + $0x118] sm:$0xf]
        %v652 = vld [vmem:[%s500 + $0x11c] sm:$0xf]
        %v665 = vunpack.c.l.b16 %v569
        %v666 = vunpack.c.h.b16 %v569
        %v667 = vunpack.c.l.b16 %v570
        %v668 = vunpack.c.h.b16 %v570
        %v669 = vunpack.c.l.b16 %v571
        %v670 = vunpack.c.l.b16 %v572
        %v671 = vunpack.c.h.b16 %v572
        %v672 = vunpack.c.l.b16 %v573
        %v673 = vunpack.c.h.b16 %v573
        %v674 = vunpack.c.l.b16 %v574
        %v675 = vunpack.c.l.b16 %v575
        %v676 = vunpack.c.h.b16 %v575
        %v677 = vunpack.c.l.b16 %v576
        %v678 = vunpack.c.h.b16 %v576
        %v679 = vunpack.c.l.b16 %v577
        %v680 = vunpack.c.l.b16 %v578
        %v681 = vunpack.c.h.b16 %v578
        %v682 = vunpack.c.l.b16 %v579
        %v683 = vunpack.c.h.b16 %v579
        %v684 = vunpack.c.l.b16 %v580
        %v685 = vpack.c.b16 %v670, %v665
        %v686 = vpack.c.b16 %v671, %v666
        %v687 = vpack.c.b16 %v672, %v667
        %v688 = vpack.c.b16 %v673, %v668
        %v689 = vpack.c.b16 %v674, %v669
        %v690 = vpack.c.b16 %v680, %v675
        %v691 = vpack.c.b16 %v681, %v676
        %v692 = vpack.c.b16 %v682, %v677
        %v693 = vpack.c.b16 %v683, %v678
        %v694 = vpack.c.b16 %v684, %v679
        %v775 = vunpack.c.l.b16 %v581
        %v776 = vunpack.c.l.b16 %v582
        %v777 = vunpack.c.l.b16 %v583
        %v778 = vunpack.c.l.b16 %v584
        %v779 = vunpack.c.l.b16 %v585
        %v780 = vunpack.c.l.b16 %v586
        %v781 = vunpack.c.l.b16 %v587
        %v782 = vunpack.c.l.b16 %v588
        %v783 = vunpack.c.l.b16 %v589
        %v784 = vunpack.c.l.b16 %v590
        %v785 = vunpack.c.l.b16 %v591
        %v786 = vunpack.c.l.b16 %v592
        %v787 = vunpack.c.l.b16 %v593
        %v788 = vunpack.c.l.b16 %v594
        %v789 = vunpack.c.l.b16 %v595
        %v790 = vunpack.c.l.b16 %v596
        %v791 = vunpack.c.l.b16 %v597
        %v792 = vunpack.c.l.b16 %v598
        %v793 = vunpack.c.l.b16 %v599
        %v794 = vunpack.c.l.b16 %v600
        %v795 = vunpack.c.l.b16 %v601
        %v796 = vunpack.c.l.b16 %v602
        %v797 = vunpack.c.l.b16 %v603
        %v798 = vunpack.c.l.b16 %v604
        %v799 = vunpack.c.l.b16 %v605
        %v800 = vunpack.c.l.b16 %v606
        %v801 = vunpack.c.l.b16 %v607
        %v802 = vunpack.c.l.b16 %v608
        %v803 = vunpack.c.l.b16 %v609
        %v804 = vunpack.c.l.b16 %v610
        %v805 = vunpack.c.l.b16 %v611
        %v806 = vunpack.c.l.b16 %v612
        %v807 = vunpack.c.l.b16 %v613
        %v808 = vunpack.c.l.b16 %v614
        %v809 = vunpack.c.l.b16 %v615
        %v810 = vunpack.c.l.b16 %v616
        %v811 = vunpack.c.l.b16 %v617
        %v812 = vunpack.c.l.b16 %v618
        %v813 = vunpack.c.l.b16 %v619
        %v814 = vunpack.c.l.b16 %v620
        %v815 = vunpack.c.l.b16 %v621
        %v816 = vunpack.c.l.b16 %v622
        %v817 = vunpack.c.l.b16 %v623
        %v818 = vunpack.c.l.b16 %v624
        %v819 = vunpack.c.l.b16 %v625
        %v820 = vunpack.c.l.b16 %v626
        %v821 = vunpack.c.l.b16 %v627
        %v822 = vunpack.c.l.b16 %v628
        %v823 = vunpack.c.l.b16 %v629
        %v824 = vunpack.c.l.b16 %v630
        %v825 = vunpack.c.l.b16 %v631
        %v826 = vunpack.c.l.b16 %v632
        %v827 = vunpack.c.l.b16 %v633
        %v828 = vunpack.c.l.b16 %v634
        %v829 = vunpack.c.l.b16 %v635
        %v830 = vunpack.c.l.b16 %v636
        %v831 = vunpack.c.l.b16 %v637
        %v832 = vunpack.c.l.b16 %v638
        %v833 = vunpack.c.l.b16 %v639
        %v834 = vunpack.c.l.b16 %v640
        %v835 = vunpack.c.l.b16 %v641
        %v836 = vunpack.c.l.b16 %v642
        %v837 = vunpack.c.l.b16 %v643
        %v838 = vunpack.c.l.b16 %v644
        %v839 = vunpack.c.l.b16 %v645
        %v840 = vunpack.c.l.b16 %v646
        %v841 = vunpack.c.l.b16 %v647
        %v842 = vunpack.c.l.b16 %v648
        %v843 = vunpack.c.l.b16 %v649
        %v844 = vunpack.c.l.b16 %v650
        %v845 = vunpack.c.l.b16 %v651
        %v846 = vunpack.c.l.b16 %v652
        %v847 = vpack.c.b16 %v776, %v775
        %v848 = vpack.c.b16 %v778, %v777
        %v849 = vpack.c.b16 %v780, %v779
        %v850 = vpack.c.b16 %v782, %v781
        %v851 = vpack.c.b16 %v784, %v783
        %v852 = vpack.c.b16 %v786, %v785
        %v853 = vpack.c.b16 %v788, %v787
        %v854 = vpack.c.b16 %v790, %v789
        %v855 = vpack.c.b16 %v792, %v791
        %v856 = vpack.c.b16 %v794, %v793
        %v857 = vpack.c.b16 %v796, %v795
        %v858 = vpack.c.b16 %v798, %v797
        %v859 = vpack.c.b16 %v800, %v799
        %v860 = vpack.c.b16 %v802, %v801
        %v861 = vpack.c.b16 %v804, %v803
        %v862 = vpack.c.b16 %v806, %v805
        %v863 = vpack.c.b16 %v808, %v807
        %v864 = vpack.c.b16 %v810, %v809
        %v865 = vpack.c.b16 %v812, %v811
        %v866 = vpack.c.b16 %v814, %v813
        %v867 = vpack.c.b16 %v816, %v815
        %v868 = vpack.c.b16 %v818, %v817
        %v869 = vpack.c.b16 %v820, %v819
        %v870 = vpack.c.b16 %v822, %v821
        %v871 = vpack.c.b16 %v824, %v823
        %v872 = vpack.c.b16 %v826, %v825
        %v873 = vpack.c.b16 %v828, %v827
        %v874 = vpack.c.b16 %v830, %v829
        %v875 = vpack.c.b16 %v832, %v831
        %v876 = vpack.c.b16 %v834, %v833
        %v877 = vpack.c.b16 %v836, %v835
        %v878 = vpack.c.b16 %v838, %v837
        %v879 = vpack.c.b16 %v840, %v839
        %v880 = vpack.c.b16 %v842, %v841
        %v881 = vpack.c.b16 %v844, %v843
        %v882 = vpack.c.b16 %v846, %v845
        %vm919 = vcmask 523264
        %v921 = vsel %vm919, %v689, 0
        %v924 = vsel %vm919, %v694, 0
        %926 = vmatprep.subr.bf16.mxu0 0
        %927 = vmatpush1.bf16.msra.mxu0 %v854
        %928 = vmatprep.subr.bf16.mxu0 0
        %929 = vmatpush1.bf16.msra.mxu0 %v853
        %930 = vmatprep.subr.bf16.mxu0 0
        %931 = vmatpush1.bf16.msra.mxu0 %v852
        %932 = vmatprep.subr.bf16.mxu0 0
        %933 = vmatpush1.bf16.msra.mxu0 %v851
        %934 = vmatprep.subr.bf16.mxu0 0
        %935 = vmatpush1.bf16.msra.mxu0 %v850
        %936 = vmatprep.subr.bf16.mxu0 0
        %937 = vmatpush1.bf16.msra.mxu0 %v849
        %938 = vmatprep.subr.bf16.mxu0 0
        %939 = vmatpush1.bf16.msra.mxu0 %v848
        %940 = vmatprep.subr.bf16.mxu0 0
        %941 = vmatpush1.bf16.msra.mxu0 %v847
        %942 = vmatprep.subr.bf16.mxu0 0
        %943 = vmatpush2.bf16.msra.mxu0 %v862
        %944 = vmatprep.subr.bf16.mxu0 0
        %945 = vmatpush2.bf16.msra.mxu0 %v861
        %946 = vmatprep.subr.bf16.mxu0 0
        %947 = vmatpush2.bf16.msra.mxu0 %v860
        %948 = vmatprep.subr.bf16.mxu0 0
        %949 = vmatpush2.bf16.msra.mxu0 %v859
        %950 = vmatprep.subr.bf16.mxu0 0
        %951 = vmatpush2.bf16.msra.mxu0 %v858
        %952 = vmatprep.subr.bf16.mxu0 0
        %953 = vmatpush2.bf16.msra.mxu0 %v857
        %954 = vmatprep.subr.bf16.mxu0 0
        %955 = vmatpush2.bf16.msra.mxu0 %v856
        %956 = vmatprep.subr.bf16.mxu0 0
        %957 = vmatpush2.bf16.msra.mxu0 %v855
        %958 = vmatprep.mubr.bf16.mxu0 %v686
        %959 = vmatmul.mubr.bf16.gmra.mxu0 %v685
        %v960 = vpop.f32.mrf.mxu0
        %v961 = vadd.f32 0.0, %v960
        %v962 = vpop.f32.mrf.mxu0
        %v963 = vpop.f32.mrf.mxu0
        %v964 = vadd.f32 0.0, %v963
        %v965 = vpop.f32.mrf.mxu0
        %966 = vmatprep.mubr.bf16.mxu0 %v691
        %967 = vmatmul.mubr.bf16.gmra.mxu0 %v690
        %v968 = vpop.f32.mrf.mxu0
        %v969 = vadd.f32 0.0, %v968
        %v970 = vpop.f32.mrf.mxu0
        %v971 = vpop.f32.mrf.mxu0
        %v972 = vadd.f32 0.0, %v971
        %v973 = vpop.f32.mrf.mxu0
        %974 = vdwg.mxu0
        %975 = vmatprep.subr.bf16.mxu0 0
        %976 = vmatpush1.bf16.msra.mxu0 %v870
        %977 = vmatprep.subr.bf16.mxu0 0
        %978 = vmatpush1.bf16.msra.mxu0 %v869
        %979 = vmatprep.subr.bf16.mxu0 0
        %980 = vmatpush1.bf16.msra.mxu0 %v868
        %981 = vmatprep.subr.bf16.mxu0 0
        %982 = vmatpush1.bf16.msra.mxu0 %v867
        %983 = vmatprep.subr.bf16.mxu0 0
        %984 = vmatpush1.bf16.msra.mxu0 %v866
        %985 = vmatprep.subr.bf16.mxu0 0
        %986 = vmatpush1.bf16.msra.mxu0 %v865
        %987 = vmatprep.subr.bf16.mxu0 0
        %988 = vmatpush1.bf16.msra.mxu0 %v864
        %989 = vmatprep.subr.bf16.mxu0 0
        %990 = vmatpush1.bf16.msra.mxu0 %v863
        %991 = vmatprep.subr.bf16.mxu0 0
        %992 = vmatpush2.bf16.msra.mxu0 %v878
        %993 = vmatprep.subr.bf16.mxu0 0
        %994 = vmatpush2.bf16.msra.mxu0 %v877
        %995 = vmatprep.subr.bf16.mxu0 0
        %996 = vmatpush2.bf16.msra.mxu0 %v876
        %997 = vmatprep.subr.bf16.mxu0 0
        %998 = vmatpush2.bf16.msra.mxu0 %v875
        %999 = vmatprep.subr.bf16.mxu0 0
        %1000 = vmatpush2.bf16.msra.mxu0 %v874
        %1001 = vmatprep.subr.bf16.mxu0 0
        %1002 = vmatpush2.bf16.msra.mxu0 %v873
        %1003 = vmatprep.subr.bf16.mxu0 0
        %1004 = vmatpush2.bf16.msra.mxu0 %v872
        %1005 = vmatprep.subr.bf16.mxu0 0
        %1006 = vmatpush2.bf16.msra.mxu0 %v871
        %1007 = vmatprep.mubr.bf16.mxu0 %v688
        %1008 = vmatmul.mubr.bf16.gmra.mxu0 %v687
        %v1009 = vpop.f32.mrf.mxu0
        %v1010 = vadd.f32 %v961, %v1009
        %v1011 = vpop.f32.mrf.mxu0
        %v1012 = vpop.f32.mrf.mxu0
        %v1013 = vadd.f32 %v964, %v1012
        %v1014 = vpop.f32.mrf.mxu0
        %1015 = vmatprep.mubr.bf16.mxu0 %v693
        %1016 = vmatmul.mubr.bf16.gmra.mxu0 %v692
        %v1017 = vpop.f32.mrf.mxu0
        %v1018 = vadd.f32 %v969, %v1017
        %v1019 = vpop.f32.mrf.mxu0
        %v1020 = vpop.f32.mrf.mxu0
        %v1021 = vadd.f32 %v972, %v1020
        %v1022 = vpop.f32.mrf.mxu0
        %1023 = vdwg.mxu0
        %1024 = vmatprep.subr.bf16.mxu0 0
        %1025 = vmatpush1.bf16.msra.mxu0 0
        %1026 = vmatprep.subr.bf16.mxu0 0
        %1027 = vmatpush1.bf16.msra.mxu0 0
        %1028 = vmatprep.subr.bf16.mxu0 0
        %1029 = vmatpush1.bf16.msra.mxu0 0
        %1030 = vmatprep.subr.bf16.mxu0 0
        %1031 = vmatpush1.bf16.msra.mxu0 0
        %1032 = vmatprep.subr.bf16.mxu0 0
        %1033 = vmatpush1.bf16.msra.mxu0 %v882
        %1034 = vmatprep.subr.bf16.mxu0 0
        %1035 = vmatpush1.bf16.msra.mxu0 %v881
        %1036 = vmatprep.subr.bf16.mxu0 0
        %1037 = vmatpush1.bf16.msra.mxu0 %v880
        %1038 = vmatprep.subr.bf16.mxu0 0
        %1039 = vmatpush1.bf16.msra.mxu0 %v879
        %1040 = vmatprep.subr.bf16.mxu0 0
        %1041 = vmatpush2.bf16.msra.mxu0 0
        %1042 = vmatprep.subr.bf16.mxu0 0
        %1043 = vmatpush2.bf16.msra.mxu0 0
        %1044 = vmatprep.subr.bf16.mxu0 0
        %1045 = vmatpush2.bf16.msra.mxu0 0
        %1046 = vmatprep.subr.bf16.mxu0 0
        %1047 = vmatpush2.bf16.msra.mxu0 0
        %1048 = vmatprep.subr.bf16.mxu0 0
        %1049 = vmatpush2.bf16.msra.mxu0 0
        %1050 = vmatprep.subr.bf16.mxu0 0
        %1051 = vmatpush2.bf16.msra.mxu0 0
        %1052 = vmatprep.subr.bf16.mxu0 0
        %1053 = vmatpush2.bf16.msra.mxu0 0
        %1054 = vmatprep.subr.bf16.mxu0 0
        %1055 = vmatpush2.bf16.msra.mxu0 0
        %1056 = vmatprep.mubr.bf16.mxu0 0
        %1057 = vmatmul.mubr.bf16.gmra.mxu0 %v921
        %v1058 = vpop.f32.mrf.mxu0
        %v1059 = vadd.f32 %v1010, %v1058
        %v1060 = vpop.f32.mrf.mxu0
        %v1061 = vpop.f32.mrf.mxu0
        %v1062 = vadd.f32 %v1013, %v1061
        %v1063 = vpop.f32.mrf.mxu0
        %1064 = vmatprep.mubr.bf16.mxu0 0
        %1065 = vmatmul.mubr.bf16.gmra.mxu0 %v924
        %v1066 = vpop.f32.mrf.mxu0
        %v1067 = vadd.f32 %v1018, %v1066
        %v1068 = vpop.f32.mrf.mxu0
        %v1069 = vpop.f32.mrf.mxu0
        %v1070 = vadd.f32 %v1021, %v1069
        %v1071 = vpop.f32.mrf.mxu0
        %1072 = vdwg.mxu0
        %v1073 = vadd.f32 %v565, %v1059
        %v1074 = vadd.f32 %v566, %v1062
        %v1075 = vadd.f32 %v567, %v1067
        %v1076 = vadd.f32 %v568, %v1070
        %1077 = vst [vmem:[#allocation2] sm:$0xff] %v1073
        %1078 = vst [vmem:[#allocation2 + $0x8] sm:$0xff] %v1074
        %1079 = vst [vmem:[#allocation2 + $0x10] sm:$0xff] %v1075
        %1080 = vst [vmem:[#allocation2 + $0x18] sm:$0xff] %v1076
        // Predicated region
        $region78: #{fade_forward.6} parent=68 // pred_check
          %p1081 = pneg %p533
        $region79: #{fade_forward.6} parent=68 // pred_check_branch
          %1083 = sbr.rel (%p1081) target = $region81
        $region80: #{fade_forward.6} parent=68 // pred_region
          %v1084 = vld [vmem:[#allocation2] sm:$0xff]
          %v1085 = vld [vmem:[#allocation2 + $0x8] sm:$0xff]
          %v1086 = vld [vmem:[#allocation2 + $0x10] sm:$0xff]
          %v1087 = vld [vmem:[#allocation2 + $0x18] sm:$0xff]
          %v1088 = vpack.c.bf16 %v1085, %v1084
          %v1089 = vpack.c.bf16 %v1087, %v1086
          %v1092 = vunpack.c.l.b16 %v1088
          %v1093 = vunpack.c.h.b16 %v1088
          %v1094 = vunpack.c.l.b16 %v1089
          %v1095 = vunpack.c.h.b16 %v1089
          %v1096 = vpack.c.b16 %v1092, %v1092
          %v1097 = vpack.c.b16 %v1093, %v1093
          %v1098 = vpack.c.b16 %v1094, %v1094
          %v1099 = vpack.c.b16 %v1095, %v1095
          %1104 = vst [vmem:[%s524] sm:$0xf] %v1096
          %1105 = vst [vmem:[%s524 + $0x4] sm:$0xf] %v1097
          %1106 = vst [vmem:[%s524 + $0x8] sm:$0xf] %v1098
          %1107 = vst [vmem:[%s524 + $0xc] sm:$0xf] %v1099
        $region81: #{fade_forward.6} parent=68 // pred_fallthru
          _
        %s1108 = sand.u32 %s109, 1
        %s1109 = sand.u32 %s109, 1
        %s1110 = smul.addr %s1109, 16
        %s1111 = scalar_lea.vmem [#allocation4], %s1110
        // Predicated region
        $region82: #{fade_forward.6} parent=68 // pred_check
          %p1112 = pneg %p119
        $region83: #{fade_forward.6} parent=68 // pred_check_branch
          %1114 = sbr.rel (%p1112) target = $region85
        $region84: #{fade_forward.6} parent=68 // pred_region
          %s1115 = smul.addr %s18, 4
          %s1116 = scalar_lea.vmem %s3, %s1115
          // Predicated region
          $region86: #{fade_forward.6} parent=84 // pred_check
            _
          $region87: #{fade_forward.6} parent=84 // pred_check_branch
            %1118 = sbr.rel (0) target = $region89
          $region88: #{fade_forward.6} parent=84 // pred_region
            // Predicated region
            $region90: #{fade_forward.6} parent=88 // pred_check
              _
            $region91: #{fade_forward.6} parent=88 // pred_check_branch
              %1120 = sbr.rel target = $region93
            $region92: #{fade_forward.6} parent=88 // pred_region
              // Predicated region
              $region105: #{fade_forward.6} parent=92 // pred_check
                _
              $region106: #{fade_forward.6} parent=92 // pred_check_branch
                %1142 = sbr.rel (0) target = $region108
              $region107: #{fade_forward.6} parent=92 // pred_region
                loop: start=0, step=1, limit=1
                $region109: #{fade_forward.6} parent=107 // loop_pre_header
                  _
                $region110: #{fade_forward.6} parent=107 // loop_header
                  %s1144 = sphi 0, %s1148
                  %p1145 = scmp.ge.s32.totalorder %s1144, 1
                  %s1149 = sphi %s1111, %s1111
                  %s1150 = sphi %s1116, %s1116
                $region111: #{fade_forward.6} parent=107 // loop_header_branch
                  %1147 = sbr.rel (%p1145) target = $region115
                $region112: #{fade_forward.6} parent=107 // loop_body
                  _
                $region113: #{fade_forward.6} parent=107 // loop_footer
                  %s1148 = sadd.s32 1, %s1144
                $region114: #{fade_forward.6} parent=107 // loop_footer_branch
                  %1143 = sbr.rel target = $region110
                $region115: #{fade_forward.6} parent=107 // loop_exit
                  _
                %s1152 = ssub.s32 16, 1
                loop: start=0, step=1, limit=1
                $region116: #{fade_forward.6} parent=107 // loop_pre_header
                  _
                $region117: #{fade_forward.6} parent=107 // loop_header
                  %s1154 = sphi 0, %s1158
                  %p1155 = scmp.ge.s32.totalorder %s1154, 1
                  %s1159 = sphi %s1111, %s1111
                  %s1160 = sphi %s1116, %s1116
                $region118: #{fade_forward.6} parent=107 // loop_header_branch
                  %1157 = sbr.rel (%p1155) target = $region122
                $region119: #{fade_forward.6} parent=107 // loop_body
                  %v1161 = vld [vmem:[%s1159] sm:%s1152]
                  %1162 = vst [vmem:[%s1160] sm:%s1152] %v1161
                  %v1163 = vld [vmem:[%s1159 + $0x4] sm:%s1152]
                  %1164 = vst [vmem:[%s1160 + $0x14] sm:%s1152] %v1163
                  %v1165 = vld [vmem:[%s1159 + $0x8] sm:%s1152]
                  %1166 = vst [vmem:[%s1160 + $0x28] sm:%s1152] %v1165
                  %v1167 = vld [vmem:[%s1159 + $0xc] sm:%s1152]
                  %1168 = vst [vmem:[%s1160 + $0x3c] sm:%s1152] %v1167
                $region120: #{fade_forward.6} parent=107 // loop_footer
                  %s1158 = sadd.s32 1, %s1154
                $region121: #{fade_forward.6} parent=107 // loop_footer_branch
                  %1153 = sbr.rel target = $region117
                $region122: #{fade_forward.6} parent=107 // loop_exit
                  _
              $region108: #{fade_forward.6} parent=92 // pred_fallthru
                _
            $region93: #{fade_forward.6} parent=88 // pred_fallthru
              _
            // Predicated region
            $region94: #{fade_forward.6} parent=88 // pred_check
              _
            $region95: #{fade_forward.6} parent=88 // pred_check_branch
              %1122 = sbr.rel (0) target = $region97
            $region96: #{fade_forward.6} parent=88 // pred_region
              %s1124 = ssub.s32 16, 1
              loop: start=0, step=1, limit=1
              $region98: #{fade_forward.6} parent=96 // loop_pre_header
                _
              $region99: #{fade_forward.6} parent=96 // loop_header
                %s1126 = sphi 0, %s1130
                %p1127 = scmp.ge.s32.totalorder %s1126, 1
                %s1131 = sphi %s1111, %s1111
                %s1132 = sphi %s1116, %s1116
              $region100: #{fade_forward.6} parent=96 // loop_header_branch
                %1129 = sbr.rel (%p1127) target = $region104
              $region101: #{fade_forward.6} parent=96 // loop_body
                %v1133 = vld [vmem:[%s1131] sm:%s1124]
                %1134 = vst [vmem:[%s1132] sm:%s1124] %v1133
                %v1135 = vld [vmem:[%s1131 + $0x4] sm:%s1124]
                %1136 = vst [vmem:[%s1132 + $0x14] sm:%s1124] %v1135
                %v1137 = vld [vmem:[%s1131 + $0x8] sm:%s1124]
                %1138 = vst [vmem:[%s1132 + $0x28] sm:%s1124] %v1137
                %v1139 = vld [vmem:[%s1131 + $0xc] sm:%s1124]
                %1140 = vst [vmem:[%s1132 + $0x3c] sm:%s1124] %v1139
              $region102: #{fade_forward.6} parent=96 // loop_footer
                %s1130 = sadd.s32 1, %s1126
              $region103: #{fade_forward.6} parent=96 // loop_footer_branch
                %1125 = sbr.rel target = $region99
              $region104: #{fade_forward.6} parent=96 // loop_exit
                _
            $region97: #{fade_forward.6} parent=88 // pred_fallthru
              _
          $region89: #{fade_forward.6} parent=84 // pred_fallthru
            _
          %1169 = vnop
        $region85: #{fade_forward.6} parent=68 // pred_fallthru
          _
      $region69: #{fade_forward.6} parent=5 // pred_fallthru
        _
      %p1170 = scmp.le.s32.totalorder 2, %s9
      // Predicated region
      $region123: #{fade_forward.6} parent=5 // pred_check
        %p1171 = pneg %p1170
      $region124: #{fade_forward.6} parent=5 // pred_check_branch
        %1173 = sbr.rel (%p1171) target = $region126
      $region125: #{fade_forward.6} parent=5 // pred_region
        %s1174 = ssub.s32 %s9, 2
        // Predicated region
        $region127: #{fade_forward.6} parent=125 // pred_check
          %p1175 = pneg %p125
        $region128: #{fade_forward.6} parent=125 // pred_check_branch
          %1177 = sbr.rel (%p1175) target = $region130
        $region129: #{fade_forward.6} parent=125 // pred_region
          %s1178 = sand.u32 %s110, 1
          %s1179 = sand.u32 %s110, 1
          %s1180 = smul.addr %s1179, 16
          %s1181 = scalar_lea.vmem [#allocation4], %s1180
        $region130: #{fade_forward.6} parent=125 // pred_fallthru
          _
      $region126: #{fade_forward.6} parent=5 // pred_fallthru
        _
    $region6: #{fade_forward.6} parent=1 // loop_footer
      %s13 = sadd.s32 1, %s9
    $region7: #{fade_forward.6} parent=1 // loop_footer_branch
      %8 = sbr.rel target = $region3
    $region8: #{fade_forward.6} parent=1 // loop_exit
      _

// kernel: fade_forward.7
$region0: #{fade_forward.7}
  #allocation0 [shape = 'u32[]', space=smem, size = 0x4, offset = 0x4, fixed_abs, tag = 'smem constant byte address 0x4 - core index']
  #allocation1 [shape = 'u32[144,128]{1,0:T(1,128)}', space=vmem, size = 0x12000, scoped, tag = 'internal scratch']
  %s0 = inlined_call_operand.vmem [shape: bf16[2,4,12,12], index: 0, kind: input, shape index: {}]
  %s1 = inlined_call_operand.vmem [shape: bf16[25,4,2,8,8], index: 1, kind: input, shape index: {}]
  %s2 = inlined_call_operand.vmem [shape: bf16[25,2,8,8], index: 2, kind: input, shape index: {}]
  %s3 = inlined_call_operand.vmem [shape: bf16[2,1,8,8], index: 3, kind: input, shape index: {}]
  %s4 = inlined_call_operand.vmem [shape: bf16[2,4,4,8,8], index: 4, kind: input, shape index: {}]
  %s5 = inlined_call_operand.vmem [shape: bf16[2,4,4,8,8], index: 5, kind: output, shape index: {}]
  %s6 = sld [smem:[#allocation0]]
  $region135: #{fade_forward.7} parent=0
    _
  %s8 = ssub.s32 1, %s6
  %s9 = scalar_select 0, %s8, %s6
  $region1: #{fade_forward.7} parent=0
    #allocation2 [shape = 'u8[409600]{0}', space=vmem, size = 0x64000, scoped, tag = 'input window, operand 1']
    #allocation3 [shape = 'u8[102400]{0}', space=vmem, size = 0x19000, scoped, tag = 'input window, operand 2']
    loop: start=0, step=1, limit=4
    $region2: #{fade_forward.7} parent=1 // loop_pre_header
      _
    $region3: #{fade_forward.7} parent=1 // loop_header
      %s11 = sphi 0, %s15
      %p12 = scmp.ge.s32.totalorder %s11, 4
      %s18 = sphi 0, %s30
      %s19 = sphi 0, %s26
      %s20 = sphi 0, %s18
      %s21 = sphi 0, %s19
      %s22 = sphi 0, %s20
      %s23 = sphi 0, %s21
      %s35 = sphi 0, %s37
      %s38 = sphi 0, %s35
      %s39 = sphi 0, %s38
      %s55 = sphi 0, %s39
      %s61 = sphi 0, %s63
      %s64 = sphi 0, %s61
      %s65 = sphi 0, %s64
      %s81 = sphi 0, %s65
      %s87 = sphi 0, %s89
      %s90 = sphi 0, %s87
      %s91 = sphi 0, %s90
      %s107 = sphi 0, %s91
      %s113 = sphi 0, %s115
      %s116 = sphi 0, %s113
      %s117 = sphi 0, %s116
      %s133 = sphi 0, %s117
      %s141 = sphi 0, %s143
      %s144 = sphi 0, %s141
      %s145 = sphi 0, %s144
      %s161 = sphi 0, %s145
      %s169 = sphi 0, %s171
      %s172 = sphi 0, %s169
      %s173 = sphi 0, %s172
      %s189 = sphi 0, %s173
    $region4: #{fade_forward.7} parent=1 // loop_header_branch
      %14 = sbr.rel (%p12) target = $region8
    $region5: #{fade_forward.7} parent=1 // loop_body
      %s16 = ssub.s32 %s11, 1
      %s17 = ssub.s32 %s11, 2
      %s24 = sadd.s32 1, %s19
      %p25 = scmp.ge.s32.totalorder %s24, 1
      %s26 = scalar_select %p25, 0, %s24
      %s27 = sadd.s32 1, %s18
      %s28 = scalar_select %p25, %s27, %s18
      %p29 = scmp.ge.s32.totalorder %s28, 2
      %s30 = scalar_select %p29, 0, %s28
      %s31 = ssub.s32 %s18, %s30
      %s32 = ssub.s32 %s19, %s26
      %s33 = sor.u32 %s31, %s32
      %p34 = scmp.eq.s32.totalorder %s33, 0
      %s36 = sadd.s32 %s35, 1
      %s37 = scalar_select %p34, %s35, %s36
      %p40 = pneg %p34
      %p41 = scmp.eq.s32.totalorder %s11, 1
      %p42 = por %p40, %p41
      %p43 = scmp.ne.s32.totalorder %s35, %s38
      %p44 = scmp.eq.s32.totalorder %s11, 0
      %p45 = por %p43, %p44
      %p46 = scmp.ne.s32.totalorder %s35, %s38
      %p47 = scmp.eq.s32.totalorder %s16, 1
      %p48 = por %p46, %p47
      %p49 = scmp.ne.s32.totalorder %s38, %s39
      %p50 = scmp.eq.s32.totalorder %s16, 0
      %p51 = por %p49, %p50
      %p52 = scmp.ne.s32.totalorder %s38, %s39
      %p53 = scmp.eq.s32.totalorder %s17, 1
      %p54 = por %p52, %p53
      %p56 = scmp.ne.s32.totalorder %s39, %s55
      %p57 = scmp.eq.s32.totalorder %s17, 0
      %p58 = por %p56, %p57
      %s59 = ssub.s32 %s18, %s30
      %p60 = scmp.eq.s32.totalorder %s59, 0
      %s62 = sadd.s32 %s61, 1
      %s63 = scalar_select %p60, %s61, %s62
      %p66 = pneg %p60
      %p67 = scmp.eq.s32.totalorder %s11, 1
      %p68 = por %p66, %p67
      %p69 = scmp.ne.s32.totalorder %s61, %s64
      %p70 = scmp.eq.s32.totalorder %s11, 0
      %p71 = por %p69, %p70
      %p72 = scmp.ne.s32.totalorder %s61, %s64
      %p73 = scmp.eq.s32.totalorder %s16, 1
      %p74 = por %p72, %p73
      %p75 = scmp.ne.s32.totalorder %s64, %s65
      %p76 = scmp.eq.s32.totalorder %s16, 0
      %p77 = por %p75, %p76
      %p78 = scmp.ne.s32.totalorder %s64, %s65
      %p79 = scmp.eq.s32.totalorder %s17, 1
      %p80 = por %p78, %p79
      %p82 = scmp.ne.s32.totalorder %s65, %s81
      %p83 = scmp.eq.s32.totalorder %s17, 0
      %p84 = por %p82, %p83
      %s85 = ssub.s32 %s18, %s30
      %p86 = scmp.eq.s32.totalorder %s85, 0
      %s88 = sadd.s32 %s87, 1
      %s89 = scalar_select %p86, %s87, %s88
      %p92 = pneg %p86
      %p93 = scmp.eq.s32.totalorder %s11, 1
      %p94 = por %p92, %p93
      %p95 = scmp.ne.s32.totalorder %s87, %s90
      %p96 = scmp.eq.s32.totalorder %s11, 0
      %p97 = por %p95, %p96
      %p98 = scmp.ne.s32.totalorder %s87, %s90
      %p99 = scmp.eq.s32.totalorder %s16, 1
      %p100 = por %p98, %p99
      %p101 = scmp.ne.s32.totalorder %s90, %s91
      %p102 = scmp.eq.s32.totalorder %s16, 0
      %p103 = por %p101, %p102
      %p104 = scmp.ne.s32.totalorder %s90, %s91
      %p105 = scmp.eq.s32.totalorder %s17, 1
      %p106 = por %p104, %p105
      %p108 = scmp.ne.s32.totalorder %s91, %s107
      %p109 = scmp.eq.s32.totalorder %s17, 0
      %p110 = por %p108, %p109
      %s111 = ssub.s32 %s18, %s30
      %p112 = scmp.eq.s32.totalorder %s111, 0
      %s114 = sadd.s32 %s113, 1
      %s115 = scalar_select %p112, %s113, %s114
      %p118 = pneg %p112
      %p119 = scmp.eq.s32.totalorder %s11, 1
      %p120 = por %p118, %p119
      %p121 = scmp.ne.s32.totalorder %s113, %s116
      %p122 = scmp.eq.s32.totalorder %s11, 0
      %p123 = por %p121, %p122
      %p124 = scmp.ne.s32.totalorder %s113, %s116
      %p125 = scmp.eq.s32.totalorder %s16, 1
      %p126 = por %p124, %p125
      %p127 = scmp.ne.s32.totalorder %s116, %s117
      %p128 = scmp.eq.s32.totalorder %s16, 0
      %p129 = por %p127, %p128
      %p130 = scmp.ne.s32.totalorder %s116, %s117
      %p131 = scmp.eq.s32.totalorder %s17, 1
      %p132 = por %p130, %p131
      %p134 = scmp.ne.s32.totalorder %s117, %s133
      %p135 = scmp.eq.s32.totalorder %s17, 0
      %p136 = por %p134, %p135
      %s137 = ssub.s32 %s18, %s30
      %s138 = ssub.s32 %s19, %s26
      %s139 = sor.u32 %s137, %s138
      %p140 = scmp.eq.s32.totalorder %s139, 0
      %s142 = sadd.s32 %s141, 1
      %s143 = scalar_select %p140, %s141, %s142
      %p146 = pneg %p140
      %p147 = scmp.eq.s32.totalorder %s11, 1
      %p148 = por %p146, %p147
      %p149 = scmp.ne.s32.totalorder %s141, %s144
      %p150 = scmp.eq.s32.totalorder %s11, 0
      %p151 = por %p149, %p150
      %p152 = scmp.ne.s32.totalorder %s141, %s144
      %p153 = scmp.eq.s32.totalorder %s16, 1
      %p154 = por %p152, %p153
      %p155 = scmp.ne.s32.totalorder %s144, %s145
      %p156 = scmp.eq.s32.totalorder %s16, 0
      %p157 = por %p155, %p156
      %p158 = scmp.ne.s32.totalorder %s144, %s145
      %p159 = scmp.eq.s32.totalorder %s17, 1
      %p160 = por %p158, %p159
      %p162 = scmp.ne.s32.totalorder %s145, %s161
      %p163 = scmp.eq.s32.totalorder %s17, 0
      %p164 = por %p162, %p163
      %s165 = ssub.s32 %s18, %s30
      %s166 = ssub.s32 %s19, %s26
      %s167 = sor.u32 %s165, %s166
      %p168 = scmp.eq.s32.totalorder %s167, 0
      %s170 = sadd.s32 %s169, 1
      %s171 = scalar_select %p168, %s169, %s170
      %p174 = pneg %p168
      %p175 = scmp.eq.s32.totalorder %s11, 1
      %p176 = por %p174, %p175
      %p177 = scmp.ne.s32.totalorder %s169, %s172
      %p178 = scmp.eq.s32.totalorder %s11, 0
      %p179 = por %p177, %p178
      %p180 = scmp.ne.s32.totalorder %s169, %s172
      %p181 = scmp.eq.s32.totalorder %s16, 1
      %p182 = por %p180, %p181
      %p183 = scmp.ne.s32.totalorder %s172, %s173
      %p184 = scmp.eq.s32.totalorder %s16, 0
      %p185 = por %p183, %p184
      %p186 = scmp.ne.s32.totalorder %s172, %s173
      %p187 = scmp.eq.s32.totalorder %s17, 1
      %p188 = por %p186, %p187
      %p190 = scmp.ne.s32.totalorder %s173, %s189
      %p191 = scmp.eq.s32.totalorder %s17, 0
      %p192 = por %p190, %p191
      %p193 = scmp.le.s32.totalorder 1, %s11
      %p194 = scmp.lt.s32.totalorder %s11, 3
      %p195 = pnand %p193, %p194
      %p196 = pneg %p195
      // Predicated region
      $region9: #{fade_forward.7} parent=5 // pred_check
        _
      $region10: #{fade_forward.7} parent=5 // pred_check_branch
        %198 = sbr.rel (%p195) target = $region12
      $region11: #{fade_forward.7} parent=5 // pred_region
        %s199 = ssub.s32 %s11, 1
      $region12: #{fade_forward.7} parent=5 // pred_fallthru
        _
      %p200 = scmp.lt.s32.totalorder %s11, 2
      // Predicated region
      $region13: #{fade_forward.7} parent=5 // pred_check
        %p201 = pneg %p200
      $region14: #{fade_forward.7} parent=5 // pred_check_branch
        %203 = sbr.rel (%p201) target = $region16
      $region15: #{fade_forward.7} parent=5 // pred_region
        // Predicated region
        $region17: #{fade_forward.7} parent=15 // pred_check
          %p204 = pneg %p45
        $region18: #{fade_forward.7} parent=15 // pred_check_branch
          %206 = sbr.rel (%p204) target = $region20
        $region19: #{fade_forward.7} parent=15 // pred_region
          %s207 = smul.u32 4, %s19
          %p208 = scmp.lt.s32.totalorder %s18, 1
          %s209 = scalar_select %p208, %s18, 1
          %p210 = scmp.lt.s32.totalorder %s207, 3
          %s211 = scalar_select %p210, %s207, 3
          %s212 = smul.addr %s211, 2
          %s213 = smul.addr %s209, 8
          %s214 = sadd.s32 %s212, %s213
          %s215 = smul.addr %s214, 4
          %s216 = scalar_lea.vmem %s0, %s215
          %s217 = smul.u32 4, %s19
        $region20: #{fade_forward.7} parent=15 // pred_fallthru
          _
        // Predicated region
        $region21: #{fade_forward.7} parent=15 // pred_check
          %p218 = pneg %p71
        $region22: #{fade_forward.7} parent=15 // pred_check_branch
          %220 = sbr.rel (%p218) target = $region24
        $region23: #{fade_forward.7} parent=15 // pred_region
          %s221 = sand.u32 %s61, 1
          %s222 = sand.u32 %s61, 1
          %s223 = smul.addr %s222, 400
          %s224 = scalar_lea.vmem [#allocation2], %s223
          %s225 = smul.addr %s18, 4
          %s226 = scalar_lea.vmem %s1, %s225
          // Predicated region
          $region25: #{fade_forward.7} parent=23 // pred_check
            _
          $region26: #{fade_forward.7} parent=23 // pred_check_branch
            %228 = sbr.rel (0) target = $region28
          $region27: #{fade_forward.7} parent=23 // pred_region
            // Predicated region
            $region29: #{fade_forward.7} parent=27 // pred_check
              _
            $region30: #{fade_forward.7} parent=27 // pred_check_branch
              %230 = sbr.rel target = $region32
            $region31: #{fade_forward.7} parent=27 // pred_region
              // Predicated region
              $region44: #{fade_forward.7} parent=31 // pred_check
                _
              $region45: #{fade_forward.7} parent=31 // pred_check_branch
                %444 = sbr.rel (0) target = $region47
              $region46: #{fade_forward.7} parent=31 // pred_region
                loop: start=0, step=1, limit=1
                $region48: #{fade_forward.7} parent=46 // loop_pre_header
                  _
                $region49: #{fade_forward.7} parent=46 // loop_header
                  %s446 = sphi 0, %s450
                  %p447 = scmp.ge.s32.totalorder %s446, 1
                  %s451 = sphi %s226, %s226
                  %s452 = sphi %s224, %s224
                $region50: #{fade_forward.7} parent=46 // loop_header_branch
                  %449 = sbr.rel (%p447) target = $region54
                $region51: #{fade_forward.7} parent=46 // loop_body
                  _
                $region52: #{fade_forward.7} parent=46 // loop_footer
                  %s450 = sadd.s32 1, %s446
                $region53: #{fade_forward.7} parent=46 // loop_footer_branch
                  %445 = sbr.rel target = $region49
                $region54: #{fade_forward.7} parent=46 // loop_exit
                  _
                %s454 = ssub.s32 16, 1
                loop: start=0, step=1, limit=1
                $region55: #{fade_forward.7} parent=46 // loop_pre_header
                  _
                $region56: #{fade_forward.7} parent=46 // loop_header
                  %s456 = sphi 0, %s460
                  %p457 = scmp.ge.s32.totalorder %s456, 1
                  %s461 = sphi %s226, %s226
                  %s462 = sphi %s224, %s224
                $region57: #{fade_forward.7} parent=46 // loop_header_branch
                  %459 = sbr.rel (%p457) target = $region61
                $region58: #{fade_forward.7} parent=46 // loop_body
                  %v463 = vld [vmem:[%s461] sm:%s454]
                  %464 = vst [vmem:[%s462] sm:%s454] %v463
                  %v465 = vld [vmem:[%s461 + $0x8] sm:%s454]
                  %466 = vst [vmem:[%s462 + $0x4] sm:%s454] %v465
                  %v467 = vld [vmem:[%s461 + $0x10] sm:%s454]
                  %468 = vst [vmem:[%s462 + $0x8] sm:%s454] %v467
                  %v469 = vld [vmem:[%s461 + $0x18] sm:%s454]
                  %470 = vst [vmem:[%s462 + $0xc] sm:%s454] %v469
                  %v471 = vld [vmem:[%s461 + $0x20] sm:%s454]
                  %472 = vst [vmem:[%s462 + $0x10] sm:%s454] %v471
                  %v473 = vld [vmem:[%s461 + $0x28] sm:%s454]
                  %474 = vst [vmem:[%s462 + $0x14] sm:%s454] %v473
                  %v475 = vld [vmem:[%s461 + $0x30] sm:%s454]
                  %476 = vst [vmem:[%s462 + $0x18] sm:%s454] %v475
                  %v477 = vld [vmem:[%s461 + $0x38] sm:%s454]
                  %478 = vst [vmem:[%s462 + $0x1c] sm:%s454] %v477
                  %v479 = vld [vmem:[%s461 + $0x40] sm:%s454]
                  %480 = vst [vmem:[%s462 + $0x20] sm:%s454] %v479
                  %v481 = vld [vmem:[%s461 + $0x48] sm:%s454]
                  %482 = vst [vmem:[%s462 + $0x24] sm:%s454] %v481
                  %v483 = vld [vmem:[%s461 + $0x50] sm:%s454]
                  %484 = vst [vmem:[%s462 + $0x28] sm:%s454] %v483
                  %v485 = vld [vmem:[%s461 + $0x58] sm:%s454]
                  %486 = vst [vmem:[%s462 + $0x2c] sm:%s454] %v485
                  %v487 = vld [vmem:[%s461 + $0x60] sm:%s454]
                  %488 = vst [vmem:[%s462 + $0x30] sm:%s454] %v487
                  %v489 = vld [vmem:[%s461 + $0x68] sm:%s454]
                  %490 = vst [vmem:[%s462 + $0x34] sm:%s454] %v489
                  %v491 = vld [vmem:[%s461 + $0x70] sm:%s454]
                  %492 = vst [vmem:[%s462 + $0x38] sm:%s454] %v491
                  %v493 = vld [vmem:[%s461 + $0x78] sm:%s454]
                  %494 = vst [vmem:[%s462 + $0x3c] sm:%s454] %v493
                  %v495 = vld [vmem:[%s461 + $0x80] sm:%s454]
                  %496 = vst [vmem:[%s462 + $0x40] sm:%s454] %v495
                  %v497 = vld [vmem:[%s461 + $0x88] sm:%s454]
                  %498 = vst [vmem:[%s462 + $0x44] sm:%s454] %v497
                  %v499 = vld [vmem:[%s461 + $0x90] sm:%s454]
                  %500 = vst [vmem:[%s462 + $0x48] sm:%s454] %v499
                  %v501 = vld [vmem:[%s461 + $0x98] sm:%s454]
                  %502 = vst [vmem:[%s462 + $0x4c] sm:%s454] %v501
                  %v503 = vld [vmem:[%s461 + $0xa0] sm:%s454]
                  %504 = vst [vmem:[%s462 + $0x50] sm:%s454] %v503
                  %v505 = vld [vmem:[%s461 + $0xa8] sm:%s454]
                  %506 = vst [vmem:[%s462 + $0x54] sm:%s454] %v505
                  %v507 = vld [vmem:[%s461 + $0xb0] sm:%s454]
                  %508 = vst [vmem:[%s462 + $0x58] sm:%s454] %v507
                  %v509 = vld [vmem:[%s461 + $0xb8] sm:%s454]
                  %510 = vst [vmem:[%s462 + $0x5c] sm:%s454] %v509
                  %v511 = vld [vmem:[%s461 + $0xc0] sm:%s454]
                  %512 = vst [vmem:[%s462 + $0x60] sm:%s454] %v511
                  %v513 = vld [vmem:[%s461 + $0xc8] sm:%s454]
                  %514 = vst [vmem:[%s462 + $0x64] sm:%s454] %v513
                  %v515 = vld [vmem:[%s461 + $0xd0] sm:%s454]
                  %516 = vst [vmem:[%s462 + $0x68] sm:%s454] %v515
                  %v517 = vld [vmem:[%s461 + $0xd8] sm:%s454]
                  %518 = vst [vmem:[%s462 + $0x6c] sm:%s454] %v517
                  %v519 = vld [vmem:[%s461 + $0xe0] sm:%s454]
                  %520 = vst [vmem:[%s462 + $0x70] sm:%s454] %v519
                  %v521 = vld [vmem:[%s461 + $0xe8] sm:%s454]
                  %522 = vst [vmem:[%s462 + $0x74] sm:%s454] %v521
                  %v523 = vld [vmem:[%s461 + $0xf0] sm:%s454]
                  %524 = vst [vmem:[%s462 + $0x78] sm:%s454] %v523
                  %v525 = vld [vmem:[%s461 + $0xf8] sm:%s454]
                  %526 = vst [vmem:[%s462 + $0x7c] sm:%s454] %v525
                  %v527 = vld [vmem:[%s461 + $0x100] sm:%s454]
                  %528 = vst [vmem:[%s462 + $0x80] sm:%s454] %v527
                  %v529 = vld [vmem:[%s461 + $0x108] sm:%s454]
                  %530 = vst [vmem:[%s462 + $0x84] sm:%s454] %v529
                  %v531 = vld [vmem:[%s461 + $0x110] sm:%s454]
                  %532 = vst [vmem:[%s462 + $0x88] sm:%s454] %v531
                  %v533 = vld [vmem:[%s461 + $0x118] sm:%s454]
                  %534 = vst [vmem:[%s462 + $0x8c] sm:%s454] %v533
                  %v535 = vld [vmem:[%s461 + $0x120] sm:%s454]
                  %536 = vst [vmem:[%s462 + $0x90] sm:%s454] %v535
                  %v537 = vld [vmem:[%s461 + $0x128] sm:%s454]
                  %538 = vst [vmem:[%s462 + $0x94] sm:%s454] %v537
                  %v539 = vld [vmem:[%s461 + $0x130] sm:%s454]
                  %540 = vst [vmem:[%s462 + $0x98] sm:%s454] %v539
                  %v541 = vld [vmem:[%s461 + $0x138] sm:%s454]
                  %542 = vst [vmem:[%s462 + $0x9c] sm:%s454] %v541
                  %v543 = vld [vmem:[%s461 + $0x140] sm:%s454]
                  %544 = vst [vmem:[%s462 + $0xa0] sm:%s454] %v543
                  %v545 = vld [vmem:[%s461 + $0x148] sm:%s454]
                  %546 = vst [vmem:[%s462 + $0xa4] sm:%s454] %v545
                  %v547 = vld [vmem:[%s461 + $0x150] sm:%s454]
                  %548 = vst [vmem:[%s462 + $0xa8] sm:%s454] %v547
                  %v549 = vld [vmem:[%s461 + $0x158] sm:%s454]
                  %550 = vst [vmem:[%s462 + $0xac] sm:%s454] %v549
                  %v551 = vld [vmem:[%s461 + $0x160] sm:%s454]
                  %552 = vst [vmem:[%s462 + $0xb0] sm:%s454] %v551
                  %v553 = vld [vmem:[%s461 + $0x168] sm:%s454]
                  %554 = vst [vmem:[%s462 + $0xb4] sm:%s454] %v553
                  %v555 = vld [vmem:[%s461 + $0x170] sm:%s454]
                  %556 = vst [vmem:[%s462 + $0xb8] sm:%s454] %v555
                  %v557 = vld [vmem:[%s461 + $0x178] sm:%s454]
                  %558 = vst [vmem:[%s462 + $0xbc] sm:%s454] %v557
                  %v559 = vld [vmem:[%s461 + $0x180] sm:%s454]
                  %560 = vst [vmem:[%s462 + $0xc0] sm:%s454] %v559
                  %v561 = vld [vmem:[%s461 + $0x188] sm:%s454]
                  %562 = vst [vmem:[%s462 + $0xc4] sm:%s454] %v561
                  %v563 = vld [vmem:[%s461 + $0x190] sm:%s454]
                  %564 = vst [vmem:[%s462 + $0xc8] sm:%s454] %v563
                  %v565 = vld [vmem:[%s461 + $0x198] sm:%s454]
                  %566 = vst [vmem:[%s462 + $0xcc] sm:%s454] %v565
                  %v567 = vld [vmem:[%s461 + $0x1a0] sm:%s454]
                  %568 = vst [vmem:[%s462 + $0xd0] sm:%s454] %v567
                  %v569 = vld [vmem:[%s461 + $0x1a8] sm:%s454]
                  %570 = vst [vmem:[%s462 + $0xd4] sm:%s454] %v569
                  %v571 = vld [vmem:[%s461 + $0x1b0] sm:%s454]
                  %572 = vst [vmem:[%s462 + $0xd8] sm:%s454] %v571
                  %v573 = vld [vmem:[%s461 + $0x1b8] sm:%s454]
                  %574 = vst [vmem:[%s462 + $0xdc] sm:%s454] %v573
                  %v575 = vld [vmem:[%s461 + $0x1c0] sm:%s454]
                  %576 = vst [vmem:[%s462 + $0xe0] sm:%s454] %v575
                  %v577 = vld [vmem:[%s461 + $0x1c8] sm:%s454]
                  %578 = vst [vmem:[%s462 + $0xe4] sm:%s454] %v577
                  %v579 = vld [vmem:[%s461 + $0x1d0] sm:%s454]
                  %580 = vst [vmem:[%s462 + $0xe8] sm:%s454] %v579
                  %v581 = vld [vmem:[%s461 + $0x1d8] sm:%s454]
                  %582 = vst [vmem:[%s462 + $0xec] sm:%s454] %v581
                  %v583 = vld [vmem:[%s461 + $0x1e0] sm:%s454]
                  %584 = vst [vmem:[%s462 + $0xf0] sm:%s454] %v583
                  %v585 = vld [vmem:[%s461 + $0x1e8] sm:%s454]
                  %586 = vst [vmem:[%s462 + $0xf4] sm:%s454] %v585
                  %v587 = vld [vmem:[%s461 + $0x1f0] sm:%s454]
                  %588 = vst [vmem:[%s462 + $0xf8] sm:%s454] %v587
                  %v589 = vld [vmem:[%s461 + $0x1f8] sm:%s454]
                  %590 = vst [vmem:[%s462 + $0xfc] sm:%s454] %v589
                  %v591 = vld [vmem:[%s461 + $0x200] sm:%s454]
                  %592 = vst [vmem:[%s462 + $0x100] sm:%s454] %v591
                  %v593 = vld [vmem:[%s461 + $0x208] sm:%s454]
                  %594 = vst [vmem:[%s462 + $0x104] sm:%s454] %v593
                  %v595 = vld [vmem:[%s461 + $0x210] sm:%s454]
                  %596 = vst [vmem:[%s462 + $0x108] sm:%s454] %v595
                  %v597 = vld [vmem:[%s461 + $0x218] sm:%s454]
                  %598 = vst [vmem:[%s462 + $0x10c] sm:%s454] %v597
                  %v599 = vld [vmem:[%s461 + $0x220] sm:%s454]
                  %600 = vst [vmem:[%s462 + $0x110] sm:%s454] %v599
                  %v601 = vld [vmem:[%s461 + $0x228] sm:%s454]
                  %602 = vst [vmem:[%s462 + $0x114] sm:%s454] %v601
                  %v603 = vld [vmem:[%s461 + $0x230] sm:%s454]
                  %604 = vst [vmem:[%s462 + $0x118] sm:%s454] %v603
                  %v605 = vld [vmem:[%s461 + $0x238] sm:%s454]
                  %606 = vst [vmem:[%s462 + $0x11c] sm:%s454] %v605
                  %v607 = vld [vmem:[%s461 + $0x240] sm:%s454]
                  %608 = vst [vmem:[%s462 + $0x120] sm:%s454] %v607
                  %v609 = vld [vmem:[%s461 + $0x248] sm:%s454]
                  %610 = vst [vmem:[%s462 + $0x124] sm:%s454] %v609
                  %v611 = vld [vmem:[%s461 + $0x250] sm:%s454]
                  %612 = vst [vmem:[%s462 + $0x128] sm:%s454] %v611
                  %v613 = vld [vmem:[%s461 + $0x258] sm:%s454]
                  %614 = vst [vmem:[%s462 + $0x12c] sm:%s454] %v613
                  %v615 = vld [vmem:[%s461 + $0x260] sm:%s454]
                  %616 = vst [vmem:[%s462 + $0x130] sm:%s454] %v615
                  %v617 = vld [vmem:[%s461 + $0x268] sm:%s454]
                  %618 = vst [vmem:[%s462 + $0x134] sm:%s454] %v617
                  %v619 = vld [vmem:[%s461 + $0x270] sm:%s454]
                  %620 = vst [vmem:[%s462 + $0x138] sm:%s454] %v619
                  %v621 = vld [vmem:[%s461 + $0x278] sm:%s454]
                  %622 = vst [vmem:[%s462 + $0x13c] sm:%s454] %v621
                  %v623 = vld [vmem:[%s461 + $0x280] sm:%s454]
                  %624 = vst [vmem:[%s462 + $0x140] sm:%s454] %v623
                  %v625 = vld [vmem:[%s461 + $0x288] sm:%s454]
                  %626 = vst [vmem:[%s462 + $0x144] sm:%s454] %v625
                  %v627 = vld [vmem:[%s461 + $0x290] sm:%s454]
                  %628 = vst [vmem:[%s462 + $0x148] sm:%s454] %v627
                  %v629 = vld [vmem:[%s461 + $0x298] sm:%s454]
                  %630 = vst [vmem:[%s462 + $0x14c] sm:%s454] %v629
                  %v631 = vld [vmem:[%s461 + $0x2a0] sm:%s454]
                  %632 = vst [vmem:[%s462 + $0x150] sm:%s454] %v631
                  %v633 = vld [vmem:[%s461 + $0x2a8] sm:%s454]
                  %634 = vst [vmem:[%s462 + $0x154] sm:%s454] %v633
                  %v635 = vld [vmem:[%s461 + $0x2b0] sm:%s454]
                  %636 = vst [vmem:[%s462 + $0x158] sm:%s454] %v635
                  %v637 = vld [vmem:[%s461 + $0x2b8] sm:%s454]
                  %638 = vst [vmem:[%s462 + $0x15c] sm:%s454] %v637
                  %v639 = vld [vmem:[%s461 + $0x2c0] sm:%s454]
                  %640 = vst [vmem:[%s462 + $0x160] sm:%s454] %v639
                  %v641 = vld [vmem:[%s461 + $0x2c8] sm:%s454]
                  %642 = vst [vmem:[%s462 + $0x164] sm:%s454] %v641
                  %v643 = vld [vmem:[%s461 + $0x2d0] sm:%s454]
                  %644 = vst [vmem:[%s462 + $0x168] sm:%s454] %v643
                  %v645 = vld [vmem:[%s461 + $0x2d8] sm:%s454]
                  %646 = vst [vmem:[%s462 + $0x16c] sm:%s454] %v645
                  %v647 = vld [vmem:[%s461 + $0x2e0] sm:%s454]
                  %648 = vst [vmem:[%s462 + $0x170] sm:%s454] %v647
                  %v649 = vld [vmem:[%s461 + $0x2e8] sm:%s454]
                  %650 = vst [vmem:[%s462 + $0x174] sm:%s454] %v649
                  %v651 = vld [vmem:[%s461 + $0x2f0] sm:%s454]
                  %652 = vst [vmem:[%s462 + $0x178] sm:%s454] %v651
                  %v653 = vld [vmem:[%s461 + $0x2f8] sm:%s454]
                  %654 = vst [vmem:[%s462 + $0x17c] sm:%s454] %v653
                  %v655 = vld [vmem:[%s461 + $0x300] sm:%s454]
                  %656 = vst [vmem:[%s462 + $0x180] sm:%s454] %v655
                  %v657 = vld [vmem:[%s461 + $0x308] sm:%s454]
                  %658 = vst [vmem:[%s462 + $0x184] sm:%s454] %v657
                  %v659 = vld [vmem:[%s461 + $0x310] sm:%s454]
                  %660 = vst [vmem:[%s462 + $0x188] sm:%s454] %v659
                  %v661 = vld [vmem:[%s461 + $0x318] sm:%s454]
                  %662 = vst [vmem:[%s462 + $0x18c] sm:%s454] %v661
                $region59: #{fade_forward.7} parent=46 // loop_footer
                  %s460 = sadd.s32 1, %s456
                $region60: #{fade_forward.7} parent=46 // loop_footer_branch
                  %455 = sbr.rel target = $region56
                $region61: #{fade_forward.7} parent=46 // loop_exit
                  _
              $region47: #{fade_forward.7} parent=31 // pred_fallthru
                _
            $region32: #{fade_forward.7} parent=27 // pred_fallthru
              _
            // Predicated region
            $region33: #{fade_forward.7} parent=27 // pred_check
              _
            $region34: #{fade_forward.7} parent=27 // pred_check_branch
              %232 = sbr.rel (0) target = $region36
            $region35: #{fade_forward.7} parent=27 // pred_region
              %s234 = ssub.s32 16, 1
              loop: start=0, step=1, limit=1
              $region37: #{fade_forward.7} parent=35 // loop_pre_header
                _
              $region38: #{fade_forward.7} parent=35 // loop_header
                %s236 = sphi 0, %s240
                %p237 = scmp.ge.s32.totalorder %s236, 1
                %s241 = sphi %s226, %s226
                %s242 = sphi %s224, %s224
              $region39: #{fade_forward.7} parent=35 // loop_header_branch
                %239 = sbr.rel (%p237) target = $region43
              $region40: #{fade_forward.7} parent=35 // loop_body
                %v243 = vld [vmem:[%s241] sm:%s234]
                %244 = vst [vmem:[%s242] sm:%s234] %v243
                %v245 = vld [vmem:[%s241 + $0x8] sm:%s234]
                %246 = vst [vmem:[%s242 + $0x4] sm:%s234] %v245
                %v247 = vld [vmem:[%s241 + $0x10] sm:%s234]
                %248 = vst [vmem:[%s242 + $0x8] sm:%s234] %v247
                %v249 = vld [vmem:[%s241 + $0x18] sm:%s234]
                %250 = vst [vmem:[%s242 + $0xc] sm:%s234] %v249
                %v251 = vld [vmem:[%s241 + $0x20] sm:%s234]
                %252 = vst [vmem:[%s242 + $0x10] sm:%s234] %v251
                %v253 = vld [vmem:[%s241 + $0x28] sm:%s234]
                %254 = vst [vmem:[%s242 + $0x14] sm:%s234] %v253
                %v255 = vld [vmem:[%s241 + $0x30] sm:%s234]
                %256 = vst [vmem:[%s242 + $0x18] sm:%s234] %v255
                %v257 = vld [vmem:[%s241 + $0x38] sm:%s234]
                %258 = vst [vmem:[%s242 + $0x1c] sm:%s234] %v257
                %v259 = vld [vmem:[%s241 + $0x40] sm:%s234]
                %260 = vst [vmem:[%s242 + $0x20] sm:%s234] %v259
                %v261 = vld [vmem:[%s241 + $0x48] sm:%s234]
                %262 = vst [vmem:[%s242 + $0x24] sm:%s234] %v261
                %v263 = vld [vmem:[%s241 + $0x50] sm:%s234]
                %264 = vst [vmem:[%s242 + $0x28] sm:%s234] %v263
                %v265 = vld [vmem:[%s241 + $0x58] sm:%s234]
                %266 = vst [vmem:[%s242 + $0x2c] sm:%s234] %v265
                %v267 = vld [vmem:[%s241 + $0x60] sm:%s234]
                %268 = vst [vmem:[%s242 + $0x30] sm:%s234] %v267
                %v269 = vld [vmem:[%s241 + $0x68] sm:%s234]
                %270 = vst [vmem:[%s242 + $0x34] sm:%s234] %v269
                %v271 = vld [vmem:[%s241 + $0x70] sm:%s234]
                %272 = vst [vmem:[%s242 + $0x38] sm:%s234] %v271
                %v273 = vld [vmem:[%s241 + $0x78] sm:%s234]
                %274 = vst [vmem:[%s242 + $0x3c] sm:%s234] %v273
                %v275 = vld [vmem:[%s241 + $0x80] sm:%s234]
                %276 = vst [vmem:[%s242 + $0x40] sm:%s234] %v275
                %v277 = vld [vmem:[%s241 + $0x88] sm:%s234]
                %278 = vst [vmem:[%s242 + $0x44] sm:%s234] %v277
                %v279 = vld [vmem:[%s241 + $0x90] sm:%s234]
                %280 = vst [vmem:[%s242 + $0x48] sm:%s234] %v279
                %v281 = vld [vmem:[%s241 + $0x98] sm:%s234]
                %282 = vst [vmem:[%s242 + $0x4c] sm:%s234] %v281
                %v283 = vld [vmem:[%s241 + $0xa0] sm:%s234]
                %284 = vst [vmem:[%s242 + $0x50] sm:%s234] %v283
                %v285 = vld [vmem:[%s241 + $0xa8] sm:%s234]
                %286 = vst [vmem:[%s242 + $0x54] sm:%s234] %v285
                %v287 = vld [vmem:[%s241 + $0xb0] sm:%s234]
                %288 = vst [vmem:[%s242 + $0x58] sm:%s234] %v287
                %v289 = vld [vmem:[%s241 + $0xb8] sm:%s234]
                %290 = vst [vmem:[%s242 + $0x5c] sm:%s234] %v289
                %v291 = vld [vmem:[%s241 + $0xc0] sm:%s234]
                %292 = vst [vmem:[%s242 + $0x60] sm:%s234] %v291
                %v293 = vld [vmem:[%s241 + $0xc8] sm:%s234]
                %294 = vst [vmem:[%s242 + $0x64] sm:%s234] %v293
                %v295 = vld [vmem:[%s241 + $0xd0] sm:%s234]
                %296 = vst [vmem:[%s242 + $0x68] sm:%s234] %v295
                %v297 = vld [vmem:[%s241 + $0xd8] sm:%s234]
                %298 = vst [vmem:[%s242 + $0x6c] sm:%s234] %v297
                %v299 = vld [vmem:[%s241 + $0xe0] sm:%s234]
                %300 = vst [vmem:[%s242 + $0x70] sm:%s234] %v299
                %v301 = vld [vmem:[%s241 + $0xe8] sm:%s234]
                %302 = vst [vmem:[%s242 + $0x74] sm:%s234] %v301
                %v303 = vld [vmem:[%s241 + $0xf0] sm:%s234]
                %304 = vst [vmem:[%s242 + $0x78] sm:%s234] %v303
                %v305 = vld [vmem:[%s241 + $0xf8] sm:%s234]
                %306 = vst [vmem:[%s242 + $0x7c] sm:%s234] %v305
                %v307 = vld [vmem:[%s241 + $0x100] sm:%s234]
                %308 = vst [vmem:[%s242 + $0x80] sm:%s234] %v307
                %v309 = vld [vmem:[%s241 + $0x108] sm:%s234]
                %310 = vst [vmem:[%s242 + $0x84] sm:%s234] %v309
                %v311 = vld [vmem:[%s241 + $0x110] sm:%s234]
                %312 = vst [vmem:[%s242 + $0x88] sm:%s234] %v311
                %v313 = vld [vmem:[%s241 + $0x118] sm:%s234]
                %314 = vst [vmem:[%s242 + $0x8c] sm:%s234] %v313
                %v315 = vld [vmem:[%s241 + $0x120] sm:%s234]
                %316 = vst [vmem:[%s242 + $0x90] sm:%s234] %v315
                %v317 = vld [vmem:[%s241 + $0x128] sm:%s234]
                %318 = vst [vmem:[%s242 + $0x94] sm:%s234] %v317
                %v319 = vld [vmem:[%s241 + $0x130] sm:%s234]
                %320 = vst [vmem:[%s242 + $0x98] sm:%s234] %v319
                %v321 = vld [vmem:[%s241 + $0x138] sm:%s234]
                %322 = vst [vmem:[%s242 + $0x9c] sm:%s234] %v321
                %v323 = vld [vmem:[%s241 + $0x140] sm:%s234]
                %324 = vst [vmem:[%s242 + $0xa0] sm:%s234] %v323
                %v325 = vld [vmem:[%s241 + $0x148] sm:%s234]
                %326 = vst [vmem:[%s242 + $0xa4] sm:%s234] %v325
                %v327 = vld [vmem:[%s241 + $0x150] sm:%s234]
                %328 = vst [vmem:[%s242 + $0xa8] sm:%s234] %v327
                %v329 = vld [vmem:[%s241 + $0x158] sm:%s234]
                %330 = vst [vmem:[%s242 + $0xac] sm:%s234] %v329
                %v331 = vld [vmem:[%s241 + $0x160] sm:%s234]
                %332 = vst [vmem:[%s242 + $0xb0] sm:%s234] %v331
                %v333 = vld [vmem:[%s241 + $0x168] sm:%s234]
                %334 = vst [vmem:[%s242 + $0xb4] sm:%s234] %v333
                %v335 = vld [vmem:[%s241 + $0x170] sm:%s234]
                %336 = vst [vmem:[%s242 + $0xb8] sm:%s234] %v335
                %v337 = vld [vmem:[%s241 + $0x178] sm:%s234]
                %338 = vst [vmem:[%s242 + $0xbc] sm:%s234] %v337
                %v339 = vld [vmem:[%s241 + $0x180] sm:%s234]
                %340 = vst [vmem:[%s242 + $0xc0] sm:%s234] %v339
                %v341 = vld [vmem:[%s241 + $0x188] sm:%s234]
                %342 = vst [vmem:[%s242 + $0xc4] sm:%s234] %v341
                %v343 = vld [vmem:[%s241 + $0x190] sm:%s234]
                %344 = vst [vmem:[%s242 + $0xc8] sm:%s234] %v343
                %v345 = vld [vmem:[%s241 + $0x198] sm:%s234]
                %346 = vst [vmem:[%s242 + $0xcc] sm:%s234] %v345
                %v347 = vld [vmem:[%s241 + $0x1a0] sm:%s234]
                %348 = vst [vmem:[%s242 + $0xd0] sm:%s234] %v347
                %v349 = vld [vmem:[%s241 + $0x1a8] sm:%s234]
                %350 = vst [vmem:[%s242 + $0xd4] sm:%s234] %v349
                %v351 = vld [vmem:[%s241 + $0x1b0] sm:%s234]
                %352 = vst [vmem:[%s242 + $0xd8] sm:%s234] %v351
                %v353 = vld [vmem:[%s241 + $0x1b8] sm:%s234]
                %354 = vst [vmem:[%s242 + $0xdc] sm:%s234] %v353
                %v355 = vld [vmem:[%s241 + $0x1c0] sm:%s234]
                %356 = vst [vmem:[%s242 + $0xe0] sm:%s234] %v355
                %v357 = vld [vmem:[%s241 + $0x1c8] sm:%s234]
                %358 = vst [vmem:[%s242 + $0xe4] sm:%s234] %v357
                %v359 = vld [vmem:[%s241 + $0x1d0] sm:%s234]
                %360 = vst [vmem:[%s242 + $0xe8] sm:%s234] %v359
                %v361 = vld [vmem:[%s241 + $0x1d8] sm:%s234]
                %362 = vst [vmem:[%s242 + $0xec] sm:%s234] %v361
                %v363 = vld [vmem:[%s241 + $0x1e0] sm:%s234]
                %364 = vst [vmem:[%s242 + $0xf0] sm:%s234] %v363
                %v365 = vld [vmem:[%s241 + $0x1e8] sm:%s234]
                %366 = vst [vmem:[%s242 + $0xf4] sm:%s234] %v365
                %v367 = vld [vmem:[%s241 + $0x1f0] sm:%s234]
                %368 = vst [vmem:[%s242 + $0xf8] sm:%s234] %v367
                %v369 = vld [vmem:[%s241 + $0x1f8] sm:%s234]
                %370 = vst [vmem:[%s242 + $0xfc] sm:%s234] %v369
                %v371 = vld [vmem:[%s241 + $0x200] sm:%s234]
                %372 = vst [vmem:[%s242 + $0x100] sm:%s234] %v371
                %v373 = vld [vmem:[%s241 + $0x208] sm:%s234]
                %374 = vst [vmem:[%s242 + $0x104] sm:%s234] %v373
                %v375 = vld [vmem:[%s241 + $0x210] sm:%s234]
                %376 = vst [vmem:[%s242 + $0x108] sm:%s234] %v375
                %v377 = vld [vmem:[%s241 + $0x218] sm:%s234]
                %378 = vst [vmem:[%s242 + $0x10c] sm:%s234] %v377
                %v379 = vld [vmem:[%s241 + $0x220] sm:%s234]
                %380 = vst [vmem:[%s242 + $0x110] sm:%s234] %v379
                %v381 = vld [vmem:[%s241 + $0x228] sm:%s234]
                %382 = vst [vmem:[%s242 + $0x114] sm:%s234] %v381
                %v383 = vld [vmem:[%s241 + $0x230] sm:%s234]
                %384 = vst [vmem:[%s242 + $0x118] sm:%s234] %v383
                %v385 = vld [vmem:[%s241 + $0x238] sm:%s234]
                %386 = vst [vmem:[%s242 + $0x11c] sm:%s234] %v385
                %v387 = vld [vmem:[%s241 + $0x240] sm:%s234]
                %388 = vst [vmem:[%s242 + $0x120] sm:%s234] %v387
                %v389 = vld [vmem:[%s241 + $0x248] sm:%s234]
                %390 = vst [vmem:[%s242 + $0x124] sm:%s234] %v389
                %v391 = vld [vmem:[%s241 + $0x250] sm:%s234]
                %392 = vst [vmem:[%s242 + $0x128] sm:%s234] %v391
                %v393 = vld [vmem:[%s241 + $0x258] sm:%s234]
                %394 = vst [vmem:[%s242 + $0x12c] sm:%s234] %v393
                %v395 = vld [vmem:[%s241 + $0x260] sm:%s234]
                %396 = vst [vmem:[%s242 + $0x130] sm:%s234] %v395
                %v397 = vld [vmem:[%s241 + $0x268] sm:%s234]
                %398 = vst [vmem:[%s242 + $0x134] sm:%s234] %v397
                %v399 = vld [vmem:[%s241 + $0x270] sm:%s234]
                %400 = vst [vmem:[%s242 + $0x138] sm:%s234] %v399
                %v401 = vld [vmem:[%s241 + $0x278] sm:%s234]
                %402 = vst [vmem:[%s242 + $0x13c] sm:%s234] %v401
                %v403 = vld [vmem:[%s241 + $0x280] sm:%s234]
                %404 = vst [vmem:[%s242 + $0x140] sm:%s234] %v403
                %v405 = vld [vmem:[%s241 + $0x288] sm:%s234]
                %406 = vst [vmem:[%s242 + $0x144] sm:%s234] %v405
                %v407 = vld [vmem:[%s241 + $0x290] sm:%s234]
                %408 = vst [vmem:[%s242 + $0x148] sm:%s234] %v407
                %v409 = vld [vmem:[%s241 + $0x298] sm:%s234]
                %410 = vst [vmem:[%s242 + $0x14c] sm:%s234] %v409
                %v411 = vld [vmem:[%s241 + $0x2a0] sm:%s234]
                %412 = vst [vmem:[%s242 + $0x150] sm:%s234] %v411
                %v413 = vld [vmem:[%s241 + $0x2a8] sm:%s234]
                %414 = vst [vmem:[%s242 + $0x154] sm:%s234] %v413
                %v415 = vld [vmem:[%s241 + $0x2b0] sm:%s234]
                %416 = vst [vmem:[%s242 + $0x158] sm:%s234] %v415
                %v417 = vld [vmem:[%s241 + $0x2b8] sm:%s234]
                %418 = vst [vmem:[%s242 + $0x15c] sm:%s234] %v417
                %v419 = vld [vmem:[%s241 + $0x2c0] sm:%s234]
                %420 = vst [vmem:[%s242 + $0x160] sm:%s234] %v419
                %v421 = vld [vmem:[%s241 + $0x2c8] sm:%s234]
                %422 = vst [vmem:[%s242 + $0x164] sm:%s234] %v421
                %v423 = vld [vmem:[%s241 + $0x2d0] sm:%s234]
                %424 = vst [vmem:[%s242 + $0x168] sm:%s234] %v423
                %v425 = vld [vmem:[%s241 + $0x2d8] sm:%s234]
                %426 = vst [vmem:[%s242 + $0x16c] sm:%s234] %v425
                %v427 = vld [vmem:[%s241 + $0x2e0] sm:%s234]
                %428 = vst [vmem:[%s242 + $0x170] sm:%s234] %v427
                %v429 = vld [vmem:[%s241 + $0x2e8] sm:%s234]
                %430 = vst [vmem:[%s242 + $0x174] sm:%s234] %v429
                %v431 = vld [vmem:[%s241 + $0x2f0] sm:%s234]
                %432 = vst [vmem:[%s242 + $0x178] sm:%s234] %v431
                %v433 = vld [vmem:[%s241 + $0x2f8] sm:%s234]
                %434 = vst [vmem:[%s242 + $0x17c] sm:%s234] %v433
                %v435 = vld [vmem:[%s241 + $0x300] sm:%s234]
                %436 = vst [vmem:[%s242 + $0x180] sm:%s234] %v435
                %v437 = vld [vmem:[%s241 + $0x308] sm:%s234]
                %438 = vst [vmem:[%s242 + $0x184] sm:%s234] %v437
                %v439 = vld [vmem:[%s241 + $0x310] sm:%s234]
                %440 = vst [vmem:[%s242 + $0x188] sm:%s234] %v439
                %v441 = vld [vmem:[%s241 + $0x318] sm:%s234]
                %442 = vst [vmem:[%s242 + $0x18c] sm:%s234] %v441
              $region41: #{fade_forward.7} parent=35 // loop_footer
                %s240 = sadd.s32 1, %s236
              $region42: #{fade_forward.7} parent=35 // loop_footer_branch
                %235 = sbr.rel target = $region38
              $region43: #{fade_forward.7} parent=35 // loop_exit
                _
            $region36: #{fade_forward.7} parent=27 // pred_fallthru
              _
          $region28: #{fade_forward.7} parent=23 // pred_fallthru
            _
          %663 = vnop
        $region24: #{fade_forward.7} parent=15 // pred_fallthru
          _
        // Predicated region
        $region62: #{fade_forward.7} parent=15 // pred_check
          %p664 = pneg %p97
        $region63: #{fade_forward.7} parent=15 // pred_check_branch
          %666 = sbr.rel (%p664) target = $region65
        $region64: #{fade_forward.7} parent=15 // pred_region
          %s667 = sand.u32 %s87, 1
          %s668 = sand.u32 %s87, 1
          %s669 = smul.addr %s668, 100
          %s670 = scalar_lea.vmem [#allocation3], %s669
          %s671 = smul.addr %s18, 4
          %s672 = scalar_lea.vmem %s2, %s671
          // Predicated region
          $region66: #{fade_forward.7} parent=64 // pred_check
            _
          $region67: #{fade_forward.7} parent=64 // pred_check_branch
            %674 = sbr.rel (0) target = $region69
          $region68: #{fade_forward.7} parent=64 // pred_region
            // Predicated region
            $region70: #{fade_forward.7} parent=68 // pred_check
              _
            $region71: #{fade_forward.7} parent=68 // pred_check_branch
              %676 = sbr.rel target = $region73
            $region72: #{fade_forward.7} parent=68 // pred_region
              // Predicated region
              $region85: #{fade_forward.7} parent=72 // pred_check
                _
              $region86: #{fade_forward.7} parent=72 // pred_check_branch
                %740 = sbr.rel (0) target = $region88
              $region87: #{fade_forward.7} parent=72 // pred_region
                loop: start=0, step=1, limit=1
                $region89: #{fade_forward.7} parent=87 // loop_pre_header
                  _
                $region90: #{fade_forward.7} parent=87 // loop_header
                  %s742 = sphi 0, %s746
                  %p743 = scmp.ge.s32.totalorder %s742, 1
                  %s747 = sphi %s672, %s672
                  %s748 = sphi %s670, %s670
                $region91: #{fade_forward.7} parent=87 // loop_header_branch
                  %745 = sbr.rel (%p743) target = $region95
                $region92: #{fade_forward.7} parent=87 // loop_body
                  _
                $region93: #{fade_forward.7} parent=87 // loop_footer
                  %s746 = sadd.s32 1, %s742
                $region94: #{fade_forward.7} parent=87 // loop_footer_branch
                  %741 = sbr.rel target = $region90
                $region95: #{fade_forward.7} parent=87 // loop_exit
                  _
                %s750 = ssub.s32 16, 1
                loop: start=0, step=1, limit=1
                $region96: #{fade_forward.7} parent=87 // loop_pre_header
                  _
                $region97: #{fade_forward.7} parent=87 // loop_header
                  %s752 = sphi 0, %s756
                  %p753 = scmp.ge.s32.totalorder %s752, 1
                  %s757 = sphi %s672, %s672
                  %s758 = sphi %s670, %s670
                $region98: #{fade_forward.7} parent=87 // loop_header_branch
                  %755 = sbr.rel (%p753) target = $region102
                $region99: #{fade_forward.7} parent=87 // loop_body
                  %v759 = vld [vmem:[%s757] sm:%s750]
                  %760 = vst [vmem:[%s758] sm:%s750] %v759
                  %v761 = vld [vmem:[%s757 + $0x8] sm:%s750]
                  %762 = vst [vmem:[%s758 + $0x4] sm:%s750] %v761
                  %v763 = vld [vmem:[%s757 + $0x10] sm:%s750]
                  %764 = vst [vmem:[%s758 + $0x8] sm:%s750] %v763
                  %v765 = vld [vmem:[%s757 + $0x18] sm:%s750]
                  %766 = vst [vmem:[%s758 + $0xc] sm:%s750] %v765
                  %v767 = vld [vmem:[%s757 + $0x20] sm:%s750]
                  %768 = vst [vmem:[%s758 + $0x10] sm:%s750] %v767
                  %v769 = vld [vmem:[%s757 + $0x28] sm:%s750]
                  %770 = vst [vmem:[%s758 + $0x14] sm:%s750] %v769
                  %v771 = vld [vmem:[%s757 + $0x30] sm:%s750]
                  %772 = vst [vmem:[%s758 + $0x18] sm:%s750] %v771
                  %v773 = vld [vmem:[%s757 + $0x38] sm:%s750]
                  %774 = vst [vmem:[%s758 + $0x1c] sm:%s750] %v773
                  %v775 = vld [vmem:[%s757 + $0x40] sm:%s750]
                  %776 = vst [vmem:[%s758 + $0x20] sm:%s750] %v775
                  %v777 = vld [vmem:[%s757 + $0x48] sm:%s750]
                  %778 = vst [vmem:[%s758 + $0x24] sm:%s750] %v777
                  %v779 = vld [vmem:[%s757 + $0x50] sm:%s750]
                  %780 = vst [vmem:[%s758 + $0x28] sm:%s750] %v779
                  %v781 = vld [vmem:[%s757 + $0x58] sm:%s750]
                  %782 = vst [vmem:[%s758 + $0x2c] sm:%s750] %v781
                  %v783 = vld [vmem:[%s757 + $0x60] sm:%s750]
                  %784 = vst [vmem:[%s758 + $0x30] sm:%s750] %v783
                  %v785 = vld [vmem:[%s757 + $0x68] sm:%s750]
                  %786 = vst [vmem:[%s758 + $0x34] sm:%s750] %v785
                  %v787 = vld [vmem:[%s757 + $0x70] sm:%s750]
                  %788 = vst [vmem:[%s758 + $0x38] sm:%s750] %v787
                  %v789 = vld [vmem:[%s757 + $0x78] sm:%s750]
                  %790 = vst [vmem:[%s758 + $0x3c] sm:%s750] %v789
                  %v791 = vld [vmem:[%s757 + $0x80] sm:%s750]
                  %792 = vst [vmem:[%s758 + $0x40] sm:%s750] %v791
                  %v793 = vld [vmem:[%s757 + $0x88] sm:%s750]
                  %794 = vst [vmem:[%s758 + $0x44] sm:%s750] %v793
                  %v795 = vld [vmem:[%s757 + $0x90] sm:%s750]
                  %796 = vst [vmem:[%s758 + $0x48] sm:%s750] %v795
                  %v797 = vld [vmem:[%s757 + $0x98] sm:%s750]
                  %798 = vst [vmem:[%s758 + $0x4c] sm:%s750] %v797
                  %v799 = vld [vmem:[%s757 + $0xa0] sm:%s750]
                  %800 = vst [vmem:[%s758 + $0x50] sm:%s750] %v799
                  %v801 = vld [vmem:[%s757 + $0xa8] sm:%s750]
                  %802 = vst [vmem:[%s758 + $0x54] sm:%s750] %v801
                  %v803 = vld [vmem:[%s757 + $0xb0] sm:%s750]
                  %804 = vst [vmem:[%s758 + $0x58] sm:%s750] %v803
                  %v805 = vld [vmem:[%s757 + $0xb8] sm:%s750]
                  %806 = vst [vmem:[%s758 + $0x5c] sm:%s750] %v805
                  %v807 = vld [vmem:[%s757 + $0xc0] sm:%s750]
                  %808 = vst [vmem:[%s758 + $0x60] sm:%s750] %v807
                $region100: #{fade_forward.7} parent=87 // loop_footer
                  %s756 = sadd.s32 1, %s752
                $region101: #{fade_forward.7} parent=87 // loop_footer_branch
                  %751 = sbr.rel target = $region97
                $region102: #{fade_forward.7} parent=87 // loop_exit
                  _
              $region88: #{fade_forward.7} parent=72 // pred_fallthru
                _
            $region73: #{fade_forward.7} parent=68 // pred_fallthru
              _
            // Predicated region
            $region74: #{fade_forward.7} parent=68 // pred_check
              _
            $region75: #{fade_forward.7} parent=68 // pred_check_branch
              %678 = sbr.rel (0) target = $region77
            $region76: #{fade_forward.7} parent=68 // pred_region
              %s680 = ssub.s32 16, 1
              loop: start=0, step=1, limit=1
              $region78: #{fade_forward.7} parent=76 // loop_pre_header
                _
              $region79: #{fade_forward.7} parent=76 // loop_header
                %s682 = sphi 0, %s686
                %p683 = scmp.ge.s32.totalorder %s682, 1
                %s687 = sphi %s672, %s672
                %s688 = sphi %s670, %s670
              $region80: #{fade_forward.7} parent=76 // loop_header_branch
                %685 = sbr.rel (%p683) target = $region84
              $region81: #{fade_forward.7} parent=76 // loop_body
                %v689 = vld [vmem:[%s687] sm:%s680]
                %690 = vst [vmem:[%s688] sm:%s680] %v689
                %v691 = vld [vmem:[%s687 + $0x8] sm:%s680]
                %692 = vst [vmem:[%s688 + $0x4] sm:%s680] %v691
                %v693 = vld [vmem:[%s687 + $0x10] sm:%s680]
                %694 = vst [vmem:[%s688 + $0x8] sm:%s680] %v693
                %v695 = vld [vmem:[%s687 + $0x18] sm:%s680]
                %696 = vst [vmem:[%s688 + $0xc] sm:%s680] %v695
                %v697 = vld [vmem:[%s687 + $0x20] sm:%s680]
                %698 = vst [vmem:[%s688 + $0x10] sm:%s680] %v697
                %v699 = vld [vmem:[%s687 + $0x28] sm:%s680]
                %700 = vst [vmem:[%s688 + $0x14] sm:%s680] %v699
                %v701 = vld [vmem:[%s687 + $0x30] sm:%s680]
                %702 = vst [vmem:[%s688 + $0x18] sm:%s680] %v701
                %v703 = vld [vmem:[%s687 + $0x38] sm:%s680]
                %704 = vst [vmem:[%s688 + $0x1c] sm:%s680] %v703
                %v705 = vld [vmem:[%s687 + $0x40] sm:%s680]
                %706 = vst [vmem:[%s688 + $0x20] sm:%s680] %v705
                %v707 = vld [vmem:[%s687 + $0x48] sm:%s680]
                %708 = vst [vmem:[%s688 + $0x24] sm:%s680] %v707
                %v709 = vld [vmem:[%s687 + $0x50] sm:%s680]
                %710 = vst [vmem:[%s688 + $0x28] sm:%s680] %v709
                %v711 = vld [vmem:[%s687 + $0x58] sm:%s680]
                %712 = vst [vmem:[%s688 + $0x2c] sm:%s680] %v711
                %v713 = vld [vmem:[%s687 + $0x60] sm:%s680]
                %714 = vst [vmem:[%s688 + $0x30] sm:%s680] %v713
                %v715 = vld [vmem:[%s687 + $0x68] sm:%s680]
                %716 = vst [vmem:[%s688 + $0x34] sm:%s680] %v715
                %v717 = vld [vmem:[%s687 + $0x70] sm:%s680]
                %718 = vst [vmem:[%s688 + $0x38] sm:%s680] %v717
                %v719 = vld [vmem:[%s687 + $0x78] sm:%s680]
                %720 = vst [vmem:[%s688 + $0x3c] sm:%s680] %v719
                %v721 = vld [vmem:[%s687 + $0x80] sm:%s680]
                %722 = vst [vmem:[%s688 + $0x40] sm:%s680] %v721
                %v723 = vld [vmem:[%s687 + $0x88] sm:%s680]
                %724 = vst [vmem:[%s688 + $0x44] sm:%s680] %v723
                %v725 = vld [vmem:[%s687 + $0x90] sm:%s680]
                %726 = vst [vmem:[%s688 + $0x48] sm:%s680] %v725
                %v727 = vld [vmem:[%s687 + $0x98] sm:%s680]
                %728 = vst [vmem:[%s688 + $0x4c] sm:%s680] %v727
                %v729 = vld [vmem:[%s687 + $0xa0] sm:%s680]
                %730 = vst [vmem:[%s688 + $0x50] sm:%s680] %v729
                %v731 = vld [vmem:[%s687 + $0xa8] sm:%s680]
                %732 = vst [vmem:[%s688 + $0x54] sm:%s680] %v731
                %v733 = vld [vmem:[%s687 + $0xb0] sm:%s680]
                %734 = vst [vmem:[%s688 + $0x58] sm:%s680] %v733
                %v735 = vld [vmem:[%s687 + $0xb8] sm:%s680]
                %736 = vst [vmem:[%s688 + $0x5c] sm:%s680] %v735
                %v737 = vld [vmem:[%s687 + $0xc0] sm:%s680]
                %738 = vst [vmem:[%s688 + $0x60] sm:%s680] %v737
              $region82: #{fade_forward.7} parent=76 // loop_footer
                %s686 = sadd.s32 1, %s682
              $region83: #{fade_forward.7} parent=76 // loop_footer_branch
                %681 = sbr.rel target = $region79
              $region84: #{fade_forward.7} parent=76 // loop_exit
                _
            $region77: #{fade_forward.7} parent=68 // pred_fallthru
              _
          $region69: #{fade_forward.7} parent=64 // pred_fallthru
            _
          %809 = vnop
        $region65: #{fade_forward.7} parent=15 // pred_fallthru
          _
        // Predicated region
        $region103: #{fade_forward.7} parent=15 // pred_check
          %p810 = pneg %p123
        $region104: #{fade_forward.7} parent=15 // pred_check_branch
          %812 = sbr.rel (%p810) target = $region106
        $region105: #{fade_forward.7} parent=15 // pred_region
          %p813 = scmp.lt.s32.totalorder %s18, 1
          %s814 = scalar_select %p813, %s18, 1
          %s815 = smul.addr %s814, 4
          %s816 = scalar_lea.vmem %s3, %s815
        $region106: #{fade_forward.7} parent=15 // pred_fallthru
          _
        // Predicated region
        $region107: #{fade_forward.7} parent=15 // pred_check
          %p817 = pneg %p151
        $region108: #{fade_forward.7} parent=15 // pred_check_branch
          %819 = sbr.rel (%p817) target = $region110
        $region109: #{fade_forward.7} parent=15 // pred_region
          %s820 = smul.u32 4, %s19
          %p821 = scmp.lt.s32.totalorder %s18, 1
          %s822 = scalar_select %p821, %s18, 1
          %p823 = scmp.lt.s32.totalorder %s820, 3
          %s824 = scalar_select %p823, %s820, 3
          %s825 = smul.addr %s822, 16
          %s826 = sadd.s32 %s824, %s825
          %s827 = smul.addr %s826, 4
          %s828 = scalar_lea.vmem %s4, %s827
          %s829 = smul.u32 4, %s19
        $region110: #{fade_forward.7} parent=15 // pred_fallthru
          _
      $region16: #{fade_forward.7} parent=5 // pred_fallthru
        _
      %p830 = scmp.le.s32.totalorder 1, %s11
      %p831 = scmp.lt.s32.totalorder %s11, 3
      %p832 = pnand %p830, %p831
      %p833 = pneg %p832
      // Predicated region
      $region111: #{fade_forward.7} parent=5 // pred_check
        _
      $region112: #{fade_forward.7} parent=5 // pred_check_branch
        %835 = sbr.rel (%p832) target = $region114
      $region113: #{fade_forward.7} parent=5 // pred_region
        %s836 = ssub.s32 %s11, 1
        %s837 = sand.u32 %s64, 1
        %s838 = sand.u32 %s64, 1
        %s839 = smul.addr %s838, 400
        %s840 = scalar_lea.vmem [#allocation2], %s839
        // Predicated region
        $region115: #{fade_forward.7} parent=113 // pred_check
          %p841 = pneg %p77
        $region116: #{fade_forward.7} parent=113 // pred_check_branch
          %843 = sbr.rel (%p841) target = $region118
        $region117: #{fade_forward.7} parent=113 // pred_region
          _
        $region118: #{fade_forward.7} parent=113 // pred_fallthru
          _
        %s844 = sand.u32 %s90, 1
        %s845 = sand.u32 %s90, 1
        %s846 = smul.addr %s845, 100
        %s847 = scalar_lea.vmem [#allocation3], %s846
        // Predicated region
        $region119: #{fade_forward.7} parent=113 // pred_check
          %p848 = pneg %p103
        $region120: #{fade_forward.7} parent=113 // pred_check_branch
          %850 = sbr.rel (%p848) target = $region122
        $region121: #{fade_forward.7} parent=113 // pred_region
          _
        $region122: #{fade_forward.7} parent=113 // pred_fallthru
          _
        %s851 = smul.u32 4, %s21
        %p852 = scmp.lt.s32.totalorder %s20, 1
        %s853 = scalar_select %p852, %s20, 1
        %p854 = scmp.lt.s32.totalorder %s851, 3
        %s855 = scalar_select %p854, %s851, 3
        %s856 = smul.addr %s855, 2
        %s857 = smul.addr %s853, 8
        %s858 = sadd.s32 %s856, %s857
        %s859 = smul.addr %s858, 4
        %s860 = scalar_lea.vmem %s0, %s859
        %p861 = pneg %p51
        %p862 = pneg %p48
        %s863 = sand.u32 %s64, 1
        %s864 = sand.u32 %s64, 1
        %s865 = smul.addr %s864, 400
        %s866 = scalar_lea.vmem [#allocation2], %s865
        %p867 = pneg %p77
        %p868 = pneg %p74
        %s869 = sand.u32 %s90, 1
        %s870 = sand.u32 %s90, 1
        %s871 = smul.addr %s870, 100
        %s872 = scalar_lea.vmem [#allocation3], %s871
        %p873 = pneg %p103
        %p874 = pneg %p100
        %p875 = scmp.lt.s32.totalorder %s20, 1
        %s876 = scalar_select %p875, %s20, 1
        %s877 = smul.addr %s876, 4
        %s878 = scalar_lea.vmem %s3, %s877
        %p879 = pneg %p129
        %p880 = pneg %p126
        %s881 = smul.u32 4, %s21
        %p882 = scmp.lt.s32.totalorder %s20, 1
        %s883 = scalar_select %p882, %s20, 1
        %p884 = scmp.lt.s32.totalorder %s881, 3
        %s885 = scalar_select %p884, %s881, 3
        %s886 = smul.addr %s883, 16
        %s887 = sadd.s32 %s885, %s886
        %s888 = smul.addr %s887, 4
        %s889 = scalar_lea.vmem %s4, %s888
        %p890 = pneg %p157
        %p891 = pneg %p154
        %p892 = pneg %p185
        %p893 = pneg %p182
        %s894 = smul.u32 4, %s21
        %p895 = scmp.lt.s32.totalorder %s20, 1
        %s896 = scalar_select %p895, %s20, 1
        %p897 = scmp.lt.s32.totalorder %s894, 3
        %s898 = scalar_select %p897, %s894, 3
        %s899 = smul.addr %s896, 16
        %s900 = sadd.s32 %s898, %s899
        %s901 = smul.addr %s900, 4
        %s902 = scalar_lea.vmem %s5, %s901
        %s903 = smul.u32 4, %s21
        %p904 = scmp.lt.s32.totalorder %s20, 1
        %s905 = scalar_select %p904, %s20, 1
        %p906 = scmp.lt.s32.totalorder %s903, 3
        %s907 = scalar_select %p906, %s903, 3
        %s908 = smul.addr %s907, 2
        %s909 = smul.addr %s905, 8
        %s910 = sadd.s32 %s908, %s909
        %s911 = smul.addr %s910, 4
        %s912 = scalar_lea.vmem %s0, %s911
        %s913 = smul.u32 4, %s21
        %p914 = scmp.lt.s32.totalorder %s20, 1
        %s915 = scalar_select %p914, %s20, 1
        %s916 = smul.addr %s915, 4
        %s917 = scalar_lea.vmem %s3, %s916
        %s918 = smul.u32 4, %s21
        %p919 = scmp.lt.s32.totalorder %s20, 1
        %s920 = scalar_select %p919, %s20, 1
        %p921 = scmp.lt.s32.totalorder %s918, 3
        %s922 = scalar_select %p921, %s918, 3
        %s923 = smul.addr %s920, 16
        %s924 = sadd.s32 %s922, %s923
        %s925 = smul.addr %s924, 4
        %s926 = scalar_lea.vmem %s4, %s925
        %s927 = smul.u32 4, %s21
        %s928 = smul.u32 4, %s21
        %p929 = scmp.lt.s32.totalorder %s20, 1
        %s930 = scalar_select %p929, %s20, 1
        %p931 = scmp.lt.s32.totalorder %s928, 3
        %s932 = scalar_select %p931, %s928, 3
        %s933 = smul.addr %s930, 16
        %s934 = sadd.s32 %s932, %s933
        %s935 = smul.addr %s934, 4
        %s936 = scalar_lea.vmem %s5, %s935
        %s937 = smul.u32 4, %s21
        %v938 = vld [vmem:[%s917] sm:$0xf]
        %v939 = vunpack.c.l.bf16 %v938
        %v940 = vxor.u32 %v939, 2147483648
        %v941 = vmul.f32 %v940, 1.442695
        %v942 = vpow.pop %v941
        %v943 = vadd.f32 %v942, 1.0
        %v944 = vrcp.pop %v943
        %v945 = vmul.f32 1.0, %v944
        %v946 = vsub.f32 1.0, %v945
        %v947 = vld [vmem:[%s847] sm:$0xf]
        %v948 = vld [vmem:[%s847 + $0x4] sm:$0xf]
        %v949 = vld [vmem:[%s847 + $0x8] sm:$0xf]
        %v950 = vld [vmem:[%s847 + $0xc] sm:$0xf]
        %v951 = vld [vmem:[%s847 + $0x10] sm:$0xf]
        %v952 = vld [vmem:[%s847 + $0x14] sm:$0xf]
        %v953 = vld [vmem:[%s847 + $0x18] sm:$0xf]
        %v954 = vld [vmem:[%s847 + $0x1c] sm:$0xf]
        %v955 = vld [vmem:[%s847 + $0x20] sm:$0xf]
        %v956 = vld [vmem:[%s847 + $0x24] sm:$0xf]
        %v957 = vld [vmem:[%s847 + $0x28] sm:$0xf]
        %v958 = vld [vmem:[%s847 + $0x2c] sm:$0xf]
        %v959 = vld [vmem:[%s847 + $0x30] sm:$0xf]
        %v960 = vld [vmem:[%s847 + $0x34] sm:$0xf]
        %v961 = vld [vmem:[%s847 + $0x38] sm:$0xf]
        %v962 = vld [vmem:[%s847 + $0x3c] sm:$0xf]
        %v963 = vld [vmem:[%s847 + $0x40] sm:$0xf]
        %v964 = vld [vmem:[%s847 + $0x44] sm:$0xf]
        %v965 = vld [vmem:[%s847 + $0x48] sm:$0xf]
        %v966 = vld [vmem:[%s847 + $0x4c] sm:$0xf]
        %v967 = vld [vmem:[%s847 + $0x50] sm:$0xf]
        %v968 = vld [vmem:[%s847 + $0x54] sm:$0xf]
        %v969 = vld [vmem:[%s847 + $0x58] sm:$0xf]
        %v970 = vld [vmem:[%s847 + $0x5c] sm:$0xf]
        %v971 = vld [vmem:[%s847 + $0x60] sm:$0xf]
        %v972 = vunpack.c.l.bf16 %v947
        %v973 = vunpack.c.l.bf16 %v948
        %v974 = vunpack.c.l.bf16 %v949
        %v975 = vunpack.c.l.bf16 %v950
        %v976 = vunpack.c.l.bf16 %v951
        %v977 = vunpack.c.l.bf16 %v952
        %v978 = vunpack.c.l.bf16 %v953
        %v979 = vunpack.c.l.bf16 %v954
        %v980 = vunpack.c.l.bf16 %v955
        %v981 = vunpack.c.l.bf16 %v956
        %v982 = vunpack.c.l.bf16 %v957
        %v983 = vunpack.c.l.bf16 %v958
        %v984 = vunpack.c.l.bf16 %v959
        %v985 = vunpack.c.l.bf16 %v960
        %v986 = vunpack.c.l.bf16 %v961
        %v987 = vunpack.c.l.bf16 %v962
        %v988 = vunpack.c.l.bf16 %v963
        %v989 = vunpack.c.l.bf16 %v964
        %v990 = vunpack.c.l.bf16 %v965
        %v991 = vunpack.c.l.bf16 %v966
        %v992 = vunpack.c.l.bf16 %v967
        %v993 = vunpack.c.l.bf16 %v968
        %v994 = vunpack.c.l.bf16 %v969
        %v995 = vunpack.c.l.bf16 %v970
        %v996 = vunpack.c.l.bf16 %v971
        %v997 = vld [vmem:[%s840] sm:$0xf]
        %v998 = vld [vmem:[%s840 + $0x10] sm:$0xf]
        %v999 = vld [vmem:[%s840 + $0x20] sm:$0xf]
        %v1000 = vld [vmem:[%s840 + $0x30] sm:$0xf]
        %v1001 = vld [vmem:[%s840 + $0x40] sm:$0xf]
        %v1002 = vld [vmem:[%s840 + $0x50] sm:$0xf]
        %v1003 = vld [vmem:[%s840 + $0x60] sm:$0xf]
        %v1004 = vld [vmem:[%s840 + $0x70] sm:$0xf]
        %v1005 = vld [vmem:[%s840 + $0x80] sm:$0xf]
        %v1006 = vld [vmem:[%s840 + $0x90] sm:$0xf]
        %v1007 = vld [vmem:[%s840 + $0xa0] sm:$0xf]
        %v1008 = vld [vmem:[%s840 + $0xb0] sm:$0xf]
        %v1009 = vld [vmem:[%s840 + $0xc0] sm:$0xf]
        %v1010 = vld [vmem:[%s840 + $0xd0] sm:$0xf]
        %v1011 = vld [vmem:[%s840 + $0xe0] sm:$0xf]
        %v1012 = vld [vmem:[%s840 + $0xf0] sm:$0xf]
        %v1013 = vld [vmem:[%s840 + $0x100] sm:$0xf]
        %v1014 = vld [vmem:[%s840 + $0x110] sm:$0xf]
        %v1015 = vld [vmem:[%s840 + $0x120] sm:$0xf]
        %v1016 = vld [vmem:[%s840 + $0x130] sm:$0xf]
        %v1017 = vld [vmem:[%s840 + $0x140] sm:$0xf]
        %v1018 = vld [vmem:[%s840 + $0x150] sm:$0xf]
        %v1019 = vld [vmem:[%s840 + $0x160] sm:$0xf]
        %v1020 = vld [vmem:[%s840 + $0x170] sm:$0xf]
        %v1021 = vld [vmem:[%s840 + $0x180] sm:$0xf]
        %v1022 = vunpack.c.l.bf16 %v997
        %v1023 = vunpack.c.l.bf16 %v998
        %v1024 = vunpack.c.l.bf16 %v999
        %v1025 = vunpack.c.l.bf16 %v1000
        %v1026 = vunpack.c.l.bf16 %v1001
        %v1027 = vunpack.c.l.bf16 %v1002
        %v1028 = vunpack.c.l.bf16 %v1003
        %v1029 = vunpack.c.l.bf16 %v1004
        %v1030 = vunpack.c.l.bf16 %v1005
        %v1031 = vunpack.c.l.bf16 %v1006
        %v1032 = vunpack.c.l.bf16 %v1007
        %v1033 = vunpack.c.l.bf16 %v1008
        %v1034 = vunpack.c.l.bf16 %v1009
        %v1035 = vunpack.c.l.bf16 %v1010
        %v1036 = vunpack.c.l.bf16 %v1011
        %v1037 = vunpack.c.l.bf16 %v1012
        %v1038 = vunpack.c.l.bf16 %v1013
        %v1039 = vunpack.c.l.bf16 %v1014
        %v1040 = vunpack.c.l.bf16 %v1015
        %v1041 = vunpack.c.l.bf16 %v1016
        %v1042 = vunpack.c.l.bf16 %v1017
        %v1043 = vunpack.c.l.bf16 %v1018
        %v1044 = vunpack.c.l.bf16 %v1019
        %v1045 = vunpack.c.l.bf16 %v1020
        %v1046 = vunpack.c.l.bf16 %v1021
        %v1047 = vadd.f32 %v1022, %v972
        %v1048 = vadd.f32 %v1023, %v973
        %v1049 = vadd.f32 %v1024, %v974
        %v1050 = vadd.f32 %v1025, %v975
        %v1051 = vadd.f32 %v1026, %v976
        %v1052 = vadd.f32 %v1027, %v977
        %v1053 = vadd.f32 %v1028, %v978
        %v1054 = vadd.f32 %v1029, %v979
        %v1055 = vadd.f32 %v1030, %v980
        %v1056 = vadd.f32 %v1031, %v981
        %v1057 = vadd.f32 %v1032, %v982
        %v1058 = vadd.f32 %v1033, %v983
        %v1059 = vadd.f32 %v1034, %v984
        %v1060 = vadd.f32 %v1035, %v985
        %v1061 = vadd.f32 %v1036, %v986
        %v1062 = vadd.f32 %v1037, %v987
        %v1063 = vadd.f32 %v1038, %v988
        %v1064 = vadd.f32 %v1039, %v989
        %v1065 = vadd.f32 %v1040, %v990
        %v1066 = vadd.f32 %v1041, %v991
        %v1067 = vadd.f32 %v1042, %v992
        %v1068 = vadd.f32 %v1043, %v993
        %v1069 = vadd.f32 %v1044, %v994
        %v1070 = vadd.f32 %v1045, %v995
        %v1071 = vadd.f32 %v1046, %v996
        %vm1072 = vcmask 64512
        %v1073 = vsel %vm1072, %v1047, -inf
        %v1074 = vsel %vm1072, %v1048, -inf
        %v1075 = vsel %vm1072, %v1049, -inf
        %v1076 = vsel %vm1072, %v1050, -inf
        %v1077 = vsel %vm1072, %v1051, -inf
        %v1078 = vmax.f32 %v1073, %v1077
        %v1079 = vsel %vm1072, %v1052, -inf
        %v1080 = vmax.f32 %v1074, %v1079
        %v1081 = vsel %vm1072, %v1053, -inf
        %v1082 = vmax.f32 %v1075, %v1081
        %v1083 = vsel %vm1072, %v1054, -inf
        %v1084 = vmax.f32 %v1076, %v1083
        %v1085 = vsel %vm1072, %v1055, -inf
        %v1086 = vmax.f32 %v1078, %v1085
        %v1087 = vsel %vm1072, %v1056, -inf
        %v1088 = vmax.f32 %v1080, %v1087
        %v1089 = vsel %vm1072, %v1057, -inf
        %v1090 = vmax.f32 %v1082, %v1089
        %v1091 = vsel %vm1072, %v1058, -inf
        %v1092 = vmax.f32 %v1084, %v1091
        %v1093 = vsel %vm1072, %v1059, -inf
        %v1094 = vmax.f32 %v1086, %v1093
        %v1095 = vsel %vm1072, %v1060, -inf
        %v1096 = vmax.f32 %v1088, %v1095
        %v1097 = vsel %vm1072, %v1061, -inf
        %v1098 = vmax.f32 %v1090, %v1097
        %v1099 = vsel %vm1072, %v1062, -inf
        %v1100 = vmax.f32 %v1092, %v1099
        %v1101 = vsel %vm1072, %v1063, -inf
        %v1102 = vmax.f32 %v1094, %v1101
        %v1103 = vsel %vm1072, %v1064, -inf
        %v1104 = vmax.f32 %v1096, %v1103
        %v1105 = vsel %vm1072, %v1065, -inf
        %v1106 = vmax.f32 %v1098, %v1105
        %v1107 = vsel %vm1072, %v1066, -inf
        %v1108 = vmax.f32 %v1100, %v1107
        %v1109 = vsel %vm1072, %v1067, -inf
        %v1110 = vmax.f32 %v1102, %v1109
        %v1111 = vsel %vm1072, %v1068, -inf
        %v1112 = vmax.f32 %v1104, %v1111
        %v1113 = vsel %vm1072, %v1069, -inf
        %v1114 = vmax.f32 %v1106, %v1113
        %v1115 = vsel %vm1072, %v1070, -inf
        %v1116 = vmax.f32 %v1108, %v1115
        %v1117 = vsel %vm1072, %v1071, -inf
        %v1118 = vmax.f32 %v1110, %v1117
        %v1119 = vmax.f32 %v1118, %v1112
        %v1120 = vmax.f32 %v1114, %v1116
        %v1121 = vmax.f32 %v1119, %v1120
        %v1122 = vsub.f32 %v1047, %v1121
        %v1123 = vsub.f32 %v1048, %v1121
        %v1124 = vsub.f32 %v1049, %v1121
        %v1125 = vsub.f32 %v1050, %v1121
        %v1126 = vsub.f32 %v1051, %v1121
        %v1127 = vsub.f32 %v1052, %v1121
        %v1128 = vsub.f32 %v1053, %v1121
        %v1129 = vsub.f32 %v1054, %v1121
        %v1130 = vsub.f32 %v1055, %v1121
        %v1131 = vsub.f32 %v1056, %v1121
        %v1132 = vsub.f32 %v1057, %v1121
        %v1133 = vsub.f32 %v1058, %v1121
        %v1134 = vsub.f32 %v1059, %v1121
        %v1135 = vsub.f32 %v1060, %v1121
        %v1136 = vsub.f32 %v1061, %v1121
        %v1137 = vsub.f32 %v1062, %v1121
        %v1138 = vsub.f32 %v1063, %v1121
        %v1139 = vsub.f32 %v1064, %v1121
        %v1140 = vsub.f32 %v1065, %v1121
        %v1141 = vsub.f32 %v1066, %v1121
        %v1142 = vsub.f32 %v1067, %v1121
        %v1143 = vsub.f32 %v1068, %v1121
        %v1144 = vsub.f32 %v1069, %v1121
        %v1145 = vsub.f32 %v1070, %v1121
        %v1146 = vsub.f32 %v1071, %v1121
        %v1147 = vmul.f32 %v1122, 1.442695
        %v1148 = vpow.pop %v1147
        %v1149 = vmul.f32 %v1123, 1.442695
        %v1150 = vpow.pop %v1149
        %v1151 = vmul.f32 %v1124, 1.442695
        %v1152 = vpow.pop %v1151
        %v1153 = vmul.f32 %v1125, 1.442695
        %v1154 = vpow.pop %v1153
        %v1155 = vmul.f32 %v1126, 1.442695
        %v1156 = vpow.pop %v1155
        %v1157 = vmul.f32 %v1127, 1.442695
        %v1158 = vpow.pop %v1157
        %v1159 = vmul.f32 %v1128, 1.442695
        %v1160 = vpow.pop %v1159
        %v1161 = vmul.f32 %v1129, 1.442695
        %v1162 = vpow.pop %v1161
        %v1163 = vmul.f32 %v1130, 1.442695
        %v1164 = vpow.pop %v1163
        %v1165 = vmul.f32 %v1131, 1.442695
        %v1166 = vpow.pop %v1165
        %v1167 = vmul.f32 %v1132, 1.442695
        %v1168 = vpow.pop %v1167
        %v1169 = vmul.f32 %v1133, 1.442695
        %v1170 = vpow.pop %v1169
        %v1171 = vmul.f32 %v1134, 1.442695
        %v1172 = vpow.pop %v1171
        %v1173 = vmul.f32 %v1135, 1.442695
        %v1174 = vpow.pop %v1173
        %v1175 = vmul.f32 %v1136, 1.442695
        %v1176 = vpow.pop %v1175
        %v1177 = vmul.f32 %v1137, 1.442695
        %v1178 = vpow.pop %v1177
        %v1179 = vmul.f32 %v1138, 1.442695
        %v1180 = vpow.pop %v1179
        %v1181 = vmul.f32 %v1139, 1.442695
        %v1182 = vpow.pop %v1181
        %v1183 = vmul.f32 %v1140, 1.442695
        %v1184 = vpow.pop %v1183
        %v1185 = vmul.f32 %v1141, 1.442695
        %v1186 = vpow.pop %v1185
        %v1187 = vmul.f32 %v1142, 1.442695
        %v1188 = vpow.pop %v1187
        %v1189 = vmul.f32 %v1143, 1.442695
        %v1190 = vpow.pop %v1189
        %v1191 = vmul.f32 %v1144, 1.442695
        %v1192 = vpow.pop %v1191
        %v1193 = vmul.f32 %v1145, 1.442695
        %v1194 = vpow.pop %v1193
        %v1195 = vmul.f32 %v1146, 1.442695
        %v1196 = vpow.pop %v1195
        %v1197 = vsel %vm1072, %v1148, 0.0
        %v1198 = vsel %vm1072, %v1150, 0.0
        %v1199 = vadd.f32 %v1197, %v1198
        %v1200 = vsel %vm1072, %v1152, 0.0
        %v1201 = vadd.f32 %v1199, %v1200
        %v1202 = vsel %vm1072, %v1154, 0.0
        %v1203 = vadd.f32 %v1201, %v1202
        %v1204 = vsel %vm1072, %v1156, 0.0
        %v1205 = vadd.f32 %v1203, %v1204
        %v1206 = vsel %vm1072, %v1158, 0.0
        %v1207 = vadd.f32 %v1205, %v1206
        %v1208 = vsel %vm1072, %v1160, 0.0
        %v1209 = vadd.f32 %v1207, %v1208
        %v1210 = vsel %vm1072, %v1162, 0.0
        %v1211 = vadd.f32 %v1209, %v1210
        %v1212 = vsel %vm1072, %v1164, 0.0
        %v1213 = vadd.f32 %v1211, %v1212
        %v1214 = vsel %vm1072, %v1166, 0.0
        %v1215 = vadd.f32 %v1213, %v1214
        %v1216 = vsel %vm1072, %v1168, 0.0
        %v1217 = vadd.f32 %v1215, %v1216
        %v1218 = vsel %vm1072, %v1170, 0.0
        %v1219 = vadd.f32 %v1217, %v1218
        %v1220 = vsel %vm1072, %v1172, 0.0
        %v1221 = vadd.f32 %v1219, %v1220
        %v1222 = vsel %vm1072, %v1174, 0.0
        %v1223 = vadd.f32 %v1221, %v1222
        %v1224 = vsel %vm1072, %v1176, 0.0
        %v1225 = vadd.f32 %v1223, %v1224
        %v1226 = vsel %vm1072, %v1178, 0.0
        %v1227 = vadd.f32 %v1225, %v1226
        %v1228 = vsel %vm1072, %v1180, 0.0
        %v1229 = vadd.f32 %v1227, %v1228
        %v1230 = vsel %vm1072, %v1182, 0.0
        %v1231 = vadd.f32 %v1229, %v1230
        %v1232 = vsel %vm1072, %v1184, 0.0
        %v1233 = vadd.f32 %v1231, %v1232
        %v1234 = vsel %vm1072, %v1186, 0.0
        %v1235 = vadd.f32 %v1233, %v1234
        %v1236 = vsel %vm1072, %v1188, 0.0
        %v1237 = vadd.f32 %v1235, %v1236
        %v1238 = vsel %vm1072, %v1190, 0.0
        %v1239 = vadd.f32 %v1237, %v1238
        %v1240 = vsel %vm1072, %v1192, 0.0
        %v1241 = vadd.f32 %v1239, %v1240
        %v1242 = vsel %vm1072, %v1194, 0.0
        %v1243 = vadd.f32 %v1241, %v1242
        %v1244 = vsel %vm1072, %v1196, 0.0
        %v1245 = vadd.f32 %v1243, %v1244
        %v1246 = vrcp.pop %v1245
        %v1247 = vmul.f32 %v1148, %v1246
        %v1248 = vmul.f32 %v1150, %v1246
        %v1249 = vmul.f32 %v1152, %v1246
        %v1250 = vmul.f32 %v1154, %v1246
        %v1251 = vmul.f32 %v1156, %v1246
        %v1252 = vmul.f32 %v1158, %v1246
        %v1253 = vmul.f32 %v1160, %v1246
        %v1254 = vmul.f32 %v1162, %v1246
        %v1255 = vmul.f32 %v1164, %v1246
        %v1256 = vmul.f32 %v1166, %v1246
        %v1257 = vmul.f32 %v1168, %v1246
        %v1258 = vmul.f32 %v1170, %v1246
        %v1259 = vmul.f32 %v1172, %v1246
        %v1260 = vmul.f32 %v1174, %v1246
        %v1261 = vmul.f32 %v1176, %v1246
        %v1262 = vmul.f32 %v1178, %v1246
        %v1263 = vmul.f32 %v1180, %v1246
        %v1264 = vmul.f32 %v1182, %v1246
        %v1265 = vmul.f32 %v1184, %v1246
        %v1266 = vmul.f32 %v1186, %v1246
        %v1267 = vmul.f32 %v1188, %v1246
        %v1268 = vmul.f32 %v1190, %v1246
        %v1269 = vmul.f32 %v1192, %v1246
        %v1270 = vmul.f32 %v1194, %v1246
        %v1271 = vmul.f32 %v1196, %v1246
        %v1272 = vld [vmem:[%s912] sm:$0xf]
        %v1273 = vld [vmem:[%s912 + $0x8] sm:$0xf]
        %v1274 = vld [vmem:[%s912 + $0x10] sm:$0xf]
        %v1275 = vld [vmem:[%s912 + $0x18] sm:$0xf]
        %v1276 = vunpack.c.l.bf16 %v1272
        %v1277 = vunpack.c.l.bf16 %v1273
        %v1278 = vunpack.c.l.bf16 %v1274
        %v1279 = vunpack.c.l.bf16 %v1275
        %v1280 = vmul.f32 %v1276, %v1247
        %v1281 = vmul.f32 %v1277, %v1247
        %v1282 = vmul.f32 %v1278, %v1247
        %v1283 = vmul.f32 %v1279, %v1247
        %v1284 = vadd.f32 %v1280, 0.0
        %v1285 = vadd.f32 %v1281, 0.0
        %v1286 = vadd.f32 %v1282, 0.0
        %v1287 = vadd.f32 %v1283, 0.0
        %1289 = vrot.lane.b32.xlu0 %v1248, 1
        %v1290 = vpop.permute.xlu0 %1289
        %v1292 = vmul.f32 %v1276, %v1290
        %v1293 = vmul.f32 %v1277, %v1290
        %v1294 = vmul.f32 %v1278, %v1290
        %v1295 = vmul.f32 %v1279, %v1290
        %1300 = vrot.lane.b32.xlu0 %v1292, 127
        %v1301 = vpop.permute.xlu0 %1300
        %1302 = vrot.lane.b32.xlu0 %v1293, 127
        %v1303 = vpop.permute.xlu0 %1302
        %1304 = vrot.lane.b32.xlu0 %v1294, 127
        %v1305 = vpop.permute.xlu0 %1304
        %1306 = vrot.lane.b32.xlu0 %v1295, 127
        %v1307 = vpop.permute.xlu0 %1306
        %v1312 = vadd.f32 %v1284, %v1301
        %v1313 = vadd.f32 %v1285, %v1303
        %v1314 = vadd.f32 %v1286, %v1305
        %v1315 = vadd.f32 %v1287, %v1307
        %1317 = vrot.lane.b32.xlu0 %v1249, 2
        %v1318 = vpop.permute.xlu0 %1317
        %v1320 = vmul.f32 %v1276, %v1318
        %v1321 = vmul.f32 %v1277, %v1318
        %v1322 = vmul.f32 %v1278, %v1318
        %v1323 = vmul.f32 %v1279, %v1318
        %1328 = vrot.lane.b32.xlu0 %v1320, 126
        %v1329 = vpop.permute.xlu0 %1328
        %1330 = vrot.lane.b32.xlu0 %v1321, 126
        %v1331 = vpop.permute.xlu0 %1330
        %1332 = vrot.lane.b32.xlu0 %v1322, 126
        %v1333 = vpop.permute.xlu0 %1332
        %1334 = vrot.lane.b32.xlu0 %v1323, 126
        %v1335 = vpop.permute.xlu0 %1334
        %v1340 = vadd.f32 %v1312, %v1329
        %v1341 = vadd.f32 %v1313, %v1331
        %v1342 = vadd.f32 %v1314, %v1333
        %v1343 = vadd.f32 %v1315, %v1335
        %1345 = vrot.lane.b32.xlu0 %v1250, 3
        %v1346 = vpop.permute.xlu0 %1345
        %v1348 = vmul.f32 %v1276, %v1346
        %v1349 = vmul.f32 %v1277, %v1346
        %v1350 = vmul.f32 %v1278, %v1346
        %v1351 = vmul.f32 %v1279, %v1346
        %1356 = vrot.lane.b32.xlu0 %v1348, 125
        %v1357 = vpop.permute.xlu0 %1356
        %1358 = vrot.lane.b32.xlu0 %v1349, 125
        %v1359 = vpop.permute.xlu0 %1358
        %1360 = vrot.lane.b32.xlu0 %v1350, 125
        %v1361 = vpop.permute.xlu0 %1360
        %1362 = vrot.lane.b32.xlu0 %v1351, 125
        %v1363 = vpop.permute.xlu0 %1362
        %v1368 = vadd.f32 %v1340, %v1357
        %v1369 = vadd.f32 %v1341, %v1359
        %v1370 = vadd.f32 %v1342, %v1361
        %v1371 = vadd.f32 %v1343, %v1363
        %1373 = vrot.lane.b32.xlu0 %v1251, 4
        %v1374 = vpop.permute.xlu0 %1373
        %v1376 = vmul.f32 %v1276, %v1374
        %v1377 = vmul.f32 %v1277, %v1374
        %v1378 = vmul.f32 %v1278, %v1374
        %v1379 = vmul.f32 %v1279, %v1374
        %1384 = vrot.lane.b32.xlu0 %v1376, 124
        %v1385 = vpop.permute.xlu0 %1384
        %1386 = vrot.lane.b32.xlu0 %v1377, 124
        %v1387 = vpop.permute.xlu0 %1386
        %1388 = vrot.lane.b32.xlu0 %v1378, 124
        %v1389 = vpop.permute.xlu0 %1388
        %1390 = vrot.lane.b32.xlu0 %v1379, 124
        %v1391 = vpop.permute.xlu0 %1390
        %v1396 = vadd.f32 %v1368, %v1385
        %v1397 = vadd.f32 %v1369, %v1387
        %v1398 = vadd.f32 %v1370, %v1389
        %v1399 = vadd.f32 %v1371, %v1391
        %v1400 = vld [vmem:[%s912 + $0x4] sm:$0x1]
        %v1401 = vld [vmem:[%s912 + $0xc] sm:$0x1]
        %v1402 = vld [vmem:[%s912 + $0x14] sm:$0x1]
        %v1403 = vld [vmem:[%s912 + $0x1c] sm:$0x1]
        %v1404 = vunpack.c.l.bf16 %v1400
        %v1405 = vunpack.c.l.bf16 %v1401
        %v1406 = vunpack.c.l.bf16 %v1402
        %v1407 = vunpack.c.l.bf16 %v1403
        %v1409 = vrot.slane %v1252, 7
        %v1411 = vmul.f32 %v1276, %v1409
        %v1412 = vmul.f32 %v1404, %v1409
        %v1413 = vmul.f32 %v1277, %v1409
        %v1414 = vmul.f32 %v1405, %v1409
        %v1415 = vmul.f32 %v1278, %v1409
        %v1416 = vmul.f32 %v1406, %v1409
        %v1417 = vmul.f32 %v1279, %v1409
        %v1418 = vmul.f32 %v1407, %v1409
        %vm1427 = vcmask 1046528
        %v1428 = vrot.slane %v1411, 1
        %v1429 = vrot.slane %v1412, 1
        %v1430 = vsel %vm1427, %v1428, %v1429
        %v1431 = vrot.slane %v1413, 1
        %v1432 = vrot.slane %v1414, 1
        %v1433 = vsel %vm1427, %v1431, %v1432
        %v1434 = vrot.slane %v1415, 1
        %v1435 = vrot.slane %v1416, 1
        %v1436 = vsel %vm1427, %v1434, %v1435
        %v1437 = vrot.slane %v1417, 1
        %v1438 = vrot.slane %v1418, 1
        %v1439 = vsel %vm1427, %v1437, %v1438
        %v1444 = vadd.f32 %v1396, %v1430
        %v1445 = vadd.f32 %v1397, %v1433
        %v1446 = vadd.f32 %v1398, %v1436
        %v1447 = vadd.f32 %v1399, %v1439
        %v1449 = vrot.slane %v1253, 7
        %1450 = vrot.lane.b32.xlu0 %v1449, 1
        %v1451 = vpop.permute.xlu0 %1450
        %v1453 = vmul.f32 %v1276, %v1451
        %v1454 = vmul.f32 %v1404, %v1451
        %v1455 = vmul.f32 %v1277, %v1451
        %v1456 = vmul.f32 %v1405, %v1451
        %v1457 = vmul.f32 %v1278, %v1451
        %v1458 = vmul.f32 %v1406, %v1451
        %v1459 = vmul.f32 %v1279, %v1451
        %v1460 = vmul.f32 %v1407, %v1451
        %v1469 = vrot.slane %v1453, 1
        %v1470 = vrot.slane %v1454, 1
        %v1471 = vsel %vm1427, %v1469, %v1470
        %v1472 = vrot.slane %v1455, 1
        %v1473 = vrot.slane %v1456, 1
        %v1474 = vsel %vm1427, %v1472, %v1473
        %v1475 = vrot.slane %v1457, 1
        %v1476 = vrot.slane %v1458, 1
        %v1477 = vsel %vm1427, %v1475, %v1476
        %v1478 = vrot.slane %v1459, 1
        %v1479 = vrot.slane %v1460, 1
        %v1480 = vsel %vm1427, %v1478, %v1479
        %1481 = vrot.lane.b32.xlu0 %v1471, 127
        %v1482 = vpop.permute.xlu0 %1481
        %1483 = vrot.lane.b32.xlu0 %v1474, 127
        %v1484 = vpop.permute.xlu0 %1483
        %1485 = vrot.lane.b32.xlu0 %v1477, 127
        %v1486 = vpop.permute.xlu0 %1485
        %1487 = vrot.lane.b32.xlu0 %v1480, 127
        %v1488 = vpop.permute.xlu0 %1487
        %v1493 = vadd.f32 %v1444, %v1482
        %v1494 = vadd.f32 %v1445, %v1484
        %v1495 = vadd.f32 %v1446, %v1486
        %v1496 = vadd.f32 %v1447, %v1488
        %v1498 = vrot.slane %v1254, 7
        %1499 = vrot.lane.b32.xlu0 %v1498, 2
        %v1500 = vpop.permute.xlu0 %1499
        %v1502 = vmul.f32 %v1276, %v1500
        %v1503 = vmul.f32 %v1404, %v1500
        %v1504 = vmul.f32 %v1277, %v1500
        %v1505 = vmul.f32 %v1405, %v1500
        %v1506 = vmul.f32 %v1278, %v1500
        %v1507 = vmul.f32 %v1406, %v1500
        %v1508 = vmul.f32 %v1279, %v1500
        %v1509 = vmul.f32 %v1407, %v1500
        %v1518 = vrot.slane %v1502, 1
        %v1519 = vrot.slane %v1503, 1
        %v1520 = vsel %vm1427, %v1518, %v1519
        %v1521 = vrot.slane %v1504, 1
        %v1522 = vrot.slane %v1505, 1
        %v1523 = vsel %vm1427, %v1521, %v1522
        %v1524 = vrot.slane %v1506, 1
        %v1525 = vrot.slane %v1507, 1
        %v1526 = vsel %vm1427, %v1524, %v1525
        %v1527 = vrot.slane %v1508, 1
        %v1528 = vrot.slane %v1509, 1
        %v1529 = vsel %vm1427, %v1527, %v1528
        %1530 = vrot.lane.b32.xlu0 %v1520, 126
        %v1531 = vpop.permute.xlu0 %1530
        %1532 = vrot.lane.b32.xlu0 %v1523, 126
        %v1533 = vpop.permute.xlu0 %1532
        %1534 = vrot.lane.b32.xlu0 %v1526, 126
        %v1535 = vpop.permute.xlu0 %1534
        %1536 = vrot.lane.b32.xlu0 %v1529, 126
        %v1537 = vpop.permute.xlu0 %1536
        %v1542 = vadd.f32 %v1493, %v1531
        %v1543 = vadd.f32 %v1494, %v1533
        %v1544 = vadd.f32 %v1495, %v1535
        %v1545 = vadd.f32 %v1496, %v1537
        %v1547 = vrot.slane %v1255, 7
        %1548 = vrot.lane.b32.xlu0 %v1547, 3
        %v1549 = vpop.permute.xlu0 %1548
        %v1551 = vmul.f32 %v1276, %v1549
        %v1552 = vmul.f32 %v1404, %v1549
        %v1553 = vmul.f32 %v1277, %v1549
        %v1554 = vmul.f32 %v1405, %v1549
        %v1555 = vmul.f32 %v1278, %v1549
        %v1556 = vmul.f32 %v1406, %v1549
        %v1557 = vmul.f32 %v1279, %v1549
        %v1558 = vmul.f32 %v1407, %v1549
        %v1567 = vrot.slane %v1551, 1
        %v1568 = vrot.slane %v1552, 1
        %v1569 = vsel %vm1427, %v1567, %v1568
        %v1570 = vrot.slane %v1553, 1
        %v1571 = vrot.slane %v1554, 1
        %v1572 = vsel %vm1427, %v1570, %v1571
        %v1573 = vrot.slane %v1555, 1
        %v1574 = vrot.slane %v1556, 1
        %v1575 = vsel %vm1427, %v1573, %v1574
        %v1576 = vrot.slane %v1557, 1
        %v1577 = vrot.slane %v1558, 1
        %v1578 = vsel %vm1427, %v1576, %v1577
        %1579 = vrot.lane.b32.xlu0 %v1569, 125
        %v1580 = vpop.permute.xlu0 %1579
        %1581 = vrot.lane.b32.xlu0 %v1572, 125
        %v1582 = vpop.permute.xlu0 %1581
        %1583 = vrot.lane.b32.xlu0 %v1575, 125
        %v1584 = vpop.permute.xlu0 %1583
        %1585 = vrot.lane.b32.xlu0 %v1578, 125
        %v1586 = vpop.permute.xlu0 %1585
        %v1591 = vadd.f32 %v1542, %v1580
        %v1592 = vadd.f32 %v1543, %v1582
        %v1593 = vadd.f32 %v1544, %v1584
        %v1594 = vadd.f32 %v1545, %v1586
        %v1596 = vrot.slane %v1256, 7
        %1597 = vrot.lane.b32.xlu0 %v1596, 4
        %v1598 = vpop.permute.xlu0 %1597
        %v1600 = vmul.f32 %v1276, %v1598
        %v1601 = vmul.f32 %v1404, %v1598
        %v1602 = vmul.f32 %v1277, %v1598
        %v1603 = vmul.f32 %v1405, %v1598
        %v1604 = vmul.f32 %v1278, %v1598
        %v1605 = vmul.f32 %v1406, %v1598
        %v1606 = vmul.f32 %v1279, %v1598
        %v1607 = vmul.f32 %v1407, %v1598
        %v1616 = vrot.slane %v1600, 1
        %v1617 = vrot.slane %v1601, 1
        %v1618 = vsel %vm1427, %v1616, %v1617
        %v1619 = vrot.slane %v1602, 1
        %v1620 = vrot.slane %v1603, 1
        %v1621 = vsel %vm1427, %v1619, %v1620
        %v1622 = vrot.slane %v1604, 1
        %v1623 = vrot.slane %v1605, 1
        %v1624 = vsel %vm1427, %v1622, %v1623
        %v1625 = vrot.slane %v1606, 1
        %v1626 = vrot.slane %v1607, 1
        %v1627 = vsel %vm1427, %v1625, %v1626
        %1628 = vrot.lane.b32.xlu0 %v1618, 124
        %v1629 = vpop.permute.xlu0 %1628
        %1630 = vrot.lane.b32.xlu0 %v1621, 124
        %v1631 = vpop.permute.xlu0 %1630
        %1632 = vrot.lane.b32.xlu0 %v1624, 124
        %v1633 = vpop.permute.xlu0 %1632
        %1634 = vrot.lane.b32.xlu0 %v1627, 124
        %v1635 = vpop.permute.xlu0 %1634
        %v1640 = vadd.f32 %v1591, %v1629
        %v1641 = vadd.f32 %v1592, %v1631
        %v1642 = vadd.f32 %v1593, %v1633
        %v1643 = vadd.f32 %v1594, %v1635
        %v1644 = vld [vmem:[%s912] sm:$0xe]
        %v1645 = vld [vmem:[%s912 + $0x8] sm:$0xe]
        %v1646 = vld [vmem:[%s912 + $0x10] sm:$0xe]
        %v1647 = vld [vmem:[%s912 + $0x18] sm:$0xe]
        %v1648 = vunpack.c.l.bf16 %v1644
        %v1649 = vunpack.c.l.bf16 %v1645
        %v1650 = vunpack.c.l.bf16 %v1646
        %v1651 = vunpack.c.l.bf16 %v1647
        %v1653 = vrot.slane %v1257, 6
        %v1655 = vmul.f32 %v1648, %v1653
        %v1656 = vmul.f32 %v1404, %v1653
        %v1657 = vmul.f32 %v1649, %v1653
        %v1658 = vmul.f32 %v1405, %v1653
        %v1659 = vmul.f32 %v1650, %v1653
        %v1660 = vmul.f32 %v1406, %v1653
        %v1661 = vmul.f32 %v1651, %v1653
        %v1662 = vmul.f32 %v1407, %v1653
        %vm1671 = vcmask 1045504
        %v1672 = vrot.slane %v1655, 2
        %v1673 = vrot.slane %v1656, 2
        %v1674 = vsel %vm1671, %v1672, %v1673
        %v1675 = vrot.slane %v1657, 2
        %v1676 = vrot.slane %v1658, 2
        %v1677 = vsel %vm1671, %v1675, %v1676
        %v1678 = vrot.slane %v1659, 2
        %v1679 = vrot.slane %v1660, 2
        %v1680 = vsel %vm1671, %v1678, %v1679
        %v1681 = vrot.slane %v1661, 2
        %v1682 = vrot.slane %v1662, 2
        %v1683 = vsel %vm1671, %v1681, %v1682
        %v1688 = vadd.f32 %v1640, %v1674
        %v1689 = vadd.f32 %v1641, %v1677
        %v1690 = vadd.f32 %v1642, %v1680
        %v1691 = vadd.f32 %v1643, %v1683
        %v1693 = vrot.slane %v1258, 6
        %1694 = vrot.lane.b32.xlu0 %v1693, 1
        %v1695 = vpop.permute.xlu0 %1694
        %v1697 = vmul.f32 %v1648, %v1695
        %v1698 = vmul.f32 %v1404, %v1695
        %v1699 = vmul.f32 %v1649, %v1695
        %v1700 = vmul.f32 %v1405, %v1695
        %v1701 = vmul.f32 %v1650, %v1695
        %v1702 = vmul.f32 %v1406, %v1695
        %v1703 = vmul.f32 %v1651, %v1695
        %v1704 = vmul.f32 %v1407, %v1695
        %v1713 = vrot.slane %v1697, 2
        %v1714 = vrot.slane %v1698, 2
        %v1715 = vsel %vm1671, %v1713, %v1714
        %v1716 = vrot.slane %v1699, 2
        %v1717 = vrot.slane %v1700, 2
        %v1718 = vsel %vm1671, %v1716, %v1717
        %v1719 = vrot.slane %v1701, 2
        %v1720 = vrot.slane %v1702, 2
        %v1721 = vsel %vm1671, %v1719, %v1720
        %v1722 = vrot.slane %v1703, 2
        %v1723 = vrot.slane %v1704, 2
        %v1724 = vsel %vm1671, %v1722, %v1723
        %1725 = vrot.lane.b32.xlu0 %v1715, 127
        %v1726 = vpop.permute.xlu0 %1725
        %1727 = vrot.lane.b32.xlu0 %v1718, 127
        %v1728 = vpop.permute.xlu0 %1727
        %1729 = vrot.lane.b32.xlu0 %v1721, 127
        %v1730 = vpop.permute.xlu0 %1729
        %1731 = vrot.lane.b32.xlu0 %v1724, 127
        %v1732 = vpop.permute.xlu0 %1731
        %v1737 = vadd.f32 %v1688, %v1726
        %v1738 = vadd.f32 %v1689, %v1728
        %v1739 = vadd.f32 %v1690, %v1730
        %v1740 = vadd.f32 %v1691, %v1732
        %v1742 = vrot.slane %v1259, 6
        %1743 = vrot.lane.b32.xlu0 %v1742, 2
        %v1744 = vpop.permute.xlu0 %1743
        %v1746 = vmul.f32 %v1648, %v1744
        %v1747 = vmul.f32 %v1404, %v1744
        %v1748 = vmul.f32 %v1649, %v1744
        %v1749 = vmul.f32 %v1405, %v1744
        %v1750 = vmul.f32 %v1650, %v1744
        %v1751 = vmul.f32 %v1406, %v1744
        %v1752 = vmul.f32 %v1651, %v1744
        %v1753 = vmul.f32 %v1407, %v1744
        %v1762 = vrot.slane %v1746, 2
        %v1763 = vrot.slane %v1747, 2
        %v1764 = vsel %vm1671, %v1762, %v1763
        %v1765 = vrot.slane %v1748, 2
        %v1766 = vrot.slane %v1749, 2
        %v1767 = vsel %vm1671, %v1765, %v1766
        %v1768 = vrot.slane %v1750, 2
        %v1769 = vrot.slane %v1751, 2
        %v1770 = vsel %vm1671, %v1768, %v1769
        %v1771 = vrot.slane %v1752, 2
        %v1772 = vrot.slane %v1753, 2
        %v1773 = vsel %vm1671, %v1771, %v1772
        %1774 = vrot.lane.b32.xlu0 %v1764, 126
        %v1775 = vpop.permute.xlu0 %1774
        %1776 = vrot.lane.b32.xlu0 %v1767, 126
        %v1777 = vpop.permute.xlu0 %1776
        %1778 = vrot.lane.b32.xlu0 %v1770, 126
        %v1779 = vpop.permute.xlu0 %1778
        %1780 = vrot.lane.b32.xlu0 %v1773, 126
        %v1781 = vpop.permute.xlu0 %1780
        %v1786 = vadd.f32 %v1737, %v1775
        %v1787 = vadd.f32 %v1738, %v1777
        %v1788 = vadd.f32 %v1739, %v1779
        %v1789 = vadd.f32 %v1740, %v1781
        %v1791 = vrot.slane %v1260, 6
        %1792 = vrot.lane.b32.xlu0 %v1791, 3
        %v1793 = vpop.permute.xlu0 %1792
        %v1795 = vmul.f32 %v1648, %v1793
        %v1796 = vmul.f32 %v1404, %v1793
        %v1797 = vmul.f32 %v1649, %v1793
        %v1798 = vmul.f32 %v1405, %v1793
        %v1799 = vmul.f32 %v1650, %v1793
        %v1800 = vmul.f32 %v1406, %v1793
        %v1801 = vmul.f32 %v1651, %v1793
        %v1802 = vmul.f32 %v1407, %v1793
        %v1811 = vrot.slane %v1795, 2
        %v1812 = vrot.slane %v1796, 2
        %v1813 = vsel %vm1671, %v1811, %v1812
        %v1814 = vrot.slane %v1797, 2
        %v1815 = vrot.slane %v1798, 2
        %v1816 = vsel %vm1671, %v1814, %v1815
        %v1817 = vrot.slane %v1799, 2
        %v1818 = vrot.slane %v1800, 2
        %v1819 = vsel %vm1671, %v1817, %v1818
        %v1820 = vrot.slane %v1801, 2
        %v1821 = vrot.slane %v1802, 2
        %v1822 = vsel %vm1671, %v1820, %v1821
        %1823 = vrot.lane.b32.xlu0 %v1813, 125
        %v1824 = vpop.permute.xlu0 %1823
        %1825 = vrot.lane.b32.xlu0 %v1816, 125
        %v1826 = vpop.permute.xlu0 %1825
        %1827 = vrot.lane.b32.xlu0 %v1819, 125
        %v1828 = vpop.permute.xlu0 %1827
        %1829 = vrot.lane.b32.xlu0 %v1822, 125
        %v1830 = vpop.permute.xlu0 %1829
        %v1835 = vadd.f32 %v1786, %v1824
        %v1836 = vadd.f32 %v1787, %v1826
        %v1837 = vadd.f32 %v1788, %v1828
        %v1838 = vadd.f32 %v1789, %v1830
        %v1840 = vrot.slane %v1261, 6
        %1841 = vrot.lane.b32.xlu0 %v1840, 4
        %v1842 = vpop.permute.xlu0 %1841
        %v1844 = vmul.f32 %v1648, %v1842
        %v1845 = vmul.f32 %v1404, %v1842
        %v1846 = vmul.f32 %v1649, %v1842
        %v1847 = vmul.f32 %v1405, %v1842
        %v1848 = vmul.f32 %v1650, %v1842
        %v1849 = vmul.f32 %v1406, %v1842
        %v1850 = vmul.f32 %v1651, %v1842
        %v1851 = vmul.f32 %v1407, %v1842
        %v1860 = vrot.slane %v1844, 2
        %v1861 = vrot.slane %v1845, 2
        %v1862 = vsel %vm1671, %v1860, %v1861
        %v1863 = vrot.slane %v1846, 2
        %v1864 = vrot.slane %v1847, 2
        %v1865 = vsel %vm1671, %v1863, %v1864
        %v1866 = vrot.slane %v1848, 2
        %v1867 = vrot.slane %v1849, 2
        %v1868 = vsel %vm1671, %v1866, %v1867
        %v1869 = vrot.slane %v1850, 2
        %v1870 = vrot.slane %v1851, 2
        %v1871 = vsel %vm1671, %v1869, %v1870
        %1872 = vrot.lane.b32.xlu0 %v1862, 124
        %v1873 = vpop.permute.xlu0 %1872
        %1874 = vrot.lane.b32.xlu0 %v1865, 124
        %v1875 = vpop.permute.xlu0 %1874
        %1876 = vrot.lane.b32.xlu0 %v1868, 124
        %v1877 = vpop.permute.xlu0 %1876
        %1878 = vrot.lane.b32.xlu0 %v1871, 124
        %v1879 = vpop.permute.xlu0 %1878
        %v1884 = vadd.f32 %v1835, %v1873
        %v1885 = vadd.f32 %v1836, %v1875
        %v1886 = vadd.f32 %v1837, %v1877
        %v1887 = vadd.f32 %v1838, %v1879
        %v1888 = vld [vmem:[%s912 + $0x4] sm:$0x3]
        %v1889 = vld [vmem:[%s912 + $0xc] sm:$0x3]
        %v1890 = vld [vmem:[%s912 + $0x14] sm:$0x3]
        %v1891 = vld [vmem:[%s912 + $0x1c] sm:$0x3]
        %v1892 = vunpack.c.l.bf16 %v1888
        %v1893 = vunpack.c.l.bf16 %v1889
        %v1894 = vunpack.c.l.bf16 %v1890
        %v1895 = vunpack.c.l.bf16 %v1891
        %v1897 = vrot.slane %v1262, 5
        %v1899 = vmul.f32 %v1648, %v1897
        %v1900 = vmul.f32 %v1892, %v1897
        %v1901 = vmul.f32 %v1649, %v1897
        %v1902 = vmul.f32 %v1893, %v1897
        %v1903 = vmul.f32 %v1650, %v1897
        %v1904 = vmul.f32 %v1894, %v1897
        %v1905 = vmul.f32 %v1651, %v1897
        %v1906 = vmul.f32 %v1895, %v1897
        %vm1915 = vcmask 1044480
        %v1916 = vrot.slane %v1899, 3
        %v1917 = vrot.slane %v1900, 3
        %v1918 = vsel %vm1915, %v1916, %v1917
        %v1919 = vrot.slane %v1901, 3
        %v1920 = vrot.slane %v1902, 3
        %v1921 = vsel %vm1915, %v1919, %v1920
        %v1922 = vrot.slane %v1903, 3
        %v1923 = vrot.slane %v1904, 3
        %v1924 = vsel %vm1915, %v1922, %v1923
        %v1925 = vrot.slane %v1905, 3
        %v1926 = vrot.slane %v1906, 3
        %v1927 = vsel %vm1915, %v1925, %v1926
        %v1932 = vadd.f32 %v1884, %v1918
        %v1933 = vadd.f32 %v1885, %v1921
        %v1934 = vadd.f32 %v1886, %v1924
        %v1935 = vadd.f32 %v1887, %v1927
        %v1937 = vrot.slane %v1263, 5
        %1938 = vrot.lane.b32.xlu0 %v1937, 1
        %v1939 = vpop.permute.xlu0 %1938
        %v1941 = vmul.f32 %v1648, %v1939
        %v1942 = vmul.f32 %v1892, %v1939
        %v1943 = vmul.f32 %v1649, %v1939
        %v1944 = vmul.f32 %v1893, %v1939
        %v1945 = vmul.f32 %v1650, %v1939
        %v1946 = vmul.f32 %v1894, %v1939
        %v1947 = vmul.f32 %v1651, %v1939
        %v1948 = vmul.f32 %v1895, %v1939
        %v1957 = vrot.slane %v1941, 3
        %v1958 = vrot.slane %v1942, 3
        %v1959 = vsel %vm1915, %v1957, %v1958
        %v1960 = vrot.slane %v1943, 3
        %v1961 = vrot.slane %v1944, 3
        %v1962 = vsel %vm1915, %v1960, %v1961
        %v1963 = vrot.slane %v1945, 3
        %v1964 = vrot.slane %v1946, 3
        %v1965 = vsel %vm1915, %v1963, %v1964
        %v1966 = vrot.slane %v1947, 3
        %v1967 = vrot.slane %v1948, 3
        %v1968 = vsel %vm1915, %v1966, %v1967
        %1969 = vrot.lane.b32.xlu0 %v1959, 127
        %v1970 = vpop.permute.xlu0 %1969
        %1971 = vrot.lane.b32.xlu0 %v1962, 127
        %v1972 = vpop.permute.xlu0 %1971
        %1973 = vrot.lane.b32.xlu0 %v1965, 127
        %v1974 = vpop.permute.xlu0 %1973
        %1975 = vrot.lane.b32.xlu0 %v1968, 127
        %v1976 = vpop.permute.xlu0 %1975
        %v1981 = vadd.f32 %v1932, %v1970
        %v1982 = vadd.f32 %v1933, %v1972
        %v1983 = vadd.f32 %v1934, %v1974
        %v1984 = vadd.f32 %v1935, %v1976
        %v1986 = vrot.slane %v1264, 5
        %1987 = vrot.lane.b32.xlu0 %v1986, 2
        %v1988 = vpop.permute.xlu0 %1987
        %v1990 = vmul.f32 %v1648, %v1988
        %v1991 = vmul.f32 %v1892, %v1988
        %v1992 = vmul.f32 %v1649, %v1988
        %v1993 = vmul.f32 %v1893, %v1988
        %v1994 = vmul.f32 %v1650, %v1988
        %v1995 = vmul.f32 %v1894, %v1988
        %v1996 = vmul.f32 %v1651, %v1988
        %v1997 = vmul.f32 %v1895, %v1988
        %v2006 = vrot.slane %v1990, 3
        %v2007 = vrot.slane %v1991, 3
        %v2008 = vsel %vm1915, %v2006, %v2007
        %v2009 = vrot.slane %v1992, 3
        %v2010 = vrot.slane %v1993, 3
        %v2011 = vsel %vm1915, %v2009, %v2010
        %v2012 = vrot.slane %v1994, 3
        %v2013 = vrot.slane %v1995, 3
        %v2014 = vsel %vm1915, %v2012, %v2013
        %v2015 = vrot.slane %v1996, 3
        %v2016 = vrot.slane %v1997, 3
        %v2017 = vsel %vm1915, %v2015, %v2016
        %2018 = vrot.lane.b32.xlu0 %v2008, 126
        %v2019 = vpop.permute.xlu0 %2018
        %2020 = vrot.lane.b32.xlu0 %v2011, 126
        %v2021 = vpop.permute.xlu0 %2020
        %2022 = vrot.lane.b32.xlu0 %v2014, 126
        %v2023 = vpop.permute.xlu0 %2022
        %2024 = vrot.lane.b32.xlu0 %v2017, 126
        %v2025 = vpop.permute.xlu0 %2024
        %v2030 = vadd.f32 %v1981, %v2019
        %v2031 = vadd.f32 %v1982, %v2021
        %v2032 = vadd.f32 %v1983, %v2023
        %v2033 = vadd.f32 %v1984, %v2025
        %v2035 = vrot.slane %v1265, 5
        %2036 = vrot.lane.b32.xlu0 %v2035, 3
        %v2037 = vpop.permute.xlu0 %2036
        %v2039 = vmul.f32 %v1648, %v2037
        %v2040 = vmul.f32 %v1892, %v2037
        %v2041 = vmul.f32 %v1649, %v2037
        %v2042 = vmul.f32 %v1893, %v2037
        %v2043 = vmul.f32 %v1650, %v2037
        %v2044 = vmul.f32 %v1894, %v2037
        %v2045 = vmul.f32 %v1651, %v2037
        %v2046 = vmul.f32 %v1895, %v2037
        %v2055 = vrot.slane %v2039, 3
        %v2056 = vrot.slane %v2040, 3
        %v2057 = vsel %vm1915, %v2055, %v2056
        %v2058 = vrot.slane %v2041, 3
        %v2059 = vrot.slane %v2042, 3
        %v2060 = vsel %vm1915, %v2058, %v2059
        %v2061 = vrot.slane %v2043, 3
        %v2062 = vrot.slane %v2044, 3
        %v2063 = vsel %vm1915, %v2061, %v2062
        %v2064 = vrot.slane %v2045, 3
        %v2065 = vrot.slane %v2046, 3
        %v2066 = vsel %vm1915, %v2064, %v2065
        %2067 = vrot.lane.b32.xlu0 %v2057, 125
        %v2068 = vpop.permute.xlu0 %2067
        %2069 = vrot.lane.b32.xlu0 %v2060, 125
        %v2070 = vpop.permute.xlu0 %2069
        %2071 = vrot.lane.b32.xlu0 %v2063, 125
        %v2072 = vpop.permute.xlu0 %2071
        %2073 = vrot.lane.b32.xlu0 %v2066, 125
        %v2074 = vpop.permute.xlu0 %2073
        %v2079 = vadd.f32 %v2030, %v2068
        %v2080 = vadd.f32 %v2031, %v2070
        %v2081 = vadd.f32 %v2032, %v2072
        %v2082 = vadd.f32 %v2033, %v2074
        %v2084 = vrot.slane %v1266, 5
        %2085 = vrot.lane.b32.xlu0 %v2084, 4
        %v2086 = vpop.permute.xlu0 %2085
        %v2088 = vmul.f32 %v1648, %v2086
        %v2089 = vmul.f32 %v1892, %v2086
        %v2090 = vmul.f32 %v1649, %v2086
        %v2091 = vmul.f32 %v1893, %v2086
        %v2092 = vmul.f32 %v1650, %v2086
        %v2093 = vmul.f32 %v1894, %v2086
        %v2094 = vmul.f32 %v1651, %v2086
        %v2095 = vmul.f32 %v1895, %v2086
        %v2104 = vrot.slane %v2088, 3
        %v2105 = vrot.slane %v2089, 3
        %v2106 = vsel %vm1915, %v2104, %v2105
        %v2107 = vrot.slane %v2090, 3
        %v2108 = vrot.slane %v2091, 3
        %v2109 = vsel %vm1915, %v2107, %v2108
        %v2110 = vrot.slane %v2092, 3
        %v2111 = vrot.slane %v2093, 3
        %v2112 = vsel %vm1915, %v2110, %v2111
        %v2113 = vrot.slane %v2094, 3
        %v2114 = vrot.slane %v2095, 3
        %v2115 = vsel %vm1915, %v2113, %v2114
        %2116 = vrot.lane.b32.xlu0 %v2106, 124
        %v2117 = vpop.permute.xlu0 %2116
        %2118 = vrot.lane.b32.xlu0 %v2109, 124
        %v2119 = vpop.permute.xlu0 %2118
        %2120 = vrot.lane.b32.xlu0 %v2112, 124
        %v2121 = vpop.permute.xlu0 %2120
        %2122 = vrot.lane.b32.xlu0 %v2115, 124
        %v2123 = vpop.permute.xlu0 %2122
        %v2128 = vadd.f32 %v2079, %v2117
        %v2129 = vadd.f32 %v2080, %v2119
        %v2130 = vadd.f32 %v2081, %v2121
        %v2131 = vadd.f32 %v2082, %v2123
        %v2132 = vld [vmem:[%s912] sm:$0xc]
        %v2133 = vld [vmem:[%s912 + $0x8] sm:$0xc]
        %v2134 = vld [vmem:[%s912 + $0x10] sm:$0xc]
        %v2135 = vld [vmem:[%s912 + $0x18] sm:$0xc]
        %v2136 = vunpack.c.l.bf16 %v2132
        %v2137 = vunpack.c.l.bf16 %v2133
        %v2138 = vunpack.c.l.bf16 %v2134
        %v2139 = vunpack.c.l.bf16 %v2135
        %v2141 = vrot.slane %v1267, 4
        %v2143 = vmul.f32 %v2136, %v2141
        %v2144 = vmul.f32 %v1892, %v2141
        %v2145 = vmul.f32 %v2137, %v2141
        %v2146 = vmul.f32 %v1893, %v2141
        %v2147 = vmul.f32 %v2138, %v2141
        %v2148 = vmul.f32 %v1894, %v2141
        %v2149 = vmul.f32 %v2139, %v2141
        %v2150 = vmul.f32 %v1895, %v2141
        %vm2159 = vcmask 1043456
        %v2160 = vrot.slane %v2143, 4
        %v2161 = vrot.slane %v2144, 4
        %v2162 = vsel %vm2159, %v2160, %v2161
        %v2163 = vrot.slane %v2145, 4
        %v2164 = vrot.slane %v2146, 4
        %v2165 = vsel %vm2159, %v2163, %v2164
        %v2166 = vrot.slane %v2147, 4
        %v2167 = vrot.slane %v2148, 4
        %v2168 = vsel %vm2159, %v2166, %v2167
        %v2169 = vrot.slane %v2149, 4
        %v2170 = vrot.slane %v2150, 4
        %v2171 = vsel %vm2159, %v2169, %v2170
        %v2176 = vadd.f32 %v2128, %v2162
        %v2177 = vadd.f32 %v2129, %v2165
        %v2178 = vadd.f32 %v2130, %v2168
        %v2179 = vadd.f32 %v2131, %v2171
        %v2181 = vrot.slane %v1268, 4
        %2182 = vrot.lane.b32.xlu0 %v2181, 1
        %v2183 = vpop.permute.xlu0 %2182
        %v2185 = vmul.f32 %v2136, %v2183
        %v2186 = vmul.f32 %v1892, %v2183
        %v2187 = vmul.f32 %v2137, %v2183
        %v2188 = vmul.f32 %v1893, %v2183
        %v2189 = vmul.f32 %v2138, %v2183
        %v2190 = vmul.f32 %v1894, %v2183
        %v2191 = vmul.f32 %v2139, %v2183
        %v2192 = vmul.f32 %v1895, %v2183
        %v2201 = vrot.slane %v2185, 4
        %v2202 = vrot.slane %v2186, 4
        %v2203 = vsel %vm2159, %v2201, %v2202
        %v2204 = vrot.slane %v2187, 4
        %v2205 = vrot.slane %v2188, 4
        %v2206 = vsel %vm2159, %v2204, %v2205
        %v2207 = vrot.slane %v2189, 4
        %v2208 = vrot.slane %v2190, 4
        %v2209 = vsel %vm2159, %v2207, %v2208
        %v2210 = vrot.slane %v2191, 4
        %v2211 = vrot.slane %v2192, 4
        %v2212 = vsel %vm2159, %v2210, %v2211
        %2213 = vrot.lane.b32.xlu0 %v2203, 127
        %v2214 = vpop.permute.xlu0 %2213
        %2215 = vrot.lane.b32.xlu0 %v2206, 127
        %v2216 = vpop.permute.xlu0 %2215
        %2217 = vrot.lane.b32.xlu0 %v2209, 127
        %v2218 = vpop.permute.xlu0 %2217
        %2219 = vrot.lane.b32.xlu0 %v2212, 127
        %v2220 = vpop.permute.xlu0 %2219
        %v2225 = vadd.f32 %v2176, %v2214
        %v2226 = vadd.f32 %v2177, %v2216
        %v2227 = vadd.f32 %v2178, %v2218
        %v2228 = vadd.f32 %v2179, %v2220
        %v2230 = vrot.slane %v1269, 4
        %2231 = vrot.lane.b32.xlu0 %v2230, 2
        %v2232 = vpop.permute.xlu0 %2231
        %v2234 = vmul.f32 %v2136, %v2232
        %v2235 = vmul.f32 %v1892, %v2232
        %v2236 = vmul.f32 %v2137, %v2232
        %v2237 = vmul.f32 %v1893, %v2232
        %v2238 = vmul.f32 %v2138, %v2232
        %v2239 = vmul.f32 %v1894, %v2232
        %v2240 = vmul.f32 %v2139, %v2232
        %v2241 = vmul.f32 %v1895, %v2232
        %v2250 = vrot.slane %v2234, 4
        %v2251 = vrot.slane %v2235, 4
        %v2252 = vsel %vm2159, %v2250, %v2251
        %v2253 = vrot.slane %v2236, 4
        %v2254 = vrot.slane %v2237, 4
        %v2255 = vsel %vm2159, %v2253, %v2254
        %v2256 = vrot.slane %v2238, 4
        %v2257 = vrot.slane %v2239, 4
        %v2258 = vsel %vm2159, %v2256, %v2257
        %v2259 = vrot.slane %v2240, 4
        %v2260 = vrot.slane %v2241, 4
        %v2261 = vsel %vm2159, %v2259, %v2260
        %2262 = vrot.lane.b32.xlu0 %v2252, 126
        %v2263 = vpop.permute.xlu0 %2262
        %2264 = vrot.lane.b32.xlu0 %v2255, 126
        %v2265 = vpop.permute.xlu0 %2264
        %2266 = vrot.lane.b32.xlu0 %v2258, 126
        %v2267 = vpop.permute.xlu0 %2266
        %2268 = vrot.lane.b32.xlu0 %v2261, 126
        %v2269 = vpop.permute.xlu0 %2268
        %v2274 = vadd.f32 %v2225, %v2263
        %v2275 = vadd.f32 %v2226, %v2265
        %v2276 = vadd.f32 %v2227, %v2267
        %v2277 = vadd.f32 %v2228, %v2269
        %v2279 = vrot.slane %v1270, 4
        %2280 = vrot.lane.b32.xlu0 %v2279, 3
        %v2281 = vpop.permute.xlu0 %2280
        %v2283 = vmul.f32 %v2136, %v2281
        %v2284 = vmul.f32 %v1892, %v2281
        %v2285 = vmul.f32 %v2137, %v2281
        %v2286 = vmul.f32 %v1893, %v2281
        %v2287 = vmul.f32 %v2138, %v2281
        %v2288 = vmul.f32 %v1894, %v2281
        %v2289 = vmul.f32 %v2139, %v2281
        %v2290 = vmul.f32 %v1895, %v2281
        %v2299 = vrot.slane %v2283, 4
        %v2300 = vrot.slane %v2284, 4
        %v2301 = vsel %vm2159, %v2299, %v2300
        %v2302 = vrot.slane %v2285, 4
        %v2303 = vrot.slane %v2286, 4
        %v2304 = vsel %vm2159, %v2302, %v2303
        %v2305 = vrot.slane %v2287, 4
        %v2306 = vrot.slane %v2288, 4
        %v2307 = vsel %vm2159, %v2305, %v2306
        %v2308 = vrot.slane %v2289, 4
        %v2309 = vrot.slane %v2290, 4
        %v2310 = vsel %vm2159, %v2308, %v2309
        %2311 = vrot.lane.b32.xlu0 %v2301, 125
        %v2312 = vpop.permute.xlu0 %2311
        %2313 = vrot.lane.b32.xlu0 %v2304, 125
        %v2314 = vpop.permute.xlu0 %2313
        %2315 = vrot.lane.b32.xlu0 %v2307, 125
        %v2316 = vpop.permute.xlu0 %2315
        %2317 = vrot.lane.b32.xlu0 %v2310, 125
        %v2318 = vpop.permute.xlu0 %2317
        %v2323 = vadd.f32 %v2274, %v2312
        %v2324 = vadd.f32 %v2275, %v2314
        %v2325 = vadd.f32 %v2276, %v2316
        %v2326 = vadd.f32 %v2277, %v2318
        %v2328 = vrot.slane %v1271, 4
        %2329 = vrot.lane.b32.xlu0 %v2328, 4
        %v2330 = vpop.permute.xlu0 %2329
        %v2332 = vmul.f32 %v2136, %v2330
        %v2333 = vmul.f32 %v1892, %v2330
        %v2334 = vmul.f32 %v2137, %v2330
        %v2335 = vmul.f32 %v1893, %v2330
        %v2336 = vmul.f32 %v2138, %v2330
        %v2337 = vmul.f32 %v1894, %v2330
        %v2338 = vmul.f32 %v2139, %v2330
        %v2339 = vmul.f32 %v1895, %v2330
        %v2348 = vrot.slane %v2332, 4
        %v2349 = vrot.slane %v2333, 4
        %v2350 = vsel %vm2159, %v2348, %v2349
        %v2351 = vrot.slane %v2334, 4
        %v2352 = vrot.slane %v2335, 4
        %v2353 = vsel %vm2159, %v2351, %v2352
        %v2354 = vrot.slane %v2336, 4
        %v2355 = vrot.slane %v2337, 4
        %v2356 = vsel %vm2159, %v2354, %v2355
        %v2357 = vrot.slane %v2338, 4
        %v2358 = vrot.slane %v2339, 4
        %v2359 = vsel %vm2159, %v2357, %v2358
        %2360 = vrot.lane.b32.xlu0 %v2350, 124
        %v2361 = vpop.permute.xlu0 %2360
        %2362 = vrot.lane.b32.xlu0 %v2353, 124
        %v2363 = vpop.permute.xlu0 %2362
        %2364 = vrot.lane.b32.xlu0 %v2356, 124
        %v2365 = vpop.permute.xlu0 %2364
        %2366 = vrot.lane.b32.xlu0 %v2359, 124
        %v2367 = vpop.permute.xlu0 %2366
        %v2372 = vadd.f32 %v2323, %v2361
        %v2373 = vadd.f32 %v2324, %v2363
        %v2374 = vadd.f32 %v2325, %v2365
        %v2375 = vadd.f32 %v2326, %v2367
        %v2376 = vld [vmem:[%s926] sm:$0xf]
        %v2377 = vld [vmem:[%s926 + $0x4] sm:$0xf]
        %v2378 = vld [vmem:[%s926 + $0x8] sm:$0xf]
        %v2379 = vld [vmem:[%s926 + $0xc] sm:$0xf]
        %v2380 = vunpack.c.l.bf16 %v2376
        %v2381 = vunpack.c.l.bf16 %v2377
        %v2382 = vunpack.c.l.bf16 %v2378
        %v2383 = vunpack.c.l.bf16 %v2379
        %v2384 = vmul.f32 %v945, %v2380
        %v2385 = vmul.f32 %v945, %v2381
        %v2386 = vmul.f32 %v945, %v2382
        %v2387 = vmul.f32 %v945, %v2383
        %v2388 = vmul.f32 %v946, %v2372
        %v2389 = vmul.f32 %v946, %v2373
        %v2390 = vmul.f32 %v946, %v2374
        %v2391 = vmul.f32 %v946, %v2375
        %v2392 = vadd.f32 %v2384, %v2388
        %v2393 = vadd.f32 %v2385, %v2389
        %v2394 = vadd.f32 %v2386, %v2390
        %v2395 = vadd.f32 %v2387, %v2391
        %v2396 = vpack.c.bf16 %v2392, %v2392
        %v2397 = vpack.c.bf16 %v2393, %v2393
        %v2398 = vpack.c.bf16 %v2394, %v2394
        %v2399 = vpack.c.bf16 %v2395, %v2395
        %vm2400 = vcmask 60416
        %2401 = vst.msk [vmem:[%s936] sm:$0xf] %vm2400, %v2396
        %2402 = vst.msk [vmem:[%s936 + $0x4] sm:$0xf] %vm2400, %v2397
        %2403 = vst.msk [vmem:[%s936 + $0x8] sm:$0xf] %vm2400, %v2398
        %2404 = vst.msk [vmem:[%s936 + $0xc] sm:$0xf] %vm2400, %v2399
        %s2405 = scalar_lea.vmem %s840, 4 [#allocation2]
        %v2406 = vld [vmem:[%s2405] sm:$0xf]
        %v2407 = vld [vmem:[%s2405 + $0x10] sm:$0xf]
        %v2408 = vld [vmem:[%s2405 + $0x20] sm:$0xf]
        %v2409 = vld [vmem:[%s2405 + $0x30] sm:$0xf]
        %v2410 = vld [vmem:[%s2405 + $0x40] sm:$0xf]
        %v2411 = vld [vmem:[%s2405 + $0x50] sm:$0xf]
        %v2412 = vld [vmem:[%s2405 + $0x60] sm:$0xf]
        %v2413 = vld [vmem:[%s2405 + $0x70] sm:$0xf]
        %v2414 = vld [vmem:[%s2405 + $0x80] sm:$0xf]
        %v2415 = vld [vmem:[%s2405 + $0x90] sm:$0xf]
        %v2416 = vld [vmem:[%s2405 + $0xa0] sm:$0xf]
        %v2417 = vld [vmem:[%s2405 + $0xb0] sm:$0xf]
        %v2418 = vld [vmem:[%s2405 + $0xc0] sm:$0xf]
        %v2419 = vld [vmem:[%s2405 + $0xd0] sm:$0xf]
        %v2420 = vld [vmem:[%s2405 + $0xe0] sm:$0xf]
        %v2421 = vld [vmem:[%s2405 + $0xf0] sm:$0xf]
        %v2422 = vld [vmem:[%s2405 + $0x100] sm:$0xf]
        %v2423 = vld [vmem:[%s2405 + $0x110] sm:$0xf]
        %v2424 = vld [vmem:[%s2405 + $0x120] sm:$0xf]
        %v2425 = vld [vmem:[%s2405 + $0x130] sm:$0xf]
        %v2426 = vld [vmem:[%s2405 + $0x140] sm:$0xf]
        %v2427 = vld [vmem:[%s2405 + $0x150] sm:$0xf]
        %v2428 = vld [vmem:[%s2405 + $0x160] sm:$0xf]
        %v2429 = vld [vmem:[%s2405 + $0x170] sm:$0xf]
        %v2430 = vld [vmem:[%s2405 + $0x180] sm:$0xf]
        %v2431 = vunpack.c.l.bf16 %v2406
        %v2432 = vunpack.c.l.bf16 %v2407
        %v2433 = vunpack.c.l.bf16 %v2408
        %v2434 = vunpack.c.l.bf16 %v2409
        %v2435 = vunpack.c.l.bf16 %v2410
        %v2436 = vunpack.c.l.bf16 %v2411
        %v2437 = vunpack.c.l.bf16 %v2412
        %v2438 = vunpack.c.l.bf16 %v2413
        %v2439 = vunpack.c.l.bf16 %v2414
        %v2440 = vunpack.c.l.bf16 %v2415
        %v2441 = vunpack.c.l.bf16 %v2416
        %v2442 = vunpack.c.l.bf16 %v2417
        %v2443 = vunpack.c.l.bf16 %v2418
        %v2444 = vunpack.c.l.bf16 %v2419
        %v2445 = vunpack.c.l.bf16 %v2420
        %v2446 = vunpack.c.l.bf16 %v2421
        %v2447 = vunpack.c.l.bf16 %v2422
        %v2448 = vunpack.c.l.bf16 %v2423
        %v2449 = vunpack.c.l.bf16 %v2424
        %v2450 = vunpack.c.l.bf16 %v2425
        %v2451 = vunpack.c.l.bf16 %v2426
        %v2452 = vunpack.c.l.bf16 %v2427
        %v2453 = vunpack.c.l.bf16 %v2428
        %v2454 = vunpack.c.l.bf16 %v2429
        %v2455 = vunpack.c.l.bf16 %v2430
        %v2456 = vadd.f32 %v2431, %v972
        %v2457 = vadd.f32 %v2432, %v973
        %v2458 = vadd.f32 %v2433, %v974
        %v2459 = vadd.f32 %v2434, %v975
        %v2460 = vadd.f32 %v2435, %v976
        %v2461 = vadd.f32 %v2436, %v977
        %v2462 = vadd.f32 %v2437, %v978
        %v2463 = vadd.f32 %v2438, %v979
        %v2464 = vadd.f32 %v2439, %v980
        %v2465 = vadd.f32 %v2440, %v981
        %v2466 = vadd.f32 %v2441, %v982
        %v2467 = vadd.f32 %v2442, %v983
        %v2468 = vadd.f32 %v2443, %v984
        %v2469 = vadd.f32 %v2444, %v985
        %v2470 = vadd.f32 %v2445, %v986
        %v2471 = vadd.f32 %v2446, %v987
        %v2472 = vadd.f32 %v2447, %v988
        %v2473 = vadd.f32 %v2448, %v989
        %v2474 = vadd.f32 %v2449, %v990
        %v2475 = vadd.f32 %v2450, %v991
        %v2476 = vadd.f32 %v2451, %v992
        %v2477 = vadd.f32 %v2452, %v993
        %v2478 = vadd.f32 %v2453, %v994
        %v2479 = vadd.f32 %v2454, %v995
        %v2480 = vadd.f32 %v2455, %v996
        %v2481 = vsel %vm1072, %v2456, -inf
        %v2482 = vsel %vm1072, %v2457, -inf
        %v2483 = vsel %vm1072, %v2458, -inf
        %v2484 = vsel %vm1072, %v2459, -inf
        %v2485 = vsel %vm1072, %v2460, -inf
        %v2486 = vmax.f32 %v2481, %v2485
        %v2487 = vsel %vm1072, %v2461, -inf
        %v2488 = vmax.f32 %v2482, %v2487
        %v2489 = vsel %vm1072, %v2462, -inf
        %v2490 = vmax.f32 %v2483, %v2489
        %v2491 = vsel %vm1072, %v2463, -inf
        %v2492 = vmax.f32 %v2484, %v2491
        %v2493 = vsel %vm1072, %v2464, -inf
        %v2494 = vmax.f32 %v2486, %v2493
        %v2495 = vsel %vm1072, %v2465, -inf
        %v2496 = vmax.f32 %v2488, %v2495
        %v2497 = vsel %vm1072, %v2466, -inf
        %v2498 = vmax.f32 %v2490, %v2497
        %v2499 = vsel %vm1072, %v2467, -inf
        %v2500 = vmax.f32 %v2492, %v2499
        %v2501 = vsel %vm1072, %v2468, -inf
        %v2502 = vmax.f32 %v2494, %v2501
        %v2503 = vsel %vm1072, %v2469, -inf
        %v2504 = vmax.f32 %v2496, %v2503
        %v2505 = vsel %vm1072, %v2470, -inf
        %v2506 = vmax.f32 %v2498, %v2505
        %v2507 = vsel %vm1072, %v2471, -inf
        %v2508 = vmax.f32 %v2500, %v2507
        %v2509 = vsel %vm1072, %v2472, -inf
        %v2510 = vmax.f32 %v2502, %v2509
        %v2511 = vsel %vm1072, %v2473, -inf
        %v2512 = vmax.f32 %v2504, %v2511
        %v2513 = vsel %vm1072, %v2474, -inf
        %v2514 = vmax.f32 %v2506, %v2513
        %v2515 = vsel %vm1072, %v2475, -inf
        %v2516 = vmax.f32 %v2508, %v2515
        %v2517 = vsel %vm1072, %v2476, -inf
        %v2518 = vmax.f32 %v2510, %v2517
        %v2519 = vsel %vm1072, %v2477, -inf
        %v2520 = vmax.f32 %v2512, %v2519
        %v2521 = vsel %vm1072, %v2478, -inf
        %v2522 = vmax.f32 %v2514, %v2521
        %v2523 = vsel %vm1072, %v2479, -inf
        %v2524 = vmax.f32 %v2516, %v2523
        %v2525 = vsel %vm1072, %v2480, -inf
        %v2526 = vmax.f32 %v2518, %v2525
        %v2527 = vmax.f32 %v2526, %v2520
        %v2528 = vmax.f32 %v2522, %v2524
        %v2529 = vmax.f32 %v2527, %v2528
        %v2530 = vsub.f32 %v2456, %v2529
        %v2531 = vsub.f32 %v2457, %v2529
        %v2532 = vsub.f32 %v2458, %v2529
        %v2533 = vsub.f32 %v2459, %v2529
        %v2534 = vsub.f32 %v2460, %v2529
        %v2535 = vsub.f32 %v2461, %v2529
        %v2536 = vsub.f32 %v2462, %v2529
        %v2537 = vsub.f32 %v2463, %v2529
        %v2538 = vsub.f32 %v2464, %v2529
        %v2539 = vsub.f32 %v2465, %v2529
        %v2540 = vsub.f32 %v2466, %v2529
        %v2541 = vsub.f32 %v2467, %v2529
        %v2542 = vsub.f32 %v2468, %v2529
        %v2543 = vsub.f32 %v2469, %v2529
        %v2544 = vsub.f32 %v2470, %v2529
        %v2545 = vsub.f32 %v2471, %v2529
        %v2546 = vsub.f32 %v2472, %v2529
        %v2547 = vsub.f32 %v2473, %v2529
        %v2548 = vsub.f32 %v2474, %v2529
        %v2549 = vsub.f32 %v2475, %v2529
        %v2550 = vsub.f32 %v2476, %v2529
        %v2551 = vsub.f32 %v2477, %v2529
        %v2552 = vsub.f32 %v2478, %v2529
        %v2553 = vsub.f32 %v2479, %v2529
        %v2554 = vsub.f32 %v2480, %v2529
        %v2555 = vmul.f32 %v2530, 1.442695
        %v2556 = vpow.pop %v2555
        %v2557 = vmul.f32 %v2531, 1.442695
        %v2558 = vpow.pop %v2557
        %v2559 = vmul.f32 %v2532, 1.442695
        %v2560 = vpow.pop %v2559
        %v2561 = vmul.f32 %v2533, 1.442695
        %v2562 = vpow.pop %v2561
        %v2563 = vmul.f32 %v2534, 1.442695
        %v2564 = vpow.pop %v2563
        %v2565 = vmul.f32 %v2535, 1.442695
        %v2566 = vpow.pop %v2565
        %v2567 = vmul.f32 %v2536, 1.442695
        %v2568 = vpow.pop %v2567
        %v2569 = vmul.f32 %v2537, 1.442695
        %v2570 = vpow.pop %v2569
        %v2571 = vmul.f32 %v2538, 1.442695
        %v2572 = vpow.pop %v2571
        %v2573 = vmul.f32 %v2539, 1.442695
        %v2574 = vpow.pop %v2573
        %v2575 = vmul.f32 %v2540, 1.442695
        %v2576 = vpow.pop %v2575
        %v2577 = vmul.f32 %v2541, 1.442695
        %v2578 = vpow.pop %v2577
        %v2579 = vmul.f32 %v2542, 1.442695
        %v2580 = vpow.pop %v2579
        %v2581 = vmul.f32 %v2543, 1.442695
        %v2582 = vpow.pop %v2581
        %v2583 = vmul.f32 %v2544, 1.442695
        %v2584 = vpow.pop %v2583
        %v2585 = vmul.f32 %v2545, 1.442695
        %v2586 = vpow.pop %v2585
        %v2587 = vmul.f32 %v2546, 1.442695
        %v2588 = vpow.pop %v2587
        %v2589 = vmul.f32 %v2547, 1.442695
        %v2590 = vpow.pop %v2589
        %v2591 = vmul.f32 %v2548, 1.442695
        %v2592 = vpow.pop %v2591
        %v2593 = vmul.f32 %v2549, 1.442695
        %v2594 = vpow.pop %v2593
        %v2595 = vmul.f32 %v2550, 1.442695
        %v2596 = vpow.pop %v2595
        %v2597 = vmul.f32 %v2551, 1.442695
        %v2598 = vpow.pop %v2597
        %v2599 = vmul.f32 %v2552, 1.442695
        %v2600 = vpow.pop %v2599
        %v2601 = vmul.f32 %v2553, 1.442695
        %v2602 = vpow.pop %v2601
        %v2603 = vmul.f32 %v2554, 1.442695
        %v2604 = vpow.pop %v2603
        %v2605 = vsel %vm1072, %v2556, 0.0
        %v2606 = vsel %vm1072, %v2558, 0.0
        %v2607 = vadd.f32 %v2605, %v2606
        %v2608 = vsel %vm1072, %v2560, 0.0
        %v2609 = vadd.f32 %v2607, %v2608
        %v2610 = vsel %vm1072, %v2562, 0.0
        %v2611 = vadd.f32 %v2609, %v2610
        %v2612 = vsel %vm1072, %v2564, 0.0
        %v2613 = vadd.f32 %v2611, %v2612
        %v2614 = vsel %vm1072, %v2566, 0.0
        %v2615 = vadd.f32 %v2613, %v2614
        %v2616 = vsel %vm1072, %v2568, 0.0
        %v2617 = vadd.f32 %v2615, %v2616
        %v2618 = vsel %vm1072, %v2570, 0.0
        %v2619 = vadd.f32 %v2617, %v2618
        %v2620 = vsel %vm1072, %v2572, 0.0
        %v2621 = vadd.f32 %v2619, %v2620
        %v2622 = vsel %vm1072, %v2574, 0.0
        %v2623 = vadd.f32 %v2621, %v2622
        %v2624 = vsel %vm1072, %v2576, 0.0
        %v2625 = vadd.f32 %v2623, %v2624
        %v2626 = vsel %vm1072, %v2578, 0.0
        %v2627 = vadd.f32 %v2625, %v2626
        %v2628 = vsel %vm1072, %v2580, 0.0
        %v2629 = vadd.f32 %v2627, %v2628
        %v2630 = vsel %vm1072, %v2582, 0.0
        %v2631 = vadd.f32 %v2629, %v2630
        %v2632 = vsel %vm1072, %v2584, 0.0
        %v2633 = vadd.f32 %v2631, %v2632
        %v2634 = vsel %vm1072, %v2586, 0.0
        %v2635 = vadd.f32 %v2633, %v2634
        %v2636 = vsel %vm1072, %v2588, 0.0
        %v2637 = vadd.f32 %v2635, %v2636
        %v2638 = vsel %vm1072, %v2590, 0.0
        %v2639 = vadd.f32 %v2637, %v2638
        %v2640 = vsel %vm1072, %v2592, 0.0
        %v2641 = vadd.f32 %v2639, %v2640
        %v2642 = vsel %vm1072, %v2594, 0.0
        %v2643 = vadd.f32 %v2641, %v2642
        %v2644 = vsel %vm1072, %v2596, 0.0
        %v2645 = vadd.f32 %v2643, %v2644
        %v2646 = vsel %vm1072, %v2598, 0.0
        %v2647 = vadd.f32 %v2645, %v2646
        %v2648 = vsel %vm1072, %v2600, 0.0
        %v2649 = vadd.f32 %v2647, %v2648
        %v2650 = vsel %vm1072, %v2602, 0.0
        %v2651 = vadd.f32 %v2649, %v2650
        %v2652 = vsel %vm1072, %v2604, 0.0
        %v2653 = vadd.f32 %v2651, %v2652
        %v2654 = vrcp.pop %v2653
        %v2655 = vmul.f32 %v2556, %v2654
        %v2656 = vmul.f32 %v2558, %v2654
        %v2657 = vmul.f32 %v2560, %v2654
        %v2658 = vmul.f32 %v2562, %v2654
        %v2659 = vmul.f32 %v2564, %v2654
        %v2660 = vmul.f32 %v2566, %v2654
        %v2661 = vmul.f32 %v2568, %v2654
        %v2662 = vmul.f32 %v2570, %v2654
        %v2663 = vmul.f32 %v2572, %v2654
        %v2664 = vmul.f32 %v2574, %v2654
        %v2665 = vmul.f32 %v2576, %v2654
        %v2666 = vmul.f32 %v2578, %v2654
        %v2667 = vmul.f32 %v2580, %v2654
        %v2668 = vmul.f32 %v2582, %v2654
        %v2669 = vmul.f32 %v2584, %v2654
        %v2670 = vmul.f32 %v2586, %v2654
        %v2671 = vmul.f32 %v2588, %v2654
        %v2672 = vmul.f32 %v2590, %v2654
        %v2673 = vmul.f32 %v2592, %v2654
        %v2674 = vmul.f32 %v2594, %v2654
        %v2675 = vmul.f32 %v2596, %v2654
        %v2676 = vmul.f32 %v2598, %v2654
        %v2677 = vmul.f32 %v2600, %v2654
        %v2678 = vmul.f32 %v2602, %v2654
        %v2679 = vmul.f32 %v2604, %v2654
        %v2680 = vld [vmem:[%s912] sm:$0xf]
        %v2681 = vld [vmem:[%s912 + $0x8] sm:$0xf]
        %v2682 = vld [vmem:[%s912 + $0x10] sm:$0xf]
        %v2683 = vld [vmem:[%s912 + $0x18] sm:$0xf]
        %v2684 = vunpack.c.l.bf16 %v2680
        %v2685 = vunpack.c.l.bf16 %v2681
        %v2686 = vunpack.c.l.bf16 %v2682
        %v2687 = vunpack.c.l.bf16 %v2683
        %v2688 = vmul.f32 %v2684, %v2655
        %v2689 = vmul.f32 %v2685, %v2655
        %v2690 = vmul.f32 %v2686, %v2655
        %v2691 = vmul.f32 %v2687, %v2655
        %v2692 = vadd.f32 %v2688, 0.0
        %v2693 = vadd.f32 %v2689, 0.0
        %v2694 = vadd.f32 %v2690, 0.0
        %v2695 = vadd.f32 %v2691, 0.0
        %2697 = vrot.lane.b32.xlu0 %v2656, 1
        %v2698 = vpop.permute.xlu0 %2697
        %v2700 = vmul.f32 %v2684, %v2698
        %v2701 = vmul.f32 %v2685, %v2698
        %v2702 = vmul.f32 %v2686, %v2698
        %v2703 = vmul.f32 %v2687, %v2698
        %2708 = vrot.lane.b32.xlu0 %v2700, 127
        %v2709 = vpop.permute.xlu0 %2708
        %2710 = vrot.lane.b32.xlu0 %v2701, 127
        %v2711 = vpop.permute.xlu0 %2710
        %2712 = vrot.lane.b32.xlu0 %v2702, 127
        %v2713 = vpop.permute.xlu0 %2712
        %2714 = vrot.lane.b32.xlu0 %v2703, 127
        %v2715 = vpop.permute.xlu0 %2714
        %v2720 = vadd.f32 %v2692, %v2709
        %v2721 = vadd.f32 %v2693, %v2711
        %v2722 = vadd.f32 %v2694, %v2713
        %v2723 = vadd.f32 %v2695, %v2715
        %2725 = vrot.lane.b32.xlu0 %v2657, 2
        %v2726 = vpop.permute.xlu0 %2725
        %v2728 = vmul.f32 %v2684, %v2726
        %v2729 = vmul.f32 %v2685, %v2726
        %v2730 = vmul.f32 %v2686, %v2726
        %v2731 = vmul.f32 %v2687, %v2726
        %2736 = vrot.lane.b32.xlu0 %v2728, 126
        %v2737 = vpop.permute.xlu0 %2736
        %2738 = vrot.lane.b32.xlu0 %v2729, 126
        %v2739 = vpop.permute.xlu0 %2738
        %2740 = vrot.lane.b32.xlu0 %v2730, 126
        %v2741 = vpop.permute.xlu0 %2740
        %2742 = vrot.lane.b32.xlu0 %v2731, 126
        %v2743 = vpop.permute.xlu0 %2742
        %v2748 = vadd.f32 %v2720, %v2737
        %v2749 = vadd.f32 %v2721, %v2739
        %v2750 = vadd.f32 %v2722, %v2741
        %v2751 = vadd.f32 %v2723, %v2743
        %2753 = vrot.lane.b32.xlu0 %v2658, 3
        %v2754 = vpop.permute.xlu0 %2753
        %v2756 = vmul.f32 %v2684, %v2754
        %v2757 = vmul.f32 %v2685, %v2754
        %v2758 = vmul.f32 %v2686, %v2754
        %v2759 = vmul.f32 %v2687, %v2754
        %2764 = vrot.lane.b32.xlu0 %v2756, 125
        %v2765 = vpop.permute.xlu0 %2764
        %2766 = vrot.lane.b32.xlu0 %v2757, 125
        %v2767 = vpop.permute.xlu0 %2766
        %2768 = vrot.lane.b32.xlu0 %v2758, 125
        %v2769 = vpop.permute.xlu0 %2768
        %2770 = vrot.lane.b32.xlu0 %v2759, 125
        %v2771 = vpop.permute.xlu0 %2770
        %v2776 = vadd.f32 %v2748, %v2765
        %v2777 = vadd.f32 %v2749, %v2767
        %v2778 = vadd.f32 %v2750, %v2769
        %v2779 = vadd.f32 %v2751, %v2771
        %2781 = vrot.lane.b32.xlu0 %v2659, 4
        %v2782 = vpop.permute.xlu0 %2781
        %v2784 = vmul.f32 %v2684, %v2782
        %v2785 = vmul.f32 %v2685, %v2782
        %v2786 = vmul.f32 %v2686, %v2782
        %v2787 = vmul.f32 %v2687, %v2782
        %2792 = vrot.lane.b32.xlu0 %v2784, 124
        %v2793 = vpop.permute.xlu0 %2792
        %2794 = vrot.lane.b32.xlu0 %v2785, 124
        %v2795 = vpop.permute.xlu0 %2794
        %2796 = vrot.lane.b32.xlu0 %v2786, 124
        %v2797 = vpop.permute.xlu0 %2796
        %2798 = vrot.lane.b32.xlu0 %v2787, 124
        %v2799 = vpop.permute.xlu0 %2798
        %v2804 = vadd.f32 %v2776, %v2793
        %v2805 = vadd.f32 %v2777, %v2795
        %v2806 = vadd.f32 %v2778, %v2797
        %v2807 = vadd.f32 %v2779, %v2799
        %v2808 = vld [vmem:[%s912 + $0x4] sm:$0x1]
        %v2809 = vld [vmem:[%s912 + $0xc] sm:$0x1]
        %v2810 = vld [vmem:[%s912 + $0x14] sm:$0x1]
        %v2811 = vld [vmem:[%s912 + $0x1c] sm:$0x1]
        %v2812 = vunpack.c.l.bf16 %v2808
        %v2813 = vunpack.c.l.bf16 %v2809
        %v2814 = vunpack.c.l.bf16 %v2810
        %v2815 = vunpack.c.l.bf16 %v2811
        %v2817 = vrot.slane %v2660, 7
        %v2819 = vmul.f32 %v2684, %v2817
        %v2820 = vmul.f32 %v2812, %v2817
        %v2821 = vmul.f32 %v2685, %v2817
        %v2822 = vmul.f32 %v2813, %v2817
        %v2823 = vmul.f32 %v2686, %v2817
        %v2824 = vmul.f32 %v2814, %v2817
        %v2825 = vmul.f32 %v2687, %v2817
        %v2826 = vmul.f32 %v2815, %v2817
        %v2835 = vrot.slane %v2819, 1
        %v2836 = vrot.slane %v2820, 1
        %v2837 = vsel %vm1427, %v2835, %v2836
        %v2838 = vrot.slane %v2821, 1
        %v2839 = vrot.slane %v2822, 1
        %v2840 = vsel %vm1427, %v2838, %v2839
        %v2841 = vrot.slane %v2823, 1
        %v2842 = vrot.slane %v2824, 1
        %v2843 = vsel %vm1427, %v2841, %v2842
        %v2844 = vrot.slane %v2825, 1
        %v2845 = vrot.slane %v2826, 1
        %v2846 = vsel %vm1427, %v2844, %v2845
        %v2851 = vadd.f32 %v2804, %v2837
        %v2852 = vadd.f32 %v2805, %v2840
        %v2853 = vadd.f32 %v2806, %v2843
        %v2854 = vadd.f32 %v2807, %v2846
        %v2856 = vrot.slane %v2661, 7
        %2857 = vrot.lane.b32.xlu0 %v2856, 1
        %v2858 = vpop.permute.xlu0 %2857
        %v2860 = vmul.f32 %v2684, %v2858
        %v2861 = vmul.f32 %v2812, %v2858
        %v2862 = vmul.f32 %v2685, %v2858
        %v2863 = vmul.f32 %v2813, %v2858
        %v2864 = vmul.f32 %v2686, %v2858
        %v2865 = vmul.f32 %v2814, %v2858
        %v2866 = vmul.f32 %v2687, %v2858
        %v2867 = vmul.f32 %v2815, %v2858
        %v2876 = vrot.slane %v2860, 1
        %v2877 = vrot.slane %v2861, 1
        %v2878 = vsel %vm1427, %v2876, %v2877
        %v2879 = vrot.slane %v2862, 1
        %v2880 = vrot.slane %v2863, 1
        %v2881 = vsel %vm1427, %v2879, %v2880
        %v2882 = vrot.slane %v2864, 1
        %v2883 = vrot.slane %v2865, 1
        %v2884 = vsel %vm1427, %v2882, %v2883
        %v2885 = vrot.slane %v2866, 1
        %v2886 = vrot.slane %v2867, 1
        %v2887 = vsel %vm1427, %v2885, %v2886
        %2888 = vrot.lane.b32.xlu0 %v2878, 127
        %v2889 = vpop.permute.xlu0 %2888
        %2890 = vrot.lane.b32.xlu0 %v2881, 127
        %v2891 = vpop.permute.xlu0 %2890
        %2892 = vrot.lane.b32.xlu0 %v2884, 127
        %v2893 = vpop.permute.xlu0 %2892
        %2894 = vrot.lane.b32.xlu0 %v2887, 127
        %v2895 = vpop.permute.xlu0 %2894
        %v2900 = vadd.f32 %v2851, %v2889
        %v2901 = vadd.f32 %v2852, %v2891
        %v2902 = vadd.f32 %v2853, %v2893
        %v2903 = vadd.f32 %v2854, %v2895
        %v2905 = vrot.slane %v2662, 7
        %2906 = vrot.lane.b32.xlu0 %v2905, 2
        %v2907 = vpop.permute.xlu0 %2906
        %v2909 = vmul.f32 %v2684, %v2907
        %v2910 = vmul.f32 %v2812, %v2907
        %v2911 = vmul.f32 %v2685, %v2907
        %v2912 = vmul.f32 %v2813, %v2907
        %v2913 = vmul.f32 %v2686, %v2907
        %v2914 = vmul.f32 %v2814, %v2907
        %v2915 = vmul.f32 %v2687, %v2907
        %v2916 = vmul.f32 %v2815, %v2907
        %v2925 = vrot.slane %v2909, 1
        %v2926 = vrot.slane %v2910, 1
        %v2927 = vsel %vm1427, %v2925, %v2926
        %v2928 = vrot.slane %v2911, 1
        %v2929 = vrot.slane %v2912, 1
        %v2930 = vsel %vm1427, %v2928, %v2929
        %v2931 = vrot.slane %v2913, 1
        %v2932 = vrot.slane %v2914, 1
        %v2933 = vsel %vm1427, %v2931, %v2932
        %v2934 = vrot.slane %v2915, 1
        %v2935 = vrot.slane %v2916, 1
        %v2936 = vsel %vm1427, %v2934, %v2935
        %2937 = vrot.lane.b32.xlu0 %v2927, 126
        %v2938 = vpop.permute.xlu0 %2937
        %2939 = vrot.lane.b32.xlu0 %v2930, 126
        %v2940 = vpop.permute.xlu0 %2939
        %2941 = vrot.lane.b32.xlu0 %v2933, 126
        %v2942 = vpop.permute.xlu0 %2941
        %2943 = vrot.lane.b32.xlu0 %v2936, 126
        %v2944 = vpop.permute.xlu0 %2943
        %v2949 = vadd.f32 %v2900, %v2938
        %v2950 = vadd.f32 %v2901, %v2940
        %v2951 = vadd.f32 %v2902, %v2942
        %v2952 = vadd.f32 %v2903, %v2944
        %v2954 = vrot.slane %v2663, 7
        %2955 = vrot.lane.b32.xlu0 %v2954, 3
        %v2956 = vpop.permute.xlu0 %2955
        %v2958 = vmul.f32 %v2684, %v2956
        %v2959 = vmul.f32 %v2812, %v2956
        %v2960 = vmul.f32 %v2685, %v2956
        %v2961 = vmul.f32 %v2813, %v2956
        %v2962 = vmul.f32 %v2686, %v2956
        %v2963 = vmul.f32 %v2814, %v2956
        %v2964 = vmul.f32 %v2687, %v2956
        %v2965 = vmul.f32 %v2815, %v2956
        %v2974 = vrot.slane %v2958, 1
        %v2975 = vrot.slane %v2959, 1
        %v2976 = vsel %vm1427, %v2974, %v2975
        %v2977 = vrot.slane %v2960, 1
        %v2978 = vrot.slane %v2961, 1
        %v2979 = vsel %vm1427, %v2977, %v2978
        %v2980 = vrot.slane %v2962, 1
        %v2981 = vrot.slane %v2963, 1
        %v2982 = vsel %vm1427, %v2980, %v2981
        %v2983 = vrot.slane %v2964, 1
        %v2984 = vrot.slane %v2965, 1
        %v2985 = vsel %vm1427, %v2983, %v2984
        %2986 = vrot.lane.b32.xlu0 %v2976, 125
        %v2987 = vpop.permute.xlu0 %2986
        %2988 = vrot.lane.b32.xlu0 %v2979, 125
        %v2989 = vpop.permute.xlu0 %2988
        %2990 = vrot.lane.b32.xlu0 %v2982, 125
        %v2991 = vpop.permute.xlu0 %2990
        %2992 = vrot.lane.b32.xlu0 %v2985, 125
        %v2993 = vpop.permute.xlu0 %2992
        %v2998 = vadd.f32 %v2949, %v2987
        %v2999 = vadd.f32 %v2950, %v2989
        %v3000 = vadd.f32 %v2951, %v2991
        %v3001 = vadd.f32 %v2952, %v2993
        %v3003 = vrot.slane %v2664, 7
        %3004 = vrot.lane.b32.xlu0 %v3003, 4
        %v3005 = vpop.permute.xlu0 %3004
        %v3007 = vmul.f32 %v2684, %v3005
        %v3008 = vmul.f32 %v2812, %v3005
        %v3009 = vmul.f32 %v2685, %v3005
        %v3010 = vmul.f32 %v2813, %v3005
        %v3011 = vmul.f32 %v2686, %v3005
        %v3012 = vmul.f32 %v2814, %v3005
        %v3013 = vmul.f32 %v2687, %v3005
        %v3014 = vmul.f32 %v2815, %v3005
        %v3023 = vrot.slane %v3007, 1
        %v3024 = vrot.slane %v3008, 1
        %v3025 = vsel %vm1427, %v3023, %v3024
        %v3026 = vrot.slane %v3009, 1
        %v3027 = vrot.slane %v3010, 1
        %v3028 = vsel %vm1427, %v3026, %v3027
        %v3029 = vrot.slane %v3011, 1
        %v3030 = vrot.slane %v3012, 1
        %v3031 = vsel %vm1427, %v3029, %v3030
        %v3032 = vrot.slane %v3013, 1
        %v3033 = vrot.slane %v3014, 1
        %v3034 = vsel %vm1427, %v3032, %v3033
        %3035 = vrot.lane.b32.xlu0 %v3025, 124
        %v3036 = vpop.permute.xlu0 %3035
        %3037 = vrot.lane.b32.xlu0 %v3028, 124
        %v3038 = vpop.permute.xlu0 %3037
        %3039 = vrot.lane.b32.xlu0 %v3031, 124
        %v3040 = vpop.permute.xlu0 %3039
        %3041 = vrot.lane.b32.xlu0 %v3034, 124
        %v3042 = vpop.permute.xlu0 %3041
        %v3047 = vadd.f32 %v2998, %v3036
        %v3048 = vadd.f32 %v2999, %v3038
        %v3049 = vadd.f32 %v3000, %v3040
        %v3050 = vadd.f32 %v3001, %v3042
        %v3051 = vld [vmem:[%s912] sm:$0xe]
        %v3052 = vld [vmem:[%s912 + $0x8] sm:$0xe]
        %v3053 = vld [vmem:[%s912 + $0x10] sm:$0xe]
        %v3054 = vld [vmem:[%s912 + $0x18] sm:$0xe]
        %v3055 = vunpack.c.l.bf16 %v3051
        %v3056 = vunpack.c.l.bf16 %v3052
        %v3057 = vunpack.c.l.bf16 %v3053
        %v3058 = vunpack.c.l.bf16 %v3054
        %v3060 = vrot.slane %v2665, 6
        %v3062 = vmul.f32 %v3055, %v3060
        %v3063 = vmul.f32 %v2812, %v3060
        %v3064 = vmul.f32 %v3056, %v3060
        %v3065 = vmul.f32 %v2813, %v3060
        %v3066 = vmul.f32 %v3057, %v3060
        %v3067 = vmul.f32 %v2814, %v3060
        %v3068 = vmul.f32 %v3058, %v3060
        %v3069 = vmul.f32 %v2815, %v3060
        %v3078 = vrot.slane %v3062, 2
        %v3079 = vrot.slane %v3063, 2
        %v3080 = vsel %vm1671, %v3078, %v3079
        %v3081 = vrot.slane %v3064, 2
        %v3082 = vrot.slane %v3065, 2
        %v3083 = vsel %vm1671, %v3081, %v3082
        %v3084 = vrot.slane %v3066, 2
        %v3085 = vrot.slane %v3067, 2
        %v3086 = vsel %vm1671, %v3084, %v3085
        %v3087 = vrot.slane %v3068, 2
        %v3088 = vrot.slane %v3069, 2
        %v3089 = vsel %vm1671, %v3087, %v3088
        %v3094 = vadd.f32 %v3047, %v3080
        %v3095 = vadd.f32 %v3048, %v3083
        %v3096 = vadd.f32 %v3049, %v3086
        %v3097 = vadd.f32 %v3050, %v3089
        %v3099 = vrot.slane %v2666, 6
        %3100 = vrot.lane.b32.xlu0 %v3099, 1
        %v3101 = vpop.permute.xlu0 %3100
        %v3103 = vmul.f32 %v3055, %v3101
        %v3104 = vmul.f32 %v2812, %v3101
        %v3105 = vmul.f32 %v3056, %v3101
        %v3106 = vmul.f32 %v2813, %v3101
        %v3107 = vmul.f32 %v3057, %v3101
        %v3108 = vmul.f32 %v2814, %v3101
        %v3109 = vmul.f32 %v3058, %v3101
        %v3110 = vmul.f32 %v2815, %v3101
        %v3119 = vrot.slane %v3103, 2
        %v3120 = vrot.slane %v3104, 2
        %v3121 = vsel %vm1671, %v3119, %v3120
        %v3122 = vrot.slane %v3105, 2
        %v3123 = vrot.slane %v3106, 2
        %v3124 = vsel %vm1671, %v3122, %v3123
        %v3125 = vrot.slane %v3107, 2
        %v3126 = vrot.slane %v3108, 2
        %v3127 = vsel %vm1671, %v3125, %v3126
        %v3128 = vrot.slane %v3109, 2
        %v3129 = vrot.slane %v3110, 2
        %v3130 = vsel %vm1671, %v3128, %v3129
        %3131 = vrot.lane.b32.xlu0 %v3121, 127
        %v3132 = vpop.permute.xlu0 %3131
        %3133 = vrot.lane.b32.xlu0 %v3124, 127
        %v3134 = vpop.permute.xlu0 %3133
        %3135 = vrot.lane.b32.xlu0 %v3127, 127
        %v3136 = vpop.permute.xlu0 %3135
        %3137 = vrot.lane.b32.xlu0 %v3130, 127
        %v3138 = vpop.permute.xlu0 %3137
        %v3143 = vadd.f32 %v3094, %v3132
        %v3144 = vadd.f32 %v3095, %v3134
        %v3145 = vadd.f32 %v3096, %v3136
        %v3146 = vadd.f32 %v3097, %v3138
        %v3148 = vrot.slane %v2667, 6
        %3149 = vrot.lane.b32.xlu0 %v3148, 2
        %v3150 = vpop.permute.xlu0 %3149
        %v3152 = vmul.f32 %v3055, %v3150
        %v3153 = vmul.f32 %v2812, %v3150
        %v3154 = vmul.f32 %v3056, %v3150
        %v3155 = vmul.f32 %v2813, %v3150
        %v3156 = vmul.f32 %v3057, %v3150
        %v3157 = vmul.f32 %v2814, %v3150
        %v3158 = vmul.f32 %v3058, %v3150
        %v3159 = vmul.f32 %v2815, %v3150
        %v3168 = vrot.slane %v3152, 2
        %v3169 = vrot.slane %v3153, 2
        %v3170 = vsel %vm1671, %v3168, %v3169
        %v3171 = vrot.slane %v3154, 2
        %v3172 = vrot.slane %v3155, 2
        %v3173 = vsel %vm1671, %v3171, %v3172
        %v3174 = vrot.slane %v3156, 2
        %v3175 = vrot.slane %v3157, 2
        %v3176 = vsel %vm1671, %v3174, %v3175
        %v3177 = vrot.slane %v3158, 2
        %v3178 = vrot.slane %v3159, 2
        %v3179 = vsel %vm1671, %v3177, %v3178
        %3180 = vrot.lane.b32.xlu0 %v3170, 126
        %v3181 = vpop.permute.xlu0 %3180
        %3182 = vrot.lane.b32.xlu0 %v3173, 126
        %v3183 = vpop.permute.xlu0 %3182
        %3184 = vrot.lane.b32.xlu0 %v3176, 126
        %v3185 = vpop.permute.xlu0 %3184
        %3186 = vrot.lane.b32.xlu0 %v3179, 126
        %v3187 = vpop.permute.xlu0 %3186
        %v3192 = vadd.f32 %v3143, %v3181
        %v3193 = vadd.f32 %v3144, %v3183
        %v3194 = vadd.f32 %v3145, %v3185
        %v3195 = vadd.f32 %v3146, %v3187
        %v3197 = vrot.slane %v2668, 6
        %3198 = vrot.lane.b32.xlu0 %v3197, 3
        %v3199 = vpop.permute.xlu0 %3198
        %v3201 = vmul.f32 %v3055, %v3199
        %v3202 = vmul.f32 %v2812, %v3199
        %v3203 = vmul.f32 %v3056, %v3199
        %v3204 = vmul.f32 %v2813, %v3199
        %v3205 = vmul.f32 %v3057, %v3199
        %v3206 = vmul.f32 %v2814, %v3199
        %v3207 = vmul.f32 %v3058, %v3199
        %v3208 = vmul.f32 %v2815, %v3199
        %v3217 = vrot.slane %v3201, 2
        %v3218 = vrot.slane %v3202, 2
        %v3219 = vsel %vm1671, %v3217, %v3218
        %v3220 = vrot.slane %v3203, 2
        %v3221 = vrot.slane %v3204, 2
        %v3222 = vsel %vm1671, %v3220, %v3221
        %v3223 = vrot.slane %v3205, 2
        %v3224 = vrot.slane %v3206, 2
        %v3225 = vsel %vm1671, %v3223, %v3224
        %v3226 = vrot.slane %v3207, 2
        %v3227 = vrot.slane %v3208, 2
        %v3228 = vsel %vm1671, %v3226, %v3227
        %3229 = vrot.lane.b32.xlu0 %v3219, 125
        %v3230 = vpop.permute.xlu0 %3229
        %3231 = vrot.lane.b32.xlu0 %v3222, 125
        %v3232 = vpop.permute.xlu0 %3231
        %3233 = vrot.lane.b32.xlu0 %v3225, 125
        %v3234 = vpop.permute.xlu0 %3233
        %3235 = vrot.lane.b32.xlu0 %v3228, 125
        %v3236 = vpop.permute.xlu0 %3235
        %v3241 = vadd.f32 %v3192, %v3230
        %v3242 = vadd.f32 %v3193, %v3232
        %v3243 = vadd.f32 %v3194, %v3234
        %v3244 = vadd.f32 %v3195, %v3236
        %v3246 = vrot.slane %v2669, 6
        %3247 = vrot.lane.b32.xlu0 %v3246, 4
        %v3248 = vpop.permute.xlu0 %3247
        %v3250 = vmul.f32 %v3055, %v3248
        %v3251 = vmul.f32 %v2812, %v3248
        %v3252 = vmul.f32 %v3056, %v3248
        %v3253 = vmul.f32 %v2813, %v3248
        %v3254 = vmul.f32 %v3057, %v3248
        %v3255 = vmul.f32 %v2814, %v3248
        %v3256 = vmul.f32 %v3058, %v3248
        %v3257 = vmul.f32 %v2815, %v3248
        %v3266 = vrot.slane %v3250, 2
        %v3267 = vrot.slane %v3251, 2
        %v3268 = vsel %vm1671, %v3266, %v3267
        %v3269 = vrot.slane %v3252, 2
        %v3270 = vrot.slane %v3253, 2
        %v3271 = vsel %vm1671, %v3269, %v3270
        %v3272 = vrot.slane %v3254, 2
        %v3273 = vrot.slane %v3255, 2
        %v3274 = vsel %vm1671, %v3272, %v3273
        %v3275 = vrot.slane %v3256, 2
        %v3276 = vrot.slane %v3257, 2
        %v3277 = vsel %vm1671, %v3275, %v3276
        %3278 = vrot.lane.b32.xlu0 %v3268, 124
        %v3279 = vpop.permute.xlu0 %3278
        %3280 = vrot.lane.b32.xlu0 %v3271, 124
        %v3281 = vpop.permute.xlu0 %3280
        %3282 = vrot.lane.b32.xlu0 %v3274, 124
        %v3283 = vpop.permute.xlu0 %3282
        %3284 = vrot.lane.b32.xlu0 %v3277, 124
        %v3285 = vpop.permute.xlu0 %3284
        %v3290 = vadd.f32 %v3241, %v3279
        %v3291 = vadd.f32 %v3242, %v3281
        %v3292 = vadd.f32 %v3243, %v3283
        %v3293 = vadd.f32 %v3244, %v3285
        %v3294 = vld [vmem:[%s912 + $0x4] sm:$0x3]
        %v3295 = vld [vmem:[%s912 + $0xc] sm:$0x3]
        %v3296 = vld [vmem:[%s912 + $0x14] sm:$0x3]
        %v3297 = vld [vmem:[%s912 + $0x1c] sm:$0x3]
        %v3298 = vunpack.c.l.bf16 %v3294
        %v3299 = vunpack.c.l.bf16 %v3295
        %v3300 = vunpack.c.l.bf16 %v3296
        %v3301 = vunpack.c.l.bf16 %v3297
        %v3303 = vrot.slane %v2670, 5
        %v3305 = vmul.f32 %v3055, %v3303
        %v3306 = vmul.f32 %v3298, %v3303
        %v3307 = vmul.f32 %v3056, %v3303
        %v3308 = vmul.f32 %v3299, %v3303
        %v3309 = vmul.f32 %v3057, %v3303
        %v3310 = vmul.f32 %v3300, %v3303
        %v3311 = vmul.f32 %v3058, %v3303
        %v3312 = vmul.f32 %v3301, %v3303
        %v3321 = vrot.slane %v3305, 3
        %v3322 = vrot.slane %v3306, 3
        %v3323 = vsel %vm1915, %v3321, %v3322
        %v3324 = vrot.slane %v3307, 3
        %v3325 = vrot.slane %v3308, 3
        %v3326 = vsel %vm1915, %v3324, %v3325
        %v3327 = vrot.slane %v3309, 3
        %v3328 = vrot.slane %v3310, 3
        %v3329 = vsel %vm1915, %v3327, %v3328
        %v3330 = vrot.slane %v3311, 3
        %v3331 = vrot.slane %v3312, 3
        %v3332 = vsel %vm1915, %v3330, %v3331
        %v3337 = vadd.f32 %v3290, %v3323
        %v3338 = vadd.f32 %v3291, %v3326
        %v3339 = vadd.f32 %v3292, %v3329
        %v3340 = vadd.f32 %v3293, %v3332
        %v3342 = vrot.slane %v2671, 5
        %3343 = vrot.lane.b32.xlu0 %v3342, 1
        %v3344 = vpop.permute.xlu0 %3343
        %v3346 = vmul.f32 %v3055, %v3344
        %v3347 = vmul.f32 %v3298, %v3344
        %v3348 = vmul.f32 %v3056, %v3344
        %v3349 = vmul.f32 %v3299, %v3344
        %v3350 = vmul.f32 %v3057, %v3344
        %v3351 = vmul.f32 %v3300, %v3344
        %v3352 = vmul.f32 %v3058, %v3344
        %v3353 = vmul.f32 %v3301, %v3344
        %v3362 = vrot.slane %v3346, 3
        %v3363 = vrot.slane %v3347, 3
        %v3364 = vsel %vm1915, %v3362, %v3363
        %v3365 = vrot.slane %v3348, 3
        %v3366 = vrot.slane %v3349, 3
        %v3367 = vsel %vm1915, %v3365, %v3366
        %v3368 = vrot.slane %v3350, 3
        %v3369 = vrot.slane %v3351, 3
        %v3370 = vsel %vm1915, %v3368, %v3369
        %v3371 = vrot.slane %v3352, 3
        %v3372 = vrot.slane %v3353, 3
        %v3373 = vsel %vm1915, %v3371, %v3372
        %3374 = vrot.lane.b32.xlu0 %v3364, 127
        %v3375 = vpop.permute.xlu0 %3374
        %3376 = vrot.lane.b32.xlu0 %v3367, 127
        %v3377 = vpop.permute.xlu0 %3376
        %3378 = vrot.lane.b32.xlu0 %v3370, 127
        %v3379 = vpop.permute.xlu0 %3378
        %3380 = vrot.lane.b32.xlu0 %v3373, 127
        %v3381 = vpop.permute.xlu0 %3380
        %v3386 = vadd.f32 %v3337, %v3375
        %v3387 = vadd.f32 %v3338, %v3377
        %v3388 = vadd.f32 %v3339, %v3379
        %v3389 = vadd.f32 %v3340, %v3381
        %v3391 = vrot.slane %v2672, 5
        %3392 = vrot.lane.b32.xlu0 %v3391, 2
        %v3393 = vpop.permute.xlu0 %3392
        %v3395 = vmul.f32 %v3055, %v3393
        %v3396 = vmul.f32 %v3298, %v3393
        %v3397 = vmul.f32 %v3056, %v3393
        %v3398 = vmul.f32 %v3299, %v3393
        %v3399 = vmul.f32 %v3057, %v3393
        %v3400 = vmul.f32 %v3300, %v3393
        %v3401 = vmul.f32 %v3058, %v3393
        %v3402 = vmul.f32 %v3301, %v3393
        %v3411 = vrot.slane %v3395, 3
        %v3412 = vrot.slane %v3396, 3
        %v3413 = vsel %vm1915, %v3411, %v3412
        %v3414 = vrot.slane %v3397, 3
        %v3415 = vrot.slane %v3398, 3
        %v3416 = vsel %vm1915, %v3414, %v3415
        %v3417 = vrot.slane %v3399, 3
        %v3418 = vrot.slane %v3400, 3
        %v3419 = vsel %vm1915, %v3417, %v3418
        %v3420 = vrot.slane %v3401, 3
        %v3421 = vrot.slane %v3402, 3
        %v3422 = vsel %vm1915, %v3420, %v3421
        %3423 = vrot.lane.b32.xlu0 %v3413, 126
        %v3424 = vpop.permute.xlu0 %3423
        %3425 = vrot.lane.b32.xlu0 %v3416, 126
        %v3426 = vpop.permute.xlu0 %3425
        %3427 = vrot.lane.b32.xlu0 %v3419, 126
        %v3428 = vpop.permute.xlu0 %3427
        %3429 = vrot.lane.b32.xlu0 %v3422, 126
        %v3430 = vpop.permute.xlu0 %3429
        %v3435 = vadd.f32 %v3386, %v3424
        %v3436 = vadd.f32 %v3387, %v3426
        %v3437 = vadd.f32 %v3388, %v3428
        %v3438 = vadd.f32 %v3389, %v3430
        %v3440 = vrot.slane %v2673, 5
        %3441 = vrot.lane.b32.xlu0 %v3440, 3
        %v3442 = vpop.permute.xlu0 %3441
        %v3444 = vmul.f32 %v3055, %v3442
        %v3445 = vmul.f32 %v3298, %v3442
        %v3446 = vmul.f32 %v3056, %v3442
        %v3447 = vmul.f32 %v3299, %v3442
        %v3448 = vmul.f32 %v3057, %v3442
        %v3449 = vmul.f32 %v3300, %v3442
        %v3450 = vmul.f32 %v3058, %v3442
        %v3451 = vmul.f32 %v3301, %v3442
        %v3460 = vrot.slane %v3444, 3
        %v3461 = vrot.slane %v3445, 3
        %v3462 = vsel %vm1915, %v3460, %v3461
        %v3463 = vrot.slane %v3446, 3
        %v3464 = vrot.slane %v3447, 3
        %v3465 = vsel %vm1915, %v3463, %v3464
        %v3466 = vrot.slane %v3448, 3
        %v3467 = vrot.slane %v3449, 3
        %v3468 = vsel %vm1915, %v3466, %v3467
        %v3469 = vrot.slane %v3450, 3
        %v3470 = vrot.slane %v3451, 3
        %v3471 = vsel %vm1915, %v3469, %v3470
        %3472 = vrot.lane.b32.xlu0 %v3462, 125
        %v3473 = vpop.permute.xlu0 %3472
        %3474 = vrot.lane.b32.xlu0 %v3465, 125
        %v3475 = vpop.permute.xlu0 %3474
        %3476 = vrot.lane.b32.xlu0 %v3468, 125
        %v3477 = vpop.permute.xlu0 %3476
        %3478 = vrot.lane.b32.xlu0 %v3471, 125
        %v3479 = vpop.permute.xlu0 %3478
        %v3484 = vadd.f32 %v3435, %v3473
        %v3485 = vadd.f32 %v3436, %v3475
        %v3486 = vadd.f32 %v3437, %v3477
        %v3487 = vadd.f32 %v3438, %v3479
        %v3489 = vrot.slane %v2674, 5
        %3490 = vrot.lane.b32.xlu0 %v3489, 4
        %v3491 = vpop.permute.xlu0 %3490
        %v3493 = vmul.f32 %v3055, %v3491
        %v3494 = vmul.f32 %v3298, %v3491
        %v3495 = vmul.f32 %v3056, %v3491
        %v3496 = vmul.f32 %v3299, %v3491
        %v3497 = vmul.f32 %v3057, %v3491
        %v3498 = vmul.f32 %v3300, %v3491
        %v3499 = vmul.f32 %v3058, %v3491
        %v3500 = vmul.f32 %v3301, %v3491
        %v3509 = vrot.slane %v3493, 3
        %v3510 = vrot.slane %v3494, 3
        %v3511 = vsel %vm1915, %v3509, %v3510
        %v3512 = vrot.slane %v3495, 3
        %v3513 = vrot.slane %v3496, 3
        %v3514 = vsel %vm1915, %v3512, %v3513
        %v3515 = vrot.slane %v3497, 3
        %v3516 = vrot.slane %v3498, 3
        %v3517 = vsel %vm1915, %v3515, %v3516
        %v3518 = vrot.slane %v3499, 3
        %v3519 = vrot.slane %v3500, 3
        %v3520 = vsel %vm1915, %v3518, %v3519
        %3521 = vrot.lane.b32.xlu0 %v3511, 124
        %v3522 = vpop.permute.xlu0 %3521
        %3523 = vrot.lane.b32.xlu0 %v3514, 124
        %v3524 = vpop.permute.xlu0 %3523
        %3525 = vrot.lane.b32.xlu0 %v3517, 124
        %v3526 = vpop.permute.xlu0 %3525
        %3527 = vrot.lane.b32.xlu0 %v3520, 124
        %v3528 = vpop.permute.xlu0 %3527
        %v3533 = vadd.f32 %v3484, %v3522
        %v3534 = vadd.f32 %v3485, %v3524
        %v3535 = vadd.f32 %v3486, %v3526
        %v3536 = vadd.f32 %v3487, %v3528
        %v3537 = vld [vmem:[%s912] sm:$0xc]
        %v3538 = vld [vmem:[%s912 + $0x8] sm:$0xc]
        %v3539 = vld [vmem:[%s912 + $0x10] sm:$0xc]
        %v3540 = vld [vmem:[%s912 + $0x18] sm:$0xc]
        %v3541 = vunpack.c.l.bf16 %v3537
        %v3542 = vunpack.c.l.bf16 %v3538
        %v3543 = vunpack.c.l.bf16 %v3539
        %v3544 = vunpack.c.l.bf16 %v3540
        %v3546 = vrot.slane %v2675, 4
        %v3548 = vmul.f32 %v3541, %v3546
        %v3549 = vmul.f32 %v3298, %v3546
        %v3550 = vmul.f32 %v3542, %v3546
        %v3551 = vmul.f32 %v3299, %v3546
        %v3552 = vmul.f32 %v3543, %v3546
        %v3553 = vmul.f32 %v3300, %v3546
        %v3554 = vmul.f32 %v3544, %v3546
        %v3555 = vmul.f32 %v3301, %v3546
        %v3564 = vrot.slane %v3548, 4
        %v3565 = vrot.slane %v3549, 4
        %v3566 = vsel %vm2159, %v3564, %v3565
        %v3567 = vrot.slane %v3550, 4
        %v3568 = vrot.slane %v3551, 4
        %v3569 = vsel %vm2159, %v3567, %v3568
        %v3570 = vrot.slane %v3552, 4
        %v3571 = vrot.slane %v3553, 4
        %v3572 = vsel %vm2159, %v3570, %v3571
        %v3573 = vrot.slane %v3554, 4
        %v3574 = vrot.slane %v3555, 4
        %v3575 = vsel %vm2159, %v3573, %v3574
        %v3580 = vadd.f32 %v3533, %v3566
        %v3581 = vadd.f32 %v3534, %v3569
        %v3582 = vadd.f32 %v3535, %v3572
        %v3583 = vadd.f32 %v3536, %v3575
        %v3585 = vrot.slane %v2676, 4
        %3586 = vrot.lane.b32.xlu0 %v3585, 1
        %v3587 = vpop.permute.xlu0 %3586
        %v3589 = vmul.f32 %v3541, %v3587
        %v3590 = vmul.f32 %v3298, %v3587
        %v3591 = vmul.f32 %v3542, %v3587
        %v3592 = vmul.f32 %v3299, %v3587
        %v3593 = vmul.f32 %v3543, %v3587
        %v3594 = vmul.f32 %v3300, %v3587
        %v3595 = vmul.f32 %v3544, %v3587
        %v3596 = vmul.f32 %v3301, %v3587
        %v3605 = vrot.slane %v3589, 4
        %v3606 = vrot.slane %v3590, 4
        %v3607 = vsel %vm2159, %v3605, %v3606
        %v3608 = vrot.slane %v3591, 4
        %v3609 = vrot.slane %v3592, 4
        %v3610 = vsel %vm2159, %v3608, %v3609
        %v3611 = vrot.slane %v3593, 4
        %v3612 = vrot.slane %v3594, 4
        %v3613 = vsel %vm2159, %v3611, %v3612
        %v3614 = vrot.slane %v3595, 4
        %v3615 = vrot.slane %v3596, 4
        %v3616 = vsel %vm2159, %v3614, %v3615
        %3617 = vrot.lane.b32.xlu0 %v3607, 127
        %v3618 = vpop.permute.xlu0 %3617
        %3619 = vrot.lane.b32.xlu0 %v3610, 127
        %v3620 = vpop.permute.xlu0 %3619
        %3621 = vrot.lane.b32.xlu0 %v3613, 127
        %v3622 = vpop.permute.xlu0 %3621
        %3623 = vrot.lane.b32.xlu0 %v3616, 127
        %v3624 = vpop.permute.xlu0 %3623
        %v3629 = vadd.f32 %v3580, %v3618
        %v3630 = vadd.f32 %v3581, %v3620
        %v3631 = vadd.f32 %v3582, %v3622
        %v3632 = vadd.f32 %v3583, %v3624
        %v3634 = vrot.slane %v2677, 4
        %3635 = vrot.lane.b32.xlu0 %v3634, 2
        %v3636 = vpop.permute.xlu0 %3635
        %v3638 = vmul.f32 %v3541, %v3636
        %v3639 = vmul.f32 %v3298, %v3636
        %v3640 = vmul.f32 %v3542, %v3636
        %v3641 = vmul.f32 %v3299, %v3636
        %v3642 = vmul.f32 %v3543, %v3636
        %v3643 = vmul.f32 %v3300, %v3636
        %v3644 = vmul.f32 %v3544, %v3636
        %v3645 = vmul.f32 %v3301, %v3636
        %v3654 = vrot.slane %v3638, 4
        %v3655 = vrot.slane %v3639, 4
        %v3656 = vsel %vm2159, %v3654, %v3655
        %v3657 = vrot.slane %v3640, 4
        %v3658 = vrot.slane %v3641, 4
        %v3659 = vsel %vm2159, %v3657, %v3658
        %v3660 = vrot.slane %v3642, 4
        %v3661 = vrot.slane %v3643, 4
        %v3662 = vsel %vm2159, %v3660, %v3661
        %v3663 = vrot.slane %v3644, 4
        %v3664 = vrot.slane %v3645, 4
        %v3665 = vsel %vm2159, %v3663, %v3664
        %3666 = vrot.lane.b32.xlu0 %v3656, 126
        %v3667 = vpop.permute.xlu0 %3666
        %3668 = vrot.lane.b32.xlu0 %v3659, 126
        %v3669 = vpop.permute.xlu0 %3668
        %3670 = vrot.lane.b32.xlu0 %v3662, 126
        %v3671 = vpop.permute.xlu0 %3670
        %3672 = vrot.lane.b32.xlu0 %v3665, 126
        %v3673 = vpop.permute.xlu0 %3672
        %v3678 = vadd.f32 %v3629, %v3667
        %v3679 = vadd.f32 %v3630, %v3669
        %v3680 = vadd.f32 %v3631, %v3671
        %v3681 = vadd.f32 %v3632, %v3673
        %v3683 = vrot.slane %v2678, 4
        %3684 = vrot.lane.b32.xlu0 %v3683, 3
        %v3685 = vpop.permute.xlu0 %3684
        %v3687 = vmul.f32 %v3541, %v3685
        %v3688 = vmul.f32 %v3298, %v3685
        %v3689 = vmul.f32 %v3542, %v3685
        %v3690 = vmul.f32 %v3299, %v3685
        %v3691 = vmul.f32 %v3543, %v3685
        %v3692 = vmul.f32 %v3300, %v3685
        %v3693 = vmul.f32 %v3544, %v3685
        %v3694 = vmul.f32 %v3301, %v3685
        %v3703 = vrot.slane %v3687, 4
        %v3704 = vrot.slane %v3688, 4
        %v3705 = vsel %vm2159, %v3703, %v3704
        %v3706 = vrot.slane %v3689, 4
        %v3707 = vrot.slane %v3690, 4
        %v3708 = vsel %vm2159, %v3706, %v3707
        %v3709 = vrot.slane %v3691, 4
        %v3710 = vrot.slane %v3692, 4
        %v3711 = vsel %vm2159, %v3709, %v3710
        %v3712 = vrot.slane %v3693, 4
        %v3713 = vrot.slane %v3694, 4
        %v3714 = vsel %vm2159, %v3712, %v3713
        %3715 = vrot.lane.b32.xlu0 %v3705, 125
        %v3716 = vpop.permute.xlu0 %3715
        %3717 = vrot.lane.b32.xlu0 %v3708, 125
        %v3718 = vpop.permute.xlu0 %3717
        %3719 = vrot.lane.b32.xlu0 %v3711, 125
        %v3720 = vpop.permute.xlu0 %3719
        %3721 = vrot.lane.b32.xlu0 %v3714, 125
        %v3722 = vpop.permute.xlu0 %3721
        %v3727 = vadd.f32 %v3678, %v3716
        %v3728 = vadd.f32 %v3679, %v3718
        %v3729 = vadd.f32 %v3680, %v3720
        %v3730 = vadd.f32 %v3681, %v3722
        %v3732 = vrot.slane %v2679, 4
        %3733 = vrot.lane.b32.xlu0 %v3732, 4
        %v3734 = vpop.permute.xlu0 %3733
        %v3736 = vmul.f32 %v3541, %v3734
        %v3737 = vmul.f32 %v3298, %v3734
        %v3738 = vmul.f32 %v3542, %v3734
        %v3739 = vmul.f32 %v3299, %v3734
        %v3740 = vmul.f32 %v3543, %v3734
        %v3741 = vmul.f32 %v3300, %v3734
        %v3742 = vmul.f32 %v3544, %v3734
        %v3743 = vmul.f32 %v3301, %v3734
        %v3752 = vrot.slane %v3736, 4
        %v3753 = vrot.slane %v3737, 4
        %v3754 = vsel %vm2159, %v3752, %v3753
        %v3755 = vrot.slane %v3738, 4
        %v3756 = vrot.slane %v3739, 4
        %v3757 = vsel %vm2159, %v3755, %v3756
        %v3758 = vrot.slane %v3740, 4
        %v3759 = vrot.slane %v3741, 4
        %v3760 = vsel %vm2159, %v3758, %v3759
        %v3761 = vrot.slane %v3742, 4
        %v3762 = vrot.slane %v3743, 4
        %v3763 = vsel %vm2159, %v3761, %v3762
        %3764 = vrot.lane.b32.xlu0 %v3754, 124
        %v3765 = vpop.permute.xlu0 %3764
        %3766 = vrot.lane.b32.xlu0 %v3757, 124
        %v3767 = vpop.permute.xlu0 %3766
        %3768 = vrot.lane.b32.xlu0 %v3760, 124
        %v3769 = vpop.permute.xlu0 %3768
        %3770 = vrot.lane.b32.xlu0 %v3763, 124
        %v3771 = vpop.permute.xlu0 %3770
        %v3776 = vadd.f32 %v3727, %v3765
        %v3777 = vadd.f32 %v3728, %v3767
        %v3778 = vadd.f32 %v3729, %v3769
        %v3779 = vadd.f32 %v3730, %v3771
        %s3780 = scalar_lea.vmem %s926, 16
        %v3781 = vld [vmem:[%s3780] sm:$0xf]
        %v3782 = vld [vmem:[%s3780 + $0x4] sm:$0xf]
        %v3783 = vld [vmem:[%s3780 + $0x8] sm:$0xf]
        %v3784 = vld [vmem:[%s3780 + $0xc] sm:$0xf]
        %v3785 = vunpack.c.l.bf16 %v3781
        %v3786 = vunpack.c.l.bf16 %v3782
        %v3787 = vunpack.c.l.bf16 %v3783
        %v3788 = vunpack.c.l.bf16 %v3784
        %v3789 = vmul.f32 %v945, %v3785
        %v3790 = vmul.f32 %v945, %v3786
        %v3791 = vmul.f32 %v945, %v3787
        %v3792 = vmul.f32 %v945, %v3788
        %v3793 = vmul.f32 %v946, %v3776
        %v3794 = vmul.f32 %v946, %v3777
        %v3795 = vmul.f32 %v946, %v3778
        %v3796 = vmul.f32 %v946, %v3779
        %v3797 = vadd.f32 %v3789, %v3793
        %v3798 = vadd.f32 %v3790, %v3794
        %v3799 = vadd.f32 %v3791, %v3795
        %v3800 = vadd.f32 %v3792, %v3796
        %v3801 = vpack.c.bf16 %v3797, %v3797
        %v3802 = vpack.c.bf16 %v3798, %v3798
        %v3803 = vpack.c.bf16 %v3799, %v3799
        %v3804 = vpack.c.bf16 %v3800, %v3800
        %s3805 = scalar_lea.vmem %s936, 16
        %3806 = vst.msk [vmem:[%s3805] sm:$0xf] %vm2400, %v3801
        %3807 = vst.msk [vmem:[%s3805 + $0x4] sm:$0xf] %vm2400, %v3802
        %3808 = vst.msk [vmem:[%s3805 + $0x8] sm:$0xf] %vm2400, %v3803
        %3809 = vst.msk [vmem:[%s3805 + $0xc] sm:$0xf] %vm2400, %v3804
        %s3810 = scalar_lea.vmem %s840, 8 [#allocation2]
        %v3811 = vld [vmem:[%s3810] sm:$0xf]
        %v3812 = vld [vmem:[%s3810 + $0x10] sm:$0xf]
        %v3813 = vld [vmem:[%s3810 + $0x20] sm:$0xf]
        %v3814 = vld [vmem:[%s3810 + $0x30] sm:$0xf]
        %v3815 = vld [vmem:[%s3810 + $0x40] sm:$0xf]
        %v3816 = vld [vmem:[%s3810 + $0x50] sm:$0xf]
        %v3817 = vld [vmem:[%s3810 + $0x60] sm:$0xf]
        %v3818 = vld [vmem:[%s3810 + $0x70] sm:$0xf]
        %v3819 = vld [vmem:[%s3810 + $0x80] sm:$0xf]
        %v3820 = vld [vmem:[%s3810 + $0x90] sm:$0xf]
        %v3821 = vld [vmem:[%s3810 + $0xa0] sm:$0xf]
        %v3822 = vld [vmem:[%s3810 + $0xb0] sm:$0xf]
        %v3823 = vld [vmem:[%s3810 + $0xc0] sm:$0xf]
        %v3824 = vld [vmem:[%s3810 + $0xd0] sm:$0xf]
        %v3825 = vld [vmem:[%s3810 + $0xe0] sm:$0xf]
        %v3826 = vld [vmem:[%s3810 + $0xf0] sm:$0xf]
        %v3827 = vld [vmem:[%s3810 + $0x100] sm:$0xf]
        %v3828 = vld [vmem:[%s3810 + $0x110] sm:$0xf]
        %v3829 = vld [vmem:[%s3810 + $0x120] sm:$0xf]
        %v3830 = vld [vmem:[%s3810 + $0x130] sm:$0xf]
        %v3831 = vld [vmem:[%s3810 + $0x140] sm:$0xf]
        %v3832 = vld [vmem:[%s3810 + $0x150] sm:$0xf]
        %v3833 = vld [vmem:[%s3810 + $0x160] sm:$0xf]
        %v3834 = vld [vmem:[%s3810 + $0x170] sm:$0xf]
        %v3835 = vld [vmem:[%s3810 + $0x180] sm:$0xf]
        %v3836 = vunpack.c.l.bf16 %v3811
        %v3837 = vunpack.c.l.bf16 %v3812
        %v3838 = vunpack.c.l.bf16 %v3813
        %v3839 = vunpack.c.l.bf16 %v3814
        %v3840 = vunpack.c.l.bf16 %v3815
        %v3841 = vunpack.c.l.bf16 %v3816
        %v3842 = vunpack.c.l.bf16 %v3817
        %v3843 = vunpack.c.l.bf16 %v3818
        %v3844 = vunpack.c.l.bf16 %v3819
        %v3845 = vunpack.c.l.bf16 %v3820
        %v3846 = vunpack.c.l.bf16 %v3821
        %v3847 = vunpack.c.l.bf16 %v3822
        %v3848 = vunpack.c.l.bf16 %v3823
        %v3849 = vunpack.c.l.bf16 %v3824
        %v3850 = vunpack.c.l.bf16 %v3825
        %v3851 = vunpack.c.l.bf16 %v3826
        %v3852 = vunpack.c.l.bf16 %v3827
        %v3853 = vunpack.c.l.bf16 %v3828
        %v3854 = vunpack.c.l.bf16 %v3829
        %v3855 = vunpack.c.l.bf16 %v3830
        %v3856 = vunpack.c.l.bf16 %v3831
        %v3857 = vunpack.c.l.bf16 %v3832
        %v3858 = vunpack.c.l.bf16 %v3833
        %v3859 = vunpack.c.l.bf16 %v3834
        %v3860 = vunpack.c.l.bf16 %v3835
        %v3861 = vadd.f32 %v3836, %v972
        %v3862 = vadd.f32 %v3837, %v973
        %v3863 = vadd.f32 %v3838, %v974
        %v3864 = vadd.f32 %v3839, %v975
        %v3865 = vadd.f32 %v3840, %v976
        %v3866 = vadd.f32 %v3841, %v977
        %v3867 = vadd.f32 %v3842, %v978
        %v3868 = vadd.f32 %v3843, %v979
        %v3869 = vadd.f32 %v3844, %v980
        %v3870 = vadd.f32 %v3845, %v981
        %v3871 = vadd.f32 %v3846, %v982
        %v3872 = vadd.f32 %v3847, %v983
        %v3873 = vadd.f32 %v3848, %v984
        %v3874 = vadd.f32 %v3849, %v985
        %v3875 = vadd.f32 %v3850, %v986
        %v3876 = vadd.f32 %v3851, %v987
        %v3877 = vadd.f32 %v3852, %v988
        %v3878 = vadd.f32 %v3853, %v989
        %v3879 = vadd.f32 %v3854, %v990
        %v3880 = vadd.f32 %v3855, %v991
        %v3881 = vadd.f32 %v3856, %v992
        %v3882 = vadd.f32 %v3857, %v993
        %v3883 = vadd.f32 %v3858, %v994
        %v3884 = vadd.f32 %v3859, %v995
        %v3885 = vadd.f32 %v3860, %v996
        %v3886 = vsel %vm1072, %v3861, -inf
        %v3887 = vsel %vm1072, %v3862, -inf
        %v3888 = vsel %vm1072, %v3863, -inf
        %v3889 = vsel %vm1072, %v3864, -inf
        %v3890 = vsel %vm1072, %v3865, -inf
        %v3891 = vmax.f32 %v3886, %v3890
        %v3892 = vsel %vm1072, %v3866, -inf
        %v3893 = vmax.f32 %v3887, %v3892
        %v3894 = vsel %vm1072, %v3867, -inf
        %v3895 = vmax.f32 %v3888, %v3894
        %v3896 = vsel %vm1072, %v3868, -inf
        %v3897 = vmax.f32 %v3889, %v3896
        %v3898 = vsel %vm1072, %v3869, -inf
        %v3899 = vmax.f32 %v3891, %v3898
        %v3900 = vsel %vm1072, %v3870, -inf
        %v3901 = vmax.f32 %v3893, %v3900
        %v3902 = vsel %vm1072, %v3871, -inf
        %v3903 = vmax.f32 %v3895, %v3902
        %v3904 = vsel %vm1072, %v3872, -inf
        %v3905 = vmax.f32 %v3897, %v3904
        %v3906 = vsel %vm1072, %v3873, -inf
        %v3907 = vmax.f32 %v3899, %v3906
        %v3908 = vsel %vm1072, %v3874, -inf
        %v3909 = vmax.f32 %v3901, %v3908
        %v3910 = vsel %vm1072, %v3875, -inf
        %v3911 = vmax.f32 %v3903, %v3910
        %v3912 = vsel %vm1072, %v3876, -inf
        %v3913 = vmax.f32 %v3905, %v3912
        %v3914 = vsel %vm1072, %v3877, -inf
        %v3915 = vmax.f32 %v3907, %v3914
        %v3916 = vsel %vm1072, %v3878, -inf
        %v3917 = vmax.f32 %v3909, %v3916
        %v3918 = vsel %vm1072, %v3879, -inf
        %v3919 = vmax.f32 %v3911, %v3918
        %v3920 = vsel %vm1072, %v3880, -inf
        %v3921 = vmax.f32 %v3913, %v3920
        %v3922 = vsel %vm1072, %v3881, -inf
        %v3923 = vmax.f32 %v3915, %v3922
        %v3924 = vsel %vm1072, %v3882, -inf
        %v3925 = vmax.f32 %v3917, %v3924
        %v3926 = vsel %vm1072, %v3883, -inf
        %v3927 = vmax.f32 %v3919, %v3926
        %v3928 = vsel %vm1072, %v3884, -inf
        %v3929 = vmax.f32 %v3921, %v3928
        %v3930 = vsel %vm1072, %v3885, -inf
        %v3931 = vmax.f32 %v3923, %v3930
        %v3932 = vmax.f32 %v3931, %v3925
        %v3933 = vmax.f32 %v3927, %v3929
        %v3934 = vmax.f32 %v3932, %v3933
        %v3935 = vsub.f32 %v3861, %v3934
        %v3936 = vsub.f32 %v3862, %v3934
        %v3937 = vsub.f32 %v3863, %v3934
        %v3938 = vsub.f32 %v3864, %v3934
        %v3939 = vsub.f32 %v3865, %v3934
        %v3940 = vsub.f32 %v3866, %v3934
        %v3941 = vsub.f32 %v3867, %v3934
        %v3942 = vsub.f32 %v3868, %v3934
        %v3943 = vsub.f32 %v3869, %v3934
        %v3944 = vsub.f32 %v3870, %v3934
        %v3945 = vsub.f32 %v3871, %v3934
        %v3946 = vsub.f32 %v3872, %v3934
        %v3947 = vsub.f32 %v3873, %v3934
        %v3948 = vsub.f32 %v3874, %v3934
        %v3949 = vsub.f32 %v3875, %v3934
        %v3950 = vsub.f32 %v3876, %v3934
        %v3951 = vsub.f32 %v3877, %v3934
        %v3952 = vsub.f32 %v3878, %v3934
        %v3953 = vsub.f32 %v3879, %v3934
        %v3954 = vsub.f32 %v3880, %v3934
        %v3955 = vsub.f32 %v3881, %v3934
        %v3956 = vsub.f32 %v3882, %v3934
        %v3957 = vsub.f32 %v3883, %v3934
        %v3958 = vsub.f32 %v3884, %v3934
        %v3959 = vsub.f32 %v3885, %v3934
        %v3960 = vmul.f32 %v3935, 1.442695
        %v3961 = vpow.pop %v3960
        %v3962 = vmul.f32 %v3936, 1.442695
        %v3963 = vpow.pop %v3962
        %v3964 = vmul.f32 %v3937, 1.442695
        %v3965 = vpow.pop %v3964
        %v3966 = vmul.f32 %v3938, 1.442695
        %v3967 = vpow.pop %v3966
        %v3968 = vmul.f32 %v3939, 1.442695
        %v3969 = vpow.pop %v3968
        %v3970 = vmul.f32 %v3940, 1.442695
        %v3971 = vpow.pop %v3970
        %v3972 = vmul.f32 %v3941, 1.442695
        %v3973 = vpow.pop %v3972
        %v3974 = vmul.f32 %v3942, 1.442695
        %v3975 = vpow.pop %v3974
        %v3976 = vmul.f32 %v3943, 1.442695
        %v3977 = vpow.pop %v3976
        %v3978 = vmul.f32 %v3944, 1.442695
        %v3979 = vpow.pop %v3978
        %v3980 = vmul.f32 %v3945, 1.442695
        %v3981 = vpow.pop %v3980
        %v3982 = vmul.f32 %v3946, 1.442695
        %v3983 = vpow.pop %v3982
        %v3984 = vmul.f32 %v3947, 1.442695
        %v3985 = vpow.pop %v3984
        %v3986 = vmul.f32 %v3948, 1.442695
        %v3987 = vpow.pop %v3986
        %v3988 = vmul.f32 %v3949, 1.442695
        %v3989 = vpow.pop %v3988
        %v3990 = vmul.f32 %v3950, 1.442695
        %v3991 = vpow.pop %v3990
        %v3992 = vmul.f32 %v3951, 1.442695
        %v3993 = vpow.pop %v3992
        %v3994 = vmul.f32 %v3952, 1.442695
        %v3995 = vpow.pop %v3994
        %v3996 = vmul.f32 %v3953, 1.442695
        %v3997 = vpow.pop %v3996
        %v3998 = vmul.f32 %v3954, 1.442695
        %v3999 = vpow.pop %v3998
        %v4000 = vmul.f32 %v3955, 1.442695
        %v4001 = vpow.pop %v4000
        %v4002 = vmul.f32 %v3956, 1.442695
        %v4003 = vpow.pop %v4002
        %v4004 = vmul.f32 %v3957, 1.442695
        %v4005 = vpow.pop %v4004
        %v4006 = vmul.f32 %v3958, 1.442695
        %v4007 = vpow.pop %v4006
        %v4008 = vmul.f32 %v3959, 1.442695
        %v4009 = vpow.pop %v4008
        %v4010 = vsel %vm1072, %v3961, 0.0
        %v4011 = vsel %vm1072, %v3963, 0.0
        %v4012 = vadd.f32 %v4010, %v4011
        %v4013 = vsel %vm1072, %v3965, 0.0
        %v4014 = vadd.f32 %v4012, %v4013
        %v4015 = vsel %vm1072, %v3967, 0.0
        %v4016 = vadd.f32 %v4014, %v4015
        %v4017 = vsel %vm1072, %v3969, 0.0
        %v4018 = vadd.f32 %v4016, %v4017
        %v4019 = vsel %vm1072, %v3971, 0.0
        %v4020 = vadd.f32 %v4018, %v4019
        %v4021 = vsel %vm1072, %v3973, 0.0
        %v4022 = vadd.f32 %v4020, %v4021
        %v4023 = vsel %vm1072, %v3975, 0.0
        %v4024 = vadd.f32 %v4022, %v4023
        %v4025 = vsel %vm1072, %v3977, 0.0
        %v4026 = vadd.f32 %v4024, %v4025
        %v4027 = vsel %vm1072, %v3979, 0.0
        %v4028 = vadd.f32 %v4026, %v4027
        %v4029 = vsel %vm1072, %v3981, 0.0
        %v4030 = vadd.f32 %v4028, %v4029
        %v4031 = vsel %vm1072, %v3983, 0.0
        %v4032 = vadd.f32 %v4030, %v4031
        %v4033 = vsel %vm1072, %v3985, 0.0
        %v4034 = vadd.f32 %v4032, %v4033
        %v4035 = vsel %vm1072, %v3987, 0.0
        %v4036 = vadd.f32 %v4034, %v4035
        %v4037 = vsel %vm1072, %v3989, 0.0
        %v4038 = vadd.f32 %v4036, %v4037
        %v4039 = vsel %vm1072, %v3991, 0.0
        %v4040 = vadd.f32 %v4038, %v4039
        %v4041 = vsel %vm1072, %v3993, 0.0
        %v4042 = vadd.f32 %v4040, %v4041
        %v4043 = vsel %vm1072, %v3995, 0.0
        %v4044 = vadd.f32 %v4042, %v4043
        %v4045 = vsel %vm1072, %v3997, 0.0
        %v4046 = vadd.f32 %v4044, %v4045
        %v4047 = vsel %vm1072, %v3999, 0.0
        %v4048 = vadd.f32 %v4046, %v4047
        %v4049 = vsel %vm1072, %v4001, 0.0
        %v4050 = vadd.f32 %v4048, %v4049
        %v4051 = vsel %vm1072, %v4003, 0.0
        %v4052 = vadd.f32 %v4050, %v4051
        %v4053 = vsel %vm1072, %v4005, 0.0
        %v4054 = vadd.f32 %v4052, %v4053
        %v4055 = vsel %vm1072, %v4007, 0.0
        %v4056 = vadd.f32 %v4054, %v4055
        %v4057 = vsel %vm1072, %v4009, 0.0
        %v4058 = vadd.f32 %v4056, %v4057
        %v4059 = vrcp.pop %v4058
        %v4060 = vmul.f32 %v3961, %v4059
        %v4061 = vmul.f32 %v3963, %v4059
        %v4062 = vmul.f32 %v3965, %v4059
        %v4063 = vmul.f32 %v3967, %v4059
        %v4064 = vmul.f32 %v3969, %v4059
        %v4065 = vmul.f32 %v3971, %v4059
        %v4066 = vmul.f32 %v3973, %v4059
        %v4067 = vmul.f32 %v3975, %v4059
        %v4068 = vmul.f32 %v3977, %v4059
        %v4069 = vmul.f32 %v3979, %v4059
        %v4070 = vmul.f32 %v3981, %v4059
        %v4071 = vmul.f32 %v3983, %v4059
        %v4072 = vmul.f32 %v3985, %v4059
        %v4073 = vmul.f32 %v3987, %v4059
        %v4074 = vmul.f32 %v3989, %v4059
        %v4075 = vmul.f32 %v3991, %v4059
        %v4076 = vmul.f32 %v3993, %v4059
        %v4077 = vmul.f32 %v3995, %v4059
        %v4078 = vmul.f32 %v3997, %v4059
        %v4079 = vmul.f32 %v3999, %v4059
        %v4080 = vmul.f32 %v4001, %v4059
        %v4081 = vmul.f32 %v4003, %v4059
        %v4082 = vmul.f32 %v4005, %v4059
        %v4083 = vmul.f32 %v4007, %v4059
        %v4084 = vmul.f32 %v4009, %v4059
        %v4085 = vld [vmem:[%s912] sm:$0xf]
        %v4086 = vld [vmem:[%s912 + $0x8] sm:$0xf]
        %v4087 = vld [vmem:[%s912 + $0x10] sm:$0xf]
        %v4088 = vld [vmem:[%s912 + $0x18] sm:$0xf]
        %v4089 = vunpack.c.l.bf16 %v4085
        %v4090 = vunpack.c.l.bf16 %v4086
        %v4091 = vunpack.c.l.bf16 %v4087
        %v4092 = vunpack.c.l.bf16 %v4088
        %v4093 = vmul.f32 %v4089, %v4060
        %v4094 = vmul.f32 %v4090, %v4060
        %v4095 = vmul.f32 %v4091, %v4060
        %v4096 = vmul.f32 %v4092, %v4060
        %v4097 = vadd.f32 %v4093, 0.0
        %v4098 = vadd.f32 %v4094, 0.0
        %v4099 = vadd.f32 %v4095, 0.0
        %v4100 = vadd.f32 %v4096, 0.0
        %4102 = vrot.lane.b32.xlu0 %v4061, 1
        %v4103 = vpop.permute.xlu0 %4102
        %v4105 = vmul.f32 %v4089, %v4103
        %v4106 = vmul.f32 %v4090, %v4103
        %v4107 = vmul.f32 %v4091, %v4103
        %v4108 = vmul.f32 %v4092, %v4103
        %4113 = vrot.lane.b32.xlu0 %v4105, 127
        %v4114 = vpop.permute.xlu0 %4113
        %4115 = vrot.lane.b32.xlu0 %v4106, 127
        %v4116 = vpop.permute.xlu0 %4115
        %4117 = vrot.lane.b32.xlu0 %v4107, 127
        %v4118 = vpop.permute.xlu0 %4117
        %4119 = vrot.lane.b32.xlu0 %v4108, 127
        %v4120 = vpop.permute.xlu0 %4119
        %v4125 = vadd.f32 %v4097, %v4114
        %v4126 = vadd.f32 %v4098, %v4116
        %v4127 = vadd.f32 %v4099, %v4118
        %v4128 = vadd.f32 %v4100, %v4120
        %4130 = vrot.lane.b32.xlu0 %v4062, 2
        %v4131 = vpop.permute.xlu0 %4130
        %v4133 = vmul.f32 %v4089, %v4131
        %v4134 = vmul.f32 %v4090, %v4131
        %v4135 = vmul.f32 %v4091, %v4131
        %v4136 = vmul.f32 %v4092, %v4131
        %4141 = vrot.lane.b32.xlu0 %v4133, 126
        %v4142 = vpop.permute.xlu0 %4141
        %4143 = vrot.lane.b32.xlu0 %v4134, 126
        %v4144 = vpop.permute.xlu0 %4143
        %4145 = vrot.lane.b32.xlu0 %v4135, 126
        %v4146 = vpop.permute.xlu0 %4145
        %4147 = vrot.lane.b32.xlu0 %v4136, 126
        %v4148 = vpop.permute.xlu0 %4147
        %v4153 = vadd.f32 %v4125, %v4142
        %v4154 = vadd.f32 %v4126, %v4144
        %v4155 = vadd.f32 %v4127, %v4146
        %v4156 = vadd.f32 %v4128, %v4148
        %4158 = vrot.lane.b32.xlu0 %v4063, 3
        %v4159 = vpop.permute.xlu0 %4158
        %v4161 = vmul.f32 %v4089, %v4159
        %v4162 = vmul.f32 %v4090, %v4159
        %v4163 = vmul.f32 %v4091, %v4159
        %v4164 = vmul.f32 %v4092, %v4159
        %4169 = vrot.lane.b32.xlu0 %v4161, 125
        %v4170 = vpop.permute.xlu0 %4169
        %4171 = vrot.lane.b32.xlu0 %v4162, 125
        %v4172 = vpop.permute.xlu0 %4171
        %4173 = vrot.lane.b32.xlu0 %v4163, 125
        %v4174 = vpop.permute.xlu0 %4173
        %4175 = vrot.lane.b32.xlu0 %v4164, 125
        %v4176 = vpop.permute.xlu0 %4175
        %v4181 = vadd.f32 %v4153, %v4170
        %v4182 = vadd.f32 %v4154, %v4172
        %v4183 = vadd.f32 %v4155, %v4174
        %v4184 = vadd.f32 %v4156, %v4176
        %4186 = vrot.lane.b32.xlu0 %v4064, 4
        %v4187 = vpop.permute.xlu0 %4186
        %v4189 = vmul.f32 %v4089, %v4187
        %v4190 = vmul.f32 %v4090, %v4187
        %v4191 = vmul.f32 %v4091, %v4187
        %v4192 = vmul.f32 %v4092, %v4187
        %4197 = vrot.lane.b32.xlu0 %v4189, 124
        %v4198 = vpop.permute.xlu0 %4197
        %4199 = vrot.lane.b32.xlu0 %v4190, 124
        %v4200 = vpop.permute.xlu0 %4199
        %4201 = vrot.lane.b32.xlu0 %v4191, 124
        %v4202 = vpop.permute.xlu0 %4201
        %4203 = vrot.lane.b32.xlu0 %v4192, 124
        %v4204 = vpop.permute.xlu0 %4203
        %v4209 = vadd.f32 %v4181, %v4198
        %v4210 = vadd.f32 %v4182, %v4200
        %v4211 = vadd.f32 %v4183, %v4202
        %v4212 = vadd.f32 %v4184, %v4204
        %v4213 = vld [vmem:[%s912 + $0x4] sm:$0x1]
        %v4214 = vld [vmem:[%s912 + $0xc] sm:$0x1]
        %v4215 = vld [vmem:[%s912 + $0x14] sm:$0x1]
        %v4216 = vld [vmem:[%s912 + $0x1c] sm:$0x1]
        %v4217 = vunpack.c.l.bf16 %v4213
        %v4218 = vunpack.c.l.bf16 %v4214
        %v4219 = vunpack.c.l.bf16 %v4215
        %v4220 = vunpack.c.l.bf16 %v4216
        %v4222 = vrot.slane %v4065, 7
        %v4224 = vmul.f32 %v4089, %v4222
        %v4225 = vmul.f32 %v4217, %v4222
        %v4226 = vmul.f32 %v4090, %v4222
        %v4227 = vmul.f32 %v4218, %v4222
        %v4228 = vmul.f32 %v4091, %v4222
        %v4229 = vmul.f32 %v4219, %v4222
        %v4230 = vmul.f32 %v4092, %v4222
        %v4231 = vmul.f32 %v4220, %v4222
        %v4240 = vrot.slane %v4224, 1
        %v4241 = vrot.slane %v4225, 1
        %v4242 = vsel %vm1427, %v4240, %v4241
        %v4243 = vrot.slane %v4226, 1
        %v4244 = vrot.slane %v4227, 1
        %v4245 = vsel %vm1427, %v4243, %v4244
        %v4246 = vrot.slane %v4228, 1
        %v4247 = vrot.slane %v4229, 1
        %v4248 = vsel %vm1427, %v4246, %v4247
        %v4249 = vrot.slane %v4230, 1
        %v4250 = vrot.slane %v4231, 1
        %v4251 = vsel %vm1427, %v4249, %v4250
        %v4256 = vadd.f32 %v4209, %v4242
        %v4257 = vadd.f32 %v4210, %v4245
        %v4258 = vadd.f32 %v4211, %v4248
        %v4259 = vadd.f32 %v4212, %v4251
        %v4261 = vrot.slane %v4066, 7
        %4262 = vrot.lane.b32.xlu0 %v4261, 1
        %v4263 = vpop.permute.xlu0 %4262
        %v4265 = vmul.f32 %v4089, %v4263
        %v4266 = vmul.f32 %v4217, %v4263
        %v4267 = vmul.f32 %v4090, %v4263
        %v4268 = vmul.f32 %v4218, %v4263
        %v4269 = vmul.f32 %v4091, %v4263
        %v4270 = vmul.f32 %v4219, %v4263
        %v4271 = vmul.f32 %v4092, %v4263
        %v4272 = vmul.f32 %v4220, %v4263
        %v4281 = vrot.slane %v4265, 1
        %v4282 = vrot.slane %v4266, 1
        %v4283 = vsel %vm1427, %v4281, %v4282
        %v4284 = vrot.slane %v4267, 1
        %v4285 = vrot.slane %v4268, 1
        %v4286 = vsel %vm1427, %v4284, %v4285
        %v4287 = vrot.slane %v4269, 1
        %v4288 = vrot.slane %v4270, 1
        %v4289 = vsel %vm1427, %v4287, %v4288
        %v4290 = vrot.slane %v4271, 1
        %v4291 = vrot.slane %v4272, 1
        %v4292 = vsel %vm1427, %v4290, %v4291
        %4293 = vrot.lane.b32.xlu0 %v4283, 127
        %v4294 = vpop.permute.xlu0 %4293
        %4295 = vrot.lane.b32.xlu0 %v4286, 127
        %v4296 = vpop.permute.xlu0 %4295
        %4297 = vrot.lane.b32.xlu0 %v4289, 127
        %v4298 = vpop.permute.xlu0 %4297
        %4299 = vrot.lane.b32.xlu0 %v4292, 127
        %v4300 = vpop.permute.xlu0 %4299
        %v4305 = vadd.f32 %v4256, %v4294
        %v4306 = vadd.f32 %v4257, %v4296
        %v4307 = vadd.f32 %v4258, %v4298
        %v4308 = vadd.f32 %v4259, %v4300
        %v4310 = vrot.slane %v4067, 7
        %4311 = vrot.lane.b32.xlu0 %v4310, 2
        %v4312 = vpop.permute.xlu0 %4311
        %v4314 = vmul.f32 %v4089, %v4312
        %v4315 = vmul.f32 %v4217, %v4312
        %v4316 = vmul.f32 %v4090, %v4312
        %v4317 = vmul.f32 %v4218, %v4312
        %v4318 = vmul.f32 %v4091, %v4312
        %v4319 = vmul.f32 %v4219, %v4312
        %v4320 = vmul.f32 %v4092, %v4312
        %v4321 = vmul.f32 %v4220, %v4312
        %v4330 = vrot.slane %v4314, 1
        %v4331 = vrot.slane %v4315, 1
        %v4332 = vsel %vm1427, %v4330, %v4331
        %v4333 = vrot.slane %v4316, 1
        %v4334 = vrot.slane %v4317, 1
        %v4335 = vsel %vm1427, %v4333, %v4334
        %v4336 = vrot.slane %v4318, 1
        %v4337 = vrot.slane %v4319, 1
        %v4338 = vsel %vm1427, %v4336, %v4337
        %v4339 = vrot.slane %v4320, 1
        %v4340 = vrot.slane %v4321, 1
        %v4341 = vsel %vm1427, %v4339, %v4340
        %4342 = vrot.lane.b32.xlu0 %v4332, 126
        %v4343 = vpop.permute.xlu0 %4342
        %4344 = vrot.lane.b32.xlu0 %v4335, 126
        %v4345 = vpop.permute.xlu0 %4344
        %4346 = vrot.lane.b32.xlu0 %v4338, 126
        %v4347 = vpop.permute.xlu0 %4346
        %4348 = vrot.lane.b32.xlu0 %v4341, 126
        %v4349 = vpop.permute.xlu0 %4348
        %v4354 = vadd.f32 %v4305, %v4343
        %v4355 = vadd.f32 %v4306, %v4345
        %v4356 = vadd.f32 %v4307, %v4347
        %v4357 = vadd.f32 %v4308, %v4349
        %v4359 = vrot.slane %v4068, 7
        %4360 = vrot.lane.b32.xlu0 %v4359, 3
        %v4361 = vpop.permute.xlu0 %4360
        %v4363 = vmul.f32 %v4089, %v4361
        %v4364 = vmul.f32 %v4217, %v4361
        %v4365 = vmul.f32 %v4090, %v4361
        %v4366 = vmul.f32 %v4218, %v4361
        %v4367 = vmul.f32 %v4091, %v4361
        %v4368 = vmul.f32 %v4219, %v4361
        %v4369 = vmul.f32 %v4092, %v4361
        %v4370 = vmul.f32 %v4220, %v4361
        %v4379 = vrot.slane %v4363, 1
        %v4380 = vrot.slane %v4364, 1
        %v4381 = vsel %vm1427, %v4379, %v4380
        %v4382 = vrot.slane %v4365, 1
        %v4383 = vrot.slane %v4366, 1
        %v4384 = vsel %vm1427, %v4382, %v4383
        %v4385 = vrot.slane %v4367, 1
        %v4386 = vrot.slane %v4368, 1
        %v4387 = vsel %vm1427, %v4385, %v4386
        %v4388 = vrot.slane %v4369, 1
        %v4389 = vrot.slane %v4370, 1
        %v4390 = vsel %vm1427, %v4388, %v4389
        %4391 = vrot.lane.b32.xlu0 %v4381, 125
        %v4392 = vpop.permute.xlu0 %4391
        %4393 = vrot.lane.b32.xlu0 %v4384, 125
        %v4394 = vpop.permute.xlu0 %4393
        %4395 = vrot.lane.b32.xlu0 %v4387, 125
        %v4396 = vpop.permute.xlu0 %4395
        %4397 = vrot.lane.b32.xlu0 %v4390, 125
        %v4398 = vpop.permute.xlu0 %4397
        %v4403 = vadd.f32 %v4354, %v4392
        %v4404 = vadd.f32 %v4355, %v4394
        %v4405 = vadd.f32 %v4356, %v4396
        %v4406 = vadd.f32 %v4357, %v4398
        %v4408 = vrot.slane %v4069, 7
        %4409 = vrot.lane.b32.xlu0 %v4408, 4
        %v4410 = vpop.permute.xlu0 %4409
        %v4412 = vmul.f32 %v4089, %v4410
        %v4413 = vmul.f32 %v4217, %v4410
        %v4414 = vmul.f32 %v4090, %v4410
        %v4415 = vmul.f32 %v4218, %v4410
        %v4416 = vmul.f32 %v4091, %v4410
        %v4417 = vmul.f32 %v4219, %v4410
        %v4418 = vmul.f32 %v4092, %v4410
        %v4419 = vmul.f32 %v4220, %v4410
        %v4428 = vrot.slane %v4412, 1
        %v4429 = vrot.slane %v4413, 1
        %v4430 = vsel %vm1427, %v4428, %v4429
        %v4431 = vrot.slane %v4414, 1
        %v4432 = vrot.slane %v4415, 1
        %v4433 = vsel %vm1427, %v4431, %v4432
        %v4434 = vrot.slane %v4416, 1
        %v4435 = vrot.slane %v4417, 1
        %v4436 = vsel %vm1427, %v4434, %v4435
        %v4437 = vrot.slane %v4418, 1
        %v4438 = vrot.slane %v4419, 1
        %v4439 = vsel %vm1427, %v4437, %v4438
        %4440 = vrot.lane.b32.xlu0 %v4430, 124
        %v4441 = vpop.permute.xlu0 %4440
        %4442 = vrot.lane.b32.xlu0 %v4433, 124
        %v4443 = vpop.permute.xlu0 %4442
        %4444 = vrot.lane.b32.xlu0 %v4436, 124
        %v4445 = vpop.permute.xlu0 %4444
        %4446 = vrot.lane.b32.xlu0 %v4439, 124
        %v4447 = vpop.permute.xlu0 %4446
        %v4452 = vadd.f32 %v4403, %v4441
        %v4453 = vadd.f32 %v4404, %v4443
        %v4454 = vadd.f32 %v4405, %v4445
        %v4455 = vadd.f32 %v4406, %v4447
        %v4456 = vld [vmem:[%s912] sm:$0xe]
        %v4457 = vld [vmem:[%s912 + $0x8] sm:$0xe]
        %v4458 = vld [vmem:[%s912 + $0x10] sm:$0xe]
        %v4459 = vld [vmem:[%s912 + $0x18] sm:$0xe]
        %v4460 = vunpack.c.l.bf16 %v4456
        %v4461 = vunpack.c.l.bf16 %v4457
        %v4462 = vunpack.c.l.bf16 %v4458
        %v4463 = vunpack.c.l.bf16 %v4459
        %v4465 = vrot.slane %v4070, 6
        %v4467 = vmul.f32 %v4460, %v4465
        %v4468 = vmul.f32 %v4217, %v4465
        %v4469 = vmul.f32 %v4461, %v4465
        %v4470 = vmul.f32 %v4218, %v4465
        %v4471 = vmul.f32 %v4462, %v4465
        %v4472 = vmul.f32 %v4219, %v4465
        %v4473 = vmul.f32 %v4463, %v4465
        %v4474 = vmul.f32 %v4220, %v4465
        %v4483 = vrot.slane %v4467, 2
        %v4484 = vrot.slane %v4468, 2
        %v4485 = vsel %vm1671, %v4483, %v4484
        %v4486 = vrot.slane %v4469, 2
        %v4487 = vrot.slane %v4470, 2
        %v4488 = vsel %vm1671, %v4486, %v4487
        %v4489 = vrot.slane %v4471, 2
        %v4490 = vrot.slane %v4472, 2
        %v4491 = vsel %vm1671, %v4489, %v4490
        %v4492 = vrot.slane %v4473, 2
        %v4493 = vrot.slane %v4474, 2
        %v4494 = vsel %vm1671, %v4492, %v4493
        %v4499 = vadd.f32 %v4452, %v4485
        %v4500 = vadd.f32 %v4453, %v4488
        %v4501 = vadd.f32 %v4454, %v4491
        %v4502 = vadd.f32 %v4455, %v4494
        %v4504 = vrot.slane %v4071, 6
        %4505 = vrot.lane.b32.xlu0 %v4504, 1
        %v4506 = vpop.permute.xlu0 %4505
        %v4508 = vmul.f32 %v4460, %v4506
        %v4509 = vmul.f32 %v4217, %v4506
        %v4510 = vmul.f32 %v4461, %v4506
        %v4511 = vmul.f32 %v4218, %v4506
        %v4512 = vmul.f32 %v4462, %v4506
        %v4513 = vmul.f32 %v4219, %v4506
        %v4514 = vmul.f32 %v4463, %v4506
        %v4515 = vmul.f32 %v4220, %v4506
        %v4524 = vrot.slane %v4508, 2
        %v4525 = vrot.slane %v4509, 2
        %v4526 = vsel %vm1671, %v4524, %v4525
        %v4527 = vrot.slane %v4510, 2
        %v4528 = vrot.slane %v4511, 2
        %v4529 = vsel %vm1671, %v4527, %v4528
        %v4530 = vrot.slane %v4512, 2
        %v4531 = vrot.slane %v4513, 2
        %v4532 = vsel %vm1671, %v4530, %v4531
        %v4533 = vrot.slane %v4514, 2
        %v4534 = vrot.slane %v4515, 2
        %v4535 = vsel %vm1671, %v4533, %v4534
        %4536 = vrot.lane.b32.xlu0 %v4526, 127
        %v4537 = vpop.permute.xlu0 %4536
        %4538 = vrot.lane.b32.xlu0 %v4529, 127
        %v4539 = vpop.permute.xlu0 %4538
        %4540 = vrot.lane.b32.xlu0 %v4532, 127
        %v4541 = vpop.permute.xlu0 %4540
        %4542 = vrot.lane.b32.xlu0 %v4535, 127
        %v4543 = vpop.permute.xlu0 %4542
        %v4548 = vadd.f32 %v4499, %v4537
        %v4549 = vadd.f32 %v4500, %v4539
        %v4550 = vadd.f32 %v4501, %v4541
        %v4551 = vadd.f32 %v4502, %v4543
        %v4553 = vrot.slane %v4072, 6
        %4554 = vrot.lane.b32.xlu0 %v4553, 2
        %v4555 = vpop.permute.xlu0 %4554
        %v4557 = vmul.f32 %v4460, %v4555
        %v4558 = vmul.f32 %v4217, %v4555
        %v4559 = vmul.f32 %v4461, %v4555
        %v4560 = vmul.f32 %v4218, %v4555
        %v4561 = vmul.f32 %v4462, %v4555
        %v4562 = vmul.f32 %v4219, %v4555
        %v4563 = vmul.f32 %v4463, %v4555
        %v4564 = vmul.f32 %v4220, %v4555
        %v4573 = vrot.slane %v4557, 2
        %v4574 = vrot.slane %v4558, 2
        %v4575 = vsel %vm1671, %v4573, %v4574
        %v4576 = vrot.slane %v4559, 2
        %v4577 = vrot.slane %v4560, 2
        %v4578 = vsel %vm1671, %v4576, %v4577
        %v4579 = vrot.slane %v4561, 2
        %v4580 = vrot.slane %v4562, 2
        %v4581 = vsel %vm1671, %v4579, %v4580
        %v4582 = vrot.slane %v4563, 2
        %v4583 = vrot.slane %v4564, 2
        %v4584 = vsel %vm1671, %v4582, %v4583
        %4585 = vrot.lane.b32.xlu0 %v4575, 126
        %v4586 = vpop.permute.xlu0 %4585
        %4587 = vrot.lane.b32.xlu0 %v4578, 126
        %v4588 = vpop.permute.xlu0 %4587
        %4589 = vrot.lane.b32.xlu0 %v4581, 126
        %v4590 = vpop.permute.xlu0 %4589
        %4591 = vrot.lane.b32.xlu0 %v4584, 126
        %v4592 = vpop.permute.xlu0 %4591
        %v4597 = vadd.f32 %v4548, %v4586
        %v4598 = vadd.f32 %v4549, %v4588
        %v4599 = vadd.f32 %v4550, %v4590
        %v4600 = vadd.f32 %v4551, %v4592
        %v4602 = vrot.slane %v4073, 6
        %4603 = vrot.lane.b32.xlu0 %v4602, 3
        %v4604 = vpop.permute.xlu0 %4603
        %v4606 = vmul.f32 %v4460, %v4604
        %v4607 = vmul.f32 %v4217, %v4604
        %v4608 = vmul.f32 %v4461, %v4604
        %v4609 = vmul.f32 %v4218, %v4604
        %v4610 = vmul.f32 %v4462, %v4604
        %v4611 = vmul.f32 %v4219, %v4604
        %v4612 = vmul.f32 %v4463, %v4604
        %v4613 = vmul.f32 %v4220, %v4604
        %v4622 = vrot.slane %v4606, 2
        %v4623 = vrot.slane %v4607, 2
        %v4624 = vsel %vm1671, %v4622, %v4623
        %v4625 = vrot.slane %v4608, 2
        %v4626 = vrot.slane %v4609, 2
        %v4627 = vsel %vm1671, %v4625, %v4626
        %v4628 = vrot.slane %v4610, 2
        %v4629 = vrot.slane %v4611, 2
        %v4630 = vsel %vm1671, %v4628, %v4629
        %v4631 = vrot.slane %v4612, 2
        %v4632 = vrot.slane %v4613, 2
        %v4633 = vsel %vm1671, %v4631, %v4632
        %4634 = vrot.lane.b32.xlu0 %v4624, 125
        %v4635 = vpop.permute.xlu0 %4634
        %4636 = vrot.lane.b32.xlu0 %v4627, 125
        %v4637 = vpop.permute.xlu0 %4636
        %4638 = vrot.lane.b32.xlu0 %v4630, 125
        %v4639 = vpop.permute.xlu0 %4638
        %4640 = vrot.lane.b32.xlu0 %v4633, 125
        %v4641 = vpop.permute.xlu0 %4640
        %v4646 = vadd.f32 %v4597, %v4635
        %v4647 = vadd.f32 %v4598, %v4637
        %v4648 = vadd.f32 %v4599, %v4639
        %v4649 = vadd.f32 %v4600, %v4641
        %v4651 = vrot.slane %v4074, 6
        %4652 = vrot.lane.b32.xlu0 %v4651, 4
        %v4653 = vpop.permute.xlu0 %4652
        %v4655 = vmul.f32 %v4460, %v4653
        %v4656 = vmul.f32 %v4217, %v4653
        %v4657 = vmul.f32 %v4461, %v4653
        %v4658 = vmul.f32 %v4218, %v4653
        %v4659 = vmul.f32 %v4462, %v4653
        %v4660 = vmul.f32 %v4219, %v4653
        %v4661 = vmul.f32 %v4463, %v4653
        %v4662 = vmul.f32 %v4220, %v4653
        %v4671 = vrot.slane %v4655, 2
        %v4672 = vrot.slane %v4656, 2
        %v4673 = vsel %vm1671, %v4671, %v4672
        %v4674 = vrot.slane %v4657, 2
        %v4675 = vrot.slane %v4658, 2
        %v4676 = vsel %vm1671, %v4674, %v4675
        %v4677 = vrot.slane %v4659, 2
        %v4678 = vrot.slane %v4660, 2
        %v4679 = vsel %vm1671, %v4677, %v4678
        %v4680 = vrot.slane %v4661, 2
        %v4681 = vrot.slane %v4662, 2
        %v4682 = vsel %vm1671, %v4680, %v4681
        %4683 = vrot.lane.b32.xlu0 %v4673, 124
        %v4684 = vpop.permute.xlu0 %4683
        %4685 = vrot.lane.b32.xlu0 %v4676, 124
        %v4686 = vpop.permute.xlu0 %4685
        %4687 = vrot.lane.b32.xlu0 %v4679, 124
        %v4688 = vpop.permute.xlu0 %4687
        %4689 = vrot.lane.b32.xlu0 %v4682, 124
        %v4690 = vpop.permute.xlu0 %4689
        %v4695 = vadd.f32 %v4646, %v4684
        %v4696 = vadd.f32 %v4647, %v4686
        %v4697 = vadd.f32 %v4648, %v4688
        %v4698 = vadd.f32 %v4649, %v4690
        %v4699 = vld [vmem:[%s912 + $0x4] sm:$0x3]
        %v4700 = vld [vmem:[%s912 + $0xc] sm:$0x3]
        %v4701 = vld [vmem:[%s912 + $0x14] sm:$0x3]
        %v4702 = vld [vmem:[%s912 + $0x1c] sm:$0x3]
        %v4703 = vunpack.c.l.bf16 %v4699
        %v4704 = vunpack.c.l.bf16 %v4700
        %v4705 = vunpack.c.l.bf16 %v4701
        %v4706 = vunpack.c.l.bf16 %v4702
        %v4708 = vrot.slane %v4075, 5
        %v4710 = vmul.f32 %v4460, %v4708
        %v4711 = vmul.f32 %v4703, %v4708
        %v4712 = vmul.f32 %v4461, %v4708
        %v4713 = vmul.f32 %v4704, %v4708
        %v4714 = vmul.f32 %v4462, %v4708
        %v4715 = vmul.f32 %v4705, %v4708
        %v4716 = vmul.f32 %v4463, %v4708
        %v4717 = vmul.f32 %v4706, %v4708
        %v4726 = vrot.slane %v4710, 3
        %v4727 = vrot.slane %v4711, 3
        %v4728 = vsel %vm1915, %v4726, %v4727
        %v4729 = vrot.slane %v4712, 3
        %v4730 = vrot.slane %v4713, 3
        %v4731 = vsel %vm1915, %v4729, %v4730
        %v4732 = vrot.slane %v4714, 3
        %v4733 = vrot.slane %v4715, 3
        %v4734 = vsel %vm1915, %v4732, %v4733
        %v4735 = vrot.slane %v4716, 3
        %v4736 = vrot.slane %v4717, 3
        %v4737 = vsel %vm1915, %v4735, %v4736
        %v4742 = vadd.f32 %v4695, %v4728
        %v4743 = vadd.f32 %v4696, %v4731
        %v4744 = vadd.f32 %v4697, %v4734
        %v4745 = vadd.f32 %v4698, %v4737
        %v4747 = vrot.slane %v4076, 5
        %4748 = vrot.lane.b32.xlu0 %v4747, 1
        %v4749 = vpop.permute.xlu0 %4748
        %v4751 = vmul.f32 %v4460, %v4749
        %v4752 = vmul.f32 %v4703, %v4749
        %v4753 = vmul.f32 %v4461, %v4749
        %v4754 = vmul.f32 %v4704, %v4749
        %v4755 = vmul.f32 %v4462, %v4749
        %v4756 = vmul.f32 %v4705, %v4749
        %v4757 = vmul.f32 %v4463, %v4749
        %v4758 = vmul.f32 %v4706, %v4749
        %v4767 = vrot.slane %v4751, 3
        %v4768 = vrot.slane %v4752, 3
        %v4769 = vsel %vm1915, %v4767, %v4768
        %v4770 = vrot.slane %v4753, 3
        %v4771 = vrot.slane %v4754, 3
        %v4772 = vsel %vm1915, %v4770, %v4771
        %v4773 = vrot.slane %v4755, 3
        %v4774 = vrot.slane %v4756, 3
        %v4775 = vsel %vm1915, %v4773, %v4774
        %v4776 = vrot.slane %v4757, 3
        %v4777 = vrot.slane %v4758, 3
        %v4778 = vsel %vm1915, %v4776, %v4777
        %4779 = vrot.lane.b32.xlu0 %v4769, 127
        %v4780 = vpop.permute.xlu0 %4779
        %4781 = vrot.lane.b32.xlu0 %v4772, 127
        %v4782 = vpop.permute.xlu0 %4781
        %4783 = vrot.lane.b32.xlu0 %v4775, 127
        %v4784 = vpop.permute.xlu0 %4783
        %4785 = vrot.lane.b32.xlu0 %v4778, 127
        %v4786 = vpop.permute.xlu0 %4785
        %v4791 = vadd.f32 %v4742, %v4780
        %v4792 = vadd.f32 %v4743, %v4782
        %v4793 = vadd.f32 %v4744, %v4784
        %v4794 = vadd.f32 %v4745, %v4786
        %v4796 = vrot.slane %v4077, 5
        %4797 = vrot.lane.b32.xlu0 %v4796, 2
        %v4798 = vpop.permute.xlu0 %4797
        %v4800 = vmul.f32 %v4460, %v4798
        %v4801 = vmul.f32 %v4703, %v4798
        %v4802 = vmul.f32 %v4461, %v4798
        %v4803 = vmul.f32 %v4704, %v4798
        %v4804 = vmul.f32 %v4462, %v4798
        %v4805 = vmul.f32 %v4705, %v4798
        %v4806 = vmul.f32 %v4463, %v4798
        %v4807 = vmul.f32 %v4706, %v4798
        %v4816 = vrot.slane %v4800, 3
        %v4817 = vrot.slane %v4801, 3
        %v4818 = vsel %vm1915, %v4816, %v4817
        %v4819 = vrot.slane %v4802, 3
        %v4820 = vrot.slane %v4803, 3
        %v4821 = vsel %vm1915, %v4819, %v4820
        %v4822 = vrot.slane %v4804, 3
        %v4823 = vrot.slane %v4805, 3
        %v4824 = vsel %vm1915, %v4822, %v4823
        %v4825 = vrot.slane %v4806, 3
        %v4826 = vrot.slane %v4807, 3
        %v4827 = vsel %vm1915, %v4825, %v4826
        %4828 = vrot.lane.b32.xlu0 %v4818, 126
        %v4829 = vpop.permute.xlu0 %4828
        %4830 = vrot.lane.b32.xlu0 %v4821, 126
        %v4831 = vpop.permute.xlu0 %4830
        %4832 = vrot.lane.b32.xlu0 %v4824, 126
        %v4833 = vpop.permute.xlu0 %4832
        %4834 = vrot.lane.b32.xlu0 %v4827, 126
        %v4835 = vpop.permute.xlu0 %4834
        %v4840 = vadd.f32 %v4791, %v4829
        %v4841 = vadd.f32 %v4792, %v4831
        %v4842 = vadd.f32 %v4793, %v4833
        %v4843 = vadd.f32 %v4794, %v4835
        %v4845 = vrot.slane %v4078, 5
        %4846 = vrot.lane.b32.xlu0 %v4845, 3
        %v4847 = vpop.permute.xlu0 %4846
        %v4849 = vmul.f32 %v4460, %v4847
        %v4850 = vmul.f32 %v4703, %v4847
        %v4851 = vmul.f32 %v4461, %v4847
        %v4852 = vmul.f32 %v4704, %v4847
        %v4853 = vmul.f32 %v4462, %v4847
        %v4854 = vmul.f32 %v4705, %v4847
        %v4855 = vmul.f32 %v4463, %v4847
        %v4856 = vmul.f32 %v4706, %v4847
        %v4865 = vrot.slane %v4849, 3
        %v4866 = vrot.slane %v4850, 3
        %v4867 = vsel %vm1915, %v4865, %v4866
        %v4868 = vrot.slane %v4851, 3
        %v4869 = vrot.slane %v4852, 3
        %v4870 = vsel %vm1915, %v4868, %v4869
        %v4871 = vrot.slane %v4853, 3
        %v4872 = vrot.slane %v4854, 3
        %v4873 = vsel %vm1915, %v4871, %v4872
        %v4874 = vrot.slane %v4855, 3
        %v4875 = vrot.slane %v4856, 3
        %v4876 = vsel %vm1915, %v4874, %v4875
        %4877 = vrot.lane.b32.xlu0 %v4867, 125
        %v4878 = vpop.permute.xlu0 %4877
        %4879 = vrot.lane.b32.xlu0 %v4870, 125
        %v4880 = vpop.permute.xlu0 %4879
        %4881 = vrot.lane.b32.xlu0 %v4873, 125
        %v4882 = vpop.permute.xlu0 %4881
        %4883 = vrot.lane.b32.xlu0 %v4876, 125
        %v4884 = vpop.permute.xlu0 %4883
        %v4889 = vadd.f32 %v4840, %v4878
        %v4890 = vadd.f32 %v4841, %v4880
        %v4891 = vadd.f32 %v4842, %v4882
        %v4892 = vadd.f32 %v4843, %v4884
        %v4894 = vrot.slane %v4079, 5
        %4895 = vrot.lane.b32.xlu0 %v4894, 4
        %v4896 = vpop.permute.xlu0 %4895
        %v4898 = vmul.f32 %v4460, %v4896
        %v4899 = vmul.f32 %v4703, %v4896
        %v4900 = vmul.f32 %v4461, %v4896
        %v4901 = vmul.f32 %v4704, %v4896
        %v4902 = vmul.f32 %v4462, %v4896
        %v4903 = vmul.f32 %v4705, %v4896
        %v4904 = vmul.f32 %v4463, %v4896
        %v4905 = vmul.f32 %v4706, %v4896
        %v4914 = vrot.slane %v4898, 3
        %v4915 = vrot.slane %v4899, 3
        %v4916 = vsel %vm1915, %v4914, %v4915
        %v4917 = vrot.slane %v4900, 3
        %v4918 = vrot.slane %v4901, 3
        %v4919 = vsel %vm1915, %v4917, %v4918
        %v4920 = vrot.slane %v4902, 3
        %v4921 = vrot.slane %v4903, 3
        %v4922 = vsel %vm1915, %v4920, %v4921
        %v4923 = vrot.slane %v4904, 3
        %v4924 = vrot.slane %v4905, 3
        %v4925 = vsel %vm1915, %v4923, %v4924
        %4926 = vrot.lane.b32.xlu0 %v4916, 124
        %v4927 = vpop.permute.xlu0 %4926
        %4928 = vrot.lane.b32.xlu0 %v4919, 124
        %v4929 = vpop.permute.xlu0 %4928
        %4930 = vrot.lane.b32.xlu0 %v4922, 124
        %v4931 = vpop.permute.xlu0 %4930
        %4932 = vrot.lane.b32.xlu0 %v4925, 124
        %v4933 = vpop.permute.xlu0 %4932
        %v4938 = vadd.f32 %v4889, %v4927
        %v4939 = vadd.f32 %v4890, %v4929
        %v4940 = vadd.f32 %v4891, %v4931
        %v4941 = vadd.f32 %v4892, %v4933
        %v4942 = vld [vmem:[%s912] sm:$0xc]
        %v4943 = vld [vmem:[%s912 + $0x8] sm:$0xc]
        %v4944 = vld [vmem:[%s912 + $0x10] sm:$0xc]
        %v4945 = vld [vmem:[%s912 + $0x18] sm:$0xc]
        %v4946 = vunpack.c.l.bf16 %v4942
        %v4947 = vunpack.c.l.bf16 %v4943
        %v4948 = vunpack.c.l.bf16 %v4944
        %v4949 = vunpack.c.l.bf16 %v4945
        %v4951 = vrot.slane %v4080, 4
        %v4953 = vmul.f32 %v4946, %v4951
        %v4954 = vmul.f32 %v4703, %v4951
        %v4955 = vmul.f32 %v4947, %v4951
        %v4956 = vmul.f32 %v4704, %v4951
        %v4957 = vmul.f32 %v4948, %v4951
        %v4958 = vmul.f32 %v4705, %v4951
        %v4959 = vmul.f32 %v4949, %v4951
        %v4960 = vmul.f32 %v4706, %v4951
        %v4969 = vrot.slane %v4953, 4
        %v4970 = vrot.slane %v4954, 4
        %v4971 = vsel %vm2159, %v4969, %v4970
        %v4972 = vrot.slane %v4955, 4
        %v4973 = vrot.slane %v4956, 4
        %v4974 = vsel %vm2159, %v4972, %v4973
        %v4975 = vrot.slane %v4957, 4
        %v4976 = vrot.slane %v4958, 4
        %v4977 = vsel %vm2159, %v4975, %v4976
        %v4978 = vrot.slane %v4959, 4
        %v4979 = vrot.slane %v4960, 4
        %v4980 = vsel %vm2159, %v4978, %v4979
        %v4985 = vadd.f32 %v4938, %v4971
        %v4986 = vadd.f32 %v4939, %v4974
        %v4987 = vadd.f32 %v4940, %v4977
        %v4988 = vadd.f32 %v4941, %v4980
        %v4990 = vrot.slane %v4081, 4
        %4991 = vrot.lane.b32.xlu0 %v4990, 1
        %v4992 = vpop.permute.xlu0 %4991
        %v4994 = vmul.f32 %v4946, %v4992
        %v4995 = vmul.f32 %v4703, %v4992
        %v4996 = vmul.f32 %v4947, %v4992
        %v4997 = vmul.f32 %v4704, %v4992
        %v4998 = vmul.f32 %v4948, %v4992
        %v4999 = vmul.f32 %v4705, %v4992
        %v5000 = vmul.f32 %v4949, %v4992
        %v5001 = vmul.f32 %v4706, %v4992
        %v5010 = vrot.slane %v4994, 4
        %v5011 = vrot.slane %v4995, 4
        %v5012 = vsel %vm2159, %v5010, %v5011
        %v5013 = vrot.slane %v4996, 4
        %v5014 = vrot.slane %v4997, 4
        %v5015 = vsel %vm2159, %v5013, %v5014
        %v5016 = vrot.slane %v4998, 4
        %v5017 = vrot.slane %v4999, 4
        %v5018 = vsel %vm2159, %v5016, %v5017
        %v5019 = vrot.slane %v5000, 4
        %v5020 = vrot.slane %v5001, 4
        %v5021 = vsel %vm2159, %v5019, %v5020
        %5022 = vrot.lane.b32.xlu0 %v5012, 127
        %v5023 = vpop.permute.xlu0 %5022
        %5024 = vrot.lane.b32.xlu0 %v5015, 127
        %v5025 = vpop.permute.xlu0 %5024
        %5026 = vrot.lane.b32.xlu0 %v5018, 127
        %v5027 = vpop.permute.xlu0 %5026
        %5028 = vrot.lane.b32.xlu0 %v5021, 127
        %v5029 = vpop.permute.xlu0 %5028
        %v5034 = vadd.f32 %v4985, %v5023
        %v5035 = vadd.f32 %v4986, %v5025
        %v5036 = vadd.f32 %v4987, %v5027
        %v5037 = vadd.f32 %v4988, %v5029
        %v5039 = vrot.slane %v4082, 4
        %5040 = vrot.lane.b32.xlu0 %v5039, 2
        %v5041 = vpop.permute.xlu0 %5040
        %v5043 = vmul.f32 %v4946, %v5041
        %v5044 = vmul.f32 %v4703, %v5041
        %v5045 = vmul.f32 %v4947, %v5041
        %v5046 = vmul.f32 %v4704, %v5041
        %v5047 = vmul.f32 %v4948, %v5041
        %v5048 = vmul.f32 %v4705, %v5041
        %v5049 = vmul.f32 %v4949, %v5041
        %v5050 = vmul.f32 %v4706, %v5041
        %v5059 = vrot.slane %v5043, 4
        %v5060 = vrot.slane %v5044, 4
        %v5061 = vsel %vm2159, %v5059, %v5060
        %v5062 = vrot.slane %v5045, 4
        %v5063 = vrot.slane %v5046, 4
        %v5064 = vsel %vm2159, %v5062, %v5063
        %v5065 = vrot.slane %v5047, 4
        %v5066 = vrot.slane %v5048, 4
        %v5067 = vsel %vm2159, %v5065, %v5066
        %v5068 = vrot.slane %v5049, 4
        %v5069 = vrot.slane %v5050, 4
        %v5070 = vsel %vm2159, %v5068, %v5069
        %5071 = vrot.lane.b32.xlu0 %v5061, 126
        %v5072 = vpop.permute.xlu0 %5071
        %5073 = vrot.lane.b32.xlu0 %v5064, 126
        %v5074 = vpop.permute.xlu0 %5073
        %5075 = vrot.lane.b32.xlu0 %v5067, 126
        %v5076 = vpop.permute.xlu0 %5075
        %5077 = vrot.lane.b32.xlu0 %v5070, 126
        %v5078 = vpop.permute.xlu0 %5077
        %v5083 = vadd.f32 %v5034, %v5072
        %v5084 = vadd.f32 %v5035, %v5074
        %v5085 = vadd.f32 %v5036, %v5076
        %v5086 = vadd.f32 %v5037, %v5078
        %v5088 = vrot.slane %v4083, 4
        %5089 = vrot.lane.b32.xlu0 %v5088, 3
        %v5090 = vpop.permute.xlu0 %5089
        %v5092 = vmul.f32 %v4946, %v5090
        %v5093 = vmul.f32 %v4703, %v5090
        %v5094 = vmul.f32 %v4947, %v5090
        %v5095 = vmul.f32 %v4704, %v5090
        %v5096 = vmul.f32 %v4948, %v5090
        %v5097 = vmul.f32 %v4705, %v5090
        %v5098 = vmul.f32 %v4949, %v5090
        %v5099 = vmul.f32 %v4706, %v5090
        %v5108 = vrot.slane %v5092, 4
        %v5109 = vrot.slane %v5093, 4
        %v5110 = vsel %vm2159, %v5108, %v5109
        %v5111 = vrot.slane %v5094, 4
        %v5112 = vrot.slane %v5095, 4
        %v5113 = vsel %vm2159, %v5111, %v5112
        %v5114 = vrot.slane %v5096, 4
        %v5115 = vrot.slane %v5097, 4
        %v5116 = vsel %vm2159, %v5114, %v5115
        %v5117 = vrot.slane %v5098, 4
        %v5118 = vrot.slane %v5099, 4
        %v5119 = vsel %vm2159, %v5117, %v5118
        %5120 = vrot.lane.b32.xlu0 %v5110, 125
        %v5121 = vpop.permute.xlu0 %5120
        %5122 = vrot.lane.b32.xlu0 %v5113, 125
        %v5123 = vpop.permute.xlu0 %5122
        %5124 = vrot.lane.b32.xlu0 %v5116, 125
        %v5125 = vpop.permute.xlu0 %5124
        %5126 = vrot.lane.b32.xlu0 %v5119, 125
        %v5127 = vpop.permute.xlu0 %5126
        %v5132 = vadd.f32 %v5083, %v5121
        %v5133 = vadd.f32 %v5084, %v5123
        %v5134 = vadd.f32 %v5085, %v5125
        %v5135 = vadd.f32 %v5086, %v5127
        %v5137 = vrot.slane %v4084, 4
        %5138 = vrot.lane.b32.xlu0 %v5137, 4
        %v5139 = vpop.permute.xlu0 %5138
        %v5141 = vmul.f32 %v4946, %v5139
        %v5142 = vmul.f32 %v4703, %v5139
        %v5143 = vmul.f32 %v4947, %v5139
        %v5144 = vmul.f32 %v4704, %v5139
        %v5145 = vmul.f32 %v4948, %v5139
        %v5146 = vmul.f32 %v4705, %v5139
        %v5147 = vmul.f32 %v4949, %v5139
        %v5148 = vmul.f32 %v4706, %v5139
        %v5157 = vrot.slane %v5141, 4
        %v5158 = vrot.slane %v5142, 4
        %v5159 = vsel %vm2159, %v5157, %v5158
        %v5160 = vrot.slane %v5143, 4
        %v5161 = vrot.slane %v5144, 4
        %v5162 = vsel %vm2159, %v5160, %v5161
        %v5163 = vrot.slane %v5145, 4
        %v5164 = vrot.slane %v5146, 4
        %v5165 = vsel %vm2159, %v5163, %v5164
        %v5166 = vrot.slane %v5147, 4
        %v5167 = vrot.slane %v5148, 4
        %v5168 = vsel %vm2159, %v5166, %v5167
        %5169 = vrot.lane.b32.xlu0 %v5159, 124
        %v5170 = vpop.permute.xlu0 %5169
        %5171 = vrot.lane.b32.xlu0 %v5162, 124
        %v5172 = vpop.permute.xlu0 %5171
        %5173 = vrot.lane.b32.xlu0 %v5165, 124
        %v5174 = vpop.permute.xlu0 %5173
        %5175 = vrot.lane.b32.xlu0 %v5168, 124
        %v5176 = vpop.permute.xlu0 %5175
        %v5181 = vadd.f32 %v5132, %v5170
        %v5182 = vadd.f32 %v5133, %v5172
        %v5183 = vadd.f32 %v5134, %v5174
        %v5184 = vadd.f32 %v5135, %v5176
        %s5185 = scalar_lea.vmem %s926, 32
        %v5186 = vld [vmem:[%s5185] sm:$0xf]
        %v5187 = vld [vmem:[%s5185 + $0x4] sm:$0xf]
        %v5188 = vld [vmem:[%s5185 + $0x8] sm:$0xf]
        %v5189 = vld [vmem:[%s5185 + $0xc] sm:$0xf]
        %v5190 = vunpack.c.l.bf16 %v5186
        %v5191 = vunpack.c.l.bf16 %v5187
        %v5192 = vunpack.c.l.bf16 %v5188
        %v5193 = vunpack.c.l.bf16 %v5189
        %v5194 = vmul.f32 %v945, %v5190
        %v5195 = vmul.f32 %v945, %v5191
        %v5196 = vmul.f32 %v945, %v5192
        %v5197 = vmul.f32 %v945, %v5193
        %v5198 = vmul.f32 %v946, %v5181
        %v5199 = vmul.f32 %v946, %v5182
        %v5200 = vmul.f32 %v946, %v5183
        %v5201 = vmul.f32 %v946, %v5184
        %v5202 = vadd.f32 %v5194, %v5198
        %v5203 = vadd.f32 %v5195, %v5199
        %v5204 = vadd.f32 %v5196, %v5200
        %v5205 = vadd.f32 %v5197, %v5201
        %v5206 = vpack.c.bf16 %v5202, %v5202
        %v5207 = vpack.c.bf16 %v5203, %v5203
        %v5208 = vpack.c.bf16 %v5204, %v5204
        %v5209 = vpack.c.bf16 %v5205, %v5205
        %s5210 = scalar_lea.vmem %s936, 32
        %5211 = vst.msk [vmem:[%s5210] sm:$0xf] %vm2400, %v5206
        %5212 = vst.msk [vmem:[%s5210 + $0x4] sm:$0xf] %vm2400, %v5207
        %5213 = vst.msk [vmem:[%s5210 + $0x8] sm:$0xf] %vm2400, %v5208
        %5214 = vst.msk [vmem:[%s5210 + $0xc] sm:$0xf] %vm2400, %v5209
        %s5215 = scalar_lea.vmem %s840, 12 [#allocation2]
        %v5216 = vld [vmem:[%s5215] sm:$0xf]
        %v5217 = vld [vmem:[%s5215 + $0x10] sm:$0xf]
        %v5218 = vld [vmem:[%s5215 + $0x20] sm:$0xf]
        %v5219 = vld [vmem:[%s5215 + $0x30] sm:$0xf]
        %v5220 = vld [vmem:[%s5215 + $0x40] sm:$0xf]
        %v5221 = vld [vmem:[%s5215 + $0x50] sm:$0xf]
        %v5222 = vld [vmem:[%s5215 + $0x60] sm:$0xf]
        %v5223 = vld [vmem:[%s5215 + $0x70] sm:$0xf]
        %v5224 = vld [vmem:[%s5215 + $0x80] sm:$0xf]
        %v5225 = vld [vmem:[%s5215 + $0x90] sm:$0xf]
        %v5226 = vld [vmem:[%s5215 + $0xa0] sm:$0xf]
        %v5227 = vld [vmem:[%s5215 + $0xb0] sm:$0xf]
        %v5228 = vld [vmem:[%s5215 + $0xc0] sm:$0xf]
        %v5229 = vld [vmem:[%s5215 + $0xd0] sm:$0xf]
        %v5230 = vld [vmem:[%s5215 + $0xe0] sm:$0xf]
        %v5231 = vld [vmem:[%s5215 + $0xf0] sm:$0xf]
        %v5232 = vld [vmem:[%s5215 + $0x100] sm:$0xf]
        %v5233 = vld [vmem:[%s5215 + $0x110] sm:$0xf]
        %v5234 = vld [vmem:[%s5215 + $0x120] sm:$0xf]
        %v5235 = vld [vmem:[%s5215 + $0x130] sm:$0xf]
        %v5236 = vld [vmem:[%s5215 + $0x140] sm:$0xf]
        %v5237 = vld [vmem:[%s5215 + $0x150] sm:$0xf]
        %v5238 = vld [vmem:[%s5215 + $0x160] sm:$0xf]
        %v5239 = vld [vmem:[%s5215 + $0x170] sm:$0xf]
        %v5240 = vld [vmem:[%s5215 + $0x180] sm:$0xf]
        %v5241 = vunpack.c.l.bf16 %v5216
        %v5242 = vunpack.c.l.bf16 %v5217
        %v5243 = vunpack.c.l.bf16 %v5218
        %v5244 = vunpack.c.l.bf16 %v5219
        %v5245 = vunpack.c.l.bf16 %v5220
        %v5246 = vunpack.c.l.bf16 %v5221
        %v5247 = vunpack.c.l.bf16 %v5222
        %v5248 = vunpack.c.l.bf16 %v5223
        %v5249 = vunpack.c.l.bf16 %v5224
        %v5250 = vunpack.c.l.bf16 %v5225
        %v5251 = vunpack.c.l.bf16 %v5226
        %v5252 = vunpack.c.l.bf16 %v5227
        %v5253 = vunpack.c.l.bf16 %v5228
        %v5254 = vunpack.c.l.bf16 %v5229
        %v5255 = vunpack.c.l.bf16 %v5230
        %v5256 = vunpack.c.l.bf16 %v5231
        %v5257 = vunpack.c.l.bf16 %v5232
        %v5258 = vunpack.c.l.bf16 %v5233
        %v5259 = vunpack.c.l.bf16 %v5234
        %v5260 = vunpack.c.l.bf16 %v5235
        %v5261 = vunpack.c.l.bf16 %v5236
        %v5262 = vunpack.c.l.bf16 %v5237
        %v5263 = vunpack.c.l.bf16 %v5238
        %v5264 = vunpack.c.l.bf16 %v5239
        %v5265 = vunpack.c.l.bf16 %v5240
        %v5266 = vadd.f32 %v5241, %v972
        %v5267 = vadd.f32 %v5242, %v973
        %v5268 = vadd.f32 %v5243, %v974
        %v5269 = vadd.f32 %v5244, %v975
        %v5270 = vadd.f32 %v5245, %v976
        %v5271 = vadd.f32 %v5246, %v977
        %v5272 = vadd.f32 %v5247, %v978
        %v5273 = vadd.f32 %v5248, %v979
        %v5274 = vadd.f32 %v5249, %v980
        %v5275 = vadd.f32 %v5250, %v981
        %v5276 = vadd.f32 %v5251, %v982
        %v5277 = vadd.f32 %v5252, %v983
        %v5278 = vadd.f32 %v5253, %v984
        %v5279 = vadd.f32 %v5254, %v985
        %v5280 = vadd.f32 %v5255, %v986
        %v5281 = vadd.f32 %v5256, %v987
        %v5282 = vadd.f32 %v5257, %v988
        %v5283 = vadd.f32 %v5258, %v989
        %v5284 = vadd.f32 %v5259, %v990
        %v5285 = vadd.f32 %v5260, %v991
        %v5286 = vadd.f32 %v5261, %v992
        %v5287 = vadd.f32 %v5262, %v993
        %v5288 = vadd.f32 %v5263, %v994
        %v5289 = vadd.f32 %v5264, %v995
        %v5290 = vadd.f32 %v5265, %v996
        %v5291 = vsel %vm1072, %v5266, -inf
        %v5292 = vsel %vm1072, %v5267, -inf
        %v5293 = vsel %vm1072, %v5268, -inf
        %v5294 = vsel %vm1072, %v5269, -inf
        %v5295 = vsel %vm1072, %v5270, -inf
        %v5296 = vmax.f32 %v5291, %v5295
        %v5297 = vsel %vm1072, %v5271, -inf
        %v5298 = vmax.f32 %v5292, %v5297
        %v5299 = vsel %vm1072, %v5272, -inf
        %v5300 = vmax.f32 %v5293, %v5299
        %v5301 = vsel %vm1072, %v5273, -inf
        %v5302 = vmax.f32 %v5294, %v5301
        %v5303 = vsel %vm1072, %v5274, -inf
        %v5304 = vmax.f32 %v5296, %v5303
        %v5305 = vsel %vm1072, %v5275, -inf
        %v5306 = vmax.f32 %v5298, %v5305
        %v5307 = vsel %vm1072, %v5276, -inf
        %v5308 = vmax.f32 %v5300, %v5307
        %v5309 = vsel %vm1072, %v5277, -inf
        %v5310 = vmax.f32 %v5302, %v5309
        %v5311 = vsel %vm1072, %v5278, -inf
        %v5312 = vmax.f32 %v5304, %v5311
        %v5313 = vsel %vm1072, %v5279, -inf
        %v5314 = vmax.f32 %v5306, %v5313
        %v5315 = vsel %vm1072, %v5280, -inf
        %v5316 = vmax.f32 %v5308, %v5315
        %v5317 = vsel %vm1072, %v5281, -inf
        %v5318 = vmax.f32 %v5310, %v5317
        %v5319 = vsel %vm1072, %v5282, -inf
        %v5320 = vmax.f32 %v5312, %v5319
        %v5321 = vsel %vm1072, %v5283, -inf
        %v5322 = vmax.f32 %v5314, %v5321
        %v5323 = vsel %vm1072, %v5284, -inf
        %v5324 = vmax.f32 %v5316, %v5323
        %v5325 = vsel %vm1072, %v5285, -inf
        %v5326 = vmax.f32 %v5318, %v5325
        %v5327 = vsel %vm1072, %v5286, -inf
        %v5328 = vmax.f32 %v5320, %v5327
        %v5329 = vsel %vm1072, %v5287, -inf
        %v5330 = vmax.f32 %v5322, %v5329
        %v5331 = vsel %vm1072, %v5288, -inf
        %v5332 = vmax.f32 %v5324, %v5331
        %v5333 = vsel %vm1072, %v5289, -inf
        %v5334 = vmax.f32 %v5326, %v5333
        %v5335 = vsel %vm1072, %v5290, -inf
        %v5336 = vmax.f32 %v5328, %v5335
        %v5337 = vmax.f32 %v5336, %v5330
        %v5338 = vmax.f32 %v5332, %v5334
        %v5339 = vmax.f32 %v5337, %v5338
        %v5340 = vsub.f32 %v5266, %v5339
        %v5341 = vsub.f32 %v5267, %v5339
        %v5342 = vsub.f32 %v5268, %v5339
        %v5343 = vsub.f32 %v5269, %v5339
        %v5344 = vsub.f32 %v5270, %v5339
        %v5345 = vsub.f32 %v5271, %v5339
        %v5346 = vsub.f32 %v5272, %v5339
        %v5347 = vsub.f32 %v5273, %v5339
        %v5348 = vsub.f32 %v5274, %v5339
        %v5349 = vsub.f32 %v5275, %v5339
        %v5350 = vsub.f32 %v5276, %v5339
        %v5351 = vsub.f32 %v5277, %v5339
        %v5352 = vsub.f32 %v5278, %v5339
        %v5353 = vsub.f32 %v5279, %v5339
        %v5354 = vsub.f32 %v5280, %v5339
        %v5355 = vsub.f32 %v5281, %v5339
        %v5356 = vsub.f32 %v5282, %v5339
        %v5357 = vsub.f32 %v5283, %v5339
        %v5358 = vsub.f32 %v5284, %v5339
        %v5359 = vsub.f32 %v5285, %v5339
        %v5360 = vsub.f32 %v5286, %v5339
        %v5361 = vsub.f32 %v5287, %v5339
        %v5362 = vsub.f32 %v5288, %v5339
        %v5363 = vsub.f32 %v5289, %v5339
        %v5364 = vsub.f32 %v5290, %v5339
        %v5365 = vmul.f32 %v5340, 1.442695
        %v5366 = vpow.pop %v5365
        %v5367 = vmul.f32 %v5341, 1.442695
        %v5368 = vpow.pop %v5367
        %v5369 = vmul.f32 %v5342, 1.442695
        %v5370 = vpow.pop %v5369
        %v5371 = vmul.f32 %v5343, 1.442695
        %v5372 = vpow.pop %v5371
        %v5373 = vmul.f32 %v5344, 1.442695
        %v5374 = vpow.pop %v5373
        %v5375 = vmul.f32 %v5345, 1.442695
        %v5376 = vpow.pop %v5375
        %v5377 = vmul.f32 %v5346, 1.442695
        %v5378 = vpow.pop %v5377
        %v5379 = vmul.f32 %v5347, 1.442695
        %v5380 = vpow.pop %v5379
        %v5381 = vmul.f32 %v5348, 1.442695
        %v5382 = vpow.pop %v5381
        %v5383 = vmul.f32 %v5349, 1.442695
        %v5384 = vpow.pop %v5383
        %v5385 = vmul.f32 %v5350, 1.442695
        %v5386 = vpow.pop %v5385
        %v5387 = vmul.f32 %v5351, 1.442695
        %v5388 = vpow.pop %v5387
        %v5389 = vmul.f32 %v5352, 1.442695
        %v5390 = vpow.pop %v5389
        %v5391 = vmul.f32 %v5353, 1.442695
        %v5392 = vpow.pop %v5391
        %v5393 = vmul.f32 %v5354, 1.442695
        %v5394 = vpow.pop %v5393
        %v5395 = vmul.f32 %v5355, 1.442695
        %v5396 = vpow.pop %v5395
        %v5397 = vmul.f32 %v5356, 1.442695
        %v5398 = vpow.pop %v5397
        %v5399 = vmul.f32 %v5357, 1.442695
        %v5400 = vpow.pop %v5399
        %v5401 = vmul.f32 %v5358, 1.442695
        %v5402 = vpow.pop %v5401
        %v5403 = vmul.f32 %v5359, 1.442695
        %v5404 = vpow.pop %v5403
        %v5405 = vmul.f32 %v5360, 1.442695
        %v5406 = vpow.pop %v5405
        %v5407 = vmul.f32 %v5361, 1.442695
        %v5408 = vpow.pop %v5407
        %v5409 = vmul.f32 %v5362, 1.442695
        %v5410 = vpow.pop %v5409
        %v5411 = vmul.f32 %v5363, 1.442695
        %v5412 = vpow.pop %v5411
        %v5413 = vmul.f32 %v5364, 1.442695
        %v5414 = vpow.pop %v5413
        %v5415 = vsel %vm1072, %v5366, 0.0
        %v5416 = vsel %vm1072, %v5368, 0.0
        %v5417 = vadd.f32 %v5415, %v5416
        %v5418 = vsel %vm1072, %v5370, 0.0
        %v5419 = vadd.f32 %v5417, %v5418
        %v5420 = vsel %vm1072, %v5372, 0.0
        %v5421 = vadd.f32 %v5419, %v5420
        %v5422 = vsel %vm1072, %v5374, 0.0
        %v5423 = vadd.f32 %v5421, %v5422
        %v5424 = vsel %vm1072, %v5376, 0.0
        %v5425 = vadd.f32 %v5423, %v5424
        %v5426 = vsel %vm1072, %v5378, 0.0
        %v5427 = vadd.f32 %v5425, %v5426
        %v5428 = vsel %vm1072, %v5380, 0.0
        %v5429 = vadd.f32 %v5427, %v5428
        %v5430 = vsel %vm1072, %v5382, 0.0
        %v5431 = vadd.f32 %v5429, %v5430
        %v5432 = vsel %vm1072, %v5384, 0.0
        %v5433 = vadd.f32 %v5431, %v5432
        %v5434 = vsel %vm1072, %v5386, 0.0
        %v5435 = vadd.f32 %v5433, %v5434
        %v5436 = vsel %vm1072, %v5388, 0.0
        %v5437 = vadd.f32 %v5435, %v5436
        %v5438 = vsel %vm1072, %v5390, 0.0
        %v5439 = vadd.f32 %v5437, %v5438
        %v5440 = vsel %vm1072, %v5392, 0.0
        %v5441 = vadd.f32 %v5439, %v5440
        %v5442 = vsel %vm1072, %v5394, 0.0
        %v5443 = vadd.f32 %v5441, %v5442
        %v5444 = vsel %vm1072, %v5396, 0.0
        %v5445 = vadd.f32 %v5443, %v5444
        %v5446 = vsel %vm1072, %v5398, 0.0
        %v5447 = vadd.f32 %v5445, %v5446
        %v5448 = vsel %vm1072, %v5400, 0.0
        %v5449 = vadd.f32 %v5447, %v5448
        %v5450 = vsel %vm1072, %v5402, 0.0
        %v5451 = vadd.f32 %v5449, %v5450
        %v5452 = vsel %vm1072, %v5404, 0.0
        %v5453 = vadd.f32 %v5451, %v5452
        %v5454 = vsel %vm1072, %v5406, 0.0
        %v5455 = vadd.f32 %v5453, %v5454
        %v5456 = vsel %vm1072, %v5408, 0.0
        %v5457 = vadd.f32 %v5455, %v5456
        %v5458 = vsel %vm1072, %v5410, 0.0
        %v5459 = vadd.f32 %v5457, %v5458
        %v5460 = vsel %vm1072, %v5412, 0.0
        %v5461 = vadd.f32 %v5459, %v5460
        %v5462 = vsel %vm1072, %v5414, 0.0
        %v5463 = vadd.f32 %v5461, %v5462
        %v5464 = vrcp.pop %v5463
        %v5465 = vmul.f32 %v5366, %v5464
        %v5466 = vmul.f32 %v5368, %v5464
        %v5467 = vmul.f32 %v5370, %v5464
        %v5468 = vmul.f32 %v5372, %v5464
        %v5469 = vmul.f32 %v5374, %v5464
        %v5470 = vmul.f32 %v5376, %v5464
        %v5471 = vmul.f32 %v5378, %v5464
        %v5472 = vmul.f32 %v5380, %v5464
        %v5473 = vmul.f32 %v5382, %v5464
        %v5474 = vmul.f32 %v5384, %v5464
        %v5475 = vmul.f32 %v5386, %v5464
        %v5476 = vmul.f32 %v5388, %v5464
        %v5477 = vmul.f32 %v5390, %v5464
        %v5478 = vmul.f32 %v5392, %v5464
        %v5479 = vmul.f32 %v5394, %v5464
        %v5480 = vmul.f32 %v5396, %v5464
        %v5481 = vmul.f32 %v5398, %v5464
        %v5482 = vmul.f32 %v5400, %v5464
        %v5483 = vmul.f32 %v5402, %v5464
        %v5484 = vmul.f32 %v5404, %v5464
        %v5485 = vmul.f32 %v5406, %v5464
        %v5486 = vmul.f32 %v5408, %v5464
        %v5487 = vmul.f32 %v5410, %v5464
        %v5488 = vmul.f32 %v5412, %v5464
        %v5489 = vmul.f32 %v5414, %v5464
        %v5490 = vld [vmem:[%s912] sm:$0xf]
        %v5491 = vld [vmem:[%s912 + $0x8] sm:$0xf]
        %v5492 = vld [vmem:[%s912 + $0x10] sm:$0xf]
        %v5493 = vld [vmem:[%s912 + $0x18] sm:$0xf]
        %v5494 = vunpack.c.l.bf16 %v5490
        %v5495 = vunpack.c.l.bf16 %v5491
        %v5496 = vunpack.c.l.bf16 %v5492
        %v5497 = vunpack.c.l.bf16 %v5493
        %v5498 = vmul.f32 %v5494, %v5465
        %v5499 = vmul.f32 %v5495, %v5465
        %v5500 = vmul.f32 %v5496, %v5465
        %v5501 = vmul.f32 %v5497, %v5465
        %v5502 = vadd.f32 %v5498, 0.0
        %v5503 = vadd.f32 %v5499, 0.0
        %v5504 = vadd.f32 %v5500, 0.0
        %v5505 = vadd.f32 %v5501, 0.0
        %5507 = vrot.lane.b32.xlu0 %v5466, 1
        %v5508 = vpop.permute.xlu0 %5507
        %v5510 = vmul.f32 %v5494, %v5508
        %v5511 = vmul.f32 %v5495, %v5508
        %v5512 = vmul.f32 %v5496, %v5508
        %v5513 = vmul.f32 %v5497, %v5508
        %5518 = vrot.lane.b32.xlu0 %v5510, 127
        %v5519 = vpop.permute.xlu0 %5518
        %5520 = vrot.lane.b32.xlu0 %v5511, 127
        %v5521 = vpop.permute.xlu0 %5520
        %5522 = vrot.lane.b32.xlu0 %v5512, 127
        %v5523 = vpop.permute.xlu0 %5522
        %5524 = vrot.lane.b32.xlu0 %v5513, 127
        %v5525 = vpop.permute.xlu0 %5524
        %v5530 = vadd.f32 %v5502, %v5519
        %v5531 = vadd.f32 %v5503, %v5521
        %v5532 = vadd.f32 %v5504, %v5523
        %v5533 = vadd.f32 %v5505, %v5525
        %5535 = vrot.lane.b32.xlu0 %v5467, 2
        %v5536 = vpop.permute.xlu0 %5535
        %v5538 = vmul.f32 %v5494, %v5536
        %v5539 = vmul.f32 %v5495, %v5536
        %v5540 = vmul.f32 %v5496, %v5536
        %v5541 = vmul.f32 %v5497, %v5536
        %5546 = vrot.lane.b32.xlu0 %v5538, 126
        %v5547 = vpop.permute.xlu0 %5546
        %5548 = vrot.lane.b32.xlu0 %v5539, 126
        %v5549 = vpop.permute.xlu0 %5548
        %5550 = vrot.lane.b32.xlu0 %v5540, 126
        %v5551 = vpop.permute.xlu0 %5550
        %5552 = vrot.lane.b32.xlu0 %v5541, 126
        %v5553 = vpop.permute.xlu0 %5552
        %v5558 = vadd.f32 %v5530, %v5547
        %v5559 = vadd.f32 %v5531, %v5549
        %v5560 = vadd.f32 %v5532, %v5551
        %v5561 = vadd.f32 %v5533, %v5553
        %5563 = vrot.lane.b32.xlu0 %v5468, 3
        %v5564 = vpop.permute.xlu0 %5563
        %v5566 = vmul.f32 %v5494, %v5564
        %v5567 = vmul.f32 %v5495, %v5564
        %v5568 = vmul.f32 %v5496, %v5564
        %v5569 = vmul.f32 %v5497, %v5564
        %5574 = vrot.lane.b32.xlu0 %v5566, 125
        %v5575 = vpop.permute.xlu0 %5574
        %5576 = vrot.lane.b32.xlu0 %v5567, 125
        %v5577 = vpop.permute.xlu0 %5576
        %5578 = vrot.lane.b32.xlu0 %v5568, 125
        %v5579 = vpop.permute.xlu0 %5578
        %5580 = vrot.lane.b32.xlu0 %v5569, 125
        %v5581 = vpop.permute.xlu0 %5580
        %v5586 = vadd.f32 %v5558, %v5575
        %v5587 = vadd.f32 %v5559, %v5577
        %v5588 = vadd.f32 %v5560, %v5579
        %v5589 = vadd.f32 %v5561, %v5581
        %5591 = vrot.lane.b32.xlu0 %v5469, 4
        %v5592 = vpop.permute.xlu0 %5591
        %v5594 = vmul.f32 %v5494, %v5592
        %v5595 = vmul.f32 %v5495, %v5592
        %v5596 = vmul.f32 %v5496, %v5592
        %v5597 = vmul.f32 %v5497, %v5592
        %5602 = vrot.lane.b32.xlu0 %v5594, 124
        %v5603 = vpop.permute.xlu0 %5602
        %5604 = vrot.lane.b32.xlu0 %v5595, 124
        %v5605 = vpop.permute.xlu0 %5604
        %5606 = vrot.lane.b32.xlu0 %v5596, 124
        %v5607 = vpop.permute.xlu0 %5606
        %5608 = vrot.lane.b32.xlu0 %v5597, 124
        %v5609 = vpop.permute.xlu0 %5608
        %v5614 = vadd.f32 %v5586, %v5603
        %v5615 = vadd.f32 %v5587, %v5605
        %v5616 = vadd.f32 %v5588, %v5607
        %v5617 = vadd.f32 %v5589, %v5609
        %v5618 = vld [vmem:[%s912 + $0x4] sm:$0x1]
        %v5619 = vld [vmem:[%s912 + $0xc] sm:$0x1]
        %v5620 = vld [vmem:[%s912 + $0x14] sm:$0x1]
        %v5621 = vld [vmem:[%s912 + $0x1c] sm:$0x1]
        %v5622 = vunpack.c.l.bf16 %v5618
        %v5623 = vunpack.c.l.bf16 %v5619
        %v5624 = vunpack.c.l.bf16 %v5620
        %v5625 = vunpack.c.l.bf16 %v5621
        %v5627 = vrot.slane %v5470, 7
        %v5629 = vmul.f32 %v5494, %v5627
        %v5630 = vmul.f32 %v5622, %v5627
        %v5631 = vmul.f32 %v5495, %v5627
        %v5632 = vmul.f32 %v5623, %v5627
        %v5633 = vmul.f32 %v5496, %v5627
        %v5634 = vmul.f32 %v5624, %v5627
        %v5635 = vmul.f32 %v5497, %v5627
        %v5636 = vmul.f32 %v5625, %v5627
        %v5645 = vrot.slane %v5629, 1
        %v5646 = vrot.slane %v5630, 1
        %v5647 = vsel %vm1427, %v5645, %v5646
        %v5648 = vrot.slane %v5631, 1
        %v5649 = vrot.slane %v5632, 1
        %v5650 = vsel %vm1427, %v5648, %v5649
        %v5651 = vrot.slane %v5633, 1
        %v5652 = vrot.slane %v5634, 1
        %v5653 = vsel %vm1427, %v5651, %v5652
        %v5654 = vrot.slane %v5635, 1
        %v5655 = vrot.slane %v5636, 1
        %v5656 = vsel %vm1427, %v5654, %v5655
        %v5661 = vadd.f32 %v5614, %v5647
        %v5662 = vadd.f32 %v5615, %v5650
        %v5663 = vadd.f32 %v5616, %v5653
        %v5664 = vadd.f32 %v5617, %v5656
        %v5666 = vrot.slane %v5471, 7
        %5667 = vrot.lane.b32.xlu0 %v5666, 1
        %v5668 = vpop.permute.xlu0 %5667
        %v5670 = vmul.f32 %v5494, %v5668
        %v5671 = vmul.f32 %v5622, %v5668
        %v5672 = vmul.f32 %v5495, %v5668
        %v5673 = vmul.f32 %v5623, %v5668
        %v5674 = vmul.f32 %v5496, %v5668
        %v5675 = vmul.f32 %v5624, %v5668
        %v5676 = vmul.f32 %v5497, %v5668
        %v5677 = vmul.f32 %v5625, %v5668
        %v5686 = vrot.slane %v5670, 1
        %v5687 = vrot.slane %v5671, 1
        %v5688 = vsel %vm1427, %v5686, %v5687
        %v5689 = vrot.slane %v5672, 1
        %v5690 = vrot.slane %v5673, 1
        %v5691 = vsel %vm1427, %v5689, %v5690
        %v5692 = vrot.slane %v5674, 1
        %v5693 = vrot.slane %v5675, 1
        %v5694 = vsel %vm1427, %v5692, %v5693
        %v5695 = vrot.slane %v5676, 1
        %v5696 = vrot.slane %v5677, 1
        %v5697 = vsel %vm1427, %v5695, %v5696
        %5698 = vrot.lane.b32.xlu0 %v5688, 127
        %v5699 = vpop.permute.xlu0 %5698
        %5700 = vrot.lane.b32.xlu0 %v5691, 127
        %v5701 = vpop.permute.xlu0 %5700
        %5702 = vrot.lane.b32.xlu0 %v5694, 127
        %v5703 = vpop.permute.xlu0 %5702
        %5704 = vrot.lane.b32.xlu0 %v5697, 127
        %v5705 = vpop.permute.xlu0 %5704
        %v5710 = vadd.f32 %v5661, %v5699
        %v5711 = vadd.f32 %v5662, %v5701
        %v5712 = vadd.f32 %v5663, %v5703
        %v5713 = vadd.f32 %v5664, %v5705
        %v5715 = vrot.slane %v5472, 7
        %5716 = vrot.lane.b32.xlu0 %v5715, 2
        %v5717 = vpop.permute.xlu0 %5716
        %v5719 = vmul.f32 %v5494, %v5717
        %v5720 = vmul.f32 %v5622, %v5717
        %v5721 = vmul.f32 %v5495, %v5717
        %v5722 = vmul.f32 %v5623, %v5717
        %v5723 = vmul.f32 %v5496, %v5717
        %v5724 = vmul.f32 %v5624, %v5717
        %v5725 = vmul.f32 %v5497, %v5717
        %v5726 = vmul.f32 %v5625, %v5717
        %v5735 = vrot.slane %v5719, 1
        %v5736 = vrot.slane %v5720, 1
        %v5737 = vsel %vm1427, %v5735, %v5736
        %v5738 = vrot.slane %v5721, 1
        %v5739 = vrot.slane %v5722, 1
        %v5740 = vsel %vm1427, %v5738, %v5739
        %v5741 = vrot.slane %v5723, 1
        %v5742 = vrot.slane %v5724, 1
        %v5743 = vsel %vm1427, %v5741, %v5742
        %v5744 = vrot.slane %v5725, 1
        %v5745 = vrot.slane %v5726, 1
        %v5746 = vsel %vm1427, %v5744, %v5745
        %5747 = vrot.lane.b32.xlu0 %v5737, 126
        %v5748 = vpop.permute.xlu0 %5747
        %5749 = vrot.lane.b32.xlu0 %v5740, 126
        %v5750 = vpop.permute.xlu0 %5749
        %5751 = vrot.lane.b32.xlu0 %v5743, 126
        %v5752 = vpop.permute.xlu0 %5751
        %5753 = vrot.lane.b32.xlu0 %v5746, 126
        %v5754 = vpop.permute.xlu0 %5753
        %v5759 = vadd.f32 %v5710, %v5748
        %v5760 = vadd.f32 %v5711, %v5750
        %v5761 = vadd.f32 %v5712, %v5752
        %v5762 = vadd.f32 %v5713, %v5754
        %v5764 = vrot.slane %v5473, 7
        %5765 = vrot.lane.b32.xlu0 %v5764, 3
        %v5766 = vpop.permute.xlu0 %5765
        %v5768 = vmul.f32 %v5494, %v5766
        %v5769 = vmul.f32 %v5622, %v5766
        %v5770 = vmul.f32 %v5495, %v5766
        %v5771 = vmul.f32 %v5623, %v5766
        %v5772 = vmul.f32 %v5496, %v5766
        %v5773 = vmul.f32 %v5624, %v5766
        %v5774 = vmul.f32 %v5497, %v5766
        %v5775 = vmul.f32 %v5625, %v5766
        %v5784 = vrot.slane %v5768, 1
        %v5785 = vrot.slane %v5769, 1
        %v5786 = vsel %vm1427, %v5784, %v5785
        %v5787 = vrot.slane %v5770, 1
        %v5788 = vrot.slane %v5771, 1
        %v5789 = vsel %vm1427, %v5787, %v5788
        %v5790 = vrot.slane %v5772, 1
        %v5791 = vrot.slane %v5773, 1
        %v5792 = vsel %vm1427, %v5790, %v5791
        %v5793 = vrot.slane %v5774, 1
        %v5794 = vrot.slane %v5775, 1
        %v5795 = vsel %vm1427, %v5793, %v5794
        %5796 = vrot.lane.b32.xlu0 %v5786, 125
        %v5797 = vpop.permute.xlu0 %5796
        %5798 = vrot.lane.b32.xlu0 %v5789, 125
        %v5799 = vpop.permute.xlu0 %5798
        %5800 = vrot.lane.b32.xlu0 %v5792, 125
        %v5801 = vpop.permute.xlu0 %5800
        %5802 = vrot.lane.b32.xlu0 %v5795, 125
        %v5803 = vpop.permute.xlu0 %5802
        %v5808 = vadd.f32 %v5759, %v5797
        %v5809 = vadd.f32 %v5760, %v5799
        %v5810 = vadd.f32 %v5761, %v5801
        %v5811 = vadd.f32 %v5762, %v5803
        %v5813 = vrot.slane %v5474, 7
        %5814 = vrot.lane.b32.xlu0 %v5813, 4
        %v5815 = vpop.permute.xlu0 %5814
        %v5817 = vmul.f32 %v5494, %v5815
        %v5818 = vmul.f32 %v5622, %v5815
        %v5819 = vmul.f32 %v5495, %v5815
        %v5820 = vmul.f32 %v5623, %v5815
        %v5821 = vmul.f32 %v5496, %v5815
        %v5822 = vmul.f32 %v5624, %v5815
        %v5823 = vmul.f32 %v5497, %v5815
        %v5824 = vmul.f32 %v5625, %v5815
        %v5833 = vrot.slane %v5817, 1
        %v5834 = vrot.slane %v5818, 1
        %v5835 = vsel %vm1427, %v5833, %v5834
        %v5836 = vrot.slane %v5819, 1
        %v5837 = vrot.slane %v5820, 1
        %v5838 = vsel %vm1427, %v5836, %v5837
        %v5839 = vrot.slane %v5821, 1
        %v5840 = vrot.slane %v5822, 1
        %v5841 = vsel %vm1427, %v5839, %v5840
        %v5842 = vrot.slane %v5823, 1
        %v5843 = vrot.slane %v5824, 1
        %v5844 = vsel %vm1427, %v5842, %v5843
        %5845 = vrot.lane.b32.xlu0 %v5835, 124
        %v5846 = vpop.permute.xlu0 %5845
        %5847 = vrot.lane.b32.xlu0 %v5838, 124
        %v5848 = vpop.permute.xlu0 %5847
        %5849 = vrot.lane.b32.xlu0 %v5841, 124
        %v5850 = vpop.permute.xlu0 %5849
        %5851 = vrot.lane.b32.xlu0 %v5844, 124
        %v5852 = vpop.permute.xlu0 %5851
        %v5857 = vadd.f32 %v5808, %v5846
        %v5858 = vadd.f32 %v5809, %v5848
        %v5859 = vadd.f32 %v5810, %v5850
        %v5860 = vadd.f32 %v5811, %v5852
        %v5861 = vld [vmem:[%s912] sm:$0xe]
        %v5862 = vld [vmem:[%s912 + $0x8] sm:$0xe]
        %v5863 = vld [vmem:[%s912 + $0x10] sm:$0xe]
        %v5864 = vld [vmem:[%s912 + $0x18] sm:$0xe]
        %v5865 = vunpack.c.l.bf16 %v5861
        %v5866 = vunpack.c.l.bf16 %v5862
        %v5867 = vunpack.c.l.bf16 %v5863
        %v5868 = vunpack.c.l.bf16 %v5864
        %v5870 = vrot.slane %v5475, 6
        %v5872 = vmul.f32 %v5865, %v5870
        %v5873 = vmul.f32 %v5622, %v5870
        %v5874 = vmul.f32 %v5866, %v5870
        %v5875 = vmul.f32 %v5623, %v5870
        %v5876 = vmul.f32 %v5867, %v5870
        %v5877 = vmul.f32 %v5624, %v5870
        %v5878 = vmul.f32 %v5868, %v5870
        %v5879 = vmul.f32 %v5625, %v5870
        %v5888 = vrot.slane %v5872, 2
        %v5889 = vrot.slane %v5873, 2
        %v5890 = vsel %vm1671, %v5888, %v5889
        %v5891 = vrot.slane %v5874, 2
        %v5892 = vrot.slane %v5875, 2
        %v5893 = vsel %vm1671, %v5891, %v5892
        %v5894 = vrot.slane %v5876, 2
        %v5895 = vrot.slane %v5877, 2
        %v5896 = vsel %vm1671, %v5894, %v5895
        %v5897 = vrot.slane %v5878, 2
        %v5898 = vrot.slane %v5879, 2
        %v5899 = vsel %vm1671, %v5897, %v5898
        %v5904 = vadd.f32 %v5857, %v5890
        %v5905 = vadd.f32 %v5858, %v5893
        %v5906 = vadd.f32 %v5859, %v5896
        %v5907 = vadd.f32 %v5860, %v5899
        %v5909 = vrot.slane %v5476, 6
        %5910 = vrot.lane.b32.xlu0 %v5909, 1
        %v5911 = vpop.permute.xlu0 %5910
        %v5913 = vmul.f32 %v5865, %v5911
        %v5914 = vmul.f32 %v5622, %v5911
        %v5915 = vmul.f32 %v5866, %v5911
        %v5916 = vmul.f32 %v5623, %v5911
        %v5917 = vmul.f32 %v5867, %v5911
        %v5918 = vmul.f32 %v5624, %v5911
        %v5919 = vmul.f32 %v5868, %v5911
        %v5920 = vmul.f32 %v5625, %v5911
        %v5929 = vrot.slane %v5913, 2
        %v5930 = vrot.slane %v5914, 2
        %v5931 = vsel %vm1671, %v5929, %v5930
        %v5932 = vrot.slane %v5915, 2
        %v5933 = vrot.slane %v5916, 2
        %v5934 = vsel %vm1671, %v5932, %v5933
        %v5935 = vrot.slane %v5917, 2
        %v5936 = vrot.slane %v5918, 2
        %v5937 = vsel %vm1671, %v5935, %v5936
        %v5938 = vrot.slane %v5919, 2
        %v5939 = vrot.slane %v5920, 2
        %v5940 = vsel %vm1671, %v5938, %v5939
        %5941 = vrot.lane.b32.xlu0 %v5931, 127
        %v5942 = vpop.permute.xlu0 %5941
        %5943 = vrot.lane.b32.xlu0 %v5934, 127
        %v5944 = vpop.permute.xlu0 %5943
        %5945 = vrot.lane.b32.xlu0 %v5937, 127
        %v5946 = vpop.permute.xlu0 %5945
        %5947 = vrot.lane.b32.xlu0 %v5940, 127
        %v5948 = vpop.permute.xlu0 %5947
        %v5953 = vadd.f32 %v5904, %v5942
        %v5954 = vadd.f32 %v5905, %v5944
        %v5955 = vadd.f32 %v5906, %v5946
        %v5956 = vadd.f32 %v5907, %v5948
        %v5958 = vrot.slane %v5477, 6
        %5959 = vrot.lane.b32.xlu0 %v5958, 2
        %v5960 = vpop.permute.xlu0 %5959
        %v5962 = vmul.f32 %v5865, %v5960
        %v5963 = vmul.f32 %v5622, %v5960
        %v5964 = vmul.f32 %v5866, %v5960
        %v5965 = vmul.f32 %v5623, %v5960
        %v5966 = vmul.f32 %v5867, %v5960
        %v5967 = vmul.f32 %v5624, %v5960
        %v5968 = vmul.f32 %v5868, %v5960
        %v5969 = vmul.f32 %v5625, %v5960
        %v5978 = vrot.slane %v5962, 2
        %v5979 = vrot.slane %v5963, 2
        %v5980 = vsel %vm1671, %v5978, %v5979
        %v5981 = vrot.slane %v5964, 2
        %v5982 = vrot.slane %v5965, 2
        %v5983 = vsel %vm1671, %v5981, %v5982
        %v5984 = vrot.slane %v5966, 2
        %v5985 = vrot.slane %v5967, 2
        %v5986 = vsel %vm1671, %v5984, %v5985
        %v5987 = vrot.slane %v5968, 2
        %v5988 = vrot.slane %v5969, 2
        %v5989 = vsel %vm1671, %v5987, %v5988
        %5990 = vrot.lane.b32.xlu0 %v5980, 126
        %v5991 = vpop.permute.xlu0 %5990
        %5992 = vrot.lane.b32.xlu0 %v5983, 126
        %v5993 = vpop.permute.xlu0 %5992
        %5994 = vrot.lane.b32.xlu0 %v5986, 126
        %v5995 = vpop.permute.xlu0 %5994
        %5996 = vrot.lane.b32.xlu0 %v5989, 126
        %v5997 = vpop.permute.xlu0 %5996
        %v6002 = vadd.f32 %v5953, %v5991
        %v6003 = vadd.f32 %v5954, %v5993
        %v6004 = vadd.f32 %v5955, %v5995
        %v6005 = vadd.f32 %v5956, %v5997
        %v6007 = vrot.slane %v5478, 6
        %6008 = vrot.lane.b32.xlu0 %v6007, 3
        %v6009 = vpop.permute.xlu0 %6008
        %v6011 = vmul.f32 %v5865, %v6009
        %v6012 = vmul.f32 %v5622, %v6009
        %v6013 = vmul.f32 %v5866, %v6009
        %v6014 = vmul.f32 %v5623, %v6009
        %v6015 = vmul.f32 %v5867, %v6009
        %v6016 = vmul.f32 %v5624, %v6009
        %v6017 = vmul.f32 %v5868, %v6009
        %v6018 = vmul.f32 %v5625, %v6009
        %v6027 = vrot.slane %v6011, 2
        %v6028 = vrot.slane %v6012, 2
        %v6029 = vsel %vm1671, %v6027, %v6028
        %v6030 = vrot.slane %v6013, 2
        %v6031 = vrot.slane %v6014, 2
        %v6032 = vsel %vm1671, %v6030, %v6031
        %v6033 = vrot.slane %v6015, 2
        %v6034 = vrot.slane %v6016, 2
        %v6035 = vsel %vm1671, %v6033, %v6034
        %v6036 = vrot.slane %v6017, 2
        %v6037 = vrot.slane %v6018, 2
        %v6038 = vsel %vm1671, %v6036, %v6037
        %6039 = vrot.lane.b32.xlu0 %v6029, 125
        %v6040 = vpop.permute.xlu0 %6039
        %6041 = vrot.lane.b32.xlu0 %v6032, 125
        %v6042 = vpop.permute.xlu0 %6041
        %6043 = vrot.lane.b32.xlu0 %v6035, 125
        %v6044 = vpop.permute.xlu0 %6043
        %6045 = vrot.lane.b32.xlu0 %v6038, 125
        %v6046 = vpop.permute.xlu0 %6045
        %v6051 = vadd.f32 %v6002, %v6040
        %v6052 = vadd.f32 %v6003, %v6042
        %v6053 = vadd.f32 %v6004, %v6044
        %v6054 = vadd.f32 %v6005, %v6046
        %v6056 = vrot.slane %v5479, 6
        %6057 = vrot.lane.b32.xlu0 %v6056, 4
        %v6058 = vpop.permute.xlu0 %6057
        %v6060 = vmul.f32 %v5865, %v6058
        %v6061 = vmul.f32 %v5622, %v6058
        %v6062 = vmul.f32 %v5866, %v6058
        %v6063 = vmul.f32 %v5623, %v6058
        %v6064 = vmul.f32 %v5867, %v6058
        %v6065 = vmul.f32 %v5624, %v6058
        %v6066 = vmul.f32 %v5868, %v6058
        %v6067 = vmul.f32 %v5625, %v6058
        %v6076 = vrot.slane %v6060, 2
        %v6077 = vrot.slane %v6061, 2
        %v6078 = vsel %vm1671, %v6076, %v6077
        %v6079 = vrot.slane %v6062, 2
        %v6080 = vrot.slane %v6063, 2
        %v6081 = vsel %vm1671, %v6079, %v6080
        %v6082 = vrot.slane %v6064, 2
        %v6083 = vrot.slane %v6065, 2
        %v6084 = vsel %vm1671, %v6082, %v6083
        %v6085 = vrot.slane %v6066, 2
        %v6086 = vrot.slane %v6067, 2
        %v6087 = vsel %vm1671, %v6085, %v6086
        %6088 = vrot.lane.b32.xlu0 %v6078, 124
        %v6089 = vpop.permute.xlu0 %6088
        %6090 = vrot.lane.b32.xlu0 %v6081, 124
        %v6091 = vpop.permute.xlu0 %6090
        %6092 = vrot.lane.b32.xlu0 %v6084, 124
        %v6093 = vpop.permute.xlu0 %6092
        %6094 = vrot.lane.b32.xlu0 %v6087, 124
        %v6095 = vpop.permute.xlu0 %6094
        %v6100 = vadd.f32 %v6051, %v6089
        %v6101 = vadd.f32 %v6052, %v6091
        %v6102 = vadd.f32 %v6053, %v6093
        %v6103 = vadd.f32 %v6054, %v6095
        %v6104 = vld [vmem:[%s912 + $0x4] sm:$0x3]
        %v6105 = vld [vmem:[%s912 + $0xc] sm:$0x3]
        %v6106 = vld [vmem:[%s912 + $0x14] sm:$0x3]
        %v6107 = vld [vmem:[%s912 + $0x1c] sm:$0x3]
        %v6108 = vunpack.c.l.bf16 %v6104
        %v6109 = vunpack.c.l.bf16 %v6105
        %v6110 = vunpack.c.l.bf16 %v6106
        %v6111 = vunpack.c.l.bf16 %v6107
        %v6113 = vrot.slane %v5480, 5
        %v6115 = vmul.f32 %v5865, %v6113
        %v6116 = vmul.f32 %v6108, %v6113
        %v6117 = vmul.f32 %v5866, %v6113
        %v6118 = vmul.f32 %v6109, %v6113
        %v6119 = vmul.f32 %v5867, %v6113
        %v6120 = vmul.f32 %v6110, %v6113
        %v6121 = vmul.f32 %v5868, %v6113
        %v6122 = vmul.f32 %v6111, %v6113
        %v6131 = vrot.slane %v6115, 3
        %v6132 = vrot.slane %v6116, 3
        %v6133 = vsel %vm1915, %v6131, %v6132
        %v6134 = vrot.slane %v6117, 3
        %v6135 = vrot.slane %v6118, 3
        %v6136 = vsel %vm1915, %v6134, %v6135
        %v6137 = vrot.slane %v6119, 3
        %v6138 = vrot.slane %v6120, 3
        %v6139 = vsel %vm1915, %v6137, %v6138
        %v6140 = vrot.slane %v6121, 3
        %v6141 = vrot.slane %v6122, 3
        %v6142 = vsel %vm1915, %v6140, %v6141
        %v6147 = vadd.f32 %v6100, %v6133
        %v6148 = vadd.f32 %v6101, %v6136
        %v6149 = vadd.f32 %v6102, %v6139
        %v6150 = vadd.f32 %v6103, %v6142
        %v6152 = vrot.slane %v5481, 5
        %6153 = vrot.lane.b32.xlu0 %v6152, 1
        %v6154 = vpop.permute.xlu0 %6153
        %v6156 = vmul.f32 %v5865, %v6154
        %v6157 = vmul.f32 %v6108, %v6154
        %v6158 = vmul.f32 %v5866, %v6154
        %v6159 = vmul.f32 %v6109, %v6154
        %v6160 = vmul.f32 %v5867, %v6154
        %v6161 = vmul.f32 %v6110, %v6154
        %v6162 = vmul.f32 %v5868, %v6154
        %v6163 = vmul.f32 %v6111, %v6154
        %v6172 = vrot.slane %v6156, 3
        %v6173 = vrot.slane %v6157, 3
        %v6174 = vsel %vm1915, %v6172, %v6173
        %v6175 = vrot.slane %v6158, 3
        %v6176 = vrot.slane %v6159, 3
        %v6177 = vsel %vm1915, %v6175, %v6176
        %v6178 = vrot.slane %v6160, 3
        %v6179 = vrot.slane %v6161, 3
        %v6180 = vsel %vm1915, %v6178, %v6179
        %v6181 = vrot.slane %v6162, 3
        %v6182 = vrot.slane %v6163, 3
        %v6183 = vsel %vm1915, %v6181, %v6182
        %6184 = vrot.lane.b32.xlu0 %v6174, 127
        %v6185 = vpop.permute.xlu0 %6184
        %6186 = vrot.lane.b32.xlu0 %v6177, 127
        %v6187 = vpop.permute.xlu0 %6186
        %6188 = vrot.lane.b32.xlu0 %v6180, 127
        %v6189 = vpop.permute.xlu0 %6188
        %6190 = vrot.lane.b32.xlu0 %v6183, 127
        %v6191 = vpop.permute.xlu0 %6190
        %v6196 = vadd.f32 %v6147, %v6185
        %v6197 = vadd.f32 %v6148, %v6187
        %v6198 = vadd.f32 %v6149, %v6189
        %v6199 = vadd.f32 %v6150, %v6191
        %v6201 = vrot.slane %v5482, 5
        %6202 = vrot.lane.b32.xlu0 %v6201, 2
        %v6203 = vpop.permute.xlu0 %6202
        %v6205 = vmul.f32 %v5865, %v6203
        %v6206 = vmul.f32 %v6108, %v6203
        %v6207 = vmul.f32 %v5866, %v6203
        %v6208 = vmul.f32 %v6109, %v6203
        %v6209 = vmul.f32 %v5867, %v6203
        %v6210 = vmul.f32 %v6110, %v6203
        %v6211 = vmul.f32 %v5868, %v6203
        %v6212 = vmul.f32 %v6111, %v6203
        %v6221 = vrot.slane %v6205, 3
        %v6222 = vrot.slane %v6206, 3
        %v6223 = vsel %vm1915, %v6221, %v6222
        %v6224 = vrot.slane %v6207, 3
        %v6225 = vrot.slane %v6208, 3
        %v6226 = vsel %vm1915, %v6224, %v6225
        %v6227 = vrot.slane %v6209, 3
        %v6228 = vrot.slane %v6210, 3
        %v6229 = vsel %vm1915, %v6227, %v6228
        %v6230 = vrot.slane %v6211, 3
        %v6231 = vrot.slane %v6212, 3
        %v6232 = vsel %vm1915, %v6230, %v6231
        %6233 = vrot.lane.b32.xlu0 %v6223, 126
        %v6234 = vpop.permute.xlu0 %6233
        %6235 = vrot.lane.b32.xlu0 %v6226, 126
        %v6236 = vpop.permute.xlu0 %6235
        %6237 = vrot.lane.b32.xlu0 %v6229, 126
        %v6238 = vpop.permute.xlu0 %6237
        %6239 = vrot.lane.b32.xlu0 %v6232, 126
        %v6240 = vpop.permute.xlu0 %6239
        %v6245 = vadd.f32 %v6196, %v6234
        %v6246 = vadd.f32 %v6197, %v6236
        %v6247 = vadd.f32 %v6198, %v6238
        %v6248 = vadd.f32 %v6199, %v6240
        %v6250 = vrot.slane %v5483, 5
        %6251 = vrot.lane.b32.xlu0 %v6250, 3
        %v6252 = vpop.permute.xlu0 %6251
        %v6254 = vmul.f32 %v5865, %v6252
        %v6255 = vmul.f32 %v6108, %v6252
        %v6256 = vmul.f32 %v5866, %v6252
        %v6257 = vmul.f32 %v6109, %v6252
        %v6258 = vmul.f32 %v5867, %v6252
        %v6259 = vmul.f32 %v6110, %v6252
        %v6260 = vmul.f32 %v5868, %v6252
        %v6261 = vmul.f32 %v6111, %v6252
        %v6270 = vrot.slane %v6254, 3
        %v6271 = vrot.slane %v6255, 3
        %v6272 = vsel %vm1915, %v6270, %v6271
        %v6273 = vrot.slane %v6256, 3
        %v6274 = vrot.slane %v6257, 3
        %v6275 = vsel %vm1915, %v6273, %v6274
        %v6276 = vrot.slane %v6258, 3
        %v6277 = vrot.slane %v6259, 3
        %v6278 = vsel %vm1915, %v6276, %v6277
        %v6279 = vrot.slane %v6260, 3
        %v6280 = vrot.slane %v6261, 3
        %v6281 = vsel %vm1915, %v6279, %v6280
        %6282 = vrot.lane.b32.xlu0 %v6272, 125
        %v6283 = vpop.permute.xlu0 %6282
        %6284 = vrot.lane.b32.xlu0 %v6275, 125
        %v6285 = vpop.permute.xlu0 %6284
        %6286 = vrot.lane.b32.xlu0 %v6278, 125
        %v6287 = vpop.permute.xlu0 %6286
        %6288 = vrot.lane.b32.xlu0 %v6281, 125
        %v6289 = vpop.permute.xlu0 %6288
        %v6294 = vadd.f32 %v6245, %v6283
        %v6295 = vadd.f32 %v6246, %v6285
        %v6296 = vadd.f32 %v6247, %v6287
        %v6297 = vadd.f32 %v6248, %v6289
        %v6299 = vrot.slane %v5484, 5
        %6300 = vrot.lane.b32.xlu0 %v6299, 4
        %v6301 = vpop.permute.xlu0 %6300
        %v6303 = vmul.f32 %v5865, %v6301
        %v6304 = vmul.f32 %v6108, %v6301
        %v6305 = vmul.f32 %v5866, %v6301
        %v6306 = vmul.f32 %v6109, %v6301
        %v6307 = vmul.f32 %v5867, %v6301
        %v6308 = vmul.f32 %v6110, %v6301
        %v6309 = vmul.f32 %v5868, %v6301
        %v6310 = vmul.f32 %v6111, %v6301
        %v6319 = vrot.slane %v6303, 3
        %v6320 = vrot.slane %v6304, 3
        %v6321 = vsel %vm1915, %v6319, %v6320
        %v6322 = vrot.slane %v6305, 3
        %v6323 = vrot.slane %v6306, 3
        %v6324 = vsel %vm1915, %v6322, %v6323
        %v6325 = vrot.slane %v6307, 3
        %v6326 = vrot.slane %v6308, 3
        %v6327 = vsel %vm1915, %v6325, %v6326
        %v6328 = vrot.slane %v6309, 3
        %v6329 = vrot.slane %v6310, 3
        %v6330 = vsel %vm1915, %v6328, %v6329
        %6331 = vrot.lane.b32.xlu0 %v6321, 124
        %v6332 = vpop.permute.xlu0 %6331
        %6333 = vrot.lane.b32.xlu0 %v6324, 124
        %v6334 = vpop.permute.xlu0 %6333
        %6335 = vrot.lane.b32.xlu0 %v6327, 124
        %v6336 = vpop.permute.xlu0 %6335
        %6337 = vrot.lane.b32.xlu0 %v6330, 124
        %v6338 = vpop.permute.xlu0 %6337
        %v6343 = vadd.f32 %v6294, %v6332
        %v6344 = vadd.f32 %v6295, %v6334
        %v6345 = vadd.f32 %v6296, %v6336
        %v6346 = vadd.f32 %v6297, %v6338
        %v6347 = vld [vmem:[%s912] sm:$0xc]
        %v6348 = vld [vmem:[%s912 + $0x8] sm:$0xc]
        %v6349 = vld [vmem:[%s912 + $0x10] sm:$0xc]
        %v6350 = vld [vmem:[%s912 + $0x18] sm:$0xc]
        %v6351 = vunpack.c.l.bf16 %v6347
        %v6352 = vunpack.c.l.bf16 %v6348
        %v6353 = vunpack.c.l.bf16 %v6349
        %v6354 = vunpack.c.l.bf16 %v6350
        %v6356 = vrot.slane %v5485, 4
        %v6358 = vmul.f32 %v6351, %v6356
        %v6359 = vmul.f32 %v6108, %v6356
        %v6360 = vmul.f32 %v6352, %v6356
        %v6361 = vmul.f32 %v6109, %v6356
        %v6362 = vmul.f32 %v6353, %v6356
        %v6363 = vmul.f32 %v6110, %v6356
        %v6364 = vmul.f32 %v6354, %v6356
        %v6365 = vmul.f32 %v6111, %v6356
        %v6374 = vrot.slane %v6358, 4
        %v6375 = vrot.slane %v6359, 4
        %v6376 = vsel %vm2159, %v6374, %v6375
        %v6377 = vrot.slane %v6360, 4
        %v6378 = vrot.slane %v6361, 4
        %v6379 = vsel %vm2159, %v6377, %v6378
        %v6380 = vrot.slane %v6362, 4
        %v6381 = vrot.slane %v6363, 4
        %v6382 = vsel %vm2159, %v6380, %v6381
        %v6383 = vrot.slane %v6364, 4
        %v6384 = vrot.slane %v6365, 4
        %v6385 = vsel %vm2159, %v6383, %v6384
        %v6390 = vadd.f32 %v6343, %v6376
        %v6391 = vadd.f32 %v6344, %v6379
        %v6392 = vadd.f32 %v6345, %v6382
        %v6393 = vadd.f32 %v6346, %v6385
        %v6395 = vrot.slane %v5486, 4
        %6396 = vrot.lane.b32.xlu0 %v6395, 1
        %v6397 = vpop.permute.xlu0 %6396
        %v6399 = vmul.f32 %v6351, %v6397
        %v6400 = vmul.f32 %v6108, %v6397
        %v6401 = vmul.f32 %v6352, %v6397
        %v6402 = vmul.f32 %v6109, %v6397
        %v6403 = vmul.f32 %v6353, %v6397
        %v6404 = vmul.f32 %v6110, %v6397
        %v6405 = vmul.f32 %v6354, %v6397
        %v6406 = vmul.f32 %v6111, %v6397
        %v6415 = vrot.slane %v6399, 4
        %v6416 = vrot.slane %v6400, 4
        %v6417 = vsel %vm2159, %v6415, %v6416
        %v6418 = vrot.slane %v6401, 4
        %v6419 = vrot.slane %v6402, 4
        %v6420 = vsel %vm2159, %v6418, %v6419
        %v6421 = vrot.slane %v6403, 4
        %v6422 = vrot.slane %v6404, 4
        %v6423 = vsel %vm2159, %v6421, %v6422
        %v6424 = vrot.slane %v6405, 4
        %v6425 = vrot.slane %v6406, 4
        %v6426 = vsel %vm2159, %v6424, %v6425
        %6427 = vrot.lane.b32.xlu0 %v6417, 127
        %v6428 = vpop.permute.xlu0 %6427
        %6429 = vrot.lane.b32.xlu0 %v6420, 127
        %v6430 = vpop.permute.xlu0 %6429
        %6431 = vrot.lane.b32.xlu0 %v6423, 127
        %v6432 = vpop.permute.xlu0 %6431
        %6433 = vrot.lane.b32.xlu0 %v6426, 127
        %v6434 = vpop.permute.xlu0 %6433
        %v6439 = vadd.f32 %v6390, %v6428
        %v6440 = vadd.f32 %v6391, %v6430
        %v6441 = vadd.f32 %v6392, %v6432
        %v6442 = vadd.f32 %v6393, %v6434
        %v6444 = vrot.slane %v5487, 4
        %6445 = vrot.lane.b32.xlu0 %v6444, 2
        %v6446 = vpop.permute.xlu0 %6445
        %v6448 = vmul.f32 %v6351, %v6446
        %v6449 = vmul.f32 %v6108, %v6446
        %v6450 = vmul.f32 %v6352, %v6446
        %v6451 = vmul.f32 %v6109, %v6446
        %v6452 = vmul.f32 %v6353, %v6446
        %v6453 = vmul.f32 %v6110, %v6446
        %v6454 = vmul.f32 %v6354, %v6446
        %v6455 = vmul.f32 %v6111, %v6446
        %v6464 = vrot.slane %v6448, 4
        %v6465 = vrot.slane %v6449, 4
        %v6466 = vsel %vm2159, %v6464, %v6465
        %v6467 = vrot.slane %v6450, 4
        %v6468 = vrot.slane %v6451, 4
        %v6469 = vsel %vm2159, %v6467, %v6468
        %v6470 = vrot.slane %v6452, 4
        %v6471 = vrot.slane %v6453, 4
        %v6472 = vsel %vm2159, %v6470, %v6471
        %v6473 = vrot.slane %v6454, 4
        %v6474 = vrot.slane %v6455, 4
        %v6475 = vsel %vm2159, %v6473, %v6474
        %6476 = vrot.lane.b32.xlu0 %v6466, 126
        %v6477 = vpop.permute.xlu0 %6476
        %6478 = vrot.lane.b32.xlu0 %v6469, 126
        %v6479 = vpop.permute.xlu0 %6478
        %6480 = vrot.lane.b32.xlu0 %v6472, 126
        %v6481 = vpop.permute.xlu0 %6480
        %6482 = vrot.lane.b32.xlu0 %v6475, 126
        %v6483 = vpop.permute.xlu0 %6482
        %v6488 = vadd.f32 %v6439, %v6477
        %v6489 = vadd.f32 %v6440, %v6479
        %v6490 = vadd.f32 %v6441, %v6481
        %v6491 = vadd.f32 %v6442, %v6483
        %v6493 = vrot.slane %v5488, 4
        %6494 = vrot.lane.b32.xlu0 %v6493, 3
        %v6495 = vpop.permute.xlu0 %6494
        %v6497 = vmul.f32 %v6351, %v6495
        %v6498 = vmul.f32 %v6108, %v6495
        %v6499 = vmul.f32 %v6352, %v6495
        %v6500 = vmul.f32 %v6109, %v6495
        %v6501 = vmul.f32 %v6353, %v6495
        %v6502 = vmul.f32 %v6110, %v6495
        %v6503 = vmul.f32 %v6354, %v6495
        %v6504 = vmul.f32 %v6111, %v6495
        %v6513 = vrot.slane %v6497, 4
        %v6514 = vrot.slane %v6498, 4
        %v6515 = vsel %vm2159, %v6513, %v6514
        %v6516 = vrot.slane %v6499, 4
        %v6517 = vrot.slane %v6500, 4
        %v6518 = vsel %vm2159, %v6516, %v6517
        %v6519 = vrot.slane %v6501, 4
        %v6520 = vrot.slane %v6502, 4
        %v6521 = vsel %vm2159, %v6519, %v6520
        %v6522 = vrot.slane %v6503, 4
        %v6523 = vrot.slane %v6504, 4
        %v6524 = vsel %vm2159, %v6522, %v6523
        %6525 = vrot.lane.b32.xlu0 %v6515, 125
        %v6526 = vpop.permute.xlu0 %6525
        %6527 = vrot.lane.b32.xlu0 %v6518, 125
        %v6528 = vpop.permute.xlu0 %6527
        %6529 = vrot.lane.b32.xlu0 %v6521, 125
        %v6530 = vpop.permute.xlu0 %6529
        %6531 = vrot.lane.b32.xlu0 %v6524, 125
        %v6532 = vpop.permute.xlu0 %6531
        %v6537 = vadd.f32 %v6488, %v6526
        %v6538 = vadd.f32 %v6489, %v6528
        %v6539 = vadd.f32 %v6490, %v6530
        %v6540 = vadd.f32 %v6491, %v6532
        %v6542 = vrot.slane %v5489, 4
        %6543 = vrot.lane.b32.xlu0 %v6542, 4
        %v6544 = vpop.permute.xlu0 %6543
        %v6546 = vmul.f32 %v6351, %v6544
        %v6547 = vmul.f32 %v6108, %v6544
        %v6548 = vmul.f32 %v6352, %v6544
        %v6549 = vmul.f32 %v6109, %v6544
        %v6550 = vmul.f32 %v6353, %v6544
        %v6551 = vmul.f32 %v6110, %v6544
        %v6552 = vmul.f32 %v6354, %v6544
        %v6553 = vmul.f32 %v6111, %v6544
        %v6562 = vrot.slane %v6546, 4
        %v6563 = vrot.slane %v6547, 4
        %v6564 = vsel %vm2159, %v6562, %v6563
        %v6565 = vrot.slane %v6548, 4
        %v6566 = vrot.slane %v6549, 4
        %v6567 = vsel %vm2159, %v6565, %v6566
        %v6568 = vrot.slane %v6550, 4
        %v6569 = vrot.slane %v6551, 4
        %v6570 = vsel %vm2159, %v6568, %v6569
        %v6571 = vrot.slane %v6552, 4
        %v6572 = vrot.slane %v6553, 4
        %v6573 = vsel %vm2159, %v6571, %v6572
        %6574 = vrot.lane.b32.xlu0 %v6564, 124
        %v6575 = vpop.permute.xlu0 %6574
        %6576 = vrot.lane.b32.xlu0 %v6567, 124
        %v6577 = vpop.permute.xlu0 %6576
        %6578 = vrot.lane.b32.xlu0 %v6570, 124
        %v6579 = vpop.permute.xlu0 %6578
        %6580 = vrot.lane.b32.xlu0 %v6573, 124
        %v6581 = vpop.permute.xlu0 %6580
        %v6586 = vadd.f32 %v6537, %v6575
        %v6587 = vadd.f32 %v6538, %v6577
        %v6588 = vadd.f32 %v6539, %v6579
        %v6589 = vadd.f32 %v6540, %v6581
        %s6590 = scalar_lea.vmem %s926, 48
        %v6591 = vld [vmem:[%s6590] sm:$0xf]
        %v6592 = vld [vmem:[%s6590 + $0x4] sm:$0xf]
        %v6593 = vld [vmem:[%s6590 + $0x8] sm:$0xf]
        %v6594 = vld [vmem:[%s6590 + $0xc] sm:$0xf]
        %v6595 = vunpack.c.l.bf16 %v6591
        %v6596 = vunpack.c.l.bf16 %v6592
        %v6597 = vunpack.c.l.bf16 %v6593
        %v6598 = vunpack.c.l.bf16 %v6594
        %v6599 = vmul.f32 %v945, %v6595
        %v6600 = vmul.f32 %v945, %v6596
        %v6601 = vmul.f32 %v945, %v6597
        %v6602 = vmul.f32 %v945, %v6598
        %v6603 = vmul.f32 %v946, %v6586
        %v6604 = vmul.f32 %v946, %v6587
        %v6605 = vmul.f32 %v946, %v6588
        %v6606 = vmul.f32 %v946, %v6589
        %v6607 = vadd.f32 %v6599, %v6603
        %v6608 = vadd.f32 %v6600, %v6604
        %v6609 = vadd.f32 %v6601, %v6605
        %v6610 = vadd.f32 %v6602, %v6606
        %v6611 = vpack.c.bf16 %v6607, %v6607
        %v6612 = vpack.c.bf16 %v6608, %v6608
        %v6613 = vpack.c.bf16 %v6609, %v6609
        %v6614 = vpack.c.bf16 %v6610, %v6610
        %s6615 = scalar_lea.vmem %s936, 48
        %6616 = vst.msk [vmem:[%s6615] sm:$0xf] %vm2400, %v6611
        %6617 = vst.msk [vmem:[%s6615 + $0x4] sm:$0xf] %vm2400, %v6612
        %6618 = vst.msk [vmem:[%s6615 + $0x8] sm:$0xf] %vm2400, %v6613
        %6619 = vst.msk [vmem:[%s6615 + $0xc] sm:$0xf] %vm2400, %v6614
        %s6620 = smul.u32 4, %s21
        %p6621 = scmp.lt.s32.totalorder %s20, 1
        %s6622 = scalar_select %p6621, %s20, 1
        %p6623 = scmp.lt.s32.totalorder %s6620, 3
        %s6624 = scalar_select %p6623, %s6620, 3
        %s6625 = smul.addr %s6622, 16
        %s6626 = sadd.s32 %s6624, %s6625
        %s6627 = smul.addr %s6626, 4
        %s6628 = scalar_lea.vmem %s5, %s6627
        // Predicated region
        $region123: #{fade_forward.7} parent=113 // pred_check
          %p6629 = pneg %p182
        $region124: #{fade_forward.7} parent=113 // pred_check_branch
          %6631 = sbr.rel (%p6629) target = $region126
        $region125: #{fade_forward.7} parent=113 // pred_region
          %s6632 = smul.u32 4, %s21
        $region126: #{fade_forward.7} parent=113 // pred_fallthru
          _
      $region114: #{fade_forward.7} parent=5 // pred_fallthru
        _
      %p6633 = scmp.le.s32.totalorder 2, %s11
      // Predicated region
      $region127: #{fade_forward.7} parent=5 // pred_check
        %p6634 = pneg %p6633
      $region128: #{fade_forward.7} parent=5 // pred_check_branch
        %6636 = sbr.rel (%p6634) target = $region130
      $region129: #{fade_forward.7} parent=5 // pred_region
        %s6637 = ssub.s32 %s11, 2
        // Predicated region
        $region131: #{fade_forward.7} parent=129 // pred_check
          %p6638 = pneg %p188
        $region132: #{fade_forward.7} parent=129 // pred_check_branch
          %6640 = sbr.rel (%p6638) target = $region134
        $region133: #{fade_forward.7} parent=129 // pred_region
          %s6641 = smul.u32 4, %s23
          %p6642 = scmp.lt.s32.totalorder %s22, 1
          %s6643 = scalar_select %p6642, %s22, 1
          %p6644 = scmp.lt.s32.totalorder %s6641, 3
          %s6645 = scalar_select %p6644, %s6641, 3
          %s6646 = smul.addr %s6643, 16
          %s6647 = sadd.s32 %s6645, %s6646
          %s6648 = smul.addr %s6647, 4
          %s6649 = scalar_lea.vmem %s5, %s6648
        $region134: #{fade_forward.7} parent=129 // pred_fallthru
          _
      $region130: #{fade_forward.7} parent=5 // pred_fallthru
        _
    $region6: #{fade_forward.7} parent=1 // loop_footer
      %s15 = sadd.s32 1, %s11
    $region7: #{fade_forward.7} parent=1 // loop_footer_branch
      %10 = sbr.rel target = $region3
    $region8: #{fade_forward.7} parent=1 // loop_exit
      _

</llo_original>
